<compile_context>
chip_gen: v7x
topology: tpu7x:2x2x1
jax: 0.10.0
libtpu: 0.0.40
codegen_flags: <defaults>
</compile_context>

<pallas_src>
import numpy as np
import jax
import jax.numpy as jnp
from jax import lax
from jax.experimental import pallas as pl
from jax.experimental.pallas import tpu as pltpu

N_FEAT = 16
K1, P1 = 25, 12      # conv1 kernel (1, 25), padding (0, 12)
K2, P2 = 16, 8       # separable depthwise kernel (1, 16), padding (0, 8)


def _round_up(n, m):
    return ((n + m - 1) // m) * m


def _elu(x):
    # ELU(alpha=1): x if x > 0 else exp(x) - 1  (safe exp on the negative branch)
    return jnp.where(x > 0, x, jnp.exp(jnp.minimum(x, 0.0)) - 1.0)


def _make_kernel(T, rblk):
    Wx = T + 2 * P1          # conv1 padded input width (input block lane extent)
    WH = T + 2 * P2          # padded stage-1 buffer width (8-lane halo each side)
    To = T + 1               # separable-depthwise output width
    inv_To = 1.0 / To

    def kernel(x_ref, w1_s, ws_s, pw_s, aff_s, out_ref, h_ref):
        # x_ref : [rblk, Wx] VMEM     (input rows, conv1 zero padding included)
        # w1_s  : [16, 25]  SMEM      conv1 weights, bn1 scale folded in
        # ws_s  : [16, 16]  SMEM      separable depthwise weights
        # pw_s  : [16, 16]  SMEM      pointwise weights, bn3 scale folded in
        # aff_s : [16, 4]   SMEM      (bn1 shift, dw*bn2 scale, bn2 shift, bn3 shift)
        # out_ref: [16, rblk] VMEM    pooled features, lane-dense
        # h_ref : [16, rblk, WH] VMEM per-feature padded stage-1 buffer / y2 store

        # ---- stage A (per feature f): conv1 + bn1/ELU + dw(1x1)*bn2/ELU +
        #      separable depthwise (1x16).  fori_loop keeps the trace small and
        #      the live accumulator is only [rblk, T]-sized.
        def stage_a(f, carry):
            # conv1 (1x25, pad 12): accumulator seeded from the k=0 tap.
            acc = x_ref[:, 0:T] * w1_s[f, 0]
            for k in range(1, K1):
                acc = acc + x_ref[:, k:k + T] * w1_s[f, k]

            h = _elu(acc + aff_s[f, 0])                       # bn1 shift + ELU
            h = _elu(h * aff_s[f, 1] + aff_s[f, 2])           # dw(1x1)*bn2 + ELU

            # Padded buffer for the separable depthwise.  Halos are only P2=8
            # lanes each side and rewritten every step (megacore-safe).
            h_ref[f, :, 0:P2] = jnp.zeros((rblk, P2), jnp.float32)
            h_ref[f, :, P2:P2 + T] = h
            h_ref[f, :, P2 + T:WH] = jnp.zeros((rblk, WH - P2 - T), jnp.float32)

            # separable depthwise (1x16, pad 8) -> width To = T + 1
            y2 = h_ref[f, :, 0:To] * ws_s[f, 0]
            for k in range(1, K2):
                y2 = y2 + h_ref[f, :, k:k + To] * ws_s[f, k]

            # Reuse h_ref[f] as storage for y2 (all reads of h_ref[f] are done),
            # halving the resident scratch needed for stage B.
            h_ref[f, :, 0:To] = y2
            return carry

        lax.fori_loop(0, N_FEAT, stage_a, 0)

        # ---- stage B (per output feature g): pointwise 16->16 (bn3 scale
        #      folded into pw), bn3 shift + ELU, AdaptiveAvgPool over time.
        #      Result rows are written directly into the lane-dense [16, rblk]
        #      output block (no final transpose).
        for g in range(N_FEAT):
            z = h_ref[0, :, 0:To] * pw_s[g, 0]
            for f in range(1, N_FEAT):
                z = z + h_ref[f, :, 0:To] * pw_s[g, f]
            z = _elu(z + aff_s[g, 3])
            out_ref[g, :] = jnp.sum(z, axis=-1) * inv_To

    return kernel


def eegnet2d_hybrid_forward(x, params):
    """x: [B, 1, C, T] float32 (NCHW, like the PyTorch module). Returns [B, C, 16]."""
    B, one, C, T = x.shape
    assert one == 1
    R = B * C

    # Row blocking: 128 rows per grid step for large problems (multi-step
    # "parallel" grid -> megacore shardable), otherwise just round R up to the
    # sublane multiple so tiny shapes don't compute garbage rows.
    rblk = 128 if R >= 128 else max(8, _round_up(R, 8))
    r_pad = _round_up(R, rblk)
    grid_r = r_pad // rblk
    Wx = T + 2 * P1
    WH = T + 2 * P2

    # ---- fold eval-mode BatchNorm into weights / per-feature affines ---------
    bs, bb = params["bn_scale"], params["bn_shift"]
    w1f = (params["w1"] * bs[0][:, None]).astype(jnp.float32)             # [16, 25]
    pwf = (bs[2][:, None] * params["pw"]).astype(jnp.float32)             # [16, 16]
    aff = jnp.stack([bb[0], params["dw"] * bs[1], bb[1], bb[2]],
                    axis=1).astype(jnp.float32)                           # [16, 4]

    # ---- pad input: rows to r_pad, time by conv1's 12/12 zero padding --------
    x2 = x.reshape(R, T).astype(jnp.float32)
    xp = jnp.pad(x2, ((0, r_pad - R), (P1, P1)))                          # [r_pad, Wx]

    kernel = _make_kernel(T, rblk)
    smem = lambda: pl.BlockSpec(memory_space=pltpu.MemorySpace.SMEM)

    out = pl.pallas_call(
        kernel,
        grid=(grid_r,),
        in_specs=[
            pl.BlockSpec((rblk, Wx), lambda g: (g, 0)),    # input rows block
            smem(),                                        # conv1 weight (bn1 folded)
            smem(),                                        # separable depthwise weight
            smem(),                                        # pointwise weight (bn3 folded)
            smem(),                                        # per-feature affine params
        ],
        out_specs=pl.BlockSpec((N_FEAT, rblk), lambda g: (0, g)),
        out_shape=jax.ShapeDtypeStruct((N_FEAT, r_pad), jnp.float32),
        scratch_shapes=[
            pltpu.VMEM((N_FEAT, rblk, WH), jnp.float32),   # padded stage-1 / y2 buffer
        ],
        compiler_params=pltpu.CompilerParams(
            dimension_semantics=("parallel",),
            vmem_limit_bytes=48 * 1024 * 1024,             # v7x-safe headroom
        ),
    )(xp, w1f, params["ws"].astype(jnp.float32), pwf, aff)

    # [16, r_pad] -> [R, 16] -> [B, C, 16]   (== squeeze(-1).permute(0, 2, 1))
    return jnp.transpose(out[:, :R], (1, 0)).reshape(B, C, N_FEAT)


def init_params(key):
    """Deterministic synthetic parameters with the same shapes as the PyTorch module."""
    ks = jax.random.split(key, 10)
    w1 = jax.random.normal(ks[0], (N_FEAT, K1), jnp.float32) * 0.2      # conv1 (16,1,1,25)
    dw = jax.random.normal(ks[1], (N_FEAT,), jnp.float32) * 0.3 + 1.0   # depthwise 1x1
    ws = jax.random.normal(ks[2], (N_FEAT, K2), jnp.float32) * 0.2      # separable depthwise
    pw = jax.random.normal(ks[3], (N_FEAT, N_FEAT), jnp.float32) * 0.2  # pointwise (16,16,1,1)

    eps = 1e-5
    scales, shifts = [], []
    for i in range(3):
        gamma = jax.random.uniform(ks[4 + i], (N_FEAT,), jnp.float32, 0.5, 1.5)
        beta = jax.random.normal(ks[7 + i], (N_FEAT,), jnp.float32) * 0.1
        rmean = jax.random.normal(jax.random.fold_in(ks[4 + i], 7), (N_FEAT,), jnp.float32) * 0.1
        rvar = jax.random.uniform(jax.random.fold_in(ks[7 + i], 11), (N_FEAT,), jnp.float32, 0.5, 1.5)
        s = gamma / jnp.sqrt(rvar + eps)
        scales.append(s)
        shifts.append(beta - rmean * s)
    return dict(w1=w1, dw=dw, ws=ws, pw=pw,
                bn_scale=jnp.stack(scales), bn_shift=jnp.stack(shifts))


def reference_forward(x, params):
    """Pure-JAX (XLA) reference of the same forward, for verification."""
    B, _, C, T = x.shape
    R = B * C
    elu = lambda v: jnp.where(v > 0, v, jnp.exp(jnp.minimum(v, 0.0)) - 1.0)
    bs, bb = params["bn_scale"], params["bn_shift"]
    hp = lax.Precision.HIGHEST

    x2 = x.reshape(R, 1, T).astype(jnp.float32)
    dn1 = lax.conv_dimension_numbers(x2.shape, (N_FEAT, 1, K1), ("NCH", "OIH", "NCH"))
    h = lax.conv_general_dilated(x2, params["w1"][:, None, :], (1,), [(P1, P1)],
                                 dimension_numbers=dn1, precision=hp)        # [R,16,T]
    h = elu(h * bs[0][None, :, None] + bb[0][None, :, None])
    h = h * params["dw"][None, :, None]
    h = elu(h * bs[1][None, :, None] + bb[1][None, :, None])

    dn2 = lax.conv_dimension_numbers(h.shape, (N_FEAT, 1, K2), ("NCH", "OIH", "NCH"))
    h2 = lax.conv_general_dilated(h, params["ws"][:, None, :], (1,), [(P2, P2)],
                                  dimension_numbers=dn2, feature_group_count=N_FEAT,
                                  precision=hp)                              # [R,16,T+1]
    z = jnp.einsum("rft,gf->rgt", h2, params["pw"], precision=hp)
    z = elu(z * bs[2][None, :, None] + bb[2][None, :, None])
    pooled = jnp.mean(z, axis=-1)                                            # [R,16]
    return pooled.reshape(B, C, N_FEAT)


if __name__ == "__main__":
    key = jax.random.PRNGKey(0)
    kx, kp, kx2 = jax.random.split(key, 3)
    params = init_params(kp)

    # Small test: batch=2, n_channels=8, n_samples=64  (R=16 -> one 16-row block).
    B, C, T = 2, 8, 64
    x = jax.random.normal(kx, (B, 1, C, T), jnp.float32)
    out = jax.block_until_ready(eegnet2d_hybrid_forward(x, params))
    ref = reference_forward(x, params)
    assert out.shape == (B, C, N_FEAT)
    np.testing.assert_allclose(np.asarray(out), np.asarray(ref), rtol=2e-3, atol=2e-3)

    # Larger test: exercises rblk=128, a multi-step grid and padded garbage rows.
    B2, C2, T2 = 8, 19, 200
    x2 = jax.random.normal(kx2, (B2, 1, C2, T2), jnp.float32)
    out2 = jax.block_until_ready(eegnet2d_hybrid_forward(x2, params))
    ref2 = reference_forward(x2, params)
    assert out2.shape == (B2, C2, N_FEAT)
    np.testing.assert_allclose(np.asarray(out2), np.asarray(ref2), rtol=2e-3, atol=2e-3)

    print("KERNEL_OK")
</pallas_src>

<mosaic_0001>
module attributes {stable_mosaic.version = 11 : i64} {
  func.func @kernel(%arg0: i32, %arg1: memref<16x88xf32, #tpu.memory_space<vmem>>, %arg2: memref<16x25xf32, #tpu.memory_space<smem>>, %arg3: memref<16x16xf32, #tpu.memory_space<smem>>, %arg4: memref<16x16xf32, #tpu.memory_space<smem>>, %arg5: memref<16x4xf32, #tpu.memory_space<smem>>, %arg6: memref<16x16xf32, #tpu.memory_space<vmem>>, %arg7: memref<16x16x80xf32, #tpu.memory_space<vmem>>) attributes {dimension_semantics = [#tpu.dimension_semantics<parallel>], iteration_bounds = array<i64: 1>, scalar_prefetch = 0 : i64, scratch_operands = 1 : i64, tpu.core_type = #tpu.core_type<tc>, window_params = [{transform_indices = @transform_0, window_bounds = array<i64: 16, 88>}, {transform_indices = @transform_1, window_bounds = array<i64: 16, 25>}, {transform_indices = @transform_2, window_bounds = array<i64: 16, 16>}, {transform_indices = @transform_3, window_bounds = array<i64: 16, 16>}, {transform_indices = @transform_4, window_bounds = array<i64: 16, 4>}, {transform_indices = @transform_5, window_bounds = array<i64: 16, 16>}]} {
    %c0_i32 = arith.constant 0 : i32
    %c16_i32 = arith.constant 16 : i32
    %0 = arith.addi %c0_i32, %c16_i32 : i32
    %c1_i32 = arith.constant 1 : i32
    scf.for %arg8 = %c0_i32 to %0 step %c1_i32  : i32 {
      %c0_1408 = arith.constant 0 : index
      %c0_1409 = arith.constant 0 : index
      %1793 = vector.load %arg1[%c0_1408, %c0_1409] : memref<16x88xf32, #tpu.memory_space<vmem>>, vector<16x64xf32>
      %1794 = arith.index_cast %arg8 : i32 to index
      %c0_1410 = arith.constant 0 : index
      %1795 = memref.load %arg2[%1794, %c0_1410] : memref<16x25xf32, #tpu.memory_space<smem>>
      %1796 = vector.broadcast %1795 : f32 to vector<16x64xf32>
      %1797 = arith.mulf %1793, %1796 : vector<16x64xf32>
      %c0_1411 = arith.constant 0 : index
      %c1_1412 = arith.constant 1 : index
      %1798 = vector.load %arg1[%c0_1411, %c1_1412] : memref<16x88xf32, #tpu.memory_space<vmem>>, vector<16x64xf32>
      %1799 = arith.index_cast %arg8 : i32 to index
      %c1_1413 = arith.constant 1 : index
      %1800 = memref.load %arg2[%1799, %c1_1413] : memref<16x25xf32, #tpu.memory_space<smem>>
      %1801 = vector.broadcast %1800 : f32 to vector<16x64xf32>
      %1802 = arith.mulf %1798, %1801 : vector<16x64xf32>
      %1803 = arith.addf %1797, %1802 : vector<16x64xf32>
      %c0_1414 = arith.constant 0 : index
      %c2_1415 = arith.constant 2 : index
      %1804 = vector.load %arg1[%c0_1414, %c2_1415] : memref<16x88xf32, #tpu.memory_space<vmem>>, vector<16x64xf32>
      %1805 = arith.index_cast %arg8 : i32 to index
      %c2_1416 = arith.constant 2 : index
      %1806 = memref.load %arg2[%1805, %c2_1416] : memref<16x25xf32, #tpu.memory_space<smem>>
      %1807 = vector.broadcast %1806 : f32 to vector<16x64xf32>
      %1808 = arith.mulf %1804, %1807 : vector<16x64xf32>
      %1809 = arith.addf %1803, %1808 : vector<16x64xf32>
      %c0_1417 = arith.constant 0 : index
      %c3_1418 = arith.constant 3 : index
      %1810 = vector.load %arg1[%c0_1417, %c3_1418] : memref<16x88xf32, #tpu.memory_space<vmem>>, vector<16x64xf32>
      %1811 = arith.index_cast %arg8 : i32 to index
      %c3_1419 = arith.constant 3 : index
      %1812 = memref.load %arg2[%1811, %c3_1419] : memref<16x25xf32, #tpu.memory_space<smem>>
      %1813 = vector.broadcast %1812 : f32 to vector<16x64xf32>
      %1814 = arith.mulf %1810, %1813 : vector<16x64xf32>
      %1815 = arith.addf %1809, %1814 : vector<16x64xf32>
      %c0_1420 = arith.constant 0 : index
      %c4_1421 = arith.constant 4 : index
      %1816 = vector.load %arg1[%c0_1420, %c4_1421] : memref<16x88xf32, #tpu.memory_space<vmem>>, vector<16x64xf32>
      %1817 = arith.index_cast %arg8 : i32 to index
      %c4_1422 = arith.constant 4 : index
      %1818 = memref.load %arg2[%1817, %c4_1422] : memref<16x25xf32, #tpu.memory_space<smem>>
      %1819 = vector.broadcast %1818 : f32 to vector<16x64xf32>
      %1820 = arith.mulf %1816, %1819 : vector<16x64xf32>
      %1821 = arith.addf %1815, %1820 : vector<16x64xf32>
      %c0_1423 = arith.constant 0 : index
      %c5_1424 = arith.constant 5 : index
      %1822 = vector.load %arg1[%c0_1423, %c5_1424] : memref<16x88xf32, #tpu.memory_space<vmem>>, vector<16x64xf32>
      %1823 = arith.index_cast %arg8 : i32 to index
      %c5_1425 = arith.constant 5 : index
      %1824 = memref.load %arg2[%1823, %c5_1425] : memref<16x25xf32, #tpu.memory_space<smem>>
      %1825 = vector.broadcast %1824 : f32 to vector<16x64xf32>
      %1826 = arith.mulf %1822, %1825 : vector<16x64xf32>
      %1827 = arith.addf %1821, %1826 : vector<16x64xf32>
      %c0_1426 = arith.constant 0 : index
      %c6_1427 = arith.constant 6 : index
      %1828 = vector.load %arg1[%c0_1426, %c6_1427] : memref<16x88xf32, #tpu.memory_space<vmem>>, vector<16x64xf32>
      %1829 = arith.index_cast %arg8 : i32 to index
      %c6_1428 = arith.constant 6 : index
      %1830 = memref.load %arg2[%1829, %c6_1428] : memref<16x25xf32, #tpu.memory_space<smem>>
      %1831 = vector.broadcast %1830 : f32 to vector<16x64xf32>
      %1832 = arith.mulf %1828, %1831 : vector<16x64xf32>
      %1833 = arith.addf %1827, %1832 : vector<16x64xf32>
      %c0_1429 = arith.constant 0 : index
      %c7_1430 = arith.constant 7 : index
      %1834 = vector.load %arg1[%c0_1429, %c7_1430] : memref<16x88xf32, #tpu.memory_space<vmem>>, vector<16x64xf32>
      %1835 = arith.index_cast %arg8 : i32 to index
      %c7_1431 = arith.constant 7 : index
      %1836 = memref.load %arg2[%1835, %c7_1431] : memref<16x25xf32, #tpu.memory_space<smem>>
      %1837 = vector.broadcast %1836 : f32 to vector<16x64xf32>
      %1838 = arith.mulf %1834, %1837 : vector<16x64xf32>
      %1839 = arith.addf %1833, %1838 : vector<16x64xf32>
      %c0_1432 = arith.constant 0 : index
      %c8_1433 = arith.constant 8 : index
      %1840 = vector.load %arg1[%c0_1432, %c8_1433] : memref<16x88xf32, #tpu.memory_space<vmem>>, vector<16x64xf32>
      %1841 = arith.index_cast %arg8 : i32 to index
      %c8_1434 = arith.constant 8 : index
      %1842 = memref.load %arg2[%1841, %c8_1434] : memref<16x25xf32, #tpu.memory_space<smem>>
      %1843 = vector.broadcast %1842 : f32 to vector<16x64xf32>
      %1844 = arith.mulf %1840, %1843 : vector<16x64xf32>
      %1845 = arith.addf %1839, %1844 : vector<16x64xf32>
      %c0_1435 = arith.constant 0 : index
      %c9_1436 = arith.constant 9 : index
      %1846 = vector.load %arg1[%c0_1435, %c9_1436] : memref<16x88xf32, #tpu.memory_space<vmem>>, vector<16x64xf32>
      %1847 = arith.index_cast %arg8 : i32 to index
      %c9_1437 = arith.constant 9 : index
      %1848 = memref.load %arg2[%1847, %c9_1437] : memref<16x25xf32, #tpu.memory_space<smem>>
      %1849 = vector.broadcast %1848 : f32 to vector<16x64xf32>
      %1850 = arith.mulf %1846, %1849 : vector<16x64xf32>
      %1851 = arith.addf %1845, %1850 : vector<16x64xf32>
      %c0_1438 = arith.constant 0 : index
      %c10_1439 = arith.constant 10 : index
      %1852 = vector.load %arg1[%c0_1438, %c10_1439] : memref<16x88xf32, #tpu.memory_space<vmem>>, vector<16x64xf32>
      %1853 = arith.index_cast %arg8 : i32 to index
      %c10_1440 = arith.constant 10 : index
      %1854 = memref.load %arg2[%1853, %c10_1440] : memref<16x25xf32, #tpu.memory_space<smem>>
      %1855 = vector.broadcast %1854 : f32 to vector<16x64xf32>
      %1856 = arith.mulf %1852, %1855 : vector<16x64xf32>
      %1857 = arith.addf %1851, %1856 : vector<16x64xf32>
      %c0_1441 = arith.constant 0 : index
      %c11_1442 = arith.constant 11 : index
      %1858 = vector.load %arg1[%c0_1441, %c11_1442] : memref<16x88xf32, #tpu.memory_space<vmem>>, vector<16x64xf32>
      %1859 = arith.index_cast %arg8 : i32 to index
      %c11_1443 = arith.constant 11 : index
      %1860 = memref.load %arg2[%1859, %c11_1443] : memref<16x25xf32, #tpu.memory_space<smem>>
      %1861 = vector.broadcast %1860 : f32 to vector<16x64xf32>
      %1862 = arith.mulf %1858, %1861 : vector<16x64xf32>
      %1863 = arith.addf %1857, %1862 : vector<16x64xf32>
      %c0_1444 = arith.constant 0 : index
      %c12_1445 = arith.constant 12 : index
      %1864 = vector.load %arg1[%c0_1444, %c12_1445] : memref<16x88xf32, #tpu.memory_space<vmem>>, vector<16x64xf32>
      %1865 = arith.index_cast %arg8 : i32 to index
      %c12_1446 = arith.constant 12 : index
      %1866 = memref.load %arg2[%1865, %c12_1446] : memref<16x25xf32, #tpu.memory_space<smem>>
      %1867 = vector.broadcast %1866 : f32 to vector<16x64xf32>
      %1868 = arith.mulf %1864, %1867 : vector<16x64xf32>
      %1869 = arith.addf %1863, %1868 : vector<16x64xf32>
      %c0_1447 = arith.constant 0 : index
      %c13_1448 = arith.constant 13 : index
      %1870 = vector.load %arg1[%c0_1447, %c13_1448] : memref<16x88xf32, #tpu.memory_space<vmem>>, vector<16x64xf32>
      %1871 = arith.index_cast %arg8 : i32 to index
      %c13_1449 = arith.constant 13 : index
      %1872 = memref.load %arg2[%1871, %c13_1449] : memref<16x25xf32, #tpu.memory_space<smem>>
      %1873 = vector.broadcast %1872 : f32 to vector<16x64xf32>
      %1874 = arith.mulf %1870, %1873 : vector<16x64xf32>
      %1875 = arith.addf %1869, %1874 : vector<16x64xf32>
      %c0_1450 = arith.constant 0 : index
      %c14_1451 = arith.constant 14 : index
      %1876 = vector.load %arg1[%c0_1450, %c14_1451] : memref<16x88xf32, #tpu.memory_space<vmem>>, vector<16x64xf32>
      %1877 = arith.index_cast %arg8 : i32 to index
      %c14_1452 = arith.constant 14 : index
      %1878 = memref.load %arg2[%1877, %c14_1452] : memref<16x25xf32, #tpu.memory_space<smem>>
      %1879 = vector.broadcast %1878 : f32 to vector<16x64xf32>
      %1880 = arith.mulf %1876, %1879 : vector<16x64xf32>
      %1881 = arith.addf %1875, %1880 : vector<16x64xf32>
      %c0_1453 = arith.constant 0 : index
      %c15_1454 = arith.constant 15 : index
      %1882 = vector.load %arg1[%c0_1453, %c15_1454] : memref<16x88xf32, #tpu.memory_space<vmem>>, vector<16x64xf32>
      %1883 = arith.index_cast %arg8 : i32 to index
      %c15_1455 = arith.constant 15 : index
      %1884 = memref.load %arg2[%1883, %c15_1455] : memref<16x25xf32, #tpu.memory_space<smem>>
      %1885 = vector.broadcast %1884 : f32 to vector<16x64xf32>
      %1886 = arith.mulf %1882, %1885 : vector<16x64xf32>
      %1887 = arith.addf %1881, %1886 : vector<16x64xf32>
      %c0_1456 = arith.constant 0 : index
      %c16 = arith.constant 16 : index
      %1888 = vector.load %arg1[%c0_1456, %c16] : memref<16x88xf32, #tpu.memory_space<vmem>>, vector<16x64xf32>
      %1889 = arith.index_cast %arg8 : i32 to index
      %c16_1457 = arith.constant 16 : index
      %1890 = memref.load %arg2[%1889, %c16_1457] : memref<16x25xf32, #tpu.memory_space<smem>>
      %1891 = vector.broadcast %1890 : f32 to vector<16x64xf32>
      %1892 = arith.mulf %1888, %1891 : vector<16x64xf32>
      %1893 = arith.addf %1887, %1892 : vector<16x64xf32>
      %c0_1458 = arith.constant 0 : index
      %c17 = arith.constant 17 : index
      %1894 = vector.load %arg1[%c0_1458, %c17] : memref<16x88xf32, #tpu.memory_space<vmem>>, vector<16x64xf32>
      %1895 = arith.index_cast %arg8 : i32 to index
      %c17_1459 = arith.constant 17 : index
      %1896 = memref.load %arg2[%1895, %c17_1459] : memref<16x25xf32, #tpu.memory_space<smem>>
      %1897 = vector.broadcast %1896 : f32 to vector<16x64xf32>
      %1898 = arith.mulf %1894, %1897 : vector<16x64xf32>
      %1899 = arith.addf %1893, %1898 : vector<16x64xf32>
      %c0_1460 = arith.constant 0 : index
      %c18 = arith.constant 18 : index
      %1900 = vector.load %arg1[%c0_1460, %c18] : memref<16x88xf32, #tpu.memory_space<vmem>>, vector<16x64xf32>
      %1901 = arith.index_cast %arg8 : i32 to index
      %c18_1461 = arith.constant 18 : index
      %1902 = memref.load %arg2[%1901, %c18_1461] : memref<16x25xf32, #tpu.memory_space<smem>>
      %1903 = vector.broadcast %1902 : f32 to vector<16x64xf32>
      %1904 = arith.mulf %1900, %1903 : vector<16x64xf32>
      %1905 = arith.addf %1899, %1904 : vector<16x64xf32>
      %c0_1462 = arith.constant 0 : index
      %c19 = arith.constant 19 : index
      %1906 = vector.load %arg1[%c0_1462, %c19] : memref<16x88xf32, #tpu.memory_space<vmem>>, vector<16x64xf32>
      %1907 = arith.index_cast %arg8 : i32 to index
      %c19_1463 = arith.constant 19 : index
      %1908 = memref.load %arg2[%1907, %c19_1463] : memref<16x25xf32, #tpu.memory_space<smem>>
      %1909 = vector.broadcast %1908 : f32 to vector<16x64xf32>
      %1910 = arith.mulf %1906, %1909 : vector<16x64xf32>
      %1911 = arith.addf %1905, %1910 : vector<16x64xf32>
      %c0_1464 = arith.constant 0 : index
      %c20 = arith.constant 20 : index
      %1912 = vector.load %arg1[%c0_1464, %c20] : memref<16x88xf32, #tpu.memory_space<vmem>>, vector<16x64xf32>
      %1913 = arith.index_cast %arg8 : i32 to index
      %c20_1465 = arith.constant 20 : index
      %1914 = memref.load %arg2[%1913, %c20_1465] : memref<16x25xf32, #tpu.memory_space<smem>>
      %1915 = vector.broadcast %1914 : f32 to vector<16x64xf32>
      %1916 = arith.mulf %1912, %1915 : vector<16x64xf32>
      %1917 = arith.addf %1911, %1916 : vector<16x64xf32>
      %c0_1466 = arith.constant 0 : index
      %c21 = arith.constant 21 : index
      %1918 = vector.load %arg1[%c0_1466, %c21] : memref<16x88xf32, #tpu.memory_space<vmem>>, vector<16x64xf32>
      %1919 = arith.index_cast %arg8 : i32 to index
      %c21_1467 = arith.constant 21 : index
      %1920 = memref.load %arg2[%1919, %c21_1467] : memref<16x25xf32, #tpu.memory_space<smem>>
      %1921 = vector.broadcast %1920 : f32 to vector<16x64xf32>
      %1922 = arith.mulf %1918, %1921 : vector<16x64xf32>
      %1923 = arith.addf %1917, %1922 : vector<16x64xf32>
      %c0_1468 = arith.constant 0 : index
      %c22 = arith.constant 22 : index
      %1924 = vector.load %arg1[%c0_1468, %c22] : memref<16x88xf32, #tpu.memory_space<vmem>>, vector<16x64xf32>
      %1925 = arith.index_cast %arg8 : i32 to index
      %c22_1469 = arith.constant 22 : index
      %1926 = memref.load %arg2[%1925, %c22_1469] : memref<16x25xf32, #tpu.memory_space<smem>>
      %1927 = vector.broadcast %1926 : f32 to vector<16x64xf32>
      %1928 = arith.mulf %1924, %1927 : vector<16x64xf32>
      %1929 = arith.addf %1923, %1928 : vector<16x64xf32>
      %c0_1470 = arith.constant 0 : index
      %c23 = arith.constant 23 : index
      %1930 = vector.load %arg1[%c0_1470, %c23] : memref<16x88xf32, #tpu.memory_space<vmem>>, vector<16x64xf32>
      %1931 = arith.index_cast %arg8 : i32 to index
      %c23_1471 = arith.constant 23 : index
      %1932 = memref.load %arg2[%1931, %c23_1471] : memref<16x25xf32, #tpu.memory_space<smem>>
      %1933 = vector.broadcast %1932 : f32 to vector<16x64xf32>
      %1934 = arith.mulf %1930, %1933 : vector<16x64xf32>
      %1935 = arith.addf %1929, %1934 : vector<16x64xf32>
      %c0_1472 = arith.constant 0 : index
      %c24 = arith.constant 24 : index
      %1936 = vector.load %arg1[%c0_1472, %c24] : memref<16x88xf32, #tpu.memory_space<vmem>>, vector<16x64xf32>
      %1937 = arith.index_cast %arg8 : i32 to index
      %c24_1473 = arith.constant 24 : index
      %1938 = memref.load %arg2[%1937, %c24_1473] : memref<16x25xf32, #tpu.memory_space<smem>>
      %1939 = vector.broadcast %1938 : f32 to vector<16x64xf32>
      %1940 = arith.mulf %1936, %1939 : vector<16x64xf32>
      %1941 = arith.addf %1935, %1940 : vector<16x64xf32>
      %1942 = arith.index_cast %arg8 : i32 to index
      %c0_1474 = arith.constant 0 : index
      %1943 = memref.load %arg5[%1942, %c0_1474] : memref<16x4xf32, #tpu.memory_space<smem>>
      %1944 = vector.broadcast %1943 : f32 to vector<16x64xf32>
      %1945 = arith.addf %1941, %1944 : vector<16x64xf32>
      %cst_1475 = arith.constant 0.000000e+00 : f32
      %1946 = vector.broadcast %cst_1475 : f32 to vector<16x64xf32>
      %1947 = arith.cmpf ogt, %1945, %1946 : vector<16x64xf32>
      %cst_1476 = arith.constant 0.000000e+00 : f32
      %1948 = vector.broadcast %cst_1476 : f32 to vector<16x64xf32>
      %1949 = arith.minimumf %1945, %1948 : vector<16x64xf32>
      %1950 = math.exp %1949 : vector<16x64xf32>
      %cst_1477 = arith.constant 1.000000e+00 : f32
      %1951 = vector.broadcast %cst_1477 : f32 to vector<16x64xf32>
      %1952 = arith.subf %1950, %1951 : vector<16x64xf32>
      %1953 = arith.select %1947, %1945, %1952 : vector<16x64xi1>, vector<16x64xf32>
      %1954 = arith.index_cast %arg8 : i32 to index
      %c1_1478 = arith.constant 1 : index
      %1955 = memref.load %arg5[%1954, %c1_1478] : memref<16x4xf32, #tpu.memory_space<smem>>
      %1956 = vector.broadcast %1955 : f32 to vector<16x64xf32>
      %1957 = arith.mulf %1953, %1956 : vector<16x64xf32>
      %1958 = arith.index_cast %arg8 : i32 to index
      %c2_1479 = arith.constant 2 : index
      %1959 = memref.load %arg5[%1958, %c2_1479] : memref<16x4xf32, #tpu.memory_space<smem>>
      %1960 = vector.broadcast %1959 : f32 to vector<16x64xf32>
      %1961 = arith.addf %1957, %1960 : vector<16x64xf32>
      %cst_1480 = arith.constant 0.000000e+00 : f32
      %1962 = vector.broadcast %cst_1480 : f32 to vector<16x64xf32>
      %1963 = arith.cmpf ogt, %1961, %1962 : vector<16x64xf32>
      %cst_1481 = arith.constant 0.000000e+00 : f32
      %1964 = vector.broadcast %cst_1481 : f32 to vector<16x64xf32>
      %1965 = arith.minimumf %1961, %1964 : vector<16x64xf32>
      %1966 = math.exp %1965 : vector<16x64xf32>
      %cst_1482 = arith.constant 1.000000e+00 : f32
      %1967 = vector.broadcast %cst_1482 : f32 to vector<16x64xf32>
      %1968 = arith.subf %1966, %1967 : vector<16x64xf32>
      %1969 = arith.select %1963, %1961, %1968 : vector<16x64xi1>, vector<16x64xf32>
      %cst_1483 = arith.constant 0.000000e+00 : f32
      %1970 = vector.broadcast %cst_1483 : f32 to vector<16x8xf32>
      %1971 = arith.index_cast %arg8 : i32 to index
      %c0_1484 = arith.constant 0 : index
      %c0_1485 = arith.constant 0 : index
      %1972 = vector.load %arg7[%1971, %c0_1484, %c0_1485] : memref<16x16x80xf32, #tpu.memory_space<vmem>>, vector<1x16x8xf32>
      %1973 = vector.shape_cast %1972 : vector<1x16x8xf32> to vector<16x8xf32>
      %1974 = vector.shape_cast %1970 : vector<16x8xf32> to vector<1x16x8xf32>
      tpu.vector_store %arg7[%1971, %c0_1484, %c0_1485], %1974 {strides = array<i32>} : memref<16x16x80xf32, #tpu.memory_space<vmem>>, vector<1x16x8xf32>,
      %1975 = arith.index_cast %arg8 : i32 to index
      %c0_1486 = arith.constant 0 : index
      %c8_1487 = arith.constant 8 : index
      %1976 = vector.load %arg7[%1975, %c0_1486, %c8_1487] : memref<16x16x80xf32, #tpu.memory_space<vmem>>, vector<1x16x64xf32>
      %1977 = vector.shape_cast %1976 : vector<1x16x64xf32> to vector<16x64xf32>
      %1978 = vector.shape_cast %1969 : vector<16x64xf32> to vector<1x16x64xf32>
      tpu.vector_store %arg7[%1975, %c0_1486, %c8_1487], %1978 {strides = array<i32>} : memref<16x16x80xf32, #tpu.memory_space<vmem>>, vector<1x16x64xf32>,
      %cst_1488 = arith.constant 0.000000e+00 : f32
      %1979 = vector.broadcast %cst_1488 : f32 to vector<16x8xf32>
      %1980 = arith.index_cast %arg8 : i32 to index
      %c0_1489 = arith.constant 0 : index
      %c72 = arith.constant 72 : index
      %1981 = vector.load %arg7[%1980, %c0_1489, %c72] : memref<16x16x80xf32, #tpu.memory_space<vmem>>, vector<1x16x8xf32>
      %1982 = vector.shape_cast %1981 : vector<1x16x8xf32> to vector<16x8xf32>
      %1983 = vector.shape_cast %1979 : vector<16x8xf32> to vector<1x16x8xf32>
      tpu.vector_store %arg7[%1980, %c0_1489, %c72], %1983 {strides = array<i32>} : memref<16x16x80xf32, #tpu.memory_space<vmem>>, vector<1x16x8xf32>,
      %1984 = arith.index_cast %arg8 : i32 to index
      %c0_1490 = arith.constant 0 : index
      %c0_1491 = arith.constant 0 : index
      %1985 = vector.load %arg7[%1984, %c0_1490, %c0_1491] : memref<16x16x80xf32, #tpu.memory_space<vmem>>, vector<1x16x65xf32>
      %1986 = vector.shape_cast %1985 : vector<1x16x65xf32> to vector<16x65xf32>
      %1987 = arith.index_cast %arg8 : i32 to index
      %c0_1492 = arith.constant 0 : index
      %1988 = memref.load %arg3[%1987, %c0_1492] : memref<16x16xf32, #tpu.memory_space<smem>>
      %1989 = vector.broadcast %1988 : f32 to vector<16x65xf32>
      %1990 = arith.mulf %1986, %1989 : vector<16x65xf32>
      %1991 = arith.index_cast %arg8 : i32 to index
      %c0_1493 = arith.constant 0 : index
      %c1_1494 = arith.constant 1 : index
      %1992 = vector.load %arg7[%1991, %c0_1493, %c1_1494] : memref<16x16x80xf32, #tpu.memory_space<vmem>>, vector<1x16x65xf32>
      %1993 = vector.shape_cast %1992 : vector<1x16x65xf32> to vector<16x65xf32>
      %1994 = arith.index_cast %arg8 : i32 to index
      %c1_1495 = arith.constant 1 : index
      %1995 = memref.load %arg3[%1994, %c1_1495] : memref<16x16xf32, #tpu.memory_space<smem>>
      %1996 = vector.broadcast %1995 : f32 to vector<16x65xf32>
      %1997 = arith.mulf %1993, %1996 : vector<16x65xf32>
      %1998 = arith.addf %1990, %1997 : vector<16x65xf32>
      %1999 = arith.index_cast %arg8 : i32 to index
      %c0_1496 = arith.constant 0 : index
      %c2_1497 = arith.constant 2 : index
      %2000 = vector.load %arg7[%1999, %c0_1496, %c2_1497] : memref<16x16x80xf32, #tpu.memory_space<vmem>>, vector<1x16x65xf32>
      %2001 = vector.shape_cast %2000 : vector<1x16x65xf32> to vector<16x65xf32>
      %2002 = arith.index_cast %arg8 : i32 to index
      %c2_1498 = arith.constant 2 : index
      %2003 = memref.load %arg3[%2002, %c2_1498] : memref<16x16xf32, #tpu.memory_space<smem>>
      %2004 = vector.broadcast %2003 : f32 to vector<16x65xf32>
      %2005 = arith.mulf %2001, %2004 : vector<16x65xf32>
      %2006 = arith.addf %1998, %2005 : vector<16x65xf32>
      %2007 = arith.index_cast %arg8 : i32 to index
      %c0_1499 = arith.constant 0 : index
      %c3_1500 = arith.constant 3 : index
      %2008 = vector.load %arg7[%2007, %c0_1499, %c3_1500] : memref<16x16x80xf32, #tpu.memory_space<vmem>>, vector<1x16x65xf32>
      %2009 = vector.shape_cast %2008 : vector<1x16x65xf32> to vector<16x65xf32>
      %2010 = arith.index_cast %arg8 : i32 to index
      %c3_1501 = arith.constant 3 : index
      %2011 = memref.load %arg3[%2010, %c3_1501] : memref<16x16xf32, #tpu.memory_space<smem>>
      %2012 = vector.broadcast %2011 : f32 to vector<16x65xf32>
      %2013 = arith.mulf %2009, %2012 : vector<16x65xf32>
      %2014 = arith.addf %2006, %2013 : vector<16x65xf32>
      %2015 = arith.index_cast %arg8 : i32 to index
      %c0_1502 = arith.constant 0 : index
      %c4_1503 = arith.constant 4 : index
      %2016 = vector.load %arg7[%2015, %c0_1502, %c4_1503] : memref<16x16x80xf32, #tpu.memory_space<vmem>>, vector<1x16x65xf32>
      %2017 = vector.shape_cast %2016 : vector<1x16x65xf32> to vector<16x65xf32>
      %2018 = arith.index_cast %arg8 : i32 to index
      %c4_1504 = arith.constant 4 : index
      %2019 = memref.load %arg3[%2018, %c4_1504] : memref<16x16xf32, #tpu.memory_space<smem>>
      %2020 = vector.broadcast %2019 : f32 to vector<16x65xf32>
      %2021 = arith.mulf %2017, %2020 : vector<16x65xf32>
      %2022 = arith.addf %2014, %2021 : vector<16x65xf32>
      %2023 = arith.index_cast %arg8 : i32 to index
      %c0_1505 = arith.constant 0 : index
      %c5_1506 = arith.constant 5 : index
      %2024 = vector.load %arg7[%2023, %c0_1505, %c5_1506] : memref<16x16x80xf32, #tpu.memory_space<vmem>>, vector<1x16x65xf32>
      %2025 = vector.shape_cast %2024 : vector<1x16x65xf32> to vector<16x65xf32>
      %2026 = arith.index_cast %arg8 : i32 to index
      %c5_1507 = arith.constant 5 : index
      %2027 = memref.load %arg3[%2026, %c5_1507] : memref<16x16xf32, #tpu.memory_space<smem>>
      %2028 = vector.broadcast %2027 : f32 to vector<16x65xf32>
      %2029 = arith.mulf %2025, %2028 : vector<16x65xf32>
      %2030 = arith.addf %2022, %2029 : vector<16x65xf32>
      %2031 = arith.index_cast %arg8 : i32 to index
      %c0_1508 = arith.constant 0 : index
      %c6_1509 = arith.constant 6 : index
      %2032 = vector.load %arg7[%2031, %c0_1508, %c6_1509] : memref<16x16x80xf32, #tpu.memory_space<vmem>>, vector<1x16x65xf32>
      %2033 = vector.shape_cast %2032 : vector<1x16x65xf32> to vector<16x65xf32>
      %2034 = arith.index_cast %arg8 : i32 to index
      %c6_1510 = arith.constant 6 : index
      %2035 = memref.load %arg3[%2034, %c6_1510] : memref<16x16xf32, #tpu.memory_space<smem>>
      %2036 = vector.broadcast %2035 : f32 to vector<16x65xf32>
      %2037 = arith.mulf %2033, %2036 : vector<16x65xf32>
      %2038 = arith.addf %2030, %2037 : vector<16x65xf32>
      %2039 = arith.index_cast %arg8 : i32 to index
      %c0_1511 = arith.constant 0 : index
      %c7_1512 = arith.constant 7 : index
      %2040 = vector.load %arg7[%2039, %c0_1511, %c7_1512] : memref<16x16x80xf32, #tpu.memory_space<vmem>>, vector<1x16x65xf32>
      %2041 = vector.shape_cast %2040 : vector<1x16x65xf32> to vector<16x65xf32>
      %2042 = arith.index_cast %arg8 : i32 to index
      %c7_1513 = arith.constant 7 : index
      %2043 = memref.load %arg3[%2042, %c7_1513] : memref<16x16xf32, #tpu.memory_space<smem>>
      %2044 = vector.broadcast %2043 : f32 to vector<16x65xf32>
      %2045 = arith.mulf %2041, %2044 : vector<16x65xf32>
      %2046 = arith.addf %2038, %2045 : vector<16x65xf32>
      %2047 = arith.index_cast %arg8 : i32 to index
      %c0_1514 = arith.constant 0 : index
      %c8_1515 = arith.constant 8 : index
      %2048 = vector.load %arg7[%2047, %c0_1514, %c8_1515] : memref<16x16x80xf32, #tpu.memory_space<vmem>>, vector<1x16x65xf32>
      %2049 = vector.shape_cast %2048 : vector<1x16x65xf32> to vector<16x65xf32>
      %2050 = arith.index_cast %arg8 : i32 to index
      %c8_1516 = arith.constant 8 : index
      %2051 = memref.load %arg3[%2050, %c8_1516] : memref<16x16xf32, #tpu.memory_space<smem>>
      %2052 = vector.broadcast %2051 : f32 to vector<16x65xf32>
      %2053 = arith.mulf %2049, %2052 : vector<16x65xf32>
      %2054 = arith.addf %2046, %2053 : vector<16x65xf32>
      %2055 = arith.index_cast %arg8 : i32 to index
      %c0_1517 = arith.constant 0 : index
      %c9_1518 = arith.constant 9 : index
      %2056 = vector.load %arg7[%2055, %c0_1517, %c9_1518] : memref<16x16x80xf32, #tpu.memory_space<vmem>>, vector<1x16x65xf32>
      %2057 = vector.shape_cast %2056 : vector<1x16x65xf32> to vector<16x65xf32>
      %2058 = arith.index_cast %arg8 : i32 to index
      %c9_1519 = arith.constant 9 : index
      %2059 = memref.load %arg3[%2058, %c9_1519] : memref<16x16xf32, #tpu.memory_space<smem>>
      %2060 = vector.broadcast %2059 : f32 to vector<16x65xf32>
      %2061 = arith.mulf %2057, %2060 : vector<16x65xf32>
      %2062 = arith.addf %2054, %2061 : vector<16x65xf32>
      %2063 = arith.index_cast %arg8 : i32 to index
      %c0_1520 = arith.constant 0 : index
      %c10_1521 = arith.constant 10 : index
      %2064 = vector.load %arg7[%2063, %c0_1520, %c10_1521] : memref<16x16x80xf32, #tpu.memory_space<vmem>>, vector<1x16x65xf32>
      %2065 = vector.shape_cast %2064 : vector<1x16x65xf32> to vector<16x65xf32>
      %2066 = arith.index_cast %arg8 : i32 to index
      %c10_1522 = arith.constant 10 : index
      %2067 = memref.load %arg3[%2066, %c10_1522] : memref<16x16xf32, #tpu.memory_space<smem>>
      %2068 = vector.broadcast %2067 : f32 to vector<16x65xf32>
      %2069 = arith.mulf %2065, %2068 : vector<16x65xf32>
      %2070 = arith.addf %2062, %2069 : vector<16x65xf32>
      %2071 = arith.index_cast %arg8 : i32 to index
      %c0_1523 = arith.constant 0 : index
      %c11_1524 = arith.constant 11 : index
      %2072 = vector.load %arg7[%2071, %c0_1523, %c11_1524] : memref<16x16x80xf32, #tpu.memory_space<vmem>>, vector<1x16x65xf32>
      %2073 = vector.shape_cast %2072 : vector<1x16x65xf32> to vector<16x65xf32>
      %2074 = arith.index_cast %arg8 : i32 to index
      %c11_1525 = arith.constant 11 : index
      %2075 = memref.load %arg3[%2074, %c11_1525] : memref<16x16xf32, #tpu.memory_space<smem>>
      %2076 = vector.broadcast %2075 : f32 to vector<16x65xf32>
      %2077 = arith.mulf %2073, %2076 : vector<16x65xf32>
      %2078 = arith.addf %2070, %2077 : vector<16x65xf32>
      %2079 = arith.index_cast %arg8 : i32 to index
      %c0_1526 = arith.constant 0 : index
      %c12_1527 = arith.constant 12 : index
      %2080 = vector.load %arg7[%2079, %c0_1526, %c12_1527] : memref<16x16x80xf32, #tpu.memory_space<vmem>>, vector<1x16x65xf32>
      %2081 = vector.shape_cast %2080 : vector<1x16x65xf32> to vector<16x65xf32>
      %2082 = arith.index_cast %arg8 : i32 to index
      %c12_1528 = arith.constant 12 : index
      %2083 = memref.load %arg3[%2082, %c12_1528] : memref<16x16xf32, #tpu.memory_space<smem>>
      %2084 = vector.broadcast %2083 : f32 to vector<16x65xf32>
      %2085 = arith.mulf %2081, %2084 : vector<16x65xf32>
      %2086 = arith.addf %2078, %2085 : vector<16x65xf32>
      %2087 = arith.index_cast %arg8 : i32 to index
      %c0_1529 = arith.constant 0 : index
      %c13_1530 = arith.constant 13 : index
      %2088 = vector.load %arg7[%2087, %c0_1529, %c13_1530] : memref<16x16x80xf32, #tpu.memory_space<vmem>>, vector<1x16x65xf32>
      %2089 = vector.shape_cast %2088 : vector<1x16x65xf32> to vector<16x65xf32>
      %2090 = arith.index_cast %arg8 : i32 to index
      %c13_1531 = arith.constant 13 : index
      %2091 = memref.load %arg3[%2090, %c13_1531] : memref<16x16xf32, #tpu.memory_space<smem>>
      %2092 = vector.broadcast %2091 : f32 to vector<16x65xf32>
      %2093 = arith.mulf %2089, %2092 : vector<16x65xf32>
      %2094 = arith.addf %2086, %2093 : vector<16x65xf32>
      %2095 = arith.index_cast %arg8 : i32 to index
      %c0_1532 = arith.constant 0 : index
      %c14_1533 = arith.constant 14 : index
      %2096 = vector.load %arg7[%2095, %c0_1532, %c14_1533] : memref<16x16x80xf32, #tpu.memory_space<vmem>>, vector<1x16x65xf32>
      %2097 = vector.shape_cast %2096 : vector<1x16x65xf32> to vector<16x65xf32>
      %2098 = arith.index_cast %arg8 : i32 to index
      %c14_1534 = arith.constant 14 : index
      %2099 = memref.load %arg3[%2098, %c14_1534] : memref<16x16xf32, #tpu.memory_space<smem>>
      %2100 = vector.broadcast %2099 : f32 to vector<16x65xf32>
      %2101 = arith.mulf %2097, %2100 : vector<16x65xf32>
      %2102 = arith.addf %2094, %2101 : vector<16x65xf32>
      %2103 = arith.index_cast %arg8 : i32 to index
      %c0_1535 = arith.constant 0 : index
      %c15_1536 = arith.constant 15 : index
      %2104 = vector.load %arg7[%2103, %c0_1535, %c15_1536] : memref<16x16x80xf32, #tpu.memory_space<vmem>>, vector<1x16x65xf32>
      %2105 = vector.shape_cast %2104 : vector<1x16x65xf32> to vector<16x65xf32>
      %2106 = arith.index_cast %arg8 : i32 to index
      %c15_1537 = arith.constant 15 : index
      %2107 = memref.load %arg3[%2106, %c15_1537] : memref<16x16xf32, #tpu.memory_space<smem>>
      %2108 = vector.broadcast %2107 : f32 to vector<16x65xf32>
      %2109 = arith.mulf %2105, %2108 : vector<16x65xf32>
      %2110 = arith.addf %2102, %2109 : vector<16x65xf32>
      %2111 = arith.index_cast %arg8 : i32 to index
      %c0_1538 = arith.constant 0 : index
      %c0_1539 = arith.constant 0 : index
      %2112 = vector.load %arg7[%2111, %c0_1538, %c0_1539] : memref<16x16x80xf32, #tpu.memory_space<vmem>>, vector<1x16x65xf32>
      %2113 = vector.shape_cast %2112 : vector<1x16x65xf32> to vector<16x65xf32>
      %2114 = vector.shape_cast %2110 : vector<16x65xf32> to vector<1x16x65xf32>
      tpu.vector_store %arg7[%2111, %c0_1538, %c0_1539], %2114 {strides = array<i32>} : memref<16x16x80xf32, #tpu.memory_space<vmem>>, vector<1x16x65xf32>,
    }
    %c16_i32_0 = arith.constant 16 : i32
    %c0 = arith.constant 0 : index
    %c0_1 = arith.constant 0 : index
    %c0_2 = arith.constant 0 : index
    %1 = vector.load %arg7[%c0, %c0_1, %c0_2] : memref<16x16x80xf32, #tpu.memory_space<vmem>>, vector<1x16x65xf32>
    %2 = vector.shape_cast %1 : vector<1x16x65xf32> to vector<16x65xf32>
    %c0_3 = arith.constant 0 : index
    %c0_4 = arith.constant 0 : index
    %3 = memref.load %arg4[%c0_3, %c0_4] : memref<16x16xf32, #tpu.memory_space<smem>>
    %4 = vector.broadcast %3 : f32 to vector<16x65xf32>
    %5 = arith.mulf %2, %4 : vector<16x65xf32>
    %c1 = arith.constant 1 : index
    %c0_5 = arith.constant 0 : index
    %c0_6 = arith.constant 0 : index
    %6 = vector.load %arg7[%c1, %c0_5, %c0_6] : memref<16x16x80xf32, #tpu.memory_space<vmem>>, vector<1x16x65xf32>
    %7 = vector.shape_cast %6 : vector<1x16x65xf32> to vector<16x65xf32>
    %c0_7 = arith.constant 0 : index
    %c1_8 = arith.constant 1 : index
    %8 = memref.load %arg4[%c0_7, %c1_8] : memref<16x16xf32, #tpu.memory_space<smem>>
    %9 = vector.broadcast %8 : f32 to vector<16x65xf32>
    %10 = arith.mulf %7, %9 : vector<16x65xf32>
    %11 = arith.addf %5, %10 : vector<16x65xf32>
    %c2 = arith.constant 2 : index
    %c0_9 = arith.constant 0 : index
    %c0_10 = arith.constant 0 : index
    %12 = vector.load %arg7[%c2, %c0_9, %c0_10] : memref<16x16x80xf32, #tpu.memory_space<vmem>>, vector<1x16x65xf32>
    %13 = vector.shape_cast %12 : vector<1x16x65xf32> to vector<16x65xf32>
    %c0_11 = arith.constant 0 : index
    %c2_12 = arith.constant 2 : index
    %14 = memref.load %arg4[%c0_11, %c2_12] : memref<16x16xf32, #tpu.memory_space<smem>>
    %15 = vector.broadcast %14 : f32 to vector<16x65xf32>
    %16 = arith.mulf %13, %15 : vector<16x65xf32>
    %17 = arith.addf %11, %16 : vector<16x65xf32>
    %c3 = arith.constant 3 : index
    %c0_13 = arith.constant 0 : index
    %c0_14 = arith.constant 0 : index
    %18 = vector.load %arg7[%c3, %c0_13, %c0_14] : memref<16x16x80xf32, #tpu.memory_space<vmem>>, vector<1x16x65xf32>
    %19 = vector.shape_cast %18 : vector<1x16x65xf32> to vector<16x65xf32>
    %c0_15 = arith.constant 0 : index
    %c3_16 = arith.constant 3 : index
    %20 = memref.load %arg4[%c0_15, %c3_16] : memref<16x16xf32, #tpu.memory_space<smem>>
    %21 = vector.broadcast %20 : f32 to vector<16x65xf32>
    %22 = arith.mulf %19, %21 : vector<16x65xf32>
    %23 = arith.addf %17, %22 : vector<16x65xf32>
    %c4 = arith.constant 4 : index
    %c0_17 = arith.constant 0 : index
    %c0_18 = arith.constant 0 : index
    %24 = vector.load %arg7[%c4, %c0_17, %c0_18] : memref<16x16x80xf32, #tpu.memory_space<vmem>>, vector<1x16x65xf32>
    %25 = vector.shape_cast %24 : vector<1x16x65xf32> to vector<16x65xf32>
    %c0_19 = arith.constant 0 : index
    %c4_20 = arith.constant 4 : index
    %26 = memref.load %arg4[%c0_19, %c4_20] : memref<16x16xf32, #tpu.memory_space<smem>>
    %27 = vector.broadcast %26 : f32 to vector<16x65xf32>
    %28 = arith.mulf %25, %27 : vector<16x65xf32>
    %29 = arith.addf %23, %28 : vector<16x65xf32>
    %c5 = arith.constant 5 : index
    %c0_21 = arith.constant 0 : index
    %c0_22 = arith.constant 0 : index
    %30 = vector.load %arg7[%c5, %c0_21, %c0_22] : memref<16x16x80xf32, #tpu.memory_space<vmem>>, vector<1x16x65xf32>
    %31 = vector.shape_cast %30 : vector<1x16x65xf32> to vector<16x65xf32>
    %c0_23 = arith.constant 0 : index
    %c5_24 = arith.constant 5 : index
    %32 = memref.load %arg4[%c0_23, %c5_24] : memref<16x16xf32, #tpu.memory_space<smem>>
    %33 = vector.broadcast %32 : f32 to vector<16x65xf32>
    %34 = arith.mulf %31, %33 : vector<16x65xf32>
    %35 = arith.addf %29, %34 : vector<16x65xf32>
    %c6 = arith.constant 6 : index
    %c0_25 = arith.constant 0 : index
    %c0_26 = arith.constant 0 : index
    %36 = vector.load %arg7[%c6, %c0_25, %c0_26] : memref<16x16x80xf32, #tpu.memory_space<vmem>>, vector<1x16x65xf32>
    %37 = vector.shape_cast %36 : vector<1x16x65xf32> to vector<16x65xf32>
    %c0_27 = arith.constant 0 : index
    %c6_28 = arith.constant 6 : index
    %38 = memref.load %arg4[%c0_27, %c6_28] : memref<16x16xf32, #tpu.memory_space<smem>>
    %39 = vector.broadcast %38 : f32 to vector<16x65xf32>
    %40 = arith.mulf %37, %39 : vector<16x65xf32>
    %41 = arith.addf %35, %40 : vector<16x65xf32>
    %c7 = arith.constant 7 : index
    %c0_29 = arith.constant 0 : index
    %c0_30 = arith.constant 0 : index
    %42 = vector.load %arg7[%c7, %c0_29, %c0_30] : memref<16x16x80xf32, #tpu.memory_space<vmem>>, vector<1x16x65xf32>
    %43 = vector.shape_cast %42 : vector<1x16x65xf32> to vector<16x65xf32>
    %c0_31 = arith.constant 0 : index
    %c7_32 = arith.constant 7 : index
    %44 = memref.load %arg4[%c0_31, %c7_32] : memref<16x16xf32, #tpu.memory_space<smem>>
    %45 = vector.broadcast %44 : f32 to vector<16x65xf32>
    %46 = arith.mulf %43, %45 : vector<16x65xf32>
    %47 = arith.addf %41, %46 : vector<16x65xf32>
    %c8 = arith.constant 8 : index
    %c0_33 = arith.constant 0 : index
    %c0_34 = arith.constant 0 : index
    %48 = vector.load %arg7[%c8, %c0_33, %c0_34] : memref<16x16x80xf32, #tpu.memory_space<vmem>>, vector<1x16x65xf32>
    %49 = vector.shape_cast %48 : vector<1x16x65xf32> to vector<16x65xf32>
    %c0_35 = arith.constant 0 : index
    %c8_36 = arith.constant 8 : index
    %50 = memref.load %arg4[%c0_35, %c8_36] : memref<16x16xf32, #tpu.memory_space<smem>>
    %51 = vector.broadcast %50 : f32 to vector<16x65xf32>
    %52 = arith.mulf %49, %51 : vector<16x65xf32>
    %53 = arith.addf %47, %52 : vector<16x65xf32>
    %c9 = arith.constant 9 : index
    %c0_37 = arith.constant 0 : index
    %c0_38 = arith.constant 0 : index
    %54 = vector.load %arg7[%c9, %c0_37, %c0_38] : memref<16x16x80xf32, #tpu.memory_space<vmem>>, vector<1x16x65xf32>
    %55 = vector.shape_cast %54 : vector<1x16x65xf32> to vector<16x65xf32>
    %c0_39 = arith.constant 0 : index
    %c9_40 = arith.constant 9 : index
    %56 = memref.load %arg4[%c0_39, %c9_40] : memref<16x16xf32, #tpu.memory_space<smem>>
    %57 = vector.broadcast %56 : f32 to vector<16x65xf32>
    %58 = arith.mulf %55, %57 : vector<16x65xf32>
    %59 = arith.addf %53, %58 : vector<16x65xf32>
    %c10 = arith.constant 10 : index
    %c0_41 = arith.constant 0 : index
    %c0_42 = arith.constant 0 : index
    %60 = vector.load %arg7[%c10, %c0_41, %c0_42] : memref<16x16x80xf32, #tpu.memory_space<vmem>>, vector<1x16x65xf32>
    %61 = vector.shape_cast %60 : vector<1x16x65xf32> to vector<16x65xf32>
    %c0_43 = arith.constant 0 : index
    %c10_44 = arith.constant 10 : index
    %62 = memref.load %arg4[%c0_43, %c10_44] : memref<16x16xf32, #tpu.memory_space<smem>>
    %63 = vector.broadcast %62 : f32 to vector<16x65xf32>
    %64 = arith.mulf %61, %63 : vector<16x65xf32>
    %65 = arith.addf %59, %64 : vector<16x65xf32>
    %c11 = arith.constant 11 : index
    %c0_45 = arith.constant 0 : index
    %c0_46 = arith.constant 0 : index
    %66 = vector.load %arg7[%c11, %c0_45, %c0_46] : memref<16x16x80xf32, #tpu.memory_space<vmem>>, vector<1x16x65xf32>
    %67 = vector.shape_cast %66 : vector<1x16x65xf32> to vector<16x65xf32>
    %c0_47 = arith.constant 0 : index
    %c11_48 = arith.constant 11 : index
    %68 = memref.load %arg4[%c0_47, %c11_48] : memref<16x16xf32, #tpu.memory_space<smem>>
    %69 = vector.broadcast %68 : f32 to vector<16x65xf32>
    %70 = arith.mulf %67, %69 : vector<16x65xf32>
    %71 = arith.addf %65, %70 : vector<16x65xf32>
    %c12 = arith.constant 12 : index
    %c0_49 = arith.constant 0 : index
    %c0_50 = arith.constant 0 : index
    %72 = vector.load %arg7[%c12, %c0_49, %c0_50] : memref<16x16x80xf32, #tpu.memory_space<vmem>>, vector<1x16x65xf32>
    %73 = vector.shape_cast %72 : vector<1x16x65xf32> to vector<16x65xf32>
    %c0_51 = arith.constant 0 : index
    %c12_52 = arith.constant 12 : index
    %74 = memref.load %arg4[%c0_51, %c12_52] : memref<16x16xf32, #tpu.memory_space<smem>>
    %75 = vector.broadcast %74 : f32 to vector<16x65xf32>
    %76 = arith.mulf %73, %75 : vector<16x65xf32>
    %77 = arith.addf %71, %76 : vector<16x65xf32>
    %c13 = arith.constant 13 : index
    %c0_53 = arith.constant 0 : index
    %c0_54 = arith.constant 0 : index
    %78 = vector.load %arg7[%c13, %c0_53, %c0_54] : memref<16x16x80xf32, #tpu.memory_space<vmem>>, vector<1x16x65xf32>
    %79 = vector.shape_cast %78 : vector<1x16x65xf32> to vector<16x65xf32>
    %c0_55 = arith.constant 0 : index
    %c13_56 = arith.constant 13 : index
    %80 = memref.load %arg4[%c0_55, %c13_56] : memref<16x16xf32, #tpu.memory_space<smem>>
    %81 = vector.broadcast %80 : f32 to vector<16x65xf32>
    %82 = arith.mulf %79, %81 : vector<16x65xf32>
    %83 = arith.addf %77, %82 : vector<16x65xf32>
    %c14 = arith.constant 14 : index
    %c0_57 = arith.constant 0 : index
    %c0_58 = arith.constant 0 : index
    %84 = vector.load %arg7[%c14, %c0_57, %c0_58] : memref<16x16x80xf32, #tpu.memory_space<vmem>>, vector<1x16x65xf32>
    %85 = vector.shape_cast %84 : vector<1x16x65xf32> to vector<16x65xf32>
    %c0_59 = arith.constant 0 : index
    %c14_60 = arith.constant 14 : index
    %86 = memref.load %arg4[%c0_59, %c14_60] : memref<16x16xf32, #tpu.memory_space<smem>>
    %87 = vector.broadcast %86 : f32 to vector<16x65xf32>
    %88 = arith.mulf %85, %87 : vector<16x65xf32>
    %89 = arith.addf %83, %88 : vector<16x65xf32>
    %c15 = arith.constant 15 : index
    %c0_61 = arith.constant 0 : index
    %c0_62 = arith.constant 0 : index
    %90 = vector.load %arg7[%c15, %c0_61, %c0_62] : memref<16x16x80xf32, #tpu.memory_space<vmem>>, vector<1x16x65xf32>
    %91 = vector.shape_cast %90 : vector<1x16x65xf32> to vector<16x65xf32>
    %c0_63 = arith.constant 0 : index
    %c15_64 = arith.constant 15 : index
    %92 = memref.load %arg4[%c0_63, %c15_64] : memref<16x16xf32, #tpu.memory_space<smem>>
    %93 = vector.broadcast %92 : f32 to vector<16x65xf32>
    %94 = arith.mulf %91, %93 : vector<16x65xf32>
    %95 = arith.addf %89, %94 : vector<16x65xf32>
    %c0_65 = arith.constant 0 : index
    %c3_66 = arith.constant 3 : index
    %96 = memref.load %arg5[%c0_65, %c3_66] : memref<16x4xf32, #tpu.memory_space<smem>>
    %97 = vector.broadcast %96 : f32 to vector<16x65xf32>
    %98 = arith.addf %95, %97 : vector<16x65xf32>
    %cst = arith.constant 0.000000e+00 : f32
    %99 = vector.broadcast %cst : f32 to vector<16x65xf32>
    %100 = arith.cmpf ogt, %98, %99 : vector<16x65xf32>
    %cst_67 = arith.constant 0.000000e+00 : f32
    %101 = vector.broadcast %cst_67 : f32 to vector<16x65xf32>
    %102 = arith.minimumf %98, %101 : vector<16x65xf32>
    %103 = math.exp %102 : vector<16x65xf32>
    %cst_68 = arith.constant 1.000000e+00 : f32
    %104 = vector.broadcast %cst_68 : f32 to vector<16x65xf32>
    %105 = arith.subf %103, %104 : vector<16x65xf32>
    %106 = arith.select %100, %98, %105 : vector<16x65xi1>, vector<16x65xf32>
    %cst_69 = arith.constant dense<0.000000e+00> : vector<16xf32>
    %107 = vector.multi_reduction <add>, %106, %cst_69 [1] : vector<16x65xf32> to vector<16xf32>
    %cst_70 = arith.constant 0.0153846154 : f32
    %108 = vector.broadcast %cst_70 : f32 to vector<16xf32>
    %109 = arith.mulf %107, %108 : vector<16xf32>
    %c0_71 = arith.constant 0 : index
    %c0_72 = arith.constant 0 : index
    %110 = vector.load %arg6[%c0_71, %c0_72] : memref<16x16xf32, #tpu.memory_space<vmem>>, vector<1x16xf32>
    %111 = vector.shape_cast %110 : vector<1x16xf32> to vector<16xf32>
    %112 = vector.shape_cast %109 : vector<16xf32> to vector<1x16xf32>
    tpu.vector_store %arg6[%c0_71, %c0_72], %112 {strides = array<i32>} : memref<16x16xf32, #tpu.memory_space<vmem>>, vector<1x16xf32>,
    %c0_73 = arith.constant 0 : index
    %c0_74 = arith.constant 0 : index
    %c0_75 = arith.constant 0 : index
    %113 = vector.load %arg7[%c0_73, %c0_74, %c0_75] : memref<16x16x80xf32, #tpu.memory_space<vmem>>, vector<1x16x65xf32>
    %114 = vector.shape_cast %113 : vector<1x16x65xf32> to vector<16x65xf32>
    %c1_76 = arith.constant 1 : index
    %c0_77 = arith.constant 0 : index
    %115 = memref.load %arg4[%c1_76, %c0_77] : memref<16x16xf32, #tpu.memory_space<smem>>
    %116 = vector.broadcast %115 : f32 to vector<16x65xf32>
    %117 = arith.mulf %114, %116 : vector<16x65xf32>
    %c1_78 = arith.constant 1 : index
    %c0_79 = arith.constant 0 : index
    %c0_80 = arith.constant 0 : index
    %118 = vector.load %arg7[%c1_78, %c0_79, %c0_80] : memref<16x16x80xf32, #tpu.memory_space<vmem>>, vector<1x16x65xf32>
    %119 = vector.shape_cast %118 : vector<1x16x65xf32> to vector<16x65xf32>
    %c1_81 = arith.constant 1 : index
    %c1_82 = arith.constant 1 : index
    %120 = memref.load %arg4[%c1_81, %c1_82] : memref<16x16xf32, #tpu.memory_space<smem>>
    %121 = vector.broadcast %120 : f32 to vector<16x65xf32>
    %122 = arith.mulf %119, %121 : vector<16x65xf32>
    %123 = arith.addf %117, %122 : vector<16x65xf32>
    %c2_83 = arith.constant 2 : index
    %c0_84 = arith.constant 0 : index
    %c0_85 = arith.constant 0 : index
    %124 = vector.load %arg7[%c2_83, %c0_84, %c0_85] : memref<16x16x80xf32, #tpu.memory_space<vmem>>, vector<1x16x65xf32>
    %125 = vector.shape_cast %124 : vector<1x16x65xf32> to vector<16x65xf32>
    %c1_86 = arith.constant 1 : index
    %c2_87 = arith.constant 2 : index
    %126 = memref.load %arg4[%c1_86, %c2_87] : memref<16x16xf32, #tpu.memory_space<smem>>
    %127 = vector.broadcast %126 : f32 to vector<16x65xf32>
    %128 = arith.mulf %125, %127 : vector<16x65xf32>
    %129 = arith.addf %123, %128 : vector<16x65xf32>
    %c3_88 = arith.constant 3 : index
    %c0_89 = arith.constant 0 : index
    %c0_90 = arith.constant 0 : index
    %130 = vector.load %arg7[%c3_88, %c0_89, %c0_90] : memref<16x16x80xf32, #tpu.memory_space<vmem>>, vector<1x16x65xf32>
    %131 = vector.shape_cast %130 : vector<1x16x65xf32> to vector<16x65xf32>
    %c1_91 = arith.constant 1 : index
    %c3_92 = arith.constant 3 : index
    %132 = memref.load %arg4[%c1_91, %c3_92] : memref<16x16xf32, #tpu.memory_space<smem>>
    %133 = vector.broadcast %132 : f32 to vector<16x65xf32>
    %134 = arith.mulf %131, %133 : vector<16x65xf32>
    %135 = arith.addf %129, %134 : vector<16x65xf32>
    %c4_93 = arith.constant 4 : index
    %c0_94 = arith.constant 0 : index
    %c0_95 = arith.constant 0 : index
    %136 = vector.load %arg7[%c4_93, %c0_94, %c0_95] : memref<16x16x80xf32, #tpu.memory_space<vmem>>, vector<1x16x65xf32>
    %137 = vector.shape_cast %136 : vector<1x16x65xf32> to vector<16x65xf32>
    %c1_96 = arith.constant 1 : index
    %c4_97 = arith.constant 4 : index
    %138 = memref.load %arg4[%c1_96, %c4_97] : memref<16x16xf32, #tpu.memory_space<smem>>
    %139 = vector.broadcast %138 : f32 to vector<16x65xf32>
    %140 = arith.mulf %137, %139 : vector<16x65xf32>
    %141 = arith.addf %135, %140 : vector<16x65xf32>
    %c5_98 = arith.constant 5 : index
    %c0_99 = arith.constant 0 : index
    %c0_100 = arith.constant 0 : index
    %142 = vector.load %arg7[%c5_98, %c0_99, %c0_100] : memref<16x16x80xf32, #tpu.memory_space<vmem>>, vector<1x16x65xf32>
    %143 = vector.shape_cast %142 : vector<1x16x65xf32> to vector<16x65xf32>
    %c1_101 = arith.constant 1 : index
    %c5_102 = arith.constant 5 : index
    %144 = memref.load %arg4[%c1_101, %c5_102] : memref<16x16xf32, #tpu.memory_space<smem>>
    %145 = vector.broadcast %144 : f32 to vector<16x65xf32>
    %146 = arith.mulf %143, %145 : vector<16x65xf32>
    %147 = arith.addf %141, %146 : vector<16x65xf32>
    %c6_103 = arith.constant 6 : index
    %c0_104 = arith.constant 0 : index
    %c0_105 = arith.constant 0 : index
    %148 = vector.load %arg7[%c6_103, %c0_104, %c0_105] : memref<16x16x80xf32, #tpu.memory_space<vmem>>, vector<1x16x65xf32>
    %149 = vector.shape_cast %148 : vector<1x16x65xf32> to vector<16x65xf32>
    %c1_106 = arith.constant 1 : index
    %c6_107 = arith.constant 6 : index
    %150 = memref.load %arg4[%c1_106, %c6_107] : memref<16x16xf32, #tpu.memory_space<smem>>
    %151 = vector.broadcast %150 : f32 to vector<16x65xf32>
    %152 = arith.mulf %149, %151 : vector<16x65xf32>
    %153 = arith.addf %147, %152 : vector<16x65xf32>
    %c7_108 = arith.constant 7 : index
    %c0_109 = arith.constant 0 : index
    %c0_110 = arith.constant 0 : index
    %154 = vector.load %arg7[%c7_108, %c0_109, %c0_110] : memref<16x16x80xf32, #tpu.memory_space<vmem>>, vector<1x16x65xf32>
    %155 = vector.shape_cast %154 : vector<1x16x65xf32> to vector<16x65xf32>
    %c1_111 = arith.constant 1 : index
    %c7_112 = arith.constant 7 : index
    %156 = memref.load %arg4[%c1_111, %c7_112] : memref<16x16xf32, #tpu.memory_space<smem>>
    %157 = vector.broadcast %156 : f32 to vector<16x65xf32>
    %158 = arith.mulf %155, %157 : vector<16x65xf32>
    %159 = arith.addf %153, %158 : vector<16x65xf32>
    %c8_113 = arith.constant 8 : index
    %c0_114 = arith.constant 0 : index
    %c0_115 = arith.constant 0 : index
    %160 = vector.load %arg7[%c8_113, %c0_114, %c0_115] : memref<16x16x80xf32, #tpu.memory_space<vmem>>, vector<1x16x65xf32>
    %161 = vector.shape_cast %160 : vector<1x16x65xf32> to vector<16x65xf32>
    %c1_116 = arith.constant 1 : index
    %c8_117 = arith.constant 8 : index
    %162 = memref.load %arg4[%c1_116, %c8_117] : memref<16x16xf32, #tpu.memory_space<smem>>
    %163 = vector.broadcast %162 : f32 to vector<16x65xf32>
    %164 = arith.mulf %161, %163 : vector<16x65xf32>
    %165 = arith.addf %159, %164 : vector<16x65xf32>
    %c9_118 = arith.constant 9 : index
    %c0_119 = arith.constant 0 : index
    %c0_120 = arith.constant 0 : index
    %166 = vector.load %arg7[%c9_118, %c0_119, %c0_120] : memref<16x16x80xf32, #tpu.memory_space<vmem>>, vector<1x16x65xf32>
    %167 = vector.shape_cast %166 : vector<1x16x65xf32> to vector<16x65xf32>
    %c1_121 = arith.constant 1 : index
    %c9_122 = arith.constant 9 : index
    %168 = memref.load %arg4[%c1_121, %c9_122] : memref<16x16xf32, #tpu.memory_space<smem>>
    %169 = vector.broadcast %168 : f32 to vector<16x65xf32>
    %170 = arith.mulf %167, %169 : vector<16x65xf32>
    %171 = arith.addf %165, %170 : vector<16x65xf32>
    %c10_123 = arith.constant 10 : index
    %c0_124 = arith.constant 0 : index
    %c0_125 = arith.constant 0 : index
    %172 = vector.load %arg7[%c10_123, %c0_124, %c0_125] : memref<16x16x80xf32, #tpu.memory_space<vmem>>, vector<1x16x65xf32>
    %173 = vector.shape_cast %172 : vector<1x16x65xf32> to vector<16x65xf32>
    %c1_126 = arith.constant 1 : index
    %c10_127 = arith.constant 10 : index
    %174 = memref.load %arg4[%c1_126, %c10_127] : memref<16x16xf32, #tpu.memory_space<smem>>
    %175 = vector.broadcast %174 : f32 to vector<16x65xf32>
    %176 = arith.mulf %173, %175 : vector<16x65xf32>
    %177 = arith.addf %171, %176 : vector<16x65xf32>
    %c11_128 = arith.constant 11 : index
    %c0_129 = arith.constant 0 : index
    %c0_130 = arith.constant 0 : index
    %178 = vector.load %arg7[%c11_128, %c0_129, %c0_130] : memref<16x16x80xf32, #tpu.memory_space<vmem>>, vector<1x16x65xf32>
    %179 = vector.shape_cast %178 : vector<1x16x65xf32> to vector<16x65xf32>
    %c1_131 = arith.constant 1 : index
    %c11_132 = arith.constant 11 : index
    %180 = memref.load %arg4[%c1_131, %c11_132] : memref<16x16xf32, #tpu.memory_space<smem>>
    %181 = vector.broadcast %180 : f32 to vector<16x65xf32>
    %182 = arith.mulf %179, %181 : vector<16x65xf32>
    %183 = arith.addf %177, %182 : vector<16x65xf32>
    %c12_133 = arith.constant 12 : index
    %c0_134 = arith.constant 0 : index
    %c0_135 = arith.constant 0 : index
    %184 = vector.load %arg7[%c12_133, %c0_134, %c0_135] : memref<16x16x80xf32, #tpu.memory_space<vmem>>, vector<1x16x65xf32>
    %185 = vector.shape_cast %184 : vector<1x16x65xf32> to vector<16x65xf32>
    %c1_136 = arith.constant 1 : index
    %c12_137 = arith.constant 12 : index
    %186 = memref.load %arg4[%c1_136, %c12_137] : memref<16x16xf32, #tpu.memory_space<smem>>
    %187 = vector.broadcast %186 : f32 to vector<16x65xf32>
    %188 = arith.mulf %185, %187 : vector<16x65xf32>
    %189 = arith.addf %183, %188 : vector<16x65xf32>
    %c13_138 = arith.constant 13 : index
    %c0_139 = arith.constant 0 : index
    %c0_140 = arith.constant 0 : index
    %190 = vector.load %arg7[%c13_138, %c0_139, %c0_140] : memref<16x16x80xf32, #tpu.memory_space<vmem>>, vector<1x16x65xf32>
    %191 = vector.shape_cast %190 : vector<1x16x65xf32> to vector<16x65xf32>
    %c1_141 = arith.constant 1 : index
    %c13_142 = arith.constant 13 : index
    %192 = memref.load %arg4[%c1_141, %c13_142] : memref<16x16xf32, #tpu.memory_space<smem>>
    %193 = vector.broadcast %192 : f32 to vector<16x65xf32>
    %194 = arith.mulf %191, %193 : vector<16x65xf32>
    %195 = arith.addf %189, %194 : vector<16x65xf32>
    %c14_143 = arith.constant 14 : index
    %c0_144 = arith.constant 0 : index
    %c0_145 = arith.constant 0 : index
    %196 = vector.load %arg7[%c14_143, %c0_144, %c0_145] : memref<16x16x80xf32, #tpu.memory_space<vmem>>, vector<1x16x65xf32>
    %197 = vector.shape_cast %196 : vector<1x16x65xf32> to vector<16x65xf32>
    %c1_146 = arith.constant 1 : index
    %c14_147 = arith.constant 14 : index
    %198 = memref.load %arg4[%c1_146, %c14_147] : memref<16x16xf32, #tpu.memory_space<smem>>
    %199 = vector.broadcast %198 : f32 to vector<16x65xf32>
    %200 = arith.mulf %197, %199 : vector<16x65xf32>
    %201 = arith.addf %195, %200 : vector<16x65xf32>
    %c15_148 = arith.constant 15 : index
    %c0_149 = arith.constant 0 : index
    %c0_150 = arith.constant 0 : index
    %202 = vector.load %arg7[%c15_148, %c0_149, %c0_150] : memref<16x16x80xf32, #tpu.memory_space<vmem>>, vector<1x16x65xf32>
    %203 = vector.shape_cast %202 : vector<1x16x65xf32> to vector<16x65xf32>
    %c1_151 = arith.constant 1 : index
    %c15_152 = arith.constant 15 : index
    %204 = memref.load %arg4[%c1_151, %c15_152] : memref<16x16xf32, #tpu.memory_space<smem>>
    %205 = vector.broadcast %204 : f32 to vector<16x65xf32>
    %206 = arith.mulf %203, %205 : vector<16x65xf32>
    %207 = arith.addf %201, %206 : vector<16x65xf32>
    %c1_153 = arith.constant 1 : index
    %c3_154 = arith.constant 3 : index
    %208 = memref.load %arg5[%c1_153, %c3_154] : memref<16x4xf32, #tpu.memory_space<smem>>
    %209 = vector.broadcast %208 : f32 to vector<16x65xf32>
    %210 = arith.addf %207, %209 : vector<16x65xf32>
    %cst_155 = arith.constant 0.000000e+00 : f32
    %211 = vector.broadcast %cst_155 : f32 to vector<16x65xf32>
    %212 = arith.cmpf ogt, %210, %211 : vector<16x65xf32>
    %cst_156 = arith.constant 0.000000e+00 : f32
    %213 = vector.broadcast %cst_156 : f32 to vector<16x65xf32>
    %214 = arith.minimumf %210, %213 : vector<16x65xf32>
    %215 = math.exp %214 : vector<16x65xf32>
    %cst_157 = arith.constant 1.000000e+00 : f32
    %216 = vector.broadcast %cst_157 : f32 to vector<16x65xf32>
    %217 = arith.subf %215, %216 : vector<16x65xf32>
    %218 = arith.select %212, %210, %217 : vector<16x65xi1>, vector<16x65xf32>
    %cst_158 = arith.constant dense<0.000000e+00> : vector<16xf32>
    %219 = vector.multi_reduction <add>, %218, %cst_158 [1] : vector<16x65xf32> to vector<16xf32>
    %cst_159 = arith.constant 0.0153846154 : f32
    %220 = vector.broadcast %cst_159 : f32 to vector<16xf32>
    %221 = arith.mulf %219, %220 : vector<16xf32>
    %c1_160 = arith.constant 1 : index
    %c0_161 = arith.constant 0 : index
    %222 = vector.load %arg6[%c1_160, %c0_161] : memref<16x16xf32, #tpu.memory_space<vmem>>, vector<1x16xf32>
    %223 = vector.shape_cast %222 : vector<1x16xf32> to vector<16xf32>
    %224 = vector.shape_cast %221 : vector<16xf32> to vector<1x16xf32>
    tpu.vector_store %arg6[%c1_160, %c0_161], %224 {strides = array<i32>} : memref<16x16xf32, #tpu.memory_space<vmem>>, vector<1x16xf32>,
    %c0_162 = arith.constant 0 : index
    %c0_163 = arith.constant 0 : index
    %c0_164 = arith.constant 0 : index
    %225 = vector.load %arg7[%c0_162, %c0_163, %c0_164] : memref<16x16x80xf32, #tpu.memory_space<vmem>>, vector<1x16x65xf32>
    %226 = vector.shape_cast %225 : vector<1x16x65xf32> to vector<16x65xf32>
    %c2_165 = arith.constant 2 : index
    %c0_166 = arith.constant 0 : index
    %227 = memref.load %arg4[%c2_165, %c0_166] : memref<16x16xf32, #tpu.memory_space<smem>>
    %228 = vector.broadcast %227 : f32 to vector<16x65xf32>
    %229 = arith.mulf %226, %228 : vector<16x65xf32>
    %c1_167 = arith.constant 1 : index
    %c0_168 = arith.constant 0 : index
    %c0_169 = arith.constant 0 : index
    %230 = vector.load %arg7[%c1_167, %c0_168, %c0_169] : memref<16x16x80xf32, #tpu.memory_space<vmem>>, vector<1x16x65xf32>
    %231 = vector.shape_cast %230 : vector<1x16x65xf32> to vector<16x65xf32>
    %c2_170 = arith.constant 2 : index
    %c1_171 = arith.constant 1 : index
    %232 = memref.load %arg4[%c2_170, %c1_171] : memref<16x16xf32, #tpu.memory_space<smem>>
    %233 = vector.broadcast %232 : f32 to vector<16x65xf32>
    %234 = arith.mulf %231, %233 : vector<16x65xf32>
    %235 = arith.addf %229, %234 : vector<16x65xf32>
    %c2_172 = arith.constant 2 : index
    %c0_173 = arith.constant 0 : index
    %c0_174 = arith.constant 0 : index
    %236 = vector.load %arg7[%c2_172, %c0_173, %c0_174] : memref<16x16x80xf32, #tpu.memory_space<vmem>>, vector<1x16x65xf32>
    %237 = vector.shape_cast %236 : vector<1x16x65xf32> to vector<16x65xf32>
    %c2_175 = arith.constant 2 : index
    %c2_176 = arith.constant 2 : index
    %238 = memref.load %arg4[%c2_175, %c2_176] : memref<16x16xf32, #tpu.memory_space<smem>>
    %239 = vector.broadcast %238 : f32 to vector<16x65xf32>
    %240 = arith.mulf %237, %239 : vector<16x65xf32>
    %241 = arith.addf %235, %240 : vector<16x65xf32>
    %c3_177 = arith.constant 3 : index
    %c0_178 = arith.constant 0 : index
    %c0_179 = arith.constant 0 : index
    %242 = vector.load %arg7[%c3_177, %c0_178, %c0_179] : memref<16x16x80xf32, #tpu.memory_space<vmem>>, vector<1x16x65xf32>
    %243 = vector.shape_cast %242 : vector<1x16x65xf32> to vector<16x65xf32>
    %c2_180 = arith.constant 2 : index
    %c3_181 = arith.constant 3 : index
    %244 = memref.load %arg4[%c2_180, %c3_181] : memref<16x16xf32, #tpu.memory_space<smem>>
    %245 = vector.broadcast %244 : f32 to vector<16x65xf32>
    %246 = arith.mulf %243, %245 : vector<16x65xf32>
    %247 = arith.addf %241, %246 : vector<16x65xf32>
    %c4_182 = arith.constant 4 : index
    %c0_183 = arith.constant 0 : index
    %c0_184 = arith.constant 0 : index
    %248 = vector.load %arg7[%c4_182, %c0_183, %c0_184] : memref<16x16x80xf32, #tpu.memory_space<vmem>>, vector<1x16x65xf32>
    %249 = vector.shape_cast %248 : vector<1x16x65xf32> to vector<16x65xf32>
    %c2_185 = arith.constant 2 : index
    %c4_186 = arith.constant 4 : index
    %250 = memref.load %arg4[%c2_185, %c4_186] : memref<16x16xf32, #tpu.memory_space<smem>>
    %251 = vector.broadcast %250 : f32 to vector<16x65xf32>
    %252 = arith.mulf %249, %251 : vector<16x65xf32>
    %253 = arith.addf %247, %252 : vector<16x65xf32>
    %c5_187 = arith.constant 5 : index
    %c0_188 = arith.constant 0 : index
    %c0_189 = arith.constant 0 : index
    %254 = vector.load %arg7[%c5_187, %c0_188, %c0_189] : memref<16x16x80xf32, #tpu.memory_space<vmem>>, vector<1x16x65xf32>
    %255 = vector.shape_cast %254 : vector<1x16x65xf32> to vector<16x65xf32>
    %c2_190 = arith.constant 2 : index
    %c5_191 = arith.constant 5 : index
    %256 = memref.load %arg4[%c2_190, %c5_191] : memref<16x16xf32, #tpu.memory_space<smem>>
    %257 = vector.broadcast %256 : f32 to vector<16x65xf32>
    %258 = arith.mulf %255, %257 : vector<16x65xf32>
    %259 = arith.addf %253, %258 : vector<16x65xf32>
    %c6_192 = arith.constant 6 : index
    %c0_193 = arith.constant 0 : index
    %c0_194 = arith.constant 0 : index
    %260 = vector.load %arg7[%c6_192, %c0_193, %c0_194] : memref<16x16x80xf32, #tpu.memory_space<vmem>>, vector<1x16x65xf32>
    %261 = vector.shape_cast %260 : vector<1x16x65xf32> to vector<16x65xf32>
    %c2_195 = arith.constant 2 : index
    %c6_196 = arith.constant 6 : index
    %262 = memref.load %arg4[%c2_195, %c6_196] : memref<16x16xf32, #tpu.memory_space<smem>>
    %263 = vector.broadcast %262 : f32 to vector<16x65xf32>
    %264 = arith.mulf %261, %263 : vector<16x65xf32>
    %265 = arith.addf %259, %264 : vector<16x65xf32>
    %c7_197 = arith.constant 7 : index
    %c0_198 = arith.constant 0 : index
    %c0_199 = arith.constant 0 : index
    %266 = vector.load %arg7[%c7_197, %c0_198, %c0_199] : memref<16x16x80xf32, #tpu.memory_space<vmem>>, vector<1x16x65xf32>
    %267 = vector.shape_cast %266 : vector<1x16x65xf32> to vector<16x65xf32>
    %c2_200 = arith.constant 2 : index
    %c7_201 = arith.constant 7 : index
    %268 = memref.load %arg4[%c2_200, %c7_201] : memref<16x16xf32, #tpu.memory_space<smem>>
    %269 = vector.broadcast %268 : f32 to vector<16x65xf32>
    %270 = arith.mulf %267, %269 : vector<16x65xf32>
    %271 = arith.addf %265, %270 : vector<16x65xf32>
    %c8_202 = arith.constant 8 : index
    %c0_203 = arith.constant 0 : index
    %c0_204 = arith.constant 0 : index
    %272 = vector.load %arg7[%c8_202, %c0_203, %c0_204] : memref<16x16x80xf32, #tpu.memory_space<vmem>>, vector<1x16x65xf32>
    %273 = vector.shape_cast %272 : vector<1x16x65xf32> to vector<16x65xf32>
    %c2_205 = arith.constant 2 : index
    %c8_206 = arith.constant 8 : index
    %274 = memref.load %arg4[%c2_205, %c8_206] : memref<16x16xf32, #tpu.memory_space<smem>>
    %275 = vector.broadcast %274 : f32 to vector<16x65xf32>
    %276 = arith.mulf %273, %275 : vector<16x65xf32>
    %277 = arith.addf %271, %276 : vector<16x65xf32>
    %c9_207 = arith.constant 9 : index
    %c0_208 = arith.constant 0 : index
    %c0_209 = arith.constant 0 : index
    %278 = vector.load %arg7[%c9_207, %c0_208, %c0_209] : memref<16x16x80xf32, #tpu.memory_space<vmem>>, vector<1x16x65xf32>
    %279 = vector.shape_cast %278 : vector<1x16x65xf32> to vector<16x65xf32>
    %c2_210 = arith.constant 2 : index
    %c9_211 = arith.constant 9 : index
    %280 = memref.load %arg4[%c2_210, %c9_211] : memref<16x16xf32, #tpu.memory_space<smem>>
    %281 = vector.broadcast %280 : f32 to vector<16x65xf32>
    %282 = arith.mulf %279, %281 : vector<16x65xf32>
    %283 = arith.addf %277, %282 : vector<16x65xf32>
    %c10_212 = arith.constant 10 : index
    %c0_213 = arith.constant 0 : index
    %c0_214 = arith.constant 0 : index
    %284 = vector.load %arg7[%c10_212, %c0_213, %c0_214] : memref<16x16x80xf32, #tpu.memory_space<vmem>>, vector<1x16x65xf32>
    %285 = vector.shape_cast %284 : vector<1x16x65xf32> to vector<16x65xf32>
    %c2_215 = arith.constant 2 : index
    %c10_216 = arith.constant 10 : index
    %286 = memref.load %arg4[%c2_215, %c10_216] : memref<16x16xf32, #tpu.memory_space<smem>>
    %287 = vector.broadcast %286 : f32 to vector<16x65xf32>
    %288 = arith.mulf %285, %287 : vector<16x65xf32>
    %289 = arith.addf %283, %288 : vector<16x65xf32>
    %c11_217 = arith.constant 11 : index
    %c0_218 = arith.constant 0 : index
    %c0_219 = arith.constant 0 : index
    %290 = vector.load %arg7[%c11_217, %c0_218, %c0_219] : memref<16x16x80xf32, #tpu.memory_space<vmem>>, vector<1x16x65xf32>
    %291 = vector.shape_cast %290 : vector<1x16x65xf32> to vector<16x65xf32>
    %c2_220 = arith.constant 2 : index
    %c11_221 = arith.constant 11 : index
    %292 = memref.load %arg4[%c2_220, %c11_221] : memref<16x16xf32, #tpu.memory_space<smem>>
    %293 = vector.broadcast %292 : f32 to vector<16x65xf32>
    %294 = arith.mulf %291, %293 : vector<16x65xf32>
    %295 = arith.addf %289, %294 : vector<16x65xf32>
    %c12_222 = arith.constant 12 : index
    %c0_223 = arith.constant 0 : index
    %c0_224 = arith.constant 0 : index
    %296 = vector.load %arg7[%c12_222, %c0_223, %c0_224] : memref<16x16x80xf32, #tpu.memory_space<vmem>>, vector<1x16x65xf32>
    %297 = vector.shape_cast %296 : vector<1x16x65xf32> to vector<16x65xf32>
    %c2_225 = arith.constant 2 : index
    %c12_226 = arith.constant 12 : index
    %298 = memref.load %arg4[%c2_225, %c12_226] : memref<16x16xf32, #tpu.memory_space<smem>>
    %299 = vector.broadcast %298 : f32 to vector<16x65xf32>
    %300 = arith.mulf %297, %299 : vector<16x65xf32>
    %301 = arith.addf %295, %300 : vector<16x65xf32>
    %c13_227 = arith.constant 13 : index
    %c0_228 = arith.constant 0 : index
    %c0_229 = arith.constant 0 : index
    %302 = vector.load %arg7[%c13_227, %c0_228, %c0_229] : memref<16x16x80xf32, #tpu.memory_space<vmem>>, vector<1x16x65xf32>
    %303 = vector.shape_cast %302 : vector<1x16x65xf32> to vector<16x65xf32>
    %c2_230 = arith.constant 2 : index
    %c13_231 = arith.constant 13 : index
    %304 = memref.load %arg4[%c2_230, %c13_231] : memref<16x16xf32, #tpu.memory_space<smem>>
    %305 = vector.broadcast %304 : f32 to vector<16x65xf32>
    %306 = arith.mulf %303, %305 : vector<16x65xf32>
    %307 = arith.addf %301, %306 : vector<16x65xf32>
    %c14_232 = arith.constant 14 : index
    %c0_233 = arith.constant 0 : index
    %c0_234 = arith.constant 0 : index
    %308 = vector.load %arg7[%c14_232, %c0_233, %c0_234] : memref<16x16x80xf32, #tpu.memory_space<vmem>>, vector<1x16x65xf32>
    %309 = vector.shape_cast %308 : vector<1x16x65xf32> to vector<16x65xf32>
    %c2_235 = arith.constant 2 : index
    %c14_236 = arith.constant 14 : index
    %310 = memref.load %arg4[%c2_235, %c14_236] : memref<16x16xf32, #tpu.memory_space<smem>>
    %311 = vector.broadcast %310 : f32 to vector<16x65xf32>
    %312 = arith.mulf %309, %311 : vector<16x65xf32>
    %313 = arith.addf %307, %312 : vector<16x65xf32>
    %c15_237 = arith.constant 15 : index
    %c0_238 = arith.constant 0 : index
    %c0_239 = arith.constant 0 : index
    %314 = vector.load %arg7[%c15_237, %c0_238, %c0_239] : memref<16x16x80xf32, #tpu.memory_space<vmem>>, vector<1x16x65xf32>
    %315 = vector.shape_cast %314 : vector<1x16x65xf32> to vector<16x65xf32>
    %c2_240 = arith.constant 2 : index
    %c15_241 = arith.constant 15 : index
    %316 = memref.load %arg4[%c2_240, %c15_241] : memref<16x16xf32, #tpu.memory_space<smem>>
    %317 = vector.broadcast %316 : f32 to vector<16x65xf32>
    %318 = arith.mulf %315, %317 : vector<16x65xf32>
    %319 = arith.addf %313, %318 : vector<16x65xf32>
    %c2_242 = arith.constant 2 : index
    %c3_243 = arith.constant 3 : index
    %320 = memref.load %arg5[%c2_242, %c3_243] : memref<16x4xf32, #tpu.memory_space<smem>>
    %321 = vector.broadcast %320 : f32 to vector<16x65xf32>
    %322 = arith.addf %319, %321 : vector<16x65xf32>
    %cst_244 = arith.constant 0.000000e+00 : f32
    %323 = vector.broadcast %cst_244 : f32 to vector<16x65xf32>
    %324 = arith.cmpf ogt, %322, %323 : vector<16x65xf32>
    %cst_245 = arith.constant 0.000000e+00 : f32
    %325 = vector.broadcast %cst_245 : f32 to vector<16x65xf32>
    %326 = arith.minimumf %322, %325 : vector<16x65xf32>
    %327 = math.exp %326 : vector<16x65xf32>
    %cst_246 = arith.constant 1.000000e+00 : f32
    %328 = vector.broadcast %cst_246 : f32 to vector<16x65xf32>
    %329 = arith.subf %327, %328 : vector<16x65xf32>
    %330 = arith.select %324, %322, %329 : vector<16x65xi1>, vector<16x65xf32>
    %cst_247 = arith.constant dense<0.000000e+00> : vector<16xf32>
    %331 = vector.multi_reduction <add>, %330, %cst_247 [1] : vector<16x65xf32> to vector<16xf32>
    %cst_248 = arith.constant 0.0153846154 : f32
    %332 = vector.broadcast %cst_248 : f32 to vector<16xf32>
    %333 = arith.mulf %331, %332 : vector<16xf32>
    %c2_249 = arith.constant 2 : index
    %c0_250 = arith.constant 0 : index
    %334 = vector.load %arg6[%c2_249, %c0_250] : memref<16x16xf32, #tpu.memory_space<vmem>>, vector<1x16xf32>
    %335 = vector.shape_cast %334 : vector<1x16xf32> to vector<16xf32>
    %336 = vector.shape_cast %333 : vector<16xf32> to vector<1x16xf32>
    tpu.vector_store %arg6[%c2_249, %c0_250], %336 {strides = array<i32>} : memref<16x16xf32, #tpu.memory_space<vmem>>, vector<1x16xf32>,
    %c0_251 = arith.constant 0 : index
    %c0_252 = arith.constant 0 : index
    %c0_253 = arith.constant 0 : index
    %337 = vector.load %arg7[%c0_251, %c0_252, %c0_253] : memref<16x16x80xf32, #tpu.memory_space<vmem>>, vector<1x16x65xf32>
    %338 = vector.shape_cast %337 : vector<1x16x65xf32> to vector<16x65xf32>
    %c3_254 = arith.constant 3 : index
    %c0_255 = arith.constant 0 : index
    %339 = memref.load %arg4[%c3_254, %c0_255] : memref<16x16xf32, #tpu.memory_space<smem>>
    %340 = vector.broadcast %339 : f32 to vector<16x65xf32>
    %341 = arith.mulf %338, %340 : vector<16x65xf32>
    %c1_256 = arith.constant 1 : index
    %c0_257 = arith.constant 0 : index
    %c0_258 = arith.constant 0 : index
    %342 = vector.load %arg7[%c1_256, %c0_257, %c0_258] : memref<16x16x80xf32, #tpu.memory_space<vmem>>, vector<1x16x65xf32>
    %343 = vector.shape_cast %342 : vector<1x16x65xf32> to vector<16x65xf32>
    %c3_259 = arith.constant 3 : index
    %c1_260 = arith.constant 1 : index
    %344 = memref.load %arg4[%c3_259, %c1_260] : memref<16x16xf32, #tpu.memory_space<smem>>
    %345 = vector.broadcast %344 : f32 to vector<16x65xf32>
    %346 = arith.mulf %343, %345 : vector<16x65xf32>
    %347 = arith.addf %341, %346 : vector<16x65xf32>
    %c2_261 = arith.constant 2 : index
    %c0_262 = arith.constant 0 : index
    %c0_263 = arith.constant 0 : index
    %348 = vector.load %arg7[%c2_261, %c0_262, %c0_263] : memref<16x16x80xf32, #tpu.memory_space<vmem>>, vector<1x16x65xf32>
    %349 = vector.shape_cast %348 : vector<1x16x65xf32> to vector<16x65xf32>
    %c3_264 = arith.constant 3 : index
    %c2_265 = arith.constant 2 : index
    %350 = memref.load %arg4[%c3_264, %c2_265] : memref<16x16xf32, #tpu.memory_space<smem>>
    %351 = vector.broadcast %350 : f32 to vector<16x65xf32>
    %352 = arith.mulf %349, %351 : vector<16x65xf32>
    %353 = arith.addf %347, %352 : vector<16x65xf32>
    %c3_266 = arith.constant 3 : index
    %c0_267 = arith.constant 0 : index
    %c0_268 = arith.constant 0 : index
    %354 = vector.load %arg7[%c3_266, %c0_267, %c0_268] : memref<16x16x80xf32, #tpu.memory_space<vmem>>, vector<1x16x65xf32>
    %355 = vector.shape_cast %354 : vector<1x16x65xf32> to vector<16x65xf32>
    %c3_269 = arith.constant 3 : index
    %c3_270 = arith.constant 3 : index
    %356 = memref.load %arg4[%c3_269, %c3_270] : memref<16x16xf32, #tpu.memory_space<smem>>
    %357 = vector.broadcast %356 : f32 to vector<16x65xf32>
    %358 = arith.mulf %355, %357 : vector<16x65xf32>
    %359 = arith.addf %353, %358 : vector<16x65xf32>
    %c4_271 = arith.constant 4 : index
    %c0_272 = arith.constant 0 : index
    %c0_273 = arith.constant 0 : index
    %360 = vector.load %arg7[%c4_271, %c0_272, %c0_273] : memref<16x16x80xf32, #tpu.memory_space<vmem>>, vector<1x16x65xf32>
    %361 = vector.shape_cast %360 : vector<1x16x65xf32> to vector<16x65xf32>
    %c3_274 = arith.constant 3 : index
    %c4_275 = arith.constant 4 : index
    %362 = memref.load %arg4[%c3_274, %c4_275] : memref<16x16xf32, #tpu.memory_space<smem>>
    %363 = vector.broadcast %362 : f32 to vector<16x65xf32>
    %364 = arith.mulf %361, %363 : vector<16x65xf32>
    %365 = arith.addf %359, %364 : vector<16x65xf32>
    %c5_276 = arith.constant 5 : index
    %c0_277 = arith.constant 0 : index
    %c0_278 = arith.constant 0 : index
    %366 = vector.load %arg7[%c5_276, %c0_277, %c0_278] : memref<16x16x80xf32, #tpu.memory_space<vmem>>, vector<1x16x65xf32>
    %367 = vector.shape_cast %366 : vector<1x16x65xf32> to vector<16x65xf32>
    %c3_279 = arith.constant 3 : index
    %c5_280 = arith.constant 5 : index
    %368 = memref.load %arg4[%c3_279, %c5_280] : memref<16x16xf32, #tpu.memory_space<smem>>
    %369 = vector.broadcast %368 : f32 to vector<16x65xf32>
    %370 = arith.mulf %367, %369 : vector<16x65xf32>
    %371 = arith.addf %365, %370 : vector<16x65xf32>
    %c6_281 = arith.constant 6 : index
    %c0_282 = arith.constant 0 : index
    %c0_283 = arith.constant 0 : index
    %372 = vector.load %arg7[%c6_281, %c0_282, %c0_283] : memref<16x16x80xf32, #tpu.memory_space<vmem>>, vector<1x16x65xf32>
    %373 = vector.shape_cast %372 : vector<1x16x65xf32> to vector<16x65xf32>
    %c3_284 = arith.constant 3 : index
    %c6_285 = arith.constant 6 : index
    %374 = memref.load %arg4[%c3_284, %c6_285] : memref<16x16xf32, #tpu.memory_space<smem>>
    %375 = vector.broadcast %374 : f32 to vector<16x65xf32>
    %376 = arith.mulf %373, %375 : vector<16x65xf32>
    %377 = arith.addf %371, %376 : vector<16x65xf32>
    %c7_286 = arith.constant 7 : index
    %c0_287 = arith.constant 0 : index
    %c0_288 = arith.constant 0 : index
    %378 = vector.load %arg7[%c7_286, %c0_287, %c0_288] : memref<16x16x80xf32, #tpu.memory_space<vmem>>, vector<1x16x65xf32>
    %379 = vector.shape_cast %378 : vector<1x16x65xf32> to vector<16x65xf32>
    %c3_289 = arith.constant 3 : index
    %c7_290 = arith.constant 7 : index
    %380 = memref.load %arg4[%c3_289, %c7_290] : memref<16x16xf32, #tpu.memory_space<smem>>
    %381 = vector.broadcast %380 : f32 to vector<16x65xf32>
    %382 = arith.mulf %379, %381 : vector<16x65xf32>
    %383 = arith.addf %377, %382 : vector<16x65xf32>
    %c8_291 = arith.constant 8 : index
    %c0_292 = arith.constant 0 : index
    %c0_293 = arith.constant 0 : index
    %384 = vector.load %arg7[%c8_291, %c0_292, %c0_293] : memref<16x16x80xf32, #tpu.memory_space<vmem>>, vector<1x16x65xf32>
    %385 = vector.shape_cast %384 : vector<1x16x65xf32> to vector<16x65xf32>
    %c3_294 = arith.constant 3 : index
    %c8_295 = arith.constant 8 : index
    %386 = memref.load %arg4[%c3_294, %c8_295] : memref<16x16xf32, #tpu.memory_space<smem>>
    %387 = vector.broadcast %386 : f32 to vector<16x65xf32>
    %388 = arith.mulf %385, %387 : vector<16x65xf32>
    %389 = arith.addf %383, %388 : vector<16x65xf32>
    %c9_296 = arith.constant 9 : index
    %c0_297 = arith.constant 0 : index
    %c0_298 = arith.constant 0 : index
    %390 = vector.load %arg7[%c9_296, %c0_297, %c0_298] : memref<16x16x80xf32, #tpu.memory_space<vmem>>, vector<1x16x65xf32>
    %391 = vector.shape_cast %390 : vector<1x16x65xf32> to vector<16x65xf32>
    %c3_299 = arith.constant 3 : index
    %c9_300 = arith.constant 9 : index
    %392 = memref.load %arg4[%c3_299, %c9_300] : memref<16x16xf32, #tpu.memory_space<smem>>
    %393 = vector.broadcast %392 : f32 to vector<16x65xf32>
    %394 = arith.mulf %391, %393 : vector<16x65xf32>
    %395 = arith.addf %389, %394 : vector<16x65xf32>
    %c10_301 = arith.constant 10 : index
    %c0_302 = arith.constant 0 : index
    %c0_303 = arith.constant 0 : index
    %396 = vector.load %arg7[%c10_301, %c0_302, %c0_303] : memref<16x16x80xf32, #tpu.memory_space<vmem>>, vector<1x16x65xf32>
    %397 = vector.shape_cast %396 : vector<1x16x65xf32> to vector<16x65xf32>
    %c3_304 = arith.constant 3 : index
    %c10_305 = arith.constant 10 : index
    %398 = memref.load %arg4[%c3_304, %c10_305] : memref<16x16xf32, #tpu.memory_space<smem>>
    %399 = vector.broadcast %398 : f32 to vector<16x65xf32>
    %400 = arith.mulf %397, %399 : vector<16x65xf32>
    %401 = arith.addf %395, %400 : vector<16x65xf32>
    %c11_306 = arith.constant 11 : index
    %c0_307 = arith.constant 0 : index
    %c0_308 = arith.constant 0 : index
    %402 = vector.load %arg7[%c11_306, %c0_307, %c0_308] : memref<16x16x80xf32, #tpu.memory_space<vmem>>, vector<1x16x65xf32>
    %403 = vector.shape_cast %402 : vector<1x16x65xf32> to vector<16x65xf32>
    %c3_309 = arith.constant 3 : index
    %c11_310 = arith.constant 11 : index
    %404 = memref.load %arg4[%c3_309, %c11_310] : memref<16x16xf32, #tpu.memory_space<smem>>
    %405 = vector.broadcast %404 : f32 to vector<16x65xf32>
    %406 = arith.mulf %403, %405 : vector<16x65xf32>
    %407 = arith.addf %401, %406 : vector<16x65xf32>
    %c12_311 = arith.constant 12 : index
    %c0_312 = arith.constant 0 : index
    %c0_313 = arith.constant 0 : index
    %408 = vector.load %arg7[%c12_311, %c0_312, %c0_313] : memref<16x16x80xf32, #tpu.memory_space<vmem>>, vector<1x16x65xf32>
    %409 = vector.shape_cast %408 : vector<1x16x65xf32> to vector<16x65xf32>
    %c3_314 = arith.constant 3 : index
    %c12_315 = arith.constant 12 : index
    %410 = memref.load %arg4[%c3_314, %c12_315] : memref<16x16xf32, #tpu.memory_space<smem>>
    %411 = vector.broadcast %410 : f32 to vector<16x65xf32>
    %412 = arith.mulf %409, %411 : vector<16x65xf32>
    %413 = arith.addf %407, %412 : vector<16x65xf32>
    %c13_316 = arith.constant 13 : index
    %c0_317 = arith.constant 0 : index
    %c0_318 = arith.constant 0 : index
    %414 = vector.load %arg7[%c13_316, %c0_317, %c0_318] : memref<16x16x80xf32, #tpu.memory_space<vmem>>, vector<1x16x65xf32>
    %415 = vector.shape_cast %414 : vector<1x16x65xf32> to vector<16x65xf32>
    %c3_319 = arith.constant 3 : index
    %c13_320 = arith.constant 13 : index
    %416 = memref.load %arg4[%c3_319, %c13_320] : memref<16x16xf32, #tpu.memory_space<smem>>
    %417 = vector.broadcast %416 : f32 to vector<16x65xf32>
    %418 = arith.mulf %415, %417 : vector<16x65xf32>
    %419 = arith.addf %413, %418 : vector<16x65xf32>
    %c14_321 = arith.constant 14 : index
    %c0_322 = arith.constant 0 : index
    %c0_323 = arith.constant 0 : index
    %420 = vector.load %arg7[%c14_321, %c0_322, %c0_323] : memref<16x16x80xf32, #tpu.memory_space<vmem>>, vector<1x16x65xf32>
    %421 = vector.shape_cast %420 : vector<1x16x65xf32> to vector<16x65xf32>
    %c3_324 = arith.constant 3 : index
    %c14_325 = arith.constant 14 : index
    %422 = memref.load %arg4[%c3_324, %c14_325] : memref<16x16xf32, #tpu.memory_space<smem>>
    %423 = vector.broadcast %422 : f32 to vector<16x65xf32>
    %424 = arith.mulf %421, %423 : vector<16x65xf32>
    %425 = arith.addf %419, %424 : vector<16x65xf32>
    %c15_326 = arith.constant 15 : index
    %c0_327 = arith.constant 0 : index
    %c0_328 = arith.constant 0 : index
    %426 = vector.load %arg7[%c15_326, %c0_327, %c0_328] : memref<16x16x80xf32, #tpu.memory_space<vmem>>, vector<1x16x65xf32>
    %427 = vector.shape_cast %426 : vector<1x16x65xf32> to vector<16x65xf32>
    %c3_329 = arith.constant 3 : index
    %c15_330 = arith.constant 15 : index
    %428 = memref.load %arg4[%c3_329, %c15_330] : memref<16x16xf32, #tpu.memory_space<smem>>
    %429 = vector.broadcast %428 : f32 to vector<16x65xf32>
    %430 = arith.mulf %427, %429 : vector<16x65xf32>
    %431 = arith.addf %425, %430 : vector<16x65xf32>
    %c3_331 = arith.constant 3 : index
    %c3_332 = arith.constant 3 : index
    %432 = memref.load %arg5[%c3_331, %c3_332] : memref<16x4xf32, #tpu.memory_space<smem>>
    %433 = vector.broadcast %432 : f32 to vector<16x65xf32>
    %434 = arith.addf %431, %433 : vector<16x65xf32>
    %cst_333 = arith.constant 0.000000e+00 : f32
    %435 = vector.broadcast %cst_333 : f32 to vector<16x65xf32>
    %436 = arith.cmpf ogt, %434, %435 : vector<16x65xf32>
    %cst_334 = arith.constant 0.000000e+00 : f32
    %437 = vector.broadcast %cst_334 : f32 to vector<16x65xf32>
    %438 = arith.minimumf %434, %437 : vector<16x65xf32>
    %439 = math.exp %438 : vector<16x65xf32>
    %cst_335 = arith.constant 1.000000e+00 : f32
    %440 = vector.broadcast %cst_335 : f32 to vector<16x65xf32>
    %441 = arith.subf %439, %440 : vector<16x65xf32>
    %442 = arith.select %436, %434, %441 : vector<16x65xi1>, vector<16x65xf32>
    %cst_336 = arith.constant dense<0.000000e+00> : vector<16xf32>
    %443 = vector.multi_reduction <add>, %442, %cst_336 [1] : vector<16x65xf32> to vector<16xf32>
    %cst_337 = arith.constant 0.0153846154 : f32
    %444 = vector.broadcast %cst_337 : f32 to vector<16xf32>
    %445 = arith.mulf %443, %444 : vector<16xf32>
    %c3_338 = arith.constant 3 : index
    %c0_339 = arith.constant 0 : index
    %446 = vector.load %arg6[%c3_338, %c0_339] : memref<16x16xf32, #tpu.memory_space<vmem>>, vector<1x16xf32>
    %447 = vector.shape_cast %446 : vector<1x16xf32> to vector<16xf32>
    %448 = vector.shape_cast %445 : vector<16xf32> to vector<1x16xf32>
    tpu.vector_store %arg6[%c3_338, %c0_339], %448 {strides = array<i32>} : memref<16x16xf32, #tpu.memory_space<vmem>>, vector<1x16xf32>,
    %c0_340 = arith.constant 0 : index
    %c0_341 = arith.constant 0 : index
    %c0_342 = arith.constant 0 : index
    %449 = vector.load %arg7[%c0_340, %c0_341, %c0_342] : memref<16x16x80xf32, #tpu.memory_space<vmem>>, vector<1x16x65xf32>
    %450 = vector.shape_cast %449 : vector<1x16x65xf32> to vector<16x65xf32>
    %c4_343 = arith.constant 4 : index
    %c0_344 = arith.constant 0 : index
    %451 = memref.load %arg4[%c4_343, %c0_344] : memref<16x16xf32, #tpu.memory_space<smem>>
    %452 = vector.broadcast %451 : f32 to vector<16x65xf32>
    %453 = arith.mulf %450, %452 : vector<16x65xf32>
    %c1_345 = arith.constant 1 : index
    %c0_346 = arith.constant 0 : index
    %c0_347 = arith.constant 0 : index
    %454 = vector.load %arg7[%c1_345, %c0_346, %c0_347] : memref<16x16x80xf32, #tpu.memory_space<vmem>>, vector<1x16x65xf32>
    %455 = vector.shape_cast %454 : vector<1x16x65xf32> to vector<16x65xf32>
    %c4_348 = arith.constant 4 : index
    %c1_349 = arith.constant 1 : index
    %456 = memref.load %arg4[%c4_348, %c1_349] : memref<16x16xf32, #tpu.memory_space<smem>>
    %457 = vector.broadcast %456 : f32 to vector<16x65xf32>
    %458 = arith.mulf %455, %457 : vector<16x65xf32>
    %459 = arith.addf %453, %458 : vector<16x65xf32>
    %c2_350 = arith.constant 2 : index
    %c0_351 = arith.constant 0 : index
    %c0_352 = arith.constant 0 : index
    %460 = vector.load %arg7[%c2_350, %c0_351, %c0_352] : memref<16x16x80xf32, #tpu.memory_space<vmem>>, vector<1x16x65xf32>
    %461 = vector.shape_cast %460 : vector<1x16x65xf32> to vector<16x65xf32>
    %c4_353 = arith.constant 4 : index
    %c2_354 = arith.constant 2 : index
    %462 = memref.load %arg4[%c4_353, %c2_354] : memref<16x16xf32, #tpu.memory_space<smem>>
    %463 = vector.broadcast %462 : f32 to vector<16x65xf32>
    %464 = arith.mulf %461, %463 : vector<16x65xf32>
    %465 = arith.addf %459, %464 : vector<16x65xf32>
    %c3_355 = arith.constant 3 : index
    %c0_356 = arith.constant 0 : index
    %c0_357 = arith.constant 0 : index
    %466 = vector.load %arg7[%c3_355, %c0_356, %c0_357] : memref<16x16x80xf32, #tpu.memory_space<vmem>>, vector<1x16x65xf32>
    %467 = vector.shape_cast %466 : vector<1x16x65xf32> to vector<16x65xf32>
    %c4_358 = arith.constant 4 : index
    %c3_359 = arith.constant 3 : index
    %468 = memref.load %arg4[%c4_358, %c3_359] : memref<16x16xf32, #tpu.memory_space<smem>>
    %469 = vector.broadcast %468 : f32 to vector<16x65xf32>
    %470 = arith.mulf %467, %469 : vector<16x65xf32>
    %471 = arith.addf %465, %470 : vector<16x65xf32>
    %c4_360 = arith.constant 4 : index
    %c0_361 = arith.constant 0 : index
    %c0_362 = arith.constant 0 : index
    %472 = vector.load %arg7[%c4_360, %c0_361, %c0_362] : memref<16x16x80xf32, #tpu.memory_space<vmem>>, vector<1x16x65xf32>
    %473 = vector.shape_cast %472 : vector<1x16x65xf32> to vector<16x65xf32>
    %c4_363 = arith.constant 4 : index
    %c4_364 = arith.constant 4 : index
    %474 = memref.load %arg4[%c4_363, %c4_364] : memref<16x16xf32, #tpu.memory_space<smem>>
    %475 = vector.broadcast %474 : f32 to vector<16x65xf32>
    %476 = arith.mulf %473, %475 : vector<16x65xf32>
    %477 = arith.addf %471, %476 : vector<16x65xf32>
    %c5_365 = arith.constant 5 : index
    %c0_366 = arith.constant 0 : index
    %c0_367 = arith.constant 0 : index
    %478 = vector.load %arg7[%c5_365, %c0_366, %c0_367] : memref<16x16x80xf32, #tpu.memory_space<vmem>>, vector<1x16x65xf32>
    %479 = vector.shape_cast %478 : vector<1x16x65xf32> to vector<16x65xf32>
    %c4_368 = arith.constant 4 : index
    %c5_369 = arith.constant 5 : index
    %480 = memref.load %arg4[%c4_368, %c5_369] : memref<16x16xf32, #tpu.memory_space<smem>>
    %481 = vector.broadcast %480 : f32 to vector<16x65xf32>
    %482 = arith.mulf %479, %481 : vector<16x65xf32>
    %483 = arith.addf %477, %482 : vector<16x65xf32>
    %c6_370 = arith.constant 6 : index
    %c0_371 = arith.constant 0 : index
    %c0_372 = arith.constant 0 : index
    %484 = vector.load %arg7[%c6_370, %c0_371, %c0_372] : memref<16x16x80xf32, #tpu.memory_space<vmem>>, vector<1x16x65xf32>
    %485 = vector.shape_cast %484 : vector<1x16x65xf32> to vector<16x65xf32>
    %c4_373 = arith.constant 4 : index
    %c6_374 = arith.constant 6 : index
    %486 = memref.load %arg4[%c4_373, %c6_374] : memref<16x16xf32, #tpu.memory_space<smem>>
    %487 = vector.broadcast %486 : f32 to vector<16x65xf32>
    %488 = arith.mulf %485, %487 : vector<16x65xf32>
    %489 = arith.addf %483, %488 : vector<16x65xf32>
    %c7_375 = arith.constant 7 : index
    %c0_376 = arith.constant 0 : index
    %c0_377 = arith.constant 0 : index
    %490 = vector.load %arg7[%c7_375, %c0_376, %c0_377] : memref<16x16x80xf32, #tpu.memory_space<vmem>>, vector<1x16x65xf32>
    %491 = vector.shape_cast %490 : vector<1x16x65xf32> to vector<16x65xf32>
    %c4_378 = arith.constant 4 : index
    %c7_379 = arith.constant 7 : index
    %492 = memref.load %arg4[%c4_378, %c7_379] : memref<16x16xf32, #tpu.memory_space<smem>>
    %493 = vector.broadcast %492 : f32 to vector<16x65xf32>
    %494 = arith.mulf %491, %493 : vector<16x65xf32>
    %495 = arith.addf %489, %494 : vector<16x65xf32>
    %c8_380 = arith.constant 8 : index
    %c0_381 = arith.constant 0 : index
    %c0_382 = arith.constant 0 : index
    %496 = vector.load %arg7[%c8_380, %c0_381, %c0_382] : memref<16x16x80xf32, #tpu.memory_space<vmem>>, vector<1x16x65xf32>
    %497 = vector.shape_cast %496 : vector<1x16x65xf32> to vector<16x65xf32>
    %c4_383 = arith.constant 4 : index
    %c8_384 = arith.constant 8 : index
    %498 = memref.load %arg4[%c4_383, %c8_384] : memref<16x16xf32, #tpu.memory_space<smem>>
    %499 = vector.broadcast %498 : f32 to vector<16x65xf32>
    %500 = arith.mulf %497, %499 : vector<16x65xf32>
    %501 = arith.addf %495, %500 : vector<16x65xf32>
    %c9_385 = arith.constant 9 : index
    %c0_386 = arith.constant 0 : index
    %c0_387 = arith.constant 0 : index
    %502 = vector.load %arg7[%c9_385, %c0_386, %c0_387] : memref<16x16x80xf32, #tpu.memory_space<vmem>>, vector<1x16x65xf32>
    %503 = vector.shape_cast %502 : vector<1x16x65xf32> to vector<16x65xf32>
    %c4_388 = arith.constant 4 : index
    %c9_389 = arith.constant 9 : index
    %504 = memref.load %arg4[%c4_388, %c9_389] : memref<16x16xf32, #tpu.memory_space<smem>>
    %505 = vector.broadcast %504 : f32 to vector<16x65xf32>
    %506 = arith.mulf %503, %505 : vector<16x65xf32>
    %507 = arith.addf %501, %506 : vector<16x65xf32>
    %c10_390 = arith.constant 10 : index
    %c0_391 = arith.constant 0 : index
    %c0_392 = arith.constant 0 : index
    %508 = vector.load %arg7[%c10_390, %c0_391, %c0_392] : memref<16x16x80xf32, #tpu.memory_space<vmem>>, vector<1x16x65xf32>
    %509 = vector.shape_cast %508 : vector<1x16x65xf32> to vector<16x65xf32>
    %c4_393 = arith.constant 4 : index
    %c10_394 = arith.constant 10 : index
    %510 = memref.load %arg4[%c4_393, %c10_394] : memref<16x16xf32, #tpu.memory_space<smem>>
    %511 = vector.broadcast %510 : f32 to vector<16x65xf32>
    %512 = arith.mulf %509, %511 : vector<16x65xf32>
    %513 = arith.addf %507, %512 : vector<16x65xf32>
    %c11_395 = arith.constant 11 : index
    %c0_396 = arith.constant 0 : index
    %c0_397 = arith.constant 0 : index
    %514 = vector.load %arg7[%c11_395, %c0_396, %c0_397] : memref<16x16x80xf32, #tpu.memory_space<vmem>>, vector<1x16x65xf32>
    %515 = vector.shape_cast %514 : vector<1x16x65xf32> to vector<16x65xf32>
    %c4_398 = arith.constant 4 : index
    %c11_399 = arith.constant 11 : index
    %516 = memref.load %arg4[%c4_398, %c11_399] : memref<16x16xf32, #tpu.memory_space<smem>>
    %517 = vector.broadcast %516 : f32 to vector<16x65xf32>
    %518 = arith.mulf %515, %517 : vector<16x65xf32>
    %519 = arith.addf %513, %518 : vector<16x65xf32>
    %c12_400 = arith.constant 12 : index
    %c0_401 = arith.constant 0 : index
    %c0_402 = arith.constant 0 : index
    %520 = vector.load %arg7[%c12_400, %c0_401, %c0_402] : memref<16x16x80xf32, #tpu.memory_space<vmem>>, vector<1x16x65xf32>
    %521 = vector.shape_cast %520 : vector<1x16x65xf32> to vector<16x65xf32>
    %c4_403 = arith.constant 4 : index
    %c12_404 = arith.constant 12 : index
    %522 = memref.load %arg4[%c4_403, %c12_404] : memref<16x16xf32, #tpu.memory_space<smem>>
    %523 = vector.broadcast %522 : f32 to vector<16x65xf32>
    %524 = arith.mulf %521, %523 : vector<16x65xf32>
    %525 = arith.addf %519, %524 : vector<16x65xf32>
    %c13_405 = arith.constant 13 : index
    %c0_406 = arith.constant 0 : index
    %c0_407 = arith.constant 0 : index
    %526 = vector.load %arg7[%c13_405, %c0_406, %c0_407] : memref<16x16x80xf32, #tpu.memory_space<vmem>>, vector<1x16x65xf32>
    %527 = vector.shape_cast %526 : vector<1x16x65xf32> to vector<16x65xf32>
    %c4_408 = arith.constant 4 : index
    %c13_409 = arith.constant 13 : index
    %528 = memref.load %arg4[%c4_408, %c13_409] : memref<16x16xf32, #tpu.memory_space<smem>>
    %529 = vector.broadcast %528 : f32 to vector<16x65xf32>
    %530 = arith.mulf %527, %529 : vector<16x65xf32>
    %531 = arith.addf %525, %530 : vector<16x65xf32>
    %c14_410 = arith.constant 14 : index
    %c0_411 = arith.constant 0 : index
    %c0_412 = arith.constant 0 : index
    %532 = vector.load %arg7[%c14_410, %c0_411, %c0_412] : memref<16x16x80xf32, #tpu.memory_space<vmem>>, vector<1x16x65xf32>
    %533 = vector.shape_cast %532 : vector<1x16x65xf32> to vector<16x65xf32>
    %c4_413 = arith.constant 4 : index
    %c14_414 = arith.constant 14 : index
    %534 = memref.load %arg4[%c4_413, %c14_414] : memref<16x16xf32, #tpu.memory_space<smem>>
    %535 = vector.broadcast %534 : f32 to vector<16x65xf32>
    %536 = arith.mulf %533, %535 : vector<16x65xf32>
    %537 = arith.addf %531, %536 : vector<16x65xf32>
    %c15_415 = arith.constant 15 : index
    %c0_416 = arith.constant 0 : index
    %c0_417 = arith.constant 0 : index
    %538 = vector.load %arg7[%c15_415, %c0_416, %c0_417] : memref<16x16x80xf32, #tpu.memory_space<vmem>>, vector<1x16x65xf32>
    %539 = vector.shape_cast %538 : vector<1x16x65xf32> to vector<16x65xf32>
    %c4_418 = arith.constant 4 : index
    %c15_419 = arith.constant 15 : index
    %540 = memref.load %arg4[%c4_418, %c15_419] : memref<16x16xf32, #tpu.memory_space<smem>>
    %541 = vector.broadcast %540 : f32 to vector<16x65xf32>
    %542 = arith.mulf %539, %541 : vector<16x65xf32>
    %543 = arith.addf %537, %542 : vector<16x65xf32>
    %c4_420 = arith.constant 4 : index
    %c3_421 = arith.constant 3 : index
    %544 = memref.load %arg5[%c4_420, %c3_421] : memref<16x4xf32, #tpu.memory_space<smem>>
    %545 = vector.broadcast %544 : f32 to vector<16x65xf32>
    %546 = arith.addf %543, %545 : vector<16x65xf32>
    %cst_422 = arith.constant 0.000000e+00 : f32
    %547 = vector.broadcast %cst_422 : f32 to vector<16x65xf32>
    %548 = arith.cmpf ogt, %546, %547 : vector<16x65xf32>
    %cst_423 = arith.constant 0.000000e+00 : f32
    %549 = vector.broadcast %cst_423 : f32 to vector<16x65xf32>
    %550 = arith.minimumf %546, %549 : vector<16x65xf32>
    %551 = math.exp %550 : vector<16x65xf32>
    %cst_424 = arith.constant 1.000000e+00 : f32
    %552 = vector.broadcast %cst_424 : f32 to vector<16x65xf32>
    %553 = arith.subf %551, %552 : vector<16x65xf32>
    %554 = arith.select %548, %546, %553 : vector<16x65xi1>, vector<16x65xf32>
    %cst_425 = arith.constant dense<0.000000e+00> : vector<16xf32>
    %555 = vector.multi_reduction <add>, %554, %cst_425 [1] : vector<16x65xf32> to vector<16xf32>
    %cst_426 = arith.constant 0.0153846154 : f32
    %556 = vector.broadcast %cst_426 : f32 to vector<16xf32>
    %557 = arith.mulf %555, %556 : vector<16xf32>
    %c4_427 = arith.constant 4 : index
    %c0_428 = arith.constant 0 : index
    %558 = vector.load %arg6[%c4_427, %c0_428] : memref<16x16xf32, #tpu.memory_space<vmem>>, vector<1x16xf32>
    %559 = vector.shape_cast %558 : vector<1x16xf32> to vector<16xf32>
    %560 = vector.shape_cast %557 : vector<16xf32> to vector<1x16xf32>
    tpu.vector_store %arg6[%c4_427, %c0_428], %560 {strides = array<i32>} : memref<16x16xf32, #tpu.memory_space<vmem>>, vector<1x16xf32>,
    %c0_429 = arith.constant 0 : index
    %c0_430 = arith.constant 0 : index
    %c0_431 = arith.constant 0 : index
    %561 = vector.load %arg7[%c0_429, %c0_430, %c0_431] : memref<16x16x80xf32, #tpu.memory_space<vmem>>, vector<1x16x65xf32>
    %562 = vector.shape_cast %561 : vector<1x16x65xf32> to vector<16x65xf32>
    %c5_432 = arith.constant 5 : index
    %c0_433 = arith.constant 0 : index
    %563 = memref.load %arg4[%c5_432, %c0_433] : memref<16x16xf32, #tpu.memory_space<smem>>
    %564 = vector.broadcast %563 : f32 to vector<16x65xf32>
    %565 = arith.mulf %562, %564 : vector<16x65xf32>
    %c1_434 = arith.constant 1 : index
    %c0_435 = arith.constant 0 : index
    %c0_436 = arith.constant 0 : index
    %566 = vector.load %arg7[%c1_434, %c0_435, %c0_436] : memref<16x16x80xf32, #tpu.memory_space<vmem>>, vector<1x16x65xf32>
    %567 = vector.shape_cast %566 : vector<1x16x65xf32> to vector<16x65xf32>
    %c5_437 = arith.constant 5 : index
    %c1_438 = arith.constant 1 : index
    %568 = memref.load %arg4[%c5_437, %c1_438] : memref<16x16xf32, #tpu.memory_space<smem>>
    %569 = vector.broadcast %568 : f32 to vector<16x65xf32>
    %570 = arith.mulf %567, %569 : vector<16x65xf32>
    %571 = arith.addf %565, %570 : vector<16x65xf32>
    %c2_439 = arith.constant 2 : index
    %c0_440 = arith.constant 0 : index
    %c0_441 = arith.constant 0 : index
    %572 = vector.load %arg7[%c2_439, %c0_440, %c0_441] : memref<16x16x80xf32, #tpu.memory_space<vmem>>, vector<1x16x65xf32>
    %573 = vector.shape_cast %572 : vector<1x16x65xf32> to vector<16x65xf32>
    %c5_442 = arith.constant 5 : index
    %c2_443 = arith.constant 2 : index
    %574 = memref.load %arg4[%c5_442, %c2_443] : memref<16x16xf32, #tpu.memory_space<smem>>
    %575 = vector.broadcast %574 : f32 to vector<16x65xf32>
    %576 = arith.mulf %573, %575 : vector<16x65xf32>
    %577 = arith.addf %571, %576 : vector<16x65xf32>
    %c3_444 = arith.constant 3 : index
    %c0_445 = arith.constant 0 : index
    %c0_446 = arith.constant 0 : index
    %578 = vector.load %arg7[%c3_444, %c0_445, %c0_446] : memref<16x16x80xf32, #tpu.memory_space<vmem>>, vector<1x16x65xf32>
    %579 = vector.shape_cast %578 : vector<1x16x65xf32> to vector<16x65xf32>
    %c5_447 = arith.constant 5 : index
    %c3_448 = arith.constant 3 : index
    %580 = memref.load %arg4[%c5_447, %c3_448] : memref<16x16xf32, #tpu.memory_space<smem>>
    %581 = vector.broadcast %580 : f32 to vector<16x65xf32>
    %582 = arith.mulf %579, %581 : vector<16x65xf32>
    %583 = arith.addf %577, %582 : vector<16x65xf32>
    %c4_449 = arith.constant 4 : index
    %c0_450 = arith.constant 0 : index
    %c0_451 = arith.constant 0 : index
    %584 = vector.load %arg7[%c4_449, %c0_450, %c0_451] : memref<16x16x80xf32, #tpu.memory_space<vmem>>, vector<1x16x65xf32>
    %585 = vector.shape_cast %584 : vector<1x16x65xf32> to vector<16x65xf32>
    %c5_452 = arith.constant 5 : index
    %c4_453 = arith.constant 4 : index
    %586 = memref.load %arg4[%c5_452, %c4_453] : memref<16x16xf32, #tpu.memory_space<smem>>
    %587 = vector.broadcast %586 : f32 to vector<16x65xf32>
    %588 = arith.mulf %585, %587 : vector<16x65xf32>
    %589 = arith.addf %583, %588 : vector<16x65xf32>
    %c5_454 = arith.constant 5 : index
    %c0_455 = arith.constant 0 : index
    %c0_456 = arith.constant 0 : index
    %590 = vector.load %arg7[%c5_454, %c0_455, %c0_456] : memref<16x16x80xf32, #tpu.memory_space<vmem>>, vector<1x16x65xf32>
    %591 = vector.shape_cast %590 : vector<1x16x65xf32> to vector<16x65xf32>
    %c5_457 = arith.constant 5 : index
    %c5_458 = arith.constant 5 : index
    %592 = memref.load %arg4[%c5_457, %c5_458] : memref<16x16xf32, #tpu.memory_space<smem>>
    %593 = vector.broadcast %592 : f32 to vector<16x65xf32>
    %594 = arith.mulf %591, %593 : vector<16x65xf32>
    %595 = arith.addf %589, %594 : vector<16x65xf32>
    %c6_459 = arith.constant 6 : index
    %c0_460 = arith.constant 0 : index
    %c0_461 = arith.constant 0 : index
    %596 = vector.load %arg7[%c6_459, %c0_460, %c0_461] : memref<16x16x80xf32, #tpu.memory_space<vmem>>, vector<1x16x65xf32>
    %597 = vector.shape_cast %596 : vector<1x16x65xf32> to vector<16x65xf32>
    %c5_462 = arith.constant 5 : index
    %c6_463 = arith.constant 6 : index
    %598 = memref.load %arg4[%c5_462, %c6_463] : memref<16x16xf32, #tpu.memory_space<smem>>
    %599 = vector.broadcast %598 : f32 to vector<16x65xf32>
    %600 = arith.mulf %597, %599 : vector<16x65xf32>
    %601 = arith.addf %595, %600 : vector<16x65xf32>
    %c7_464 = arith.constant 7 : index
    %c0_465 = arith.constant 0 : index
    %c0_466 = arith.constant 0 : index
    %602 = vector.load %arg7[%c7_464, %c0_465, %c0_466] : memref<16x16x80xf32, #tpu.memory_space<vmem>>, vector<1x16x65xf32>
    %603 = vector.shape_cast %602 : vector<1x16x65xf32> to vector<16x65xf32>
    %c5_467 = arith.constant 5 : index
    %c7_468 = arith.constant 7 : index
    %604 = memref.load %arg4[%c5_467, %c7_468] : memref<16x16xf32, #tpu.memory_space<smem>>
    %605 = vector.broadcast %604 : f32 to vector<16x65xf32>
    %606 = arith.mulf %603, %605 : vector<16x65xf32>
    %607 = arith.addf %601, %606 : vector<16x65xf32>
    %c8_469 = arith.constant 8 : index
    %c0_470 = arith.constant 0 : index
    %c0_471 = arith.constant 0 : index
    %608 = vector.load %arg7[%c8_469, %c0_470, %c0_471] : memref<16x16x80xf32, #tpu.memory_space<vmem>>, vector<1x16x65xf32>
    %609 = vector.shape_cast %608 : vector<1x16x65xf32> to vector<16x65xf32>
    %c5_472 = arith.constant 5 : index
    %c8_473 = arith.constant 8 : index
    %610 = memref.load %arg4[%c5_472, %c8_473] : memref<16x16xf32, #tpu.memory_space<smem>>
    %611 = vector.broadcast %610 : f32 to vector<16x65xf32>
    %612 = arith.mulf %609, %611 : vector<16x65xf32>
    %613 = arith.addf %607, %612 : vector<16x65xf32>
    %c9_474 = arith.constant 9 : index
    %c0_475 = arith.constant 0 : index
    %c0_476 = arith.constant 0 : index
    %614 = vector.load %arg7[%c9_474, %c0_475, %c0_476] : memref<16x16x80xf32, #tpu.memory_space<vmem>>, vector<1x16x65xf32>
    %615 = vector.shape_cast %614 : vector<1x16x65xf32> to vector<16x65xf32>
    %c5_477 = arith.constant 5 : index
    %c9_478 = arith.constant 9 : index
    %616 = memref.load %arg4[%c5_477, %c9_478] : memref<16x16xf32, #tpu.memory_space<smem>>
    %617 = vector.broadcast %616 : f32 to vector<16x65xf32>
    %618 = arith.mulf %615, %617 : vector<16x65xf32>
    %619 = arith.addf %613, %618 : vector<16x65xf32>
    %c10_479 = arith.constant 10 : index
    %c0_480 = arith.constant 0 : index
    %c0_481 = arith.constant 0 : index
    %620 = vector.load %arg7[%c10_479, %c0_480, %c0_481] : memref<16x16x80xf32, #tpu.memory_space<vmem>>, vector<1x16x65xf32>
    %621 = vector.shape_cast %620 : vector<1x16x65xf32> to vector<16x65xf32>
    %c5_482 = arith.constant 5 : index
    %c10_483 = arith.constant 10 : index
    %622 = memref.load %arg4[%c5_482, %c10_483] : memref<16x16xf32, #tpu.memory_space<smem>>
    %623 = vector.broadcast %622 : f32 to vector<16x65xf32>
    %624 = arith.mulf %621, %623 : vector<16x65xf32>
    %625 = arith.addf %619, %624 : vector<16x65xf32>
    %c11_484 = arith.constant 11 : index
    %c0_485 = arith.constant 0 : index
    %c0_486 = arith.constant 0 : index
    %626 = vector.load %arg7[%c11_484, %c0_485, %c0_486] : memref<16x16x80xf32, #tpu.memory_space<vmem>>, vector<1x16x65xf32>
    %627 = vector.shape_cast %626 : vector<1x16x65xf32> to vector<16x65xf32>
    %c5_487 = arith.constant 5 : index
    %c11_488 = arith.constant 11 : index
    %628 = memref.load %arg4[%c5_487, %c11_488] : memref<16x16xf32, #tpu.memory_space<smem>>
    %629 = vector.broadcast %628 : f32 to vector<16x65xf32>
    %630 = arith.mulf %627, %629 : vector<16x65xf32>
    %631 = arith.addf %625, %630 : vector<16x65xf32>
    %c12_489 = arith.constant 12 : index
    %c0_490 = arith.constant 0 : index
    %c0_491 = arith.constant 0 : index
    %632 = vector.load %arg7[%c12_489, %c0_490, %c0_491] : memref<16x16x80xf32, #tpu.memory_space<vmem>>, vector<1x16x65xf32>
    %633 = vector.shape_cast %632 : vector<1x16x65xf32> to vector<16x65xf32>
    %c5_492 = arith.constant 5 : index
    %c12_493 = arith.constant 12 : index
    %634 = memref.load %arg4[%c5_492, %c12_493] : memref<16x16xf32, #tpu.memory_space<smem>>
    %635 = vector.broadcast %634 : f32 to vector<16x65xf32>
    %636 = arith.mulf %633, %635 : vector<16x65xf32>
    %637 = arith.addf %631, %636 : vector<16x65xf32>
    %c13_494 = arith.constant 13 : index
    %c0_495 = arith.constant 0 : index
    %c0_496 = arith.constant 0 : index
    %638 = vector.load %arg7[%c13_494, %c0_495, %c0_496] : memref<16x16x80xf32, #tpu.memory_space<vmem>>, vector<1x16x65xf32>
    %639 = vector.shape_cast %638 : vector<1x16x65xf32> to vector<16x65xf32>
    %c5_497 = arith.constant 5 : index
    %c13_498 = arith.constant 13 : index
    %640 = memref.load %arg4[%c5_497, %c13_498] : memref<16x16xf32, #tpu.memory_space<smem>>
    %641 = vector.broadcast %640 : f32 to vector<16x65xf32>
    %642 = arith.mulf %639, %641 : vector<16x65xf32>
    %643 = arith.addf %637, %642 : vector<16x65xf32>
    %c14_499 = arith.constant 14 : index
    %c0_500 = arith.constant 0 : index
    %c0_501 = arith.constant 0 : index
    %644 = vector.load %arg7[%c14_499, %c0_500, %c0_501] : memref<16x16x80xf32, #tpu.memory_space<vmem>>, vector<1x16x65xf32>
    %645 = vector.shape_cast %644 : vector<1x16x65xf32> to vector<16x65xf32>
    %c5_502 = arith.constant 5 : index
    %c14_503 = arith.constant 14 : index
    %646 = memref.load %arg4[%c5_502, %c14_503] : memref<16x16xf32, #tpu.memory_space<smem>>
    %647 = vector.broadcast %646 : f32 to vector<16x65xf32>
    %648 = arith.mulf %645, %647 : vector<16x65xf32>
    %649 = arith.addf %643, %648 : vector<16x65xf32>
    %c15_504 = arith.constant 15 : index
    %c0_505 = arith.constant 0 : index
    %c0_506 = arith.constant 0 : index
    %650 = vector.load %arg7[%c15_504, %c0_505, %c0_506] : memref<16x16x80xf32, #tpu.memory_space<vmem>>, vector<1x16x65xf32>
    %651 = vector.shape_cast %650 : vector<1x16x65xf32> to vector<16x65xf32>
    %c5_507 = arith.constant 5 : index
    %c15_508 = arith.constant 15 : index
    %652 = memref.load %arg4[%c5_507, %c15_508] : memref<16x16xf32, #tpu.memory_space<smem>>
    %653 = vector.broadcast %652 : f32 to vector<16x65xf32>
    %654 = arith.mulf %651, %653 : vector<16x65xf32>
    %655 = arith.addf %649, %654 : vector<16x65xf32>
    %c5_509 = arith.constant 5 : index
    %c3_510 = arith.constant 3 : index
    %656 = memref.load %arg5[%c5_509, %c3_510] : memref<16x4xf32, #tpu.memory_space<smem>>
    %657 = vector.broadcast %656 : f32 to vector<16x65xf32>
    %658 = arith.addf %655, %657 : vector<16x65xf32>
    %cst_511 = arith.constant 0.000000e+00 : f32
    %659 = vector.broadcast %cst_511 : f32 to vector<16x65xf32>
    %660 = arith.cmpf ogt, %658, %659 : vector<16x65xf32>
    %cst_512 = arith.constant 0.000000e+00 : f32
    %661 = vector.broadcast %cst_512 : f32 to vector<16x65xf32>
    %662 = arith.minimumf %658, %661 : vector<16x65xf32>
    %663 = math.exp %662 : vector<16x65xf32>
    %cst_513 = arith.constant 1.000000e+00 : f32
    %664 = vector.broadcast %cst_513 : f32 to vector<16x65xf32>
    %665 = arith.subf %663, %664 : vector<16x65xf32>
    %666 = arith.select %660, %658, %665 : vector<16x65xi1>, vector<16x65xf32>
    %cst_514 = arith.constant dense<0.000000e+00> : vector<16xf32>
    %667 = vector.multi_reduction <add>, %666, %cst_514 [1] : vector<16x65xf32> to vector<16xf32>
    %cst_515 = arith.constant 0.0153846154 : f32
    %668 = vector.broadcast %cst_515 : f32 to vector<16xf32>
    %669 = arith.mulf %667, %668 : vector<16xf32>
    %c5_516 = arith.constant 5 : index
    %c0_517 = arith.constant 0 : index
    %670 = vector.load %arg6[%c5_516, %c0_517] : memref<16x16xf32, #tpu.memory_space<vmem>>, vector<1x16xf32>
    %671 = vector.shape_cast %670 : vector<1x16xf32> to vector<16xf32>
    %672 = vector.shape_cast %669 : vector<16xf32> to vector<1x16xf32>
    tpu.vector_store %arg6[%c5_516, %c0_517], %672 {strides = array<i32>} : memref<16x16xf32, #tpu.memory_space<vmem>>, vector<1x16xf32>,
    %c0_518 = arith.constant 0 : index
    %c0_519 = arith.constant 0 : index
    %c0_520 = arith.constant 0 : index
    %673 = vector.load %arg7[%c0_518, %c0_519, %c0_520] : memref<16x16x80xf32, #tpu.memory_space<vmem>>, vector<1x16x65xf32>
    %674 = vector.shape_cast %673 : vector<1x16x65xf32> to vector<16x65xf32>
    %c6_521 = arith.constant 6 : index
    %c0_522 = arith.constant 0 : index
    %675 = memref.load %arg4[%c6_521, %c0_522] : memref<16x16xf32, #tpu.memory_space<smem>>
    %676 = vector.broadcast %675 : f32 to vector<16x65xf32>
    %677 = arith.mulf %674, %676 : vector<16x65xf32>
    %c1_523 = arith.constant 1 : index
    %c0_524 = arith.constant 0 : index
    %c0_525 = arith.constant 0 : index
    %678 = vector.load %arg7[%c1_523, %c0_524, %c0_525] : memref<16x16x80xf32, #tpu.memory_space<vmem>>, vector<1x16x65xf32>
    %679 = vector.shape_cast %678 : vector<1x16x65xf32> to vector<16x65xf32>
    %c6_526 = arith.constant 6 : index
    %c1_527 = arith.constant 1 : index
    %680 = memref.load %arg4[%c6_526, %c1_527] : memref<16x16xf32, #tpu.memory_space<smem>>
    %681 = vector.broadcast %680 : f32 to vector<16x65xf32>
    %682 = arith.mulf %679, %681 : vector<16x65xf32>
    %683 = arith.addf %677, %682 : vector<16x65xf32>
    %c2_528 = arith.constant 2 : index
    %c0_529 = arith.constant 0 : index
    %c0_530 = arith.constant 0 : index
    %684 = vector.load %arg7[%c2_528, %c0_529, %c0_530] : memref<16x16x80xf32, #tpu.memory_space<vmem>>, vector<1x16x65xf32>
    %685 = vector.shape_cast %684 : vector<1x16x65xf32> to vector<16x65xf32>
    %c6_531 = arith.constant 6 : index
    %c2_532 = arith.constant 2 : index
    %686 = memref.load %arg4[%c6_531, %c2_532] : memref<16x16xf32, #tpu.memory_space<smem>>
    %687 = vector.broadcast %686 : f32 to vector<16x65xf32>
    %688 = arith.mulf %685, %687 : vector<16x65xf32>
    %689 = arith.addf %683, %688 : vector<16x65xf32>
    %c3_533 = arith.constant 3 : index
    %c0_534 = arith.constant 0 : index
    %c0_535 = arith.constant 0 : index
    %690 = vector.load %arg7[%c3_533, %c0_534, %c0_535] : memref<16x16x80xf32, #tpu.memory_space<vmem>>, vector<1x16x65xf32>
    %691 = vector.shape_cast %690 : vector<1x16x65xf32> to vector<16x65xf32>
    %c6_536 = arith.constant 6 : index
    %c3_537 = arith.constant 3 : index
    %692 = memref.load %arg4[%c6_536, %c3_537] : memref<16x16xf32, #tpu.memory_space<smem>>
    %693 = vector.broadcast %692 : f32 to vector<16x65xf32>
    %694 = arith.mulf %691, %693 : vector<16x65xf32>
    %695 = arith.addf %689, %694 : vector<16x65xf32>
    %c4_538 = arith.constant 4 : index
    %c0_539 = arith.constant 0 : index
    %c0_540 = arith.constant 0 : index
    %696 = vector.load %arg7[%c4_538, %c0_539, %c0_540] : memref<16x16x80xf32, #tpu.memory_space<vmem>>, vector<1x16x65xf32>
    %697 = vector.shape_cast %696 : vector<1x16x65xf32> to vector<16x65xf32>
    %c6_541 = arith.constant 6 : index
    %c4_542 = arith.constant 4 : index
    %698 = memref.load %arg4[%c6_541, %c4_542] : memref<16x16xf32, #tpu.memory_space<smem>>
    %699 = vector.broadcast %698 : f32 to vector<16x65xf32>
    %700 = arith.mulf %697, %699 : vector<16x65xf32>
    %701 = arith.addf %695, %700 : vector<16x65xf32>
    %c5_543 = arith.constant 5 : index
    %c0_544 = arith.constant 0 : index
    %c0_545 = arith.constant 0 : index
    %702 = vector.load %arg7[%c5_543, %c0_544, %c0_545] : memref<16x16x80xf32, #tpu.memory_space<vmem>>, vector<1x16x65xf32>
    %703 = vector.shape_cast %702 : vector<1x16x65xf32> to vector<16x65xf32>
    %c6_546 = arith.constant 6 : index
    %c5_547 = arith.constant 5 : index
    %704 = memref.load %arg4[%c6_546, %c5_547] : memref<16x16xf32, #tpu.memory_space<smem>>
    %705 = vector.broadcast %704 : f32 to vector<16x65xf32>
    %706 = arith.mulf %703, %705 : vector<16x65xf32>
    %707 = arith.addf %701, %706 : vector<16x65xf32>
    %c6_548 = arith.constant 6 : index
    %c0_549 = arith.constant 0 : index
    %c0_550 = arith.constant 0 : index
    %708 = vector.load %arg7[%c6_548, %c0_549, %c0_550] : memref<16x16x80xf32, #tpu.memory_space<vmem>>, vector<1x16x65xf32>
    %709 = vector.shape_cast %708 : vector<1x16x65xf32> to vector<16x65xf32>
    %c6_551 = arith.constant 6 : index
    %c6_552 = arith.constant 6 : index
    %710 = memref.load %arg4[%c6_551, %c6_552] : memref<16x16xf32, #tpu.memory_space<smem>>
    %711 = vector.broadcast %710 : f32 to vector<16x65xf32>
    %712 = arith.mulf %709, %711 : vector<16x65xf32>
    %713 = arith.addf %707, %712 : vector<16x65xf32>
    %c7_553 = arith.constant 7 : index
    %c0_554 = arith.constant 0 : index
    %c0_555 = arith.constant 0 : index
    %714 = vector.load %arg7[%c7_553, %c0_554, %c0_555] : memref<16x16x80xf32, #tpu.memory_space<vmem>>, vector<1x16x65xf32>
    %715 = vector.shape_cast %714 : vector<1x16x65xf32> to vector<16x65xf32>
    %c6_556 = arith.constant 6 : index
    %c7_557 = arith.constant 7 : index
    %716 = memref.load %arg4[%c6_556, %c7_557] : memref<16x16xf32, #tpu.memory_space<smem>>
    %717 = vector.broadcast %716 : f32 to vector<16x65xf32>
    %718 = arith.mulf %715, %717 : vector<16x65xf32>
    %719 = arith.addf %713, %718 : vector<16x65xf32>
    %c8_558 = arith.constant 8 : index
    %c0_559 = arith.constant 0 : index
    %c0_560 = arith.constant 0 : index
    %720 = vector.load %arg7[%c8_558, %c0_559, %c0_560] : memref<16x16x80xf32, #tpu.memory_space<vmem>>, vector<1x16x65xf32>
    %721 = vector.shape_cast %720 : vector<1x16x65xf32> to vector<16x65xf32>
    %c6_561 = arith.constant 6 : index
    %c8_562 = arith.constant 8 : index
    %722 = memref.load %arg4[%c6_561, %c8_562] : memref<16x16xf32, #tpu.memory_space<smem>>
    %723 = vector.broadcast %722 : f32 to vector<16x65xf32>
    %724 = arith.mulf %721, %723 : vector<16x65xf32>
    %725 = arith.addf %719, %724 : vector<16x65xf32>
    %c9_563 = arith.constant 9 : index
    %c0_564 = arith.constant 0 : index
    %c0_565 = arith.constant 0 : index
    %726 = vector.load %arg7[%c9_563, %c0_564, %c0_565] : memref<16x16x80xf32, #tpu.memory_space<vmem>>, vector<1x16x65xf32>
    %727 = vector.shape_cast %726 : vector<1x16x65xf32> to vector<16x65xf32>
    %c6_566 = arith.constant 6 : index
    %c9_567 = arith.constant 9 : index
    %728 = memref.load %arg4[%c6_566, %c9_567] : memref<16x16xf32, #tpu.memory_space<smem>>
    %729 = vector.broadcast %728 : f32 to vector<16x65xf32>
    %730 = arith.mulf %727, %729 : vector<16x65xf32>
    %731 = arith.addf %725, %730 : vector<16x65xf32>
    %c10_568 = arith.constant 10 : index
    %c0_569 = arith.constant 0 : index
    %c0_570 = arith.constant 0 : index
    %732 = vector.load %arg7[%c10_568, %c0_569, %c0_570] : memref<16x16x80xf32, #tpu.memory_space<vmem>>, vector<1x16x65xf32>
    %733 = vector.shape_cast %732 : vector<1x16x65xf32> to vector<16x65xf32>
    %c6_571 = arith.constant 6 : index
    %c10_572 = arith.constant 10 : index
    %734 = memref.load %arg4[%c6_571, %c10_572] : memref<16x16xf32, #tpu.memory_space<smem>>
    %735 = vector.broadcast %734 : f32 to vector<16x65xf32>
    %736 = arith.mulf %733, %735 : vector<16x65xf32>
    %737 = arith.addf %731, %736 : vector<16x65xf32>
    %c11_573 = arith.constant 11 : index
    %c0_574 = arith.constant 0 : index
    %c0_575 = arith.constant 0 : index
    %738 = vector.load %arg7[%c11_573, %c0_574, %c0_575] : memref<16x16x80xf32, #tpu.memory_space<vmem>>, vector<1x16x65xf32>
    %739 = vector.shape_cast %738 : vector<1x16x65xf32> to vector<16x65xf32>
    %c6_576 = arith.constant 6 : index
    %c11_577 = arith.constant 11 : index
    %740 = memref.load %arg4[%c6_576, %c11_577] : memref<16x16xf32, #tpu.memory_space<smem>>
    %741 = vector.broadcast %740 : f32 to vector<16x65xf32>
    %742 = arith.mulf %739, %741 : vector<16x65xf32>
    %743 = arith.addf %737, %742 : vector<16x65xf32>
    %c12_578 = arith.constant 12 : index
    %c0_579 = arith.constant 0 : index
    %c0_580 = arith.constant 0 : index
    %744 = vector.load %arg7[%c12_578, %c0_579, %c0_580] : memref<16x16x80xf32, #tpu.memory_space<vmem>>, vector<1x16x65xf32>
    %745 = vector.shape_cast %744 : vector<1x16x65xf32> to vector<16x65xf32>
    %c6_581 = arith.constant 6 : index
    %c12_582 = arith.constant 12 : index
    %746 = memref.load %arg4[%c6_581, %c12_582] : memref<16x16xf32, #tpu.memory_space<smem>>
    %747 = vector.broadcast %746 : f32 to vector<16x65xf32>
    %748 = arith.mulf %745, %747 : vector<16x65xf32>
    %749 = arith.addf %743, %748 : vector<16x65xf32>
    %c13_583 = arith.constant 13 : index
    %c0_584 = arith.constant 0 : index
    %c0_585 = arith.constant 0 : index
    %750 = vector.load %arg7[%c13_583, %c0_584, %c0_585] : memref<16x16x80xf32, #tpu.memory_space<vmem>>, vector<1x16x65xf32>
    %751 = vector.shape_cast %750 : vector<1x16x65xf32> to vector<16x65xf32>
    %c6_586 = arith.constant 6 : index
    %c13_587 = arith.constant 13 : index
    %752 = memref.load %arg4[%c6_586, %c13_587] : memref<16x16xf32, #tpu.memory_space<smem>>
    %753 = vector.broadcast %752 : f32 to vector<16x65xf32>
    %754 = arith.mulf %751, %753 : vector<16x65xf32>
    %755 = arith.addf %749, %754 : vector<16x65xf32>
    %c14_588 = arith.constant 14 : index
    %c0_589 = arith.constant 0 : index
    %c0_590 = arith.constant 0 : index
    %756 = vector.load %arg7[%c14_588, %c0_589, %c0_590] : memref<16x16x80xf32, #tpu.memory_space<vmem>>, vector<1x16x65xf32>
    %757 = vector.shape_cast %756 : vector<1x16x65xf32> to vector<16x65xf32>
    %c6_591 = arith.constant 6 : index
    %c14_592 = arith.constant 14 : index
    %758 = memref.load %arg4[%c6_591, %c14_592] : memref<16x16xf32, #tpu.memory_space<smem>>
    %759 = vector.broadcast %758 : f32 to vector<16x65xf32>
    %760 = arith.mulf %757, %759 : vector<16x65xf32>
    %761 = arith.addf %755, %760 : vector<16x65xf32>
    %c15_593 = arith.constant 15 : index
    %c0_594 = arith.constant 0 : index
    %c0_595 = arith.constant 0 : index
    %762 = vector.load %arg7[%c15_593, %c0_594, %c0_595] : memref<16x16x80xf32, #tpu.memory_space<vmem>>, vector<1x16x65xf32>
    %763 = vector.shape_cast %762 : vector<1x16x65xf32> to vector<16x65xf32>
    %c6_596 = arith.constant 6 : index
    %c15_597 = arith.constant 15 : index
    %764 = memref.load %arg4[%c6_596, %c15_597] : memref<16x16xf32, #tpu.memory_space<smem>>
    %765 = vector.broadcast %764 : f32 to vector<16x65xf32>
    %766 = arith.mulf %763, %765 : vector<16x65xf32>
    %767 = arith.addf %761, %766 : vector<16x65xf32>
    %c6_598 = arith.constant 6 : index
    %c3_599 = arith.constant 3 : index
    %768 = memref.load %arg5[%c6_598, %c3_599] : memref<16x4xf32, #tpu.memory_space<smem>>
    %769 = vector.broadcast %768 : f32 to vector<16x65xf32>
    %770 = arith.addf %767, %769 : vector<16x65xf32>
    %cst_600 = arith.constant 0.000000e+00 : f32
    %771 = vector.broadcast %cst_600 : f32 to vector<16x65xf32>
    %772 = arith.cmpf ogt, %770, %771 : vector<16x65xf32>
    %cst_601 = arith.constant 0.000000e+00 : f32
    %773 = vector.broadcast %cst_601 : f32 to vector<16x65xf32>
    %774 = arith.minimumf %770, %773 : vector<16x65xf32>
    %775 = math.exp %774 : vector<16x65xf32>
    %cst_602 = arith.constant 1.000000e+00 : f32
    %776 = vector.broadcast %cst_602 : f32 to vector<16x65xf32>
    %777 = arith.subf %775, %776 : vector<16x65xf32>
    %778 = arith.select %772, %770, %777 : vector<16x65xi1>, vector<16x65xf32>
    %cst_603 = arith.constant dense<0.000000e+00> : vector<16xf32>
    %779 = vector.multi_reduction <add>, %778, %cst_603 [1] : vector<16x65xf32> to vector<16xf32>
    %cst_604 = arith.constant 0.0153846154 : f32
    %780 = vector.broadcast %cst_604 : f32 to vector<16xf32>
    %781 = arith.mulf %779, %780 : vector<16xf32>
    %c6_605 = arith.constant 6 : index
    %c0_606 = arith.constant 0 : index
    %782 = vector.load %arg6[%c6_605, %c0_606] : memref<16x16xf32, #tpu.memory_space<vmem>>, vector<1x16xf32>
    %783 = vector.shape_cast %782 : vector<1x16xf32> to vector<16xf32>
    %784 = vector.shape_cast %781 : vector<16xf32> to vector<1x16xf32>
    tpu.vector_store %arg6[%c6_605, %c0_606], %784 {strides = array<i32>} : memref<16x16xf32, #tpu.memory_space<vmem>>, vector<1x16xf32>,
    %c0_607 = arith.constant 0 : index
    %c0_608 = arith.constant 0 : index
    %c0_609 = arith.constant 0 : index
    %785 = vector.load %arg7[%c0_607, %c0_608, %c0_609] : memref<16x16x80xf32, #tpu.memory_space<vmem>>, vector<1x16x65xf32>
    %786 = vector.shape_cast %785 : vector<1x16x65xf32> to vector<16x65xf32>
    %c7_610 = arith.constant 7 : index
    %c0_611 = arith.constant 0 : index
    %787 = memref.load %arg4[%c7_610, %c0_611] : memref<16x16xf32, #tpu.memory_space<smem>>
    %788 = vector.broadcast %787 : f32 to vector<16x65xf32>
    %789 = arith.mulf %786, %788 : vector<16x65xf32>
    %c1_612 = arith.constant 1 : index
    %c0_613 = arith.constant 0 : index
    %c0_614 = arith.constant 0 : index
    %790 = vector.load %arg7[%c1_612, %c0_613, %c0_614] : memref<16x16x80xf32, #tpu.memory_space<vmem>>, vector<1x16x65xf32>
    %791 = vector.shape_cast %790 : vector<1x16x65xf32> to vector<16x65xf32>
    %c7_615 = arith.constant 7 : index
    %c1_616 = arith.constant 1 : index
    %792 = memref.load %arg4[%c7_615, %c1_616] : memref<16x16xf32, #tpu.memory_space<smem>>
    %793 = vector.broadcast %792 : f32 to vector<16x65xf32>
    %794 = arith.mulf %791, %793 : vector<16x65xf32>
    %795 = arith.addf %789, %794 : vector<16x65xf32>
    %c2_617 = arith.constant 2 : index
    %c0_618 = arith.constant 0 : index
    %c0_619 = arith.constant 0 : index
    %796 = vector.load %arg7[%c2_617, %c0_618, %c0_619] : memref<16x16x80xf32, #tpu.memory_space<vmem>>, vector<1x16x65xf32>
    %797 = vector.shape_cast %796 : vector<1x16x65xf32> to vector<16x65xf32>
    %c7_620 = arith.constant 7 : index
    %c2_621 = arith.constant 2 : index
    %798 = memref.load %arg4[%c7_620, %c2_621] : memref<16x16xf32, #tpu.memory_space<smem>>
    %799 = vector.broadcast %798 : f32 to vector<16x65xf32>
    %800 = arith.mulf %797, %799 : vector<16x65xf32>
    %801 = arith.addf %795, %800 : vector<16x65xf32>
    %c3_622 = arith.constant 3 : index
    %c0_623 = arith.constant 0 : index
    %c0_624 = arith.constant 0 : index
    %802 = vector.load %arg7[%c3_622, %c0_623, %c0_624] : memref<16x16x80xf32, #tpu.memory_space<vmem>>, vector<1x16x65xf32>
    %803 = vector.shape_cast %802 : vector<1x16x65xf32> to vector<16x65xf32>
    %c7_625 = arith.constant 7 : index
    %c3_626 = arith.constant 3 : index
    %804 = memref.load %arg4[%c7_625, %c3_626] : memref<16x16xf32, #tpu.memory_space<smem>>
    %805 = vector.broadcast %804 : f32 to vector<16x65xf32>
    %806 = arith.mulf %803, %805 : vector<16x65xf32>
    %807 = arith.addf %801, %806 : vector<16x65xf32>
    %c4_627 = arith.constant 4 : index
    %c0_628 = arith.constant 0 : index
    %c0_629 = arith.constant 0 : index
    %808 = vector.load %arg7[%c4_627, %c0_628, %c0_629] : memref<16x16x80xf32, #tpu.memory_space<vmem>>, vector<1x16x65xf32>
    %809 = vector.shape_cast %808 : vector<1x16x65xf32> to vector<16x65xf32>
    %c7_630 = arith.constant 7 : index
    %c4_631 = arith.constant 4 : index
    %810 = memref.load %arg4[%c7_630, %c4_631] : memref<16x16xf32, #tpu.memory_space<smem>>
    %811 = vector.broadcast %810 : f32 to vector<16x65xf32>
    %812 = arith.mulf %809, %811 : vector<16x65xf32>
    %813 = arith.addf %807, %812 : vector<16x65xf32>
    %c5_632 = arith.constant 5 : index
    %c0_633 = arith.constant 0 : index
    %c0_634 = arith.constant 0 : index
    %814 = vector.load %arg7[%c5_632, %c0_633, %c0_634] : memref<16x16x80xf32, #tpu.memory_space<vmem>>, vector<1x16x65xf32>
    %815 = vector.shape_cast %814 : vector<1x16x65xf32> to vector<16x65xf32>
    %c7_635 = arith.constant 7 : index
    %c5_636 = arith.constant 5 : index
    %816 = memref.load %arg4[%c7_635, %c5_636] : memref<16x16xf32, #tpu.memory_space<smem>>
    %817 = vector.broadcast %816 : f32 to vector<16x65xf32>
    %818 = arith.mulf %815, %817 : vector<16x65xf32>
    %819 = arith.addf %813, %818 : vector<16x65xf32>
    %c6_637 = arith.constant 6 : index
    %c0_638 = arith.constant 0 : index
    %c0_639 = arith.constant 0 : index
    %820 = vector.load %arg7[%c6_637, %c0_638, %c0_639] : memref<16x16x80xf32, #tpu.memory_space<vmem>>, vector<1x16x65xf32>
    %821 = vector.shape_cast %820 : vector<1x16x65xf32> to vector<16x65xf32>
    %c7_640 = arith.constant 7 : index
    %c6_641 = arith.constant 6 : index
    %822 = memref.load %arg4[%c7_640, %c6_641] : memref<16x16xf32, #tpu.memory_space<smem>>
    %823 = vector.broadcast %822 : f32 to vector<16x65xf32>
    %824 = arith.mulf %821, %823 : vector<16x65xf32>
    %825 = arith.addf %819, %824 : vector<16x65xf32>
    %c7_642 = arith.constant 7 : index
    %c0_643 = arith.constant 0 : index
    %c0_644 = arith.constant 0 : index
    %826 = vector.load %arg7[%c7_642, %c0_643, %c0_644] : memref<16x16x80xf32, #tpu.memory_space<vmem>>, vector<1x16x65xf32>
    %827 = vector.shape_cast %826 : vector<1x16x65xf32> to vector<16x65xf32>
    %c7_645 = arith.constant 7 : index
    %c7_646 = arith.constant 7 : index
    %828 = memref.load %arg4[%c7_645, %c7_646] : memref<16x16xf32, #tpu.memory_space<smem>>
    %829 = vector.broadcast %828 : f32 to vector<16x65xf32>
    %830 = arith.mulf %827, %829 : vector<16x65xf32>
    %831 = arith.addf %825, %830 : vector<16x65xf32>
    %c8_647 = arith.constant 8 : index
    %c0_648 = arith.constant 0 : index
    %c0_649 = arith.constant 0 : index
    %832 = vector.load %arg7[%c8_647, %c0_648, %c0_649] : memref<16x16x80xf32, #tpu.memory_space<vmem>>, vector<1x16x65xf32>
    %833 = vector.shape_cast %832 : vector<1x16x65xf32> to vector<16x65xf32>
    %c7_650 = arith.constant 7 : index
    %c8_651 = arith.constant 8 : index
    %834 = memref.load %arg4[%c7_650, %c8_651] : memref<16x16xf32, #tpu.memory_space<smem>>
    %835 = vector.broadcast %834 : f32 to vector<16x65xf32>
    %836 = arith.mulf %833, %835 : vector<16x65xf32>
    %837 = arith.addf %831, %836 : vector<16x65xf32>
    %c9_652 = arith.constant 9 : index
    %c0_653 = arith.constant 0 : index
    %c0_654 = arith.constant 0 : index
    %838 = vector.load %arg7[%c9_652, %c0_653, %c0_654] : memref<16x16x80xf32, #tpu.memory_space<vmem>>, vector<1x16x65xf32>
    %839 = vector.shape_cast %838 : vector<1x16x65xf32> to vector<16x65xf32>
    %c7_655 = arith.constant 7 : index
    %c9_656 = arith.constant 9 : index
    %840 = memref.load %arg4[%c7_655, %c9_656] : memref<16x16xf32, #tpu.memory_space<smem>>
    %841 = vector.broadcast %840 : f32 to vector<16x65xf32>
    %842 = arith.mulf %839, %841 : vector<16x65xf32>
    %843 = arith.addf %837, %842 : vector<16x65xf32>
    %c10_657 = arith.constant 10 : index
    %c0_658 = arith.constant 0 : index
    %c0_659 = arith.constant 0 : index
    %844 = vector.load %arg7[%c10_657, %c0_658, %c0_659] : memref<16x16x80xf32, #tpu.memory_space<vmem>>, vector<1x16x65xf32>
    %845 = vector.shape_cast %844 : vector<1x16x65xf32> to vector<16x65xf32>
    %c7_660 = arith.constant 7 : index
    %c10_661 = arith.constant 10 : index
    %846 = memref.load %arg4[%c7_660, %c10_661] : memref<16x16xf32, #tpu.memory_space<smem>>
    %847 = vector.broadcast %846 : f32 to vector<16x65xf32>
    %848 = arith.mulf %845, %847 : vector<16x65xf32>
    %849 = arith.addf %843, %848 : vector<16x65xf32>
    %c11_662 = arith.constant 11 : index
    %c0_663 = arith.constant 0 : index
    %c0_664 = arith.constant 0 : index
    %850 = vector.load %arg7[%c11_662, %c0_663, %c0_664] : memref<16x16x80xf32, #tpu.memory_space<vmem>>, vector<1x16x65xf32>
    %851 = vector.shape_cast %850 : vector<1x16x65xf32> to vector<16x65xf32>
    %c7_665 = arith.constant 7 : index
    %c11_666 = arith.constant 11 : index
    %852 = memref.load %arg4[%c7_665, %c11_666] : memref<16x16xf32, #tpu.memory_space<smem>>
    %853 = vector.broadcast %852 : f32 to vector<16x65xf32>
    %854 = arith.mulf %851, %853 : vector<16x65xf32>
    %855 = arith.addf %849, %854 : vector<16x65xf32>
    %c12_667 = arith.constant 12 : index
    %c0_668 = arith.constant 0 : index
    %c0_669 = arith.constant 0 : index
    %856 = vector.load %arg7[%c12_667, %c0_668, %c0_669] : memref<16x16x80xf32, #tpu.memory_space<vmem>>, vector<1x16x65xf32>
    %857 = vector.shape_cast %856 : vector<1x16x65xf32> to vector<16x65xf32>
    %c7_670 = arith.constant 7 : index
    %c12_671 = arith.constant 12 : index
    %858 = memref.load %arg4[%c7_670, %c12_671] : memref<16x16xf32, #tpu.memory_space<smem>>
    %859 = vector.broadcast %858 : f32 to vector<16x65xf32>
    %860 = arith.mulf %857, %859 : vector<16x65xf32>
    %861 = arith.addf %855, %860 : vector<16x65xf32>
    %c13_672 = arith.constant 13 : index
    %c0_673 = arith.constant 0 : index
    %c0_674 = arith.constant 0 : index
    %862 = vector.load %arg7[%c13_672, %c0_673, %c0_674] : memref<16x16x80xf32, #tpu.memory_space<vmem>>, vector<1x16x65xf32>
    %863 = vector.shape_cast %862 : vector<1x16x65xf32> to vector<16x65xf32>
    %c7_675 = arith.constant 7 : index
    %c13_676 = arith.constant 13 : index
    %864 = memref.load %arg4[%c7_675, %c13_676] : memref<16x16xf32, #tpu.memory_space<smem>>
    %865 = vector.broadcast %864 : f32 to vector<16x65xf32>
    %866 = arith.mulf %863, %865 : vector<16x65xf32>
    %867 = arith.addf %861, %866 : vector<16x65xf32>
    %c14_677 = arith.constant 14 : index
    %c0_678 = arith.constant 0 : index
    %c0_679 = arith.constant 0 : index
    %868 = vector.load %arg7[%c14_677, %c0_678, %c0_679] : memref<16x16x80xf32, #tpu.memory_space<vmem>>, vector<1x16x65xf32>
    %869 = vector.shape_cast %868 : vector<1x16x65xf32> to vector<16x65xf32>
    %c7_680 = arith.constant 7 : index
    %c14_681 = arith.constant 14 : index
    %870 = memref.load %arg4[%c7_680, %c14_681] : memref<16x16xf32, #tpu.memory_space<smem>>
    %871 = vector.broadcast %870 : f32 to vector<16x65xf32>
    %872 = arith.mulf %869, %871 : vector<16x65xf32>
    %873 = arith.addf %867, %872 : vector<16x65xf32>
    %c15_682 = arith.constant 15 : index
    %c0_683 = arith.constant 0 : index
    %c0_684 = arith.constant 0 : index
    %874 = vector.load %arg7[%c15_682, %c0_683, %c0_684] : memref<16x16x80xf32, #tpu.memory_space<vmem>>, vector<1x16x65xf32>
    %875 = vector.shape_cast %874 : vector<1x16x65xf32> to vector<16x65xf32>
    %c7_685 = arith.constant 7 : index
    %c15_686 = arith.constant 15 : index
    %876 = memref.load %arg4[%c7_685, %c15_686] : memref<16x16xf32, #tpu.memory_space<smem>>
    %877 = vector.broadcast %876 : f32 to vector<16x65xf32>
    %878 = arith.mulf %875, %877 : vector<16x65xf32>
    %879 = arith.addf %873, %878 : vector<16x65xf32>
    %c7_687 = arith.constant 7 : index
    %c3_688 = arith.constant 3 : index
    %880 = memref.load %arg5[%c7_687, %c3_688] : memref<16x4xf32, #tpu.memory_space<smem>>
    %881 = vector.broadcast %880 : f32 to vector<16x65xf32>
    %882 = arith.addf %879, %881 : vector<16x65xf32>
    %cst_689 = arith.constant 0.000000e+00 : f32
    %883 = vector.broadcast %cst_689 : f32 to vector<16x65xf32>
    %884 = arith.cmpf ogt, %882, %883 : vector<16x65xf32>
    %cst_690 = arith.constant 0.000000e+00 : f32
    %885 = vector.broadcast %cst_690 : f32 to vector<16x65xf32>
    %886 = arith.minimumf %882, %885 : vector<16x65xf32>
    %887 = math.exp %886 : vector<16x65xf32>
    %cst_691 = arith.constant 1.000000e+00 : f32
    %888 = vector.broadcast %cst_691 : f32 to vector<16x65xf32>
    %889 = arith.subf %887, %888 : vector<16x65xf32>
    %890 = arith.select %884, %882, %889 : vector<16x65xi1>, vector<16x65xf32>
    %cst_692 = arith.constant dense<0.000000e+00> : vector<16xf32>
    %891 = vector.multi_reduction <add>, %890, %cst_692 [1] : vector<16x65xf32> to vector<16xf32>
    %cst_693 = arith.constant 0.0153846154 : f32
    %892 = vector.broadcast %cst_693 : f32 to vector<16xf32>
    %893 = arith.mulf %891, %892 : vector<16xf32>
    %c7_694 = arith.constant 7 : index
    %c0_695 = arith.constant 0 : index
    %894 = vector.load %arg6[%c7_694, %c0_695] : memref<16x16xf32, #tpu.memory_space<vmem>>, vector<1x16xf32>
    %895 = vector.shape_cast %894 : vector<1x16xf32> to vector<16xf32>
    %896 = vector.shape_cast %893 : vector<16xf32> to vector<1x16xf32>
    tpu.vector_store %arg6[%c7_694, %c0_695], %896 {strides = array<i32>} : memref<16x16xf32, #tpu.memory_space<vmem>>, vector<1x16xf32>,
    %c0_696 = arith.constant 0 : index
    %c0_697 = arith.constant 0 : index
    %c0_698 = arith.constant 0 : index
    %897 = vector.load %arg7[%c0_696, %c0_697, %c0_698] : memref<16x16x80xf32, #tpu.memory_space<vmem>>, vector<1x16x65xf32>
    %898 = vector.shape_cast %897 : vector<1x16x65xf32> to vector<16x65xf32>
    %c8_699 = arith.constant 8 : index
    %c0_700 = arith.constant 0 : index
    %899 = memref.load %arg4[%c8_699, %c0_700] : memref<16x16xf32, #tpu.memory_space<smem>>
    %900 = vector.broadcast %899 : f32 to vector<16x65xf32>
    %901 = arith.mulf %898, %900 : vector<16x65xf32>
    %c1_701 = arith.constant 1 : index
    %c0_702 = arith.constant 0 : index
    %c0_703 = arith.constant 0 : index
    %902 = vector.load %arg7[%c1_701, %c0_702, %c0_703] : memref<16x16x80xf32, #tpu.memory_space<vmem>>, vector<1x16x65xf32>
    %903 = vector.shape_cast %902 : vector<1x16x65xf32> to vector<16x65xf32>
    %c8_704 = arith.constant 8 : index
    %c1_705 = arith.constant 1 : index
    %904 = memref.load %arg4[%c8_704, %c1_705] : memref<16x16xf32, #tpu.memory_space<smem>>
    %905 = vector.broadcast %904 : f32 to vector<16x65xf32>
    %906 = arith.mulf %903, %905 : vector<16x65xf32>
    %907 = arith.addf %901, %906 : vector<16x65xf32>
    %c2_706 = arith.constant 2 : index
    %c0_707 = arith.constant 0 : index
    %c0_708 = arith.constant 0 : index
    %908 = vector.load %arg7[%c2_706, %c0_707, %c0_708] : memref<16x16x80xf32, #tpu.memory_space<vmem>>, vector<1x16x65xf32>
    %909 = vector.shape_cast %908 : vector<1x16x65xf32> to vector<16x65xf32>
    %c8_709 = arith.constant 8 : index
    %c2_710 = arith.constant 2 : index
    %910 = memref.load %arg4[%c8_709, %c2_710] : memref<16x16xf32, #tpu.memory_space<smem>>
    %911 = vector.broadcast %910 : f32 to vector<16x65xf32>
    %912 = arith.mulf %909, %911 : vector<16x65xf32>
    %913 = arith.addf %907, %912 : vector<16x65xf32>
    %c3_711 = arith.constant 3 : index
    %c0_712 = arith.constant 0 : index
    %c0_713 = arith.constant 0 : index
    %914 = vector.load %arg7[%c3_711, %c0_712, %c0_713] : memref<16x16x80xf32, #tpu.memory_space<vmem>>, vector<1x16x65xf32>
    %915 = vector.shape_cast %914 : vector<1x16x65xf32> to vector<16x65xf32>
    %c8_714 = arith.constant 8 : index
    %c3_715 = arith.constant 3 : index
    %916 = memref.load %arg4[%c8_714, %c3_715] : memref<16x16xf32, #tpu.memory_space<smem>>
    %917 = vector.broadcast %916 : f32 to vector<16x65xf32>
    %918 = arith.mulf %915, %917 : vector<16x65xf32>
    %919 = arith.addf %913, %918 : vector<16x65xf32>
    %c4_716 = arith.constant 4 : index
    %c0_717 = arith.constant 0 : index
    %c0_718 = arith.constant 0 : index
    %920 = vector.load %arg7[%c4_716, %c0_717, %c0_718] : memref<16x16x80xf32, #tpu.memory_space<vmem>>, vector<1x16x65xf32>
    %921 = vector.shape_cast %920 : vector<1x16x65xf32> to vector<16x65xf32>
    %c8_719 = arith.constant 8 : index
    %c4_720 = arith.constant 4 : index
    %922 = memref.load %arg4[%c8_719, %c4_720] : memref<16x16xf32, #tpu.memory_space<smem>>
    %923 = vector.broadcast %922 : f32 to vector<16x65xf32>
    %924 = arith.mulf %921, %923 : vector<16x65xf32>
    %925 = arith.addf %919, %924 : vector<16x65xf32>
    %c5_721 = arith.constant 5 : index
    %c0_722 = arith.constant 0 : index
    %c0_723 = arith.constant 0 : index
    %926 = vector.load %arg7[%c5_721, %c0_722, %c0_723] : memref<16x16x80xf32, #tpu.memory_space<vmem>>, vector<1x16x65xf32>
    %927 = vector.shape_cast %926 : vector<1x16x65xf32> to vector<16x65xf32>
    %c8_724 = arith.constant 8 : index
    %c5_725 = arith.constant 5 : index
    %928 = memref.load %arg4[%c8_724, %c5_725] : memref<16x16xf32, #tpu.memory_space<smem>>
    %929 = vector.broadcast %928 : f32 to vector<16x65xf32>
    %930 = arith.mulf %927, %929 : vector<16x65xf32>
    %931 = arith.addf %925, %930 : vector<16x65xf32>
    %c6_726 = arith.constant 6 : index
    %c0_727 = arith.constant 0 : index
    %c0_728 = arith.constant 0 : index
    %932 = vector.load %arg7[%c6_726, %c0_727, %c0_728] : memref<16x16x80xf32, #tpu.memory_space<vmem>>, vector<1x16x65xf32>
    %933 = vector.shape_cast %932 : vector<1x16x65xf32> to vector<16x65xf32>
    %c8_729 = arith.constant 8 : index
    %c6_730 = arith.constant 6 : index
    %934 = memref.load %arg4[%c8_729, %c6_730] : memref<16x16xf32, #tpu.memory_space<smem>>
    %935 = vector.broadcast %934 : f32 to vector<16x65xf32>
    %936 = arith.mulf %933, %935 : vector<16x65xf32>
    %937 = arith.addf %931, %936 : vector<16x65xf32>
    %c7_731 = arith.constant 7 : index
    %c0_732 = arith.constant 0 : index
    %c0_733 = arith.constant 0 : index
    %938 = vector.load %arg7[%c7_731, %c0_732, %c0_733] : memref<16x16x80xf32, #tpu.memory_space<vmem>>, vector<1x16x65xf32>
    %939 = vector.shape_cast %938 : vector<1x16x65xf32> to vector<16x65xf32>
    %c8_734 = arith.constant 8 : index
    %c7_735 = arith.constant 7 : index
    %940 = memref.load %arg4[%c8_734, %c7_735] : memref<16x16xf32, #tpu.memory_space<smem>>
    %941 = vector.broadcast %940 : f32 to vector<16x65xf32>
    %942 = arith.mulf %939, %941 : vector<16x65xf32>
    %943 = arith.addf %937, %942 : vector<16x65xf32>
    %c8_736 = arith.constant 8 : index
    %c0_737 = arith.constant 0 : index
    %c0_738 = arith.constant 0 : index
    %944 = vector.load %arg7[%c8_736, %c0_737, %c0_738] : memref<16x16x80xf32, #tpu.memory_space<vmem>>, vector<1x16x65xf32>
    %945 = vector.shape_cast %944 : vector<1x16x65xf32> to vector<16x65xf32>
    %c8_739 = arith.constant 8 : index
    %c8_740 = arith.constant 8 : index
    %946 = memref.load %arg4[%c8_739, %c8_740] : memref<16x16xf32, #tpu.memory_space<smem>>
    %947 = vector.broadcast %946 : f32 to vector<16x65xf32>
    %948 = arith.mulf %945, %947 : vector<16x65xf32>
    %949 = arith.addf %943, %948 : vector<16x65xf32>
    %c9_741 = arith.constant 9 : index
    %c0_742 = arith.constant 0 : index
    %c0_743 = arith.constant 0 : index
    %950 = vector.load %arg7[%c9_741, %c0_742, %c0_743] : memref<16x16x80xf32, #tpu.memory_space<vmem>>, vector<1x16x65xf32>
    %951 = vector.shape_cast %950 : vector<1x16x65xf32> to vector<16x65xf32>
    %c8_744 = arith.constant 8 : index
    %c9_745 = arith.constant 9 : index
    %952 = memref.load %arg4[%c8_744, %c9_745] : memref<16x16xf32, #tpu.memory_space<smem>>
    %953 = vector.broadcast %952 : f32 to vector<16x65xf32>
    %954 = arith.mulf %951, %953 : vector<16x65xf32>
    %955 = arith.addf %949, %954 : vector<16x65xf32>
    %c10_746 = arith.constant 10 : index
    %c0_747 = arith.constant 0 : index
    %c0_748 = arith.constant 0 : index
    %956 = vector.load %arg7[%c10_746, %c0_747, %c0_748] : memref<16x16x80xf32, #tpu.memory_space<vmem>>, vector<1x16x65xf32>
    %957 = vector.shape_cast %956 : vector<1x16x65xf32> to vector<16x65xf32>
    %c8_749 = arith.constant 8 : index
    %c10_750 = arith.constant 10 : index
    %958 = memref.load %arg4[%c8_749, %c10_750] : memref<16x16xf32, #tpu.memory_space<smem>>
    %959 = vector.broadcast %958 : f32 to vector<16x65xf32>
    %960 = arith.mulf %957, %959 : vector<16x65xf32>
    %961 = arith.addf %955, %960 : vector<16x65xf32>
    %c11_751 = arith.constant 11 : index
    %c0_752 = arith.constant 0 : index
    %c0_753 = arith.constant 0 : index
    %962 = vector.load %arg7[%c11_751, %c0_752, %c0_753] : memref<16x16x80xf32, #tpu.memory_space<vmem>>, vector<1x16x65xf32>
    %963 = vector.shape_cast %962 : vector<1x16x65xf32> to vector<16x65xf32>
    %c8_754 = arith.constant 8 : index
    %c11_755 = arith.constant 11 : index
    %964 = memref.load %arg4[%c8_754, %c11_755] : memref<16x16xf32, #tpu.memory_space<smem>>
    %965 = vector.broadcast %964 : f32 to vector<16x65xf32>
    %966 = arith.mulf %963, %965 : vector<16x65xf32>
    %967 = arith.addf %961, %966 : vector<16x65xf32>
    %c12_756 = arith.constant 12 : index
    %c0_757 = arith.constant 0 : index
    %c0_758 = arith.constant 0 : index
    %968 = vector.load %arg7[%c12_756, %c0_757, %c0_758] : memref<16x16x80xf32, #tpu.memory_space<vmem>>, vector<1x16x65xf32>
    %969 = vector.shape_cast %968 : vector<1x16x65xf32> to vector<16x65xf32>
    %c8_759 = arith.constant 8 : index
    %c12_760 = arith.constant 12 : index
    %970 = memref.load %arg4[%c8_759, %c12_760] : memref<16x16xf32, #tpu.memory_space<smem>>
    %971 = vector.broadcast %970 : f32 to vector<16x65xf32>
    %972 = arith.mulf %969, %971 : vector<16x65xf32>
    %973 = arith.addf %967, %972 : vector<16x65xf32>
    %c13_761 = arith.constant 13 : index
    %c0_762 = arith.constant 0 : index
    %c0_763 = arith.constant 0 : index
    %974 = vector.load %arg7[%c13_761, %c0_762, %c0_763] : memref<16x16x80xf32, #tpu.memory_space<vmem>>, vector<1x16x65xf32>
    %975 = vector.shape_cast %974 : vector<1x16x65xf32> to vector<16x65xf32>
    %c8_764 = arith.constant 8 : index
    %c13_765 = arith.constant 13 : index
    %976 = memref.load %arg4[%c8_764, %c13_765] : memref<16x16xf32, #tpu.memory_space<smem>>
    %977 = vector.broadcast %976 : f32 to vector<16x65xf32>
    %978 = arith.mulf %975, %977 : vector<16x65xf32>
    %979 = arith.addf %973, %978 : vector<16x65xf32>
    %c14_766 = arith.constant 14 : index
    %c0_767 = arith.constant 0 : index
    %c0_768 = arith.constant 0 : index
    %980 = vector.load %arg7[%c14_766, %c0_767, %c0_768] : memref<16x16x80xf32, #tpu.memory_space<vmem>>, vector<1x16x65xf32>
    %981 = vector.shape_cast %980 : vector<1x16x65xf32> to vector<16x65xf32>
    %c8_769 = arith.constant 8 : index
    %c14_770 = arith.constant 14 : index
    %982 = memref.load %arg4[%c8_769, %c14_770] : memref<16x16xf32, #tpu.memory_space<smem>>
    %983 = vector.broadcast %982 : f32 to vector<16x65xf32>
    %984 = arith.mulf %981, %983 : vector<16x65xf32>
    %985 = arith.addf %979, %984 : vector<16x65xf32>
    %c15_771 = arith.constant 15 : index
    %c0_772 = arith.constant 0 : index
    %c0_773 = arith.constant 0 : index
    %986 = vector.load %arg7[%c15_771, %c0_772, %c0_773] : memref<16x16x80xf32, #tpu.memory_space<vmem>>, vector<1x16x65xf32>
    %987 = vector.shape_cast %986 : vector<1x16x65xf32> to vector<16x65xf32>
    %c8_774 = arith.constant 8 : index
    %c15_775 = arith.constant 15 : index
    %988 = memref.load %arg4[%c8_774, %c15_775] : memref<16x16xf32, #tpu.memory_space<smem>>
    %989 = vector.broadcast %988 : f32 to vector<16x65xf32>
    %990 = arith.mulf %987, %989 : vector<16x65xf32>
    %991 = arith.addf %985, %990 : vector<16x65xf32>
    %c8_776 = arith.constant 8 : index
    %c3_777 = arith.constant 3 : index
    %992 = memref.load %arg5[%c8_776, %c3_777] : memref<16x4xf32, #tpu.memory_space<smem>>
    %993 = vector.broadcast %992 : f32 to vector<16x65xf32>
    %994 = arith.addf %991, %993 : vector<16x65xf32>
    %cst_778 = arith.constant 0.000000e+00 : f32
    %995 = vector.broadcast %cst_778 : f32 to vector<16x65xf32>
    %996 = arith.cmpf ogt, %994, %995 : vector<16x65xf32>
    %cst_779 = arith.constant 0.000000e+00 : f32
    %997 = vector.broadcast %cst_779 : f32 to vector<16x65xf32>
    %998 = arith.minimumf %994, %997 : vector<16x65xf32>
    %999 = math.exp %998 : vector<16x65xf32>
    %cst_780 = arith.constant 1.000000e+00 : f32
    %1000 = vector.broadcast %cst_780 : f32 to vector<16x65xf32>
    %1001 = arith.subf %999, %1000 : vector<16x65xf32>
    %1002 = arith.select %996, %994, %1001 : vector<16x65xi1>, vector<16x65xf32>
    %cst_781 = arith.constant dense<0.000000e+00> : vector<16xf32>
    %1003 = vector.multi_reduction <add>, %1002, %cst_781 [1] : vector<16x65xf32> to vector<16xf32>
    %cst_782 = arith.constant 0.0153846154 : f32
    %1004 = vector.broadcast %cst_782 : f32 to vector<16xf32>
    %1005 = arith.mulf %1003, %1004 : vector<16xf32>
    %c8_783 = arith.constant 8 : index
    %c0_784 = arith.constant 0 : index
    %1006 = vector.load %arg6[%c8_783, %c0_784] : memref<16x16xf32, #tpu.memory_space<vmem>>, vector<1x16xf32>
    %1007 = vector.shape_cast %1006 : vector<1x16xf32> to vector<16xf32>
    %1008 = vector.shape_cast %1005 : vector<16xf32> to vector<1x16xf32>
    tpu.vector_store %arg6[%c8_783, %c0_784], %1008 {strides = array<i32>} : memref<16x16xf32, #tpu.memory_space<vmem>>, vector<1x16xf32>,
    %c0_785 = arith.constant 0 : index
    %c0_786 = arith.constant 0 : index
    %c0_787 = arith.constant 0 : index
    %1009 = vector.load %arg7[%c0_785, %c0_786, %c0_787] : memref<16x16x80xf32, #tpu.memory_space<vmem>>, vector<1x16x65xf32>
    %1010 = vector.shape_cast %1009 : vector<1x16x65xf32> to vector<16x65xf32>
    %c9_788 = arith.constant 9 : index
    %c0_789 = arith.constant 0 : index
    %1011 = memref.load %arg4[%c9_788, %c0_789] : memref<16x16xf32, #tpu.memory_space<smem>>
    %1012 = vector.broadcast %1011 : f32 to vector<16x65xf32>
    %1013 = arith.mulf %1010, %1012 : vector<16x65xf32>
    %c1_790 = arith.constant 1 : index
    %c0_791 = arith.constant 0 : index
    %c0_792 = arith.constant 0 : index
    %1014 = vector.load %arg7[%c1_790, %c0_791, %c0_792] : memref<16x16x80xf32, #tpu.memory_space<vmem>>, vector<1x16x65xf32>
    %1015 = vector.shape_cast %1014 : vector<1x16x65xf32> to vector<16x65xf32>
    %c9_793 = arith.constant 9 : index
    %c1_794 = arith.constant 1 : index
    %1016 = memref.load %arg4[%c9_793, %c1_794] : memref<16x16xf32, #tpu.memory_space<smem>>
    %1017 = vector.broadcast %1016 : f32 to vector<16x65xf32>
    %1018 = arith.mulf %1015, %1017 : vector<16x65xf32>
    %1019 = arith.addf %1013, %1018 : vector<16x65xf32>
    %c2_795 = arith.constant 2 : index
    %c0_796 = arith.constant 0 : index
    %c0_797 = arith.constant 0 : index
    %1020 = vector.load %arg7[%c2_795, %c0_796, %c0_797] : memref<16x16x80xf32, #tpu.memory_space<vmem>>, vector<1x16x65xf32>
    %1021 = vector.shape_cast %1020 : vector<1x16x65xf32> to vector<16x65xf32>
    %c9_798 = arith.constant 9 : index
    %c2_799 = arith.constant 2 : index
    %1022 = memref.load %arg4[%c9_798, %c2_799] : memref<16x16xf32, #tpu.memory_space<smem>>
    %1023 = vector.broadcast %1022 : f32 to vector<16x65xf32>
    %1024 = arith.mulf %1021, %1023 : vector<16x65xf32>
    %1025 = arith.addf %1019, %1024 : vector<16x65xf32>
    %c3_800 = arith.constant 3 : index
    %c0_801 = arith.constant 0 : index
    %c0_802 = arith.constant 0 : index
    %1026 = vector.load %arg7[%c3_800, %c0_801, %c0_802] : memref<16x16x80xf32, #tpu.memory_space<vmem>>, vector<1x16x65xf32>
    %1027 = vector.shape_cast %1026 : vector<1x16x65xf32> to vector<16x65xf32>
    %c9_803 = arith.constant 9 : index
    %c3_804 = arith.constant 3 : index
    %1028 = memref.load %arg4[%c9_803, %c3_804] : memref<16x16xf32, #tpu.memory_space<smem>>
    %1029 = vector.broadcast %1028 : f32 to vector<16x65xf32>
    %1030 = arith.mulf %1027, %1029 : vector<16x65xf32>
    %1031 = arith.addf %1025, %1030 : vector<16x65xf32>
    %c4_805 = arith.constant 4 : index
    %c0_806 = arith.constant 0 : index
    %c0_807 = arith.constant 0 : index
    %1032 = vector.load %arg7[%c4_805, %c0_806, %c0_807] : memref<16x16x80xf32, #tpu.memory_space<vmem>>, vector<1x16x65xf32>
    %1033 = vector.shape_cast %1032 : vector<1x16x65xf32> to vector<16x65xf32>
    %c9_808 = arith.constant 9 : index
    %c4_809 = arith.constant 4 : index
    %1034 = memref.load %arg4[%c9_808, %c4_809] : memref<16x16xf32, #tpu.memory_space<smem>>
    %1035 = vector.broadcast %1034 : f32 to vector<16x65xf32>
    %1036 = arith.mulf %1033, %1035 : vector<16x65xf32>
    %1037 = arith.addf %1031, %1036 : vector<16x65xf32>
    %c5_810 = arith.constant 5 : index
    %c0_811 = arith.constant 0 : index
    %c0_812 = arith.constant 0 : index
    %1038 = vector.load %arg7[%c5_810, %c0_811, %c0_812] : memref<16x16x80xf32, #tpu.memory_space<vmem>>, vector<1x16x65xf32>
    %1039 = vector.shape_cast %1038 : vector<1x16x65xf32> to vector<16x65xf32>
    %c9_813 = arith.constant 9 : index
    %c5_814 = arith.constant 5 : index
    %1040 = memref.load %arg4[%c9_813, %c5_814] : memref<16x16xf32, #tpu.memory_space<smem>>
    %1041 = vector.broadcast %1040 : f32 to vector<16x65xf32>
    %1042 = arith.mulf %1039, %1041 : vector<16x65xf32>
    %1043 = arith.addf %1037, %1042 : vector<16x65xf32>
    %c6_815 = arith.constant 6 : index
    %c0_816 = arith.constant 0 : index
    %c0_817 = arith.constant 0 : index
    %1044 = vector.load %arg7[%c6_815, %c0_816, %c0_817] : memref<16x16x80xf32, #tpu.memory_space<vmem>>, vector<1x16x65xf32>
    %1045 = vector.shape_cast %1044 : vector<1x16x65xf32> to vector<16x65xf32>
    %c9_818 = arith.constant 9 : index
    %c6_819 = arith.constant 6 : index
    %1046 = memref.load %arg4[%c9_818, %c6_819] : memref<16x16xf32, #tpu.memory_space<smem>>
    %1047 = vector.broadcast %1046 : f32 to vector<16x65xf32>
    %1048 = arith.mulf %1045, %1047 : vector<16x65xf32>
    %1049 = arith.addf %1043, %1048 : vector<16x65xf32>
    %c7_820 = arith.constant 7 : index
    %c0_821 = arith.constant 0 : index
    %c0_822 = arith.constant 0 : index
    %1050 = vector.load %arg7[%c7_820, %c0_821, %c0_822] : memref<16x16x80xf32, #tpu.memory_space<vmem>>, vector<1x16x65xf32>
    %1051 = vector.shape_cast %1050 : vector<1x16x65xf32> to vector<16x65xf32>
    %c9_823 = arith.constant 9 : index
    %c7_824 = arith.constant 7 : index
    %1052 = memref.load %arg4[%c9_823, %c7_824] : memref<16x16xf32, #tpu.memory_space<smem>>
    %1053 = vector.broadcast %1052 : f32 to vector<16x65xf32>
    %1054 = arith.mulf %1051, %1053 : vector<16x65xf32>
    %1055 = arith.addf %1049, %1054 : vector<16x65xf32>
    %c8_825 = arith.constant 8 : index
    %c0_826 = arith.constant 0 : index
    %c0_827 = arith.constant 0 : index
    %1056 = vector.load %arg7[%c8_825, %c0_826, %c0_827] : memref<16x16x80xf32, #tpu.memory_space<vmem>>, vector<1x16x65xf32>
    %1057 = vector.shape_cast %1056 : vector<1x16x65xf32> to vector<16x65xf32>
    %c9_828 = arith.constant 9 : index
    %c8_829 = arith.constant 8 : index
    %1058 = memref.load %arg4[%c9_828, %c8_829] : memref<16x16xf32, #tpu.memory_space<smem>>
    %1059 = vector.broadcast %1058 : f32 to vector<16x65xf32>
    %1060 = arith.mulf %1057, %1059 : vector<16x65xf32>
    %1061 = arith.addf %1055, %1060 : vector<16x65xf32>
    %c9_830 = arith.constant 9 : index
    %c0_831 = arith.constant 0 : index
    %c0_832 = arith.constant 0 : index
    %1062 = vector.load %arg7[%c9_830, %c0_831, %c0_832] : memref<16x16x80xf32, #tpu.memory_space<vmem>>, vector<1x16x65xf32>
    %1063 = vector.shape_cast %1062 : vector<1x16x65xf32> to vector<16x65xf32>
    %c9_833 = arith.constant 9 : index
    %c9_834 = arith.constant 9 : index
    %1064 = memref.load %arg4[%c9_833, %c9_834] : memref<16x16xf32, #tpu.memory_space<smem>>
    %1065 = vector.broadcast %1064 : f32 to vector<16x65xf32>
    %1066 = arith.mulf %1063, %1065 : vector<16x65xf32>
    %1067 = arith.addf %1061, %1066 : vector<16x65xf32>
    %c10_835 = arith.constant 10 : index
    %c0_836 = arith.constant 0 : index
    %c0_837 = arith.constant 0 : index
    %1068 = vector.load %arg7[%c10_835, %c0_836, %c0_837] : memref<16x16x80xf32, #tpu.memory_space<vmem>>, vector<1x16x65xf32>
    %1069 = vector.shape_cast %1068 : vector<1x16x65xf32> to vector<16x65xf32>
    %c9_838 = arith.constant 9 : index
    %c10_839 = arith.constant 10 : index
    %1070 = memref.load %arg4[%c9_838, %c10_839] : memref<16x16xf32, #tpu.memory_space<smem>>
    %1071 = vector.broadcast %1070 : f32 to vector<16x65xf32>
    %1072 = arith.mulf %1069, %1071 : vector<16x65xf32>
    %1073 = arith.addf %1067, %1072 : vector<16x65xf32>
    %c11_840 = arith.constant 11 : index
    %c0_841 = arith.constant 0 : index
    %c0_842 = arith.constant 0 : index
    %1074 = vector.load %arg7[%c11_840, %c0_841, %c0_842] : memref<16x16x80xf32, #tpu.memory_space<vmem>>, vector<1x16x65xf32>
    %1075 = vector.shape_cast %1074 : vector<1x16x65xf32> to vector<16x65xf32>
    %c9_843 = arith.constant 9 : index
    %c11_844 = arith.constant 11 : index
    %1076 = memref.load %arg4[%c9_843, %c11_844] : memref<16x16xf32, #tpu.memory_space<smem>>
    %1077 = vector.broadcast %1076 : f32 to vector<16x65xf32>
    %1078 = arith.mulf %1075, %1077 : vector<16x65xf32>
    %1079 = arith.addf %1073, %1078 : vector<16x65xf32>
    %c12_845 = arith.constant 12 : index
    %c0_846 = arith.constant 0 : index
    %c0_847 = arith.constant 0 : index
    %1080 = vector.load %arg7[%c12_845, %c0_846, %c0_847] : memref<16x16x80xf32, #tpu.memory_space<vmem>>, vector<1x16x65xf32>
    %1081 = vector.shape_cast %1080 : vector<1x16x65xf32> to vector<16x65xf32>
    %c9_848 = arith.constant 9 : index
    %c12_849 = arith.constant 12 : index
    %1082 = memref.load %arg4[%c9_848, %c12_849] : memref<16x16xf32, #tpu.memory_space<smem>>
    %1083 = vector.broadcast %1082 : f32 to vector<16x65xf32>
    %1084 = arith.mulf %1081, %1083 : vector<16x65xf32>
    %1085 = arith.addf %1079, %1084 : vector<16x65xf32>
    %c13_850 = arith.constant 13 : index
    %c0_851 = arith.constant 0 : index
    %c0_852 = arith.constant 0 : index
    %1086 = vector.load %arg7[%c13_850, %c0_851, %c0_852] : memref<16x16x80xf32, #tpu.memory_space<vmem>>, vector<1x16x65xf32>
    %1087 = vector.shape_cast %1086 : vector<1x16x65xf32> to vector<16x65xf32>
    %c9_853 = arith.constant 9 : index
    %c13_854 = arith.constant 13 : index
    %1088 = memref.load %arg4[%c9_853, %c13_854] : memref<16x16xf32, #tpu.memory_space<smem>>
    %1089 = vector.broadcast %1088 : f32 to vector<16x65xf32>
    %1090 = arith.mulf %1087, %1089 : vector<16x65xf32>
    %1091 = arith.addf %1085, %1090 : vector<16x65xf32>
    %c14_855 = arith.constant 14 : index
    %c0_856 = arith.constant 0 : index
    %c0_857 = arith.constant 0 : index
    %1092 = vector.load %arg7[%c14_855, %c0_856, %c0_857] : memref<16x16x80xf32, #tpu.memory_space<vmem>>, vector<1x16x65xf32>
    %1093 = vector.shape_cast %1092 : vector<1x16x65xf32> to vector<16x65xf32>
    %c9_858 = arith.constant 9 : index
    %c14_859 = arith.constant 14 : index
    %1094 = memref.load %arg4[%c9_858, %c14_859] : memref<16x16xf32, #tpu.memory_space<smem>>
    %1095 = vector.broadcast %1094 : f32 to vector<16x65xf32>
    %1096 = arith.mulf %1093, %1095 : vector<16x65xf32>
    %1097 = arith.addf %1091, %1096 : vector<16x65xf32>
    %c15_860 = arith.constant 15 : index
    %c0_861 = arith.constant 0 : index
    %c0_862 = arith.constant 0 : index
    %1098 = vector.load %arg7[%c15_860, %c0_861, %c0_862] : memref<16x16x80xf32, #tpu.memory_space<vmem>>, vector<1x16x65xf32>
    %1099 = vector.shape_cast %1098 : vector<1x16x65xf32> to vector<16x65xf32>
    %c9_863 = arith.constant 9 : index
    %c15_864 = arith.constant 15 : index
    %1100 = memref.load %arg4[%c9_863, %c15_864] : memref<16x16xf32, #tpu.memory_space<smem>>
    %1101 = vector.broadcast %1100 : f32 to vector<16x65xf32>
    %1102 = arith.mulf %1099, %1101 : vector<16x65xf32>
    %1103 = arith.addf %1097, %1102 : vector<16x65xf32>
    %c9_865 = arith.constant 9 : index
    %c3_866 = arith.constant 3 : index
    %1104 = memref.load %arg5[%c9_865, %c3_866] : memref<16x4xf32, #tpu.memory_space<smem>>
    %1105 = vector.broadcast %1104 : f32 to vector<16x65xf32>
    %1106 = arith.addf %1103, %1105 : vector<16x65xf32>
    %cst_867 = arith.constant 0.000000e+00 : f32
    %1107 = vector.broadcast %cst_867 : f32 to vector<16x65xf32>
    %1108 = arith.cmpf ogt, %1106, %1107 : vector<16x65xf32>
    %cst_868 = arith.constant 0.000000e+00 : f32
    %1109 = vector.broadcast %cst_868 : f32 to vector<16x65xf32>
    %1110 = arith.minimumf %1106, %1109 : vector<16x65xf32>
    %1111 = math.exp %1110 : vector<16x65xf32>
    %cst_869 = arith.constant 1.000000e+00 : f32
    %1112 = vector.broadcast %cst_869 : f32 to vector<16x65xf32>
    %1113 = arith.subf %1111, %1112 : vector<16x65xf32>
    %1114 = arith.select %1108, %1106, %1113 : vector<16x65xi1>, vector<16x65xf32>
    %cst_870 = arith.constant dense<0.000000e+00> : vector<16xf32>
    %1115 = vector.multi_reduction <add>, %1114, %cst_870 [1] : vector<16x65xf32> to vector<16xf32>
    %cst_871 = arith.constant 0.0153846154 : f32
    %1116 = vector.broadcast %cst_871 : f32 to vector<16xf32>
    %1117 = arith.mulf %1115, %1116 : vector<16xf32>
    %c9_872 = arith.constant 9 : index
    %c0_873 = arith.constant 0 : index
    %1118 = vector.load %arg6[%c9_872, %c0_873] : memref<16x16xf32, #tpu.memory_space<vmem>>, vector<1x16xf32>
    %1119 = vector.shape_cast %1118 : vector<1x16xf32> to vector<16xf32>
    %1120 = vector.shape_cast %1117 : vector<16xf32> to vector<1x16xf32>
    tpu.vector_store %arg6[%c9_872, %c0_873], %1120 {strides = array<i32>} : memref<16x16xf32, #tpu.memory_space<vmem>>, vector<1x16xf32>,
    %c0_874 = arith.constant 0 : index
    %c0_875 = arith.constant 0 : index
    %c0_876 = arith.constant 0 : index
    %1121 = vector.load %arg7[%c0_874, %c0_875, %c0_876] : memref<16x16x80xf32, #tpu.memory_space<vmem>>, vector<1x16x65xf32>
    %1122 = vector.shape_cast %1121 : vector<1x16x65xf32> to vector<16x65xf32>
    %c10_877 = arith.constant 10 : index
    %c0_878 = arith.constant 0 : index
    %1123 = memref.load %arg4[%c10_877, %c0_878] : memref<16x16xf32, #tpu.memory_space<smem>>
    %1124 = vector.broadcast %1123 : f32 to vector<16x65xf32>
    %1125 = arith.mulf %1122, %1124 : vector<16x65xf32>
    %c1_879 = arith.constant 1 : index
    %c0_880 = arith.constant 0 : index
    %c0_881 = arith.constant 0 : index
    %1126 = vector.load %arg7[%c1_879, %c0_880, %c0_881] : memref<16x16x80xf32, #tpu.memory_space<vmem>>, vector<1x16x65xf32>
    %1127 = vector.shape_cast %1126 : vector<1x16x65xf32> to vector<16x65xf32>
    %c10_882 = arith.constant 10 : index
    %c1_883 = arith.constant 1 : index
    %1128 = memref.load %arg4[%c10_882, %c1_883] : memref<16x16xf32, #tpu.memory_space<smem>>
    %1129 = vector.broadcast %1128 : f32 to vector<16x65xf32>
    %1130 = arith.mulf %1127, %1129 : vector<16x65xf32>
    %1131 = arith.addf %1125, %1130 : vector<16x65xf32>
    %c2_884 = arith.constant 2 : index
    %c0_885 = arith.constant 0 : index
    %c0_886 = arith.constant 0 : index
    %1132 = vector.load %arg7[%c2_884, %c0_885, %c0_886] : memref<16x16x80xf32, #tpu.memory_space<vmem>>, vector<1x16x65xf32>
    %1133 = vector.shape_cast %1132 : vector<1x16x65xf32> to vector<16x65xf32>
    %c10_887 = arith.constant 10 : index
    %c2_888 = arith.constant 2 : index
    %1134 = memref.load %arg4[%c10_887, %c2_888] : memref<16x16xf32, #tpu.memory_space<smem>>
    %1135 = vector.broadcast %1134 : f32 to vector<16x65xf32>
    %1136 = arith.mulf %1133, %1135 : vector<16x65xf32>
    %1137 = arith.addf %1131, %1136 : vector<16x65xf32>
    %c3_889 = arith.constant 3 : index
    %c0_890 = arith.constant 0 : index
    %c0_891 = arith.constant 0 : index
    %1138 = vector.load %arg7[%c3_889, %c0_890, %c0_891] : memref<16x16x80xf32, #tpu.memory_space<vmem>>, vector<1x16x65xf32>
    %1139 = vector.shape_cast %1138 : vector<1x16x65xf32> to vector<16x65xf32>
    %c10_892 = arith.constant 10 : index
    %c3_893 = arith.constant 3 : index
    %1140 = memref.load %arg4[%c10_892, %c3_893] : memref<16x16xf32, #tpu.memory_space<smem>>
    %1141 = vector.broadcast %1140 : f32 to vector<16x65xf32>
    %1142 = arith.mulf %1139, %1141 : vector<16x65xf32>
    %1143 = arith.addf %1137, %1142 : vector<16x65xf32>
    %c4_894 = arith.constant 4 : index
    %c0_895 = arith.constant 0 : index
    %c0_896 = arith.constant 0 : index
    %1144 = vector.load %arg7[%c4_894, %c0_895, %c0_896] : memref<16x16x80xf32, #tpu.memory_space<vmem>>, vector<1x16x65xf32>
    %1145 = vector.shape_cast %1144 : vector<1x16x65xf32> to vector<16x65xf32>
    %c10_897 = arith.constant 10 : index
    %c4_898 = arith.constant 4 : index
    %1146 = memref.load %arg4[%c10_897, %c4_898] : memref<16x16xf32, #tpu.memory_space<smem>>
    %1147 = vector.broadcast %1146 : f32 to vector<16x65xf32>
    %1148 = arith.mulf %1145, %1147 : vector<16x65xf32>
    %1149 = arith.addf %1143, %1148 : vector<16x65xf32>
    %c5_899 = arith.constant 5 : index
    %c0_900 = arith.constant 0 : index
    %c0_901 = arith.constant 0 : index
    %1150 = vector.load %arg7[%c5_899, %c0_900, %c0_901] : memref<16x16x80xf32, #tpu.memory_space<vmem>>, vector<1x16x65xf32>
    %1151 = vector.shape_cast %1150 : vector<1x16x65xf32> to vector<16x65xf32>
    %c10_902 = arith.constant 10 : index
    %c5_903 = arith.constant 5 : index
    %1152 = memref.load %arg4[%c10_902, %c5_903] : memref<16x16xf32, #tpu.memory_space<smem>>
    %1153 = vector.broadcast %1152 : f32 to vector<16x65xf32>
    %1154 = arith.mulf %1151, %1153 : vector<16x65xf32>
    %1155 = arith.addf %1149, %1154 : vector<16x65xf32>
    %c6_904 = arith.constant 6 : index
    %c0_905 = arith.constant 0 : index
    %c0_906 = arith.constant 0 : index
    %1156 = vector.load %arg7[%c6_904, %c0_905, %c0_906] : memref<16x16x80xf32, #tpu.memory_space<vmem>>, vector<1x16x65xf32>
    %1157 = vector.shape_cast %1156 : vector<1x16x65xf32> to vector<16x65xf32>
    %c10_907 = arith.constant 10 : index
    %c6_908 = arith.constant 6 : index
    %1158 = memref.load %arg4[%c10_907, %c6_908] : memref<16x16xf32, #tpu.memory_space<smem>>
    %1159 = vector.broadcast %1158 : f32 to vector<16x65xf32>
    %1160 = arith.mulf %1157, %1159 : vector<16x65xf32>
    %1161 = arith.addf %1155, %1160 : vector<16x65xf32>
    %c7_909 = arith.constant 7 : index
    %c0_910 = arith.constant 0 : index
    %c0_911 = arith.constant 0 : index
    %1162 = vector.load %arg7[%c7_909, %c0_910, %c0_911] : memref<16x16x80xf32, #tpu.memory_space<vmem>>, vector<1x16x65xf32>
    %1163 = vector.shape_cast %1162 : vector<1x16x65xf32> to vector<16x65xf32>
    %c10_912 = arith.constant 10 : index
    %c7_913 = arith.constant 7 : index
    %1164 = memref.load %arg4[%c10_912, %c7_913] : memref<16x16xf32, #tpu.memory_space<smem>>
    %1165 = vector.broadcast %1164 : f32 to vector<16x65xf32>
    %1166 = arith.mulf %1163, %1165 : vector<16x65xf32>
    %1167 = arith.addf %1161, %1166 : vector<16x65xf32>
    %c8_914 = arith.constant 8 : index
    %c0_915 = arith.constant 0 : index
    %c0_916 = arith.constant 0 : index
    %1168 = vector.load %arg7[%c8_914, %c0_915, %c0_916] : memref<16x16x80xf32, #tpu.memory_space<vmem>>, vector<1x16x65xf32>
    %1169 = vector.shape_cast %1168 : vector<1x16x65xf32> to vector<16x65xf32>
    %c10_917 = arith.constant 10 : index
    %c8_918 = arith.constant 8 : index
    %1170 = memref.load %arg4[%c10_917, %c8_918] : memref<16x16xf32, #tpu.memory_space<smem>>
    %1171 = vector.broadcast %1170 : f32 to vector<16x65xf32>
    %1172 = arith.mulf %1169, %1171 : vector<16x65xf32>
    %1173 = arith.addf %1167, %1172 : vector<16x65xf32>
    %c9_919 = arith.constant 9 : index
    %c0_920 = arith.constant 0 : index
    %c0_921 = arith.constant 0 : index
    %1174 = vector.load %arg7[%c9_919, %c0_920, %c0_921] : memref<16x16x80xf32, #tpu.memory_space<vmem>>, vector<1x16x65xf32>
    %1175 = vector.shape_cast %1174 : vector<1x16x65xf32> to vector<16x65xf32>
    %c10_922 = arith.constant 10 : index
    %c9_923 = arith.constant 9 : index
    %1176 = memref.load %arg4[%c10_922, %c9_923] : memref<16x16xf32, #tpu.memory_space<smem>>
    %1177 = vector.broadcast %1176 : f32 to vector<16x65xf32>
    %1178 = arith.mulf %1175, %1177 : vector<16x65xf32>
    %1179 = arith.addf %1173, %1178 : vector<16x65xf32>
    %c10_924 = arith.constant 10 : index
    %c0_925 = arith.constant 0 : index
    %c0_926 = arith.constant 0 : index
    %1180 = vector.load %arg7[%c10_924, %c0_925, %c0_926] : memref<16x16x80xf32, #tpu.memory_space<vmem>>, vector<1x16x65xf32>
    %1181 = vector.shape_cast %1180 : vector<1x16x65xf32> to vector<16x65xf32>
    %c10_927 = arith.constant 10 : index
    %c10_928 = arith.constant 10 : index
    %1182 = memref.load %arg4[%c10_927, %c10_928] : memref<16x16xf32, #tpu.memory_space<smem>>
    %1183 = vector.broadcast %1182 : f32 to vector<16x65xf32>
    %1184 = arith.mulf %1181, %1183 : vector<16x65xf32>
    %1185 = arith.addf %1179, %1184 : vector<16x65xf32>
    %c11_929 = arith.constant 11 : index
    %c0_930 = arith.constant 0 : index
    %c0_931 = arith.constant 0 : index
    %1186 = vector.load %arg7[%c11_929, %c0_930, %c0_931] : memref<16x16x80xf32, #tpu.memory_space<vmem>>, vector<1x16x65xf32>
    %1187 = vector.shape_cast %1186 : vector<1x16x65xf32> to vector<16x65xf32>
    %c10_932 = arith.constant 10 : index
    %c11_933 = arith.constant 11 : index
    %1188 = memref.load %arg4[%c10_932, %c11_933] : memref<16x16xf32, #tpu.memory_space<smem>>
    %1189 = vector.broadcast %1188 : f32 to vector<16x65xf32>
    %1190 = arith.mulf %1187, %1189 : vector<16x65xf32>
    %1191 = arith.addf %1185, %1190 : vector<16x65xf32>
    %c12_934 = arith.constant 12 : index
    %c0_935 = arith.constant 0 : index
    %c0_936 = arith.constant 0 : index
    %1192 = vector.load %arg7[%c12_934, %c0_935, %c0_936] : memref<16x16x80xf32, #tpu.memory_space<vmem>>, vector<1x16x65xf32>
    %1193 = vector.shape_cast %1192 : vector<1x16x65xf32> to vector<16x65xf32>
    %c10_937 = arith.constant 10 : index
    %c12_938 = arith.constant 12 : index
    %1194 = memref.load %arg4[%c10_937, %c12_938] : memref<16x16xf32, #tpu.memory_space<smem>>
    %1195 = vector.broadcast %1194 : f32 to vector<16x65xf32>
    %1196 = arith.mulf %1193, %1195 : vector<16x65xf32>
    %1197 = arith.addf %1191, %1196 : vector<16x65xf32>
    %c13_939 = arith.constant 13 : index
    %c0_940 = arith.constant 0 : index
    %c0_941 = arith.constant 0 : index
    %1198 = vector.load %arg7[%c13_939, %c0_940, %c0_941] : memref<16x16x80xf32, #tpu.memory_space<vmem>>, vector<1x16x65xf32>
    %1199 = vector.shape_cast %1198 : vector<1x16x65xf32> to vector<16x65xf32>
    %c10_942 = arith.constant 10 : index
    %c13_943 = arith.constant 13 : index
    %1200 = memref.load %arg4[%c10_942, %c13_943] : memref<16x16xf32, #tpu.memory_space<smem>>
    %1201 = vector.broadcast %1200 : f32 to vector<16x65xf32>
    %1202 = arith.mulf %1199, %1201 : vector<16x65xf32>
    %1203 = arith.addf %1197, %1202 : vector<16x65xf32>
    %c14_944 = arith.constant 14 : index
    %c0_945 = arith.constant 0 : index
    %c0_946 = arith.constant 0 : index
    %1204 = vector.load %arg7[%c14_944, %c0_945, %c0_946] : memref<16x16x80xf32, #tpu.memory_space<vmem>>, vector<1x16x65xf32>
    %1205 = vector.shape_cast %1204 : vector<1x16x65xf32> to vector<16x65xf32>
    %c10_947 = arith.constant 10 : index
    %c14_948 = arith.constant 14 : index
    %1206 = memref.load %arg4[%c10_947, %c14_948] : memref<16x16xf32, #tpu.memory_space<smem>>
    %1207 = vector.broadcast %1206 : f32 to vector<16x65xf32>
    %1208 = arith.mulf %1205, %1207 : vector<16x65xf32>
    %1209 = arith.addf %1203, %1208 : vector<16x65xf32>
    %c15_949 = arith.constant 15 : index
    %c0_950 = arith.constant 0 : index
    %c0_951 = arith.constant 0 : index
    %1210 = vector.load %arg7[%c15_949, %c0_950, %c0_951] : memref<16x16x80xf32, #tpu.memory_space<vmem>>, vector<1x16x65xf32>
    %1211 = vector.shape_cast %1210 : vector<1x16x65xf32> to vector<16x65xf32>
    %c10_952 = arith.constant 10 : index
    %c15_953 = arith.constant 15 : index
    %1212 = memref.load %arg4[%c10_952, %c15_953] : memref<16x16xf32, #tpu.memory_space<smem>>
    %1213 = vector.broadcast %1212 : f32 to vector<16x65xf32>
    %1214 = arith.mulf %1211, %1213 : vector<16x65xf32>
    %1215 = arith.addf %1209, %1214 : vector<16x65xf32>
    %c10_954 = arith.constant 10 : index
    %c3_955 = arith.constant 3 : index
    %1216 = memref.load %arg5[%c10_954, %c3_955] : memref<16x4xf32, #tpu.memory_space<smem>>
    %1217 = vector.broadcast %1216 : f32 to vector<16x65xf32>
    %1218 = arith.addf %1215, %1217 : vector<16x65xf32>
    %cst_956 = arith.constant 0.000000e+00 : f32
    %1219 = vector.broadcast %cst_956 : f32 to vector<16x65xf32>
    %1220 = arith.cmpf ogt, %1218, %1219 : vector<16x65xf32>
    %cst_957 = arith.constant 0.000000e+00 : f32
    %1221 = vector.broadcast %cst_957 : f32 to vector<16x65xf32>
    %1222 = arith.minimumf %1218, %1221 : vector<16x65xf32>
    %1223 = math.exp %1222 : vector<16x65xf32>
    %cst_958 = arith.constant 1.000000e+00 : f32
    %1224 = vector.broadcast %cst_958 : f32 to vector<16x65xf32>
    %1225 = arith.subf %1223, %1224 : vector<16x65xf32>
    %1226 = arith.select %1220, %1218, %1225 : vector<16x65xi1>, vector<16x65xf32>
    %cst_959 = arith.constant dense<0.000000e+00> : vector<16xf32>
    %1227 = vector.multi_reduction <add>, %1226, %cst_959 [1] : vector<16x65xf32> to vector<16xf32>
    %cst_960 = arith.constant 0.0153846154 : f32
    %1228 = vector.broadcast %cst_960 : f32 to vector<16xf32>
    %1229 = arith.mulf %1227, %1228 : vector<16xf32>
    %c10_961 = arith.constant 10 : index
    %c0_962 = arith.constant 0 : index
    %1230 = vector.load %arg6[%c10_961, %c0_962] : memref<16x16xf32, #tpu.memory_space<vmem>>, vector<1x16xf32>
    %1231 = vector.shape_cast %1230 : vector<1x16xf32> to vector<16xf32>
    %1232 = vector.shape_cast %1229 : vector<16xf32> to vector<1x16xf32>
    tpu.vector_store %arg6[%c10_961, %c0_962], %1232 {strides = array<i32>} : memref<16x16xf32, #tpu.memory_space<vmem>>, vector<1x16xf32>,
    %c0_963 = arith.constant 0 : index
    %c0_964 = arith.constant 0 : index
    %c0_965 = arith.constant 0 : index
    %1233 = vector.load %arg7[%c0_963, %c0_964, %c0_965] : memref<16x16x80xf32, #tpu.memory_space<vmem>>, vector<1x16x65xf32>
    %1234 = vector.shape_cast %1233 : vector<1x16x65xf32> to vector<16x65xf32>
    %c11_966 = arith.constant 11 : index
    %c0_967 = arith.constant 0 : index
    %1235 = memref.load %arg4[%c11_966, %c0_967] : memref<16x16xf32, #tpu.memory_space<smem>>
    %1236 = vector.broadcast %1235 : f32 to vector<16x65xf32>
    %1237 = arith.mulf %1234, %1236 : vector<16x65xf32>
    %c1_968 = arith.constant 1 : index
    %c0_969 = arith.constant 0 : index
    %c0_970 = arith.constant 0 : index
    %1238 = vector.load %arg7[%c1_968, %c0_969, %c0_970] : memref<16x16x80xf32, #tpu.memory_space<vmem>>, vector<1x16x65xf32>
    %1239 = vector.shape_cast %1238 : vector<1x16x65xf32> to vector<16x65xf32>
    %c11_971 = arith.constant 11 : index
    %c1_972 = arith.constant 1 : index
    %1240 = memref.load %arg4[%c11_971, %c1_972] : memref<16x16xf32, #tpu.memory_space<smem>>
    %1241 = vector.broadcast %1240 : f32 to vector<16x65xf32>
    %1242 = arith.mulf %1239, %1241 : vector<16x65xf32>
    %1243 = arith.addf %1237, %1242 : vector<16x65xf32>
    %c2_973 = arith.constant 2 : index
    %c0_974 = arith.constant 0 : index
    %c0_975 = arith.constant 0 : index
    %1244 = vector.load %arg7[%c2_973, %c0_974, %c0_975] : memref<16x16x80xf32, #tpu.memory_space<vmem>>, vector<1x16x65xf32>
    %1245 = vector.shape_cast %1244 : vector<1x16x65xf32> to vector<16x65xf32>
    %c11_976 = arith.constant 11 : index
    %c2_977 = arith.constant 2 : index
    %1246 = memref.load %arg4[%c11_976, %c2_977] : memref<16x16xf32, #tpu.memory_space<smem>>
    %1247 = vector.broadcast %1246 : f32 to vector<16x65xf32>
    %1248 = arith.mulf %1245, %1247 : vector<16x65xf32>
    %1249 = arith.addf %1243, %1248 : vector<16x65xf32>
    %c3_978 = arith.constant 3 : index
    %c0_979 = arith.constant 0 : index
    %c0_980 = arith.constant 0 : index
    %1250 = vector.load %arg7[%c3_978, %c0_979, %c0_980] : memref<16x16x80xf32, #tpu.memory_space<vmem>>, vector<1x16x65xf32>
    %1251 = vector.shape_cast %1250 : vector<1x16x65xf32> to vector<16x65xf32>
    %c11_981 = arith.constant 11 : index
    %c3_982 = arith.constant 3 : index
    %1252 = memref.load %arg4[%c11_981, %c3_982] : memref<16x16xf32, #tpu.memory_space<smem>>
    %1253 = vector.broadcast %1252 : f32 to vector<16x65xf32>
    %1254 = arith.mulf %1251, %1253 : vector<16x65xf32>
    %1255 = arith.addf %1249, %1254 : vector<16x65xf32>
    %c4_983 = arith.constant 4 : index
    %c0_984 = arith.constant 0 : index
    %c0_985 = arith.constant 0 : index
    %1256 = vector.load %arg7[%c4_983, %c0_984, %c0_985] : memref<16x16x80xf32, #tpu.memory_space<vmem>>, vector<1x16x65xf32>
    %1257 = vector.shape_cast %1256 : vector<1x16x65xf32> to vector<16x65xf32>
    %c11_986 = arith.constant 11 : index
    %c4_987 = arith.constant 4 : index
    %1258 = memref.load %arg4[%c11_986, %c4_987] : memref<16x16xf32, #tpu.memory_space<smem>>
    %1259 = vector.broadcast %1258 : f32 to vector<16x65xf32>
    %1260 = arith.mulf %1257, %1259 : vector<16x65xf32>
    %1261 = arith.addf %1255, %1260 : vector<16x65xf32>
    %c5_988 = arith.constant 5 : index
    %c0_989 = arith.constant 0 : index
    %c0_990 = arith.constant 0 : index
    %1262 = vector.load %arg7[%c5_988, %c0_989, %c0_990] : memref<16x16x80xf32, #tpu.memory_space<vmem>>, vector<1x16x65xf32>
    %1263 = vector.shape_cast %1262 : vector<1x16x65xf32> to vector<16x65xf32>
    %c11_991 = arith.constant 11 : index
    %c5_992 = arith.constant 5 : index
    %1264 = memref.load %arg4[%c11_991, %c5_992] : memref<16x16xf32, #tpu.memory_space<smem>>
    %1265 = vector.broadcast %1264 : f32 to vector<16x65xf32>
    %1266 = arith.mulf %1263, %1265 : vector<16x65xf32>
    %1267 = arith.addf %1261, %1266 : vector<16x65xf32>
    %c6_993 = arith.constant 6 : index
    %c0_994 = arith.constant 0 : index
    %c0_995 = arith.constant 0 : index
    %1268 = vector.load %arg7[%c6_993, %c0_994, %c0_995] : memref<16x16x80xf32, #tpu.memory_space<vmem>>, vector<1x16x65xf32>
    %1269 = vector.shape_cast %1268 : vector<1x16x65xf32> to vector<16x65xf32>
    %c11_996 = arith.constant 11 : index
    %c6_997 = arith.constant 6 : index
    %1270 = memref.load %arg4[%c11_996, %c6_997] : memref<16x16xf32, #tpu.memory_space<smem>>
    %1271 = vector.broadcast %1270 : f32 to vector<16x65xf32>
    %1272 = arith.mulf %1269, %1271 : vector<16x65xf32>
    %1273 = arith.addf %1267, %1272 : vector<16x65xf32>
    %c7_998 = arith.constant 7 : index
    %c0_999 = arith.constant 0 : index
    %c0_1000 = arith.constant 0 : index
    %1274 = vector.load %arg7[%c7_998, %c0_999, %c0_1000] : memref<16x16x80xf32, #tpu.memory_space<vmem>>, vector<1x16x65xf32>
    %1275 = vector.shape_cast %1274 : vector<1x16x65xf32> to vector<16x65xf32>
    %c11_1001 = arith.constant 11 : index
    %c7_1002 = arith.constant 7 : index
    %1276 = memref.load %arg4[%c11_1001, %c7_1002] : memref<16x16xf32, #tpu.memory_space<smem>>
    %1277 = vector.broadcast %1276 : f32 to vector<16x65xf32>
    %1278 = arith.mulf %1275, %1277 : vector<16x65xf32>
    %1279 = arith.addf %1273, %1278 : vector<16x65xf32>
    %c8_1003 = arith.constant 8 : index
    %c0_1004 = arith.constant 0 : index
    %c0_1005 = arith.constant 0 : index
    %1280 = vector.load %arg7[%c8_1003, %c0_1004, %c0_1005] : memref<16x16x80xf32, #tpu.memory_space<vmem>>, vector<1x16x65xf32>
    %1281 = vector.shape_cast %1280 : vector<1x16x65xf32> to vector<16x65xf32>
    %c11_1006 = arith.constant 11 : index
    %c8_1007 = arith.constant 8 : index
    %1282 = memref.load %arg4[%c11_1006, %c8_1007] : memref<16x16xf32, #tpu.memory_space<smem>>
    %1283 = vector.broadcast %1282 : f32 to vector<16x65xf32>
    %1284 = arith.mulf %1281, %1283 : vector<16x65xf32>
    %1285 = arith.addf %1279, %1284 : vector<16x65xf32>
    %c9_1008 = arith.constant 9 : index
    %c0_1009 = arith.constant 0 : index
    %c0_1010 = arith.constant 0 : index
    %1286 = vector.load %arg7[%c9_1008, %c0_1009, %c0_1010] : memref<16x16x80xf32, #tpu.memory_space<vmem>>, vector<1x16x65xf32>
    %1287 = vector.shape_cast %1286 : vector<1x16x65xf32> to vector<16x65xf32>
    %c11_1011 = arith.constant 11 : index
    %c9_1012 = arith.constant 9 : index
    %1288 = memref.load %arg4[%c11_1011, %c9_1012] : memref<16x16xf32, #tpu.memory_space<smem>>
    %1289 = vector.broadcast %1288 : f32 to vector<16x65xf32>
    %1290 = arith.mulf %1287, %1289 : vector<16x65xf32>
    %1291 = arith.addf %1285, %1290 : vector<16x65xf32>
    %c10_1013 = arith.constant 10 : index
    %c0_1014 = arith.constant 0 : index
    %c0_1015 = arith.constant 0 : index
    %1292 = vector.load %arg7[%c10_1013, %c0_1014, %c0_1015] : memref<16x16x80xf32, #tpu.memory_space<vmem>>, vector<1x16x65xf32>
    %1293 = vector.shape_cast %1292 : vector<1x16x65xf32> to vector<16x65xf32>
    %c11_1016 = arith.constant 11 : index
    %c10_1017 = arith.constant 10 : index
    %1294 = memref.load %arg4[%c11_1016, %c10_1017] : memref<16x16xf32, #tpu.memory_space<smem>>
    %1295 = vector.broadcast %1294 : f32 to vector<16x65xf32>
    %1296 = arith.mulf %1293, %1295 : vector<16x65xf32>
    %1297 = arith.addf %1291, %1296 : vector<16x65xf32>
    %c11_1018 = arith.constant 11 : index
    %c0_1019 = arith.constant 0 : index
    %c0_1020 = arith.constant 0 : index
    %1298 = vector.load %arg7[%c11_1018, %c0_1019, %c0_1020] : memref<16x16x80xf32, #tpu.memory_space<vmem>>, vector<1x16x65xf32>
    %1299 = vector.shape_cast %1298 : vector<1x16x65xf32> to vector<16x65xf32>
    %c11_1021 = arith.constant 11 : index
    %c11_1022 = arith.constant 11 : index
    %1300 = memref.load %arg4[%c11_1021, %c11_1022] : memref<16x16xf32, #tpu.memory_space<smem>>
    %1301 = vector.broadcast %1300 : f32 to vector<16x65xf32>
    %1302 = arith.mulf %1299, %1301 : vector<16x65xf32>
    %1303 = arith.addf %1297, %1302 : vector<16x65xf32>
    %c12_1023 = arith.constant 12 : index
    %c0_1024 = arith.constant 0 : index
    %c0_1025 = arith.constant 0 : index
    %1304 = vector.load %arg7[%c12_1023, %c0_1024, %c0_1025] : memref<16x16x80xf32, #tpu.memory_space<vmem>>, vector<1x16x65xf32>
    %1305 = vector.shape_cast %1304 : vector<1x16x65xf32> to vector<16x65xf32>
    %c11_1026 = arith.constant 11 : index
    %c12_1027 = arith.constant 12 : index
    %1306 = memref.load %arg4[%c11_1026, %c12_1027] : memref<16x16xf32, #tpu.memory_space<smem>>
    %1307 = vector.broadcast %1306 : f32 to vector<16x65xf32>
    %1308 = arith.mulf %1305, %1307 : vector<16x65xf32>
    %1309 = arith.addf %1303, %1308 : vector<16x65xf32>
    %c13_1028 = arith.constant 13 : index
    %c0_1029 = arith.constant 0 : index
    %c0_1030 = arith.constant 0 : index
    %1310 = vector.load %arg7[%c13_1028, %c0_1029, %c0_1030] : memref<16x16x80xf32, #tpu.memory_space<vmem>>, vector<1x16x65xf32>
    %1311 = vector.shape_cast %1310 : vector<1x16x65xf32> to vector<16x65xf32>
    %c11_1031 = arith.constant 11 : index
    %c13_1032 = arith.constant 13 : index
    %1312 = memref.load %arg4[%c11_1031, %c13_1032] : memref<16x16xf32, #tpu.memory_space<smem>>
    %1313 = vector.broadcast %1312 : f32 to vector<16x65xf32>
    %1314 = arith.mulf %1311, %1313 : vector<16x65xf32>
    %1315 = arith.addf %1309, %1314 : vector<16x65xf32>
    %c14_1033 = arith.constant 14 : index
    %c0_1034 = arith.constant 0 : index
    %c0_1035 = arith.constant 0 : index
    %1316 = vector.load %arg7[%c14_1033, %c0_1034, %c0_1035] : memref<16x16x80xf32, #tpu.memory_space<vmem>>, vector<1x16x65xf32>
    %1317 = vector.shape_cast %1316 : vector<1x16x65xf32> to vector<16x65xf32>
    %c11_1036 = arith.constant 11 : index
    %c14_1037 = arith.constant 14 : index
    %1318 = memref.load %arg4[%c11_1036, %c14_1037] : memref<16x16xf32, #tpu.memory_space<smem>>
    %1319 = vector.broadcast %1318 : f32 to vector<16x65xf32>
    %1320 = arith.mulf %1317, %1319 : vector<16x65xf32>
    %1321 = arith.addf %1315, %1320 : vector<16x65xf32>
    %c15_1038 = arith.constant 15 : index
    %c0_1039 = arith.constant 0 : index
    %c0_1040 = arith.constant 0 : index
    %1322 = vector.load %arg7[%c15_1038, %c0_1039, %c0_1040] : memref<16x16x80xf32, #tpu.memory_space<vmem>>, vector<1x16x65xf32>
    %1323 = vector.shape_cast %1322 : vector<1x16x65xf32> to vector<16x65xf32>
    %c11_1041 = arith.constant 11 : index
    %c15_1042 = arith.constant 15 : index
    %1324 = memref.load %arg4[%c11_1041, %c15_1042] : memref<16x16xf32, #tpu.memory_space<smem>>
    %1325 = vector.broadcast %1324 : f32 to vector<16x65xf32>
    %1326 = arith.mulf %1323, %1325 : vector<16x65xf32>
    %1327 = arith.addf %1321, %1326 : vector<16x65xf32>
    %c11_1043 = arith.constant 11 : index
    %c3_1044 = arith.constant 3 : index
    %1328 = memref.load %arg5[%c11_1043, %c3_1044] : memref<16x4xf32, #tpu.memory_space<smem>>
    %1329 = vector.broadcast %1328 : f32 to vector<16x65xf32>
    %1330 = arith.addf %1327, %1329 : vector<16x65xf32>
    %cst_1045 = arith.constant 0.000000e+00 : f32
    %1331 = vector.broadcast %cst_1045 : f32 to vector<16x65xf32>
    %1332 = arith.cmpf ogt, %1330, %1331 : vector<16x65xf32>
    %cst_1046 = arith.constant 0.000000e+00 : f32
    %1333 = vector.broadcast %cst_1046 : f32 to vector<16x65xf32>
    %1334 = arith.minimumf %1330, %1333 : vector<16x65xf32>
    %1335 = math.exp %1334 : vector<16x65xf32>
    %cst_1047 = arith.constant 1.000000e+00 : f32
    %1336 = vector.broadcast %cst_1047 : f32 to vector<16x65xf32>
    %1337 = arith.subf %1335, %1336 : vector<16x65xf32>
    %1338 = arith.select %1332, %1330, %1337 : vector<16x65xi1>, vector<16x65xf32>
    %cst_1048 = arith.constant dense<0.000000e+00> : vector<16xf32>
    %1339 = vector.multi_reduction <add>, %1338, %cst_1048 [1] : vector<16x65xf32> to vector<16xf32>
    %cst_1049 = arith.constant 0.0153846154 : f32
    %1340 = vector.broadcast %cst_1049 : f32 to vector<16xf32>
    %1341 = arith.mulf %1339, %1340 : vector<16xf32>
    %c11_1050 = arith.constant 11 : index
    %c0_1051 = arith.constant 0 : index
    %1342 = vector.load %arg6[%c11_1050, %c0_1051] : memref<16x16xf32, #tpu.memory_space<vmem>>, vector<1x16xf32>
    %1343 = vector.shape_cast %1342 : vector<1x16xf32> to vector<16xf32>
    %1344 = vector.shape_cast %1341 : vector<16xf32> to vector<1x16xf32>
    tpu.vector_store %arg6[%c11_1050, %c0_1051], %1344 {strides = array<i32>} : memref<16x16xf32, #tpu.memory_space<vmem>>, vector<1x16xf32>,
    %c0_1052 = arith.constant 0 : index
    %c0_1053 = arith.constant 0 : index
    %c0_1054 = arith.constant 0 : index
    %1345 = vector.load %arg7[%c0_1052, %c0_1053, %c0_1054] : memref<16x16x80xf32, #tpu.memory_space<vmem>>, vector<1x16x65xf32>
    %1346 = vector.shape_cast %1345 : vector<1x16x65xf32> to vector<16x65xf32>
    %c12_1055 = arith.constant 12 : index
    %c0_1056 = arith.constant 0 : index
    %1347 = memref.load %arg4[%c12_1055, %c0_1056] : memref<16x16xf32, #tpu.memory_space<smem>>
    %1348 = vector.broadcast %1347 : f32 to vector<16x65xf32>
    %1349 = arith.mulf %1346, %1348 : vector<16x65xf32>
    %c1_1057 = arith.constant 1 : index
    %c0_1058 = arith.constant 0 : index
    %c0_1059 = arith.constant 0 : index
    %1350 = vector.load %arg7[%c1_1057, %c0_1058, %c0_1059] : memref<16x16x80xf32, #tpu.memory_space<vmem>>, vector<1x16x65xf32>
    %1351 = vector.shape_cast %1350 : vector<1x16x65xf32> to vector<16x65xf32>
    %c12_1060 = arith.constant 12 : index
    %c1_1061 = arith.constant 1 : index
    %1352 = memref.load %arg4[%c12_1060, %c1_1061] : memref<16x16xf32, #tpu.memory_space<smem>>
    %1353 = vector.broadcast %1352 : f32 to vector<16x65xf32>
    %1354 = arith.mulf %1351, %1353 : vector<16x65xf32>
    %1355 = arith.addf %1349, %1354 : vector<16x65xf32>
    %c2_1062 = arith.constant 2 : index
    %c0_1063 = arith.constant 0 : index
    %c0_1064 = arith.constant 0 : index
    %1356 = vector.load %arg7[%c2_1062, %c0_1063, %c0_1064] : memref<16x16x80xf32, #tpu.memory_space<vmem>>, vector<1x16x65xf32>
    %1357 = vector.shape_cast %1356 : vector<1x16x65xf32> to vector<16x65xf32>
    %c12_1065 = arith.constant 12 : index
    %c2_1066 = arith.constant 2 : index
    %1358 = memref.load %arg4[%c12_1065, %c2_1066] : memref<16x16xf32, #tpu.memory_space<smem>>
    %1359 = vector.broadcast %1358 : f32 to vector<16x65xf32>
    %1360 = arith.mulf %1357, %1359 : vector<16x65xf32>
    %1361 = arith.addf %1355, %1360 : vector<16x65xf32>
    %c3_1067 = arith.constant 3 : index
    %c0_1068 = arith.constant 0 : index
    %c0_1069 = arith.constant 0 : index
    %1362 = vector.load %arg7[%c3_1067, %c0_1068, %c0_1069] : memref<16x16x80xf32, #tpu.memory_space<vmem>>, vector<1x16x65xf32>
    %1363 = vector.shape_cast %1362 : vector<1x16x65xf32> to vector<16x65xf32>
    %c12_1070 = arith.constant 12 : index
    %c3_1071 = arith.constant 3 : index
    %1364 = memref.load %arg4[%c12_1070, %c3_1071] : memref<16x16xf32, #tpu.memory_space<smem>>
    %1365 = vector.broadcast %1364 : f32 to vector<16x65xf32>
    %1366 = arith.mulf %1363, %1365 : vector<16x65xf32>
    %1367 = arith.addf %1361, %1366 : vector<16x65xf32>
    %c4_1072 = arith.constant 4 : index
    %c0_1073 = arith.constant 0 : index
    %c0_1074 = arith.constant 0 : index
    %1368 = vector.load %arg7[%c4_1072, %c0_1073, %c0_1074] : memref<16x16x80xf32, #tpu.memory_space<vmem>>, vector<1x16x65xf32>
    %1369 = vector.shape_cast %1368 : vector<1x16x65xf32> to vector<16x65xf32>
    %c12_1075 = arith.constant 12 : index
    %c4_1076 = arith.constant 4 : index
    %1370 = memref.load %arg4[%c12_1075, %c4_1076] : memref<16x16xf32, #tpu.memory_space<smem>>
    %1371 = vector.broadcast %1370 : f32 to vector<16x65xf32>
    %1372 = arith.mulf %1369, %1371 : vector<16x65xf32>
    %1373 = arith.addf %1367, %1372 : vector<16x65xf32>
    %c5_1077 = arith.constant 5 : index
    %c0_1078 = arith.constant 0 : index
    %c0_1079 = arith.constant 0 : index
    %1374 = vector.load %arg7[%c5_1077, %c0_1078, %c0_1079] : memref<16x16x80xf32, #tpu.memory_space<vmem>>, vector<1x16x65xf32>
    %1375 = vector.shape_cast %1374 : vector<1x16x65xf32> to vector<16x65xf32>
    %c12_1080 = arith.constant 12 : index
    %c5_1081 = arith.constant 5 : index
    %1376 = memref.load %arg4[%c12_1080, %c5_1081] : memref<16x16xf32, #tpu.memory_space<smem>>
    %1377 = vector.broadcast %1376 : f32 to vector<16x65xf32>
    %1378 = arith.mulf %1375, %1377 : vector<16x65xf32>
    %1379 = arith.addf %1373, %1378 : vector<16x65xf32>
    %c6_1082 = arith.constant 6 : index
    %c0_1083 = arith.constant 0 : index
    %c0_1084 = arith.constant 0 : index
    %1380 = vector.load %arg7[%c6_1082, %c0_1083, %c0_1084] : memref<16x16x80xf32, #tpu.memory_space<vmem>>, vector<1x16x65xf32>
    %1381 = vector.shape_cast %1380 : vector<1x16x65xf32> to vector<16x65xf32>
    %c12_1085 = arith.constant 12 : index
    %c6_1086 = arith.constant 6 : index
    %1382 = memref.load %arg4[%c12_1085, %c6_1086] : memref<16x16xf32, #tpu.memory_space<smem>>
    %1383 = vector.broadcast %1382 : f32 to vector<16x65xf32>
    %1384 = arith.mulf %1381, %1383 : vector<16x65xf32>
    %1385 = arith.addf %1379, %1384 : vector<16x65xf32>
    %c7_1087 = arith.constant 7 : index
    %c0_1088 = arith.constant 0 : index
    %c0_1089 = arith.constant 0 : index
    %1386 = vector.load %arg7[%c7_1087, %c0_1088, %c0_1089] : memref<16x16x80xf32, #tpu.memory_space<vmem>>, vector<1x16x65xf32>
    %1387 = vector.shape_cast %1386 : vector<1x16x65xf32> to vector<16x65xf32>
    %c12_1090 = arith.constant 12 : index
    %c7_1091 = arith.constant 7 : index
    %1388 = memref.load %arg4[%c12_1090, %c7_1091] : memref<16x16xf32, #tpu.memory_space<smem>>
    %1389 = vector.broadcast %1388 : f32 to vector<16x65xf32>
    %1390 = arith.mulf %1387, %1389 : vector<16x65xf32>
    %1391 = arith.addf %1385, %1390 : vector<16x65xf32>
    %c8_1092 = arith.constant 8 : index
    %c0_1093 = arith.constant 0 : index
    %c0_1094 = arith.constant 0 : index
    %1392 = vector.load %arg7[%c8_1092, %c0_1093, %c0_1094] : memref<16x16x80xf32, #tpu.memory_space<vmem>>, vector<1x16x65xf32>
    %1393 = vector.shape_cast %1392 : vector<1x16x65xf32> to vector<16x65xf32>
    %c12_1095 = arith.constant 12 : index
    %c8_1096 = arith.constant 8 : index
    %1394 = memref.load %arg4[%c12_1095, %c8_1096] : memref<16x16xf32, #tpu.memory_space<smem>>
    %1395 = vector.broadcast %1394 : f32 to vector<16x65xf32>
    %1396 = arith.mulf %1393, %1395 : vector<16x65xf32>
    %1397 = arith.addf %1391, %1396 : vector<16x65xf32>
    %c9_1097 = arith.constant 9 : index
    %c0_1098 = arith.constant 0 : index
    %c0_1099 = arith.constant 0 : index
    %1398 = vector.load %arg7[%c9_1097, %c0_1098, %c0_1099] : memref<16x16x80xf32, #tpu.memory_space<vmem>>, vector<1x16x65xf32>
    %1399 = vector.shape_cast %1398 : vector<1x16x65xf32> to vector<16x65xf32>
    %c12_1100 = arith.constant 12 : index
    %c9_1101 = arith.constant 9 : index
    %1400 = memref.load %arg4[%c12_1100, %c9_1101] : memref<16x16xf32, #tpu.memory_space<smem>>
    %1401 = vector.broadcast %1400 : f32 to vector<16x65xf32>
    %1402 = arith.mulf %1399, %1401 : vector<16x65xf32>
    %1403 = arith.addf %1397, %1402 : vector<16x65xf32>
    %c10_1102 = arith.constant 10 : index
    %c0_1103 = arith.constant 0 : index
    %c0_1104 = arith.constant 0 : index
    %1404 = vector.load %arg7[%c10_1102, %c0_1103, %c0_1104] : memref<16x16x80xf32, #tpu.memory_space<vmem>>, vector<1x16x65xf32>
    %1405 = vector.shape_cast %1404 : vector<1x16x65xf32> to vector<16x65xf32>
    %c12_1105 = arith.constant 12 : index
    %c10_1106 = arith.constant 10 : index
    %1406 = memref.load %arg4[%c12_1105, %c10_1106] : memref<16x16xf32, #tpu.memory_space<smem>>
    %1407 = vector.broadcast %1406 : f32 to vector<16x65xf32>
    %1408 = arith.mulf %1405, %1407 : vector<16x65xf32>
    %1409 = arith.addf %1403, %1408 : vector<16x65xf32>
    %c11_1107 = arith.constant 11 : index
    %c0_1108 = arith.constant 0 : index
    %c0_1109 = arith.constant 0 : index
    %1410 = vector.load %arg7[%c11_1107, %c0_1108, %c0_1109] : memref<16x16x80xf32, #tpu.memory_space<vmem>>, vector<1x16x65xf32>
    %1411 = vector.shape_cast %1410 : vector<1x16x65xf32> to vector<16x65xf32>
    %c12_1110 = arith.constant 12 : index
    %c11_1111 = arith.constant 11 : index
    %1412 = memref.load %arg4[%c12_1110, %c11_1111] : memref<16x16xf32, #tpu.memory_space<smem>>
    %1413 = vector.broadcast %1412 : f32 to vector<16x65xf32>
    %1414 = arith.mulf %1411, %1413 : vector<16x65xf32>
    %1415 = arith.addf %1409, %1414 : vector<16x65xf32>
    %c12_1112 = arith.constant 12 : index
    %c0_1113 = arith.constant 0 : index
    %c0_1114 = arith.constant 0 : index
    %1416 = vector.load %arg7[%c12_1112, %c0_1113, %c0_1114] : memref<16x16x80xf32, #tpu.memory_space<vmem>>, vector<1x16x65xf32>
    %1417 = vector.shape_cast %1416 : vector<1x16x65xf32> to vector<16x65xf32>
    %c12_1115 = arith.constant 12 : index
    %c12_1116 = arith.constant 12 : index
    %1418 = memref.load %arg4[%c12_1115, %c12_1116] : memref<16x16xf32, #tpu.memory_space<smem>>
    %1419 = vector.broadcast %1418 : f32 to vector<16x65xf32>
    %1420 = arith.mulf %1417, %1419 : vector<16x65xf32>
    %1421 = arith.addf %1415, %1420 : vector<16x65xf32>
    %c13_1117 = arith.constant 13 : index
    %c0_1118 = arith.constant 0 : index
    %c0_1119 = arith.constant 0 : index
    %1422 = vector.load %arg7[%c13_1117, %c0_1118, %c0_1119] : memref<16x16x80xf32, #tpu.memory_space<vmem>>, vector<1x16x65xf32>
    %1423 = vector.shape_cast %1422 : vector<1x16x65xf32> to vector<16x65xf32>
    %c12_1120 = arith.constant 12 : index
    %c13_1121 = arith.constant 13 : index
    %1424 = memref.load %arg4[%c12_1120, %c13_1121] : memref<16x16xf32, #tpu.memory_space<smem>>
    %1425 = vector.broadcast %1424 : f32 to vector<16x65xf32>
    %1426 = arith.mulf %1423, %1425 : vector<16x65xf32>
    %1427 = arith.addf %1421, %1426 : vector<16x65xf32>
    %c14_1122 = arith.constant 14 : index
    %c0_1123 = arith.constant 0 : index
    %c0_1124 = arith.constant 0 : index
    %1428 = vector.load %arg7[%c14_1122, %c0_1123, %c0_1124] : memref<16x16x80xf32, #tpu.memory_space<vmem>>, vector<1x16x65xf32>
    %1429 = vector.shape_cast %1428 : vector<1x16x65xf32> to vector<16x65xf32>
    %c12_1125 = arith.constant 12 : index
    %c14_1126 = arith.constant 14 : index
    %1430 = memref.load %arg4[%c12_1125, %c14_1126] : memref<16x16xf32, #tpu.memory_space<smem>>
    %1431 = vector.broadcast %1430 : f32 to vector<16x65xf32>
    %1432 = arith.mulf %1429, %1431 : vector<16x65xf32>
    %1433 = arith.addf %1427, %1432 : vector<16x65xf32>
    %c15_1127 = arith.constant 15 : index
    %c0_1128 = arith.constant 0 : index
    %c0_1129 = arith.constant 0 : index
    %1434 = vector.load %arg7[%c15_1127, %c0_1128, %c0_1129] : memref<16x16x80xf32, #tpu.memory_space<vmem>>, vector<1x16x65xf32>
    %1435 = vector.shape_cast %1434 : vector<1x16x65xf32> to vector<16x65xf32>
    %c12_1130 = arith.constant 12 : index
    %c15_1131 = arith.constant 15 : index
    %1436 = memref.load %arg4[%c12_1130, %c15_1131] : memref<16x16xf32, #tpu.memory_space<smem>>
    %1437 = vector.broadcast %1436 : f32 to vector<16x65xf32>
    %1438 = arith.mulf %1435, %1437 : vector<16x65xf32>
    %1439 = arith.addf %1433, %1438 : vector<16x65xf32>
    %c12_1132 = arith.constant 12 : index
    %c3_1133 = arith.constant 3 : index
    %1440 = memref.load %arg5[%c12_1132, %c3_1133] : memref<16x4xf32, #tpu.memory_space<smem>>
    %1441 = vector.broadcast %1440 : f32 to vector<16x65xf32>
    %1442 = arith.addf %1439, %1441 : vector<16x65xf32>
    %cst_1134 = arith.constant 0.000000e+00 : f32
    %1443 = vector.broadcast %cst_1134 : f32 to vector<16x65xf32>
    %1444 = arith.cmpf ogt, %1442, %1443 : vector<16x65xf32>
    %cst_1135 = arith.constant 0.000000e+00 : f32
    %1445 = vector.broadcast %cst_1135 : f32 to vector<16x65xf32>
    %1446 = arith.minimumf %1442, %1445 : vector<16x65xf32>
    %1447 = math.exp %1446 : vector<16x65xf32>
    %cst_1136 = arith.constant 1.000000e+00 : f32
    %1448 = vector.broadcast %cst_1136 : f32 to vector<16x65xf32>
    %1449 = arith.subf %1447, %1448 : vector<16x65xf32>
    %1450 = arith.select %1444, %1442, %1449 : vector<16x65xi1>, vector<16x65xf32>
    %cst_1137 = arith.constant dense<0.000000e+00> : vector<16xf32>
    %1451 = vector.multi_reduction <add>, %1450, %cst_1137 [1] : vector<16x65xf32> to vector<16xf32>
    %cst_1138 = arith.constant 0.0153846154 : f32
    %1452 = vector.broadcast %cst_1138 : f32 to vector<16xf32>
    %1453 = arith.mulf %1451, %1452 : vector<16xf32>
    %c12_1139 = arith.constant 12 : index
    %c0_1140 = arith.constant 0 : index
    %1454 = vector.load %arg6[%c12_1139, %c0_1140] : memref<16x16xf32, #tpu.memory_space<vmem>>, vector<1x16xf32>
    %1455 = vector.shape_cast %1454 : vector<1x16xf32> to vector<16xf32>
    %1456 = vector.shape_cast %1453 : vector<16xf32> to vector<1x16xf32>
    tpu.vector_store %arg6[%c12_1139, %c0_1140], %1456 {strides = array<i32>} : memref<16x16xf32, #tpu.memory_space<vmem>>, vector<1x16xf32>,
    %c0_1141 = arith.constant 0 : index
    %c0_1142 = arith.constant 0 : index
    %c0_1143 = arith.constant 0 : index
    %1457 = vector.load %arg7[%c0_1141, %c0_1142, %c0_1143] : memref<16x16x80xf32, #tpu.memory_space<vmem>>, vector<1x16x65xf32>
    %1458 = vector.shape_cast %1457 : vector<1x16x65xf32> to vector<16x65xf32>
    %c13_1144 = arith.constant 13 : index
    %c0_1145 = arith.constant 0 : index
    %1459 = memref.load %arg4[%c13_1144, %c0_1145] : memref<16x16xf32, #tpu.memory_space<smem>>
    %1460 = vector.broadcast %1459 : f32 to vector<16x65xf32>
    %1461 = arith.mulf %1458, %1460 : vector<16x65xf32>
    %c1_1146 = arith.constant 1 : index
    %c0_1147 = arith.constant 0 : index
    %c0_1148 = arith.constant 0 : index
    %1462 = vector.load %arg7[%c1_1146, %c0_1147, %c0_1148] : memref<16x16x80xf32, #tpu.memory_space<vmem>>, vector<1x16x65xf32>
    %1463 = vector.shape_cast %1462 : vector<1x16x65xf32> to vector<16x65xf32>
    %c13_1149 = arith.constant 13 : index
    %c1_1150 = arith.constant 1 : index
    %1464 = memref.load %arg4[%c13_1149, %c1_1150] : memref<16x16xf32, #tpu.memory_space<smem>>
    %1465 = vector.broadcast %1464 : f32 to vector<16x65xf32>
    %1466 = arith.mulf %1463, %1465 : vector<16x65xf32>
    %1467 = arith.addf %1461, %1466 : vector<16x65xf32>
    %c2_1151 = arith.constant 2 : index
    %c0_1152 = arith.constant 0 : index
    %c0_1153 = arith.constant 0 : index
    %1468 = vector.load %arg7[%c2_1151, %c0_1152, %c0_1153] : memref<16x16x80xf32, #tpu.memory_space<vmem>>, vector<1x16x65xf32>
    %1469 = vector.shape_cast %1468 : vector<1x16x65xf32> to vector<16x65xf32>
    %c13_1154 = arith.constant 13 : index
    %c2_1155 = arith.constant 2 : index
    %1470 = memref.load %arg4[%c13_1154, %c2_1155] : memref<16x16xf32, #tpu.memory_space<smem>>
    %1471 = vector.broadcast %1470 : f32 to vector<16x65xf32>
    %1472 = arith.mulf %1469, %1471 : vector<16x65xf32>
    %1473 = arith.addf %1467, %1472 : vector<16x65xf32>
    %c3_1156 = arith.constant 3 : index
    %c0_1157 = arith.constant 0 : index
    %c0_1158 = arith.constant 0 : index
    %1474 = vector.load %arg7[%c3_1156, %c0_1157, %c0_1158] : memref<16x16x80xf32, #tpu.memory_space<vmem>>, vector<1x16x65xf32>
    %1475 = vector.shape_cast %1474 : vector<1x16x65xf32> to vector<16x65xf32>
    %c13_1159 = arith.constant 13 : index
    %c3_1160 = arith.constant 3 : index
    %1476 = memref.load %arg4[%c13_1159, %c3_1160] : memref<16x16xf32, #tpu.memory_space<smem>>
    %1477 = vector.broadcast %1476 : f32 to vector<16x65xf32>
    %1478 = arith.mulf %1475, %1477 : vector<16x65xf32>
    %1479 = arith.addf %1473, %1478 : vector<16x65xf32>
    %c4_1161 = arith.constant 4 : index
    %c0_1162 = arith.constant 0 : index
    %c0_1163 = arith.constant 0 : index
    %1480 = vector.load %arg7[%c4_1161, %c0_1162, %c0_1163] : memref<16x16x80xf32, #tpu.memory_space<vmem>>, vector<1x16x65xf32>
    %1481 = vector.shape_cast %1480 : vector<1x16x65xf32> to vector<16x65xf32>
    %c13_1164 = arith.constant 13 : index
    %c4_1165 = arith.constant 4 : index
    %1482 = memref.load %arg4[%c13_1164, %c4_1165] : memref<16x16xf32, #tpu.memory_space<smem>>
    %1483 = vector.broadcast %1482 : f32 to vector<16x65xf32>
    %1484 = arith.mulf %1481, %1483 : vector<16x65xf32>
    %1485 = arith.addf %1479, %1484 : vector<16x65xf32>
    %c5_1166 = arith.constant 5 : index
    %c0_1167 = arith.constant 0 : index
    %c0_1168 = arith.constant 0 : index
    %1486 = vector.load %arg7[%c5_1166, %c0_1167, %c0_1168] : memref<16x16x80xf32, #tpu.memory_space<vmem>>, vector<1x16x65xf32>
    %1487 = vector.shape_cast %1486 : vector<1x16x65xf32> to vector<16x65xf32>
    %c13_1169 = arith.constant 13 : index
    %c5_1170 = arith.constant 5 : index
    %1488 = memref.load %arg4[%c13_1169, %c5_1170] : memref<16x16xf32, #tpu.memory_space<smem>>
    %1489 = vector.broadcast %1488 : f32 to vector<16x65xf32>
    %1490 = arith.mulf %1487, %1489 : vector<16x65xf32>
    %1491 = arith.addf %1485, %1490 : vector<16x65xf32>
    %c6_1171 = arith.constant 6 : index
    %c0_1172 = arith.constant 0 : index
    %c0_1173 = arith.constant 0 : index
    %1492 = vector.load %arg7[%c6_1171, %c0_1172, %c0_1173] : memref<16x16x80xf32, #tpu.memory_space<vmem>>, vector<1x16x65xf32>
    %1493 = vector.shape_cast %1492 : vector<1x16x65xf32> to vector<16x65xf32>
    %c13_1174 = arith.constant 13 : index
    %c6_1175 = arith.constant 6 : index
    %1494 = memref.load %arg4[%c13_1174, %c6_1175] : memref<16x16xf32, #tpu.memory_space<smem>>
    %1495 = vector.broadcast %1494 : f32 to vector<16x65xf32>
    %1496 = arith.mulf %1493, %1495 : vector<16x65xf32>
    %1497 = arith.addf %1491, %1496 : vector<16x65xf32>
    %c7_1176 = arith.constant 7 : index
    %c0_1177 = arith.constant 0 : index
    %c0_1178 = arith.constant 0 : index
    %1498 = vector.load %arg7[%c7_1176, %c0_1177, %c0_1178] : memref<16x16x80xf32, #tpu.memory_space<vmem>>, vector<1x16x65xf32>
    %1499 = vector.shape_cast %1498 : vector<1x16x65xf32> to vector<16x65xf32>
    %c13_1179 = arith.constant 13 : index
    %c7_1180 = arith.constant 7 : index
    %1500 = memref.load %arg4[%c13_1179, %c7_1180] : memref<16x16xf32, #tpu.memory_space<smem>>
    %1501 = vector.broadcast %1500 : f32 to vector<16x65xf32>
    %1502 = arith.mulf %1499, %1501 : vector<16x65xf32>
    %1503 = arith.addf %1497, %1502 : vector<16x65xf32>
    %c8_1181 = arith.constant 8 : index
    %c0_1182 = arith.constant 0 : index
    %c0_1183 = arith.constant 0 : index
    %1504 = vector.load %arg7[%c8_1181, %c0_1182, %c0_1183] : memref<16x16x80xf32, #tpu.memory_space<vmem>>, vector<1x16x65xf32>
    %1505 = vector.shape_cast %1504 : vector<1x16x65xf32> to vector<16x65xf32>
    %c13_1184 = arith.constant 13 : index
    %c8_1185 = arith.constant 8 : index
    %1506 = memref.load %arg4[%c13_1184, %c8_1185] : memref<16x16xf32, #tpu.memory_space<smem>>
    %1507 = vector.broadcast %1506 : f32 to vector<16x65xf32>
    %1508 = arith.mulf %1505, %1507 : vector<16x65xf32>
    %1509 = arith.addf %1503, %1508 : vector<16x65xf32>
    %c9_1186 = arith.constant 9 : index
    %c0_1187 = arith.constant 0 : index
    %c0_1188 = arith.constant 0 : index
    %1510 = vector.load %arg7[%c9_1186, %c0_1187, %c0_1188] : memref<16x16x80xf32, #tpu.memory_space<vmem>>, vector<1x16x65xf32>
    %1511 = vector.shape_cast %1510 : vector<1x16x65xf32> to vector<16x65xf32>
    %c13_1189 = arith.constant 13 : index
    %c9_1190 = arith.constant 9 : index
    %1512 = memref.load %arg4[%c13_1189, %c9_1190] : memref<16x16xf32, #tpu.memory_space<smem>>
    %1513 = vector.broadcast %1512 : f32 to vector<16x65xf32>
    %1514 = arith.mulf %1511, %1513 : vector<16x65xf32>
    %1515 = arith.addf %1509, %1514 : vector<16x65xf32>
    %c10_1191 = arith.constant 10 : index
    %c0_1192 = arith.constant 0 : index
    %c0_1193 = arith.constant 0 : index
    %1516 = vector.load %arg7[%c10_1191, %c0_1192, %c0_1193] : memref<16x16x80xf32, #tpu.memory_space<vmem>>, vector<1x16x65xf32>
    %1517 = vector.shape_cast %1516 : vector<1x16x65xf32> to vector<16x65xf32>
    %c13_1194 = arith.constant 13 : index
    %c10_1195 = arith.constant 10 : index
    %1518 = memref.load %arg4[%c13_1194, %c10_1195] : memref<16x16xf32, #tpu.memory_space<smem>>
    %1519 = vector.broadcast %1518 : f32 to vector<16x65xf32>
    %1520 = arith.mulf %1517, %1519 : vector<16x65xf32>
    %1521 = arith.addf %1515, %1520 : vector<16x65xf32>
    %c11_1196 = arith.constant 11 : index
    %c0_1197 = arith.constant 0 : index
    %c0_1198 = arith.constant 0 : index
    %1522 = vector.load %arg7[%c11_1196, %c0_1197, %c0_1198] : memref<16x16x80xf32, #tpu.memory_space<vmem>>, vector<1x16x65xf32>
    %1523 = vector.shape_cast %1522 : vector<1x16x65xf32> to vector<16x65xf32>
    %c13_1199 = arith.constant 13 : index
    %c11_1200 = arith.constant 11 : index
    %1524 = memref.load %arg4[%c13_1199, %c11_1200] : memref<16x16xf32, #tpu.memory_space<smem>>
    %1525 = vector.broadcast %1524 : f32 to vector<16x65xf32>
    %1526 = arith.mulf %1523, %1525 : vector<16x65xf32>
    %1527 = arith.addf %1521, %1526 : vector<16x65xf32>
    %c12_1201 = arith.constant 12 : index
    %c0_1202 = arith.constant 0 : index
    %c0_1203 = arith.constant 0 : index
    %1528 = vector.load %arg7[%c12_1201, %c0_1202, %c0_1203] : memref<16x16x80xf32, #tpu.memory_space<vmem>>, vector<1x16x65xf32>
    %1529 = vector.shape_cast %1528 : vector<1x16x65xf32> to vector<16x65xf32>
    %c13_1204 = arith.constant 13 : index
    %c12_1205 = arith.constant 12 : index
    %1530 = memref.load %arg4[%c13_1204, %c12_1205] : memref<16x16xf32, #tpu.memory_space<smem>>
    %1531 = vector.broadcast %1530 : f32 to vector<16x65xf32>
    %1532 = arith.mulf %1529, %1531 : vector<16x65xf32>
    %1533 = arith.addf %1527, %1532 : vector<16x65xf32>
    %c13_1206 = arith.constant 13 : index
    %c0_1207 = arith.constant 0 : index
    %c0_1208 = arith.constant 0 : index
    %1534 = vector.load %arg7[%c13_1206, %c0_1207, %c0_1208] : memref<16x16x80xf32, #tpu.memory_space<vmem>>, vector<1x16x65xf32>
    %1535 = vector.shape_cast %1534 : vector<1x16x65xf32> to vector<16x65xf32>
    %c13_1209 = arith.constant 13 : index
    %c13_1210 = arith.constant 13 : index
    %1536 = memref.load %arg4[%c13_1209, %c13_1210] : memref<16x16xf32, #tpu.memory_space<smem>>
    %1537 = vector.broadcast %1536 : f32 to vector<16x65xf32>
    %1538 = arith.mulf %1535, %1537 : vector<16x65xf32>
    %1539 = arith.addf %1533, %1538 : vector<16x65xf32>
    %c14_1211 = arith.constant 14 : index
    %c0_1212 = arith.constant 0 : index
    %c0_1213 = arith.constant 0 : index
    %1540 = vector.load %arg7[%c14_1211, %c0_1212, %c0_1213] : memref<16x16x80xf32, #tpu.memory_space<vmem>>, vector<1x16x65xf32>
    %1541 = vector.shape_cast %1540 : vector<1x16x65xf32> to vector<16x65xf32>
    %c13_1214 = arith.constant 13 : index
    %c14_1215 = arith.constant 14 : index
    %1542 = memref.load %arg4[%c13_1214, %c14_1215] : memref<16x16xf32, #tpu.memory_space<smem>>
    %1543 = vector.broadcast %1542 : f32 to vector<16x65xf32>
    %1544 = arith.mulf %1541, %1543 : vector<16x65xf32>
    %1545 = arith.addf %1539, %1544 : vector<16x65xf32>
    %c15_1216 = arith.constant 15 : index
    %c0_1217 = arith.constant 0 : index
    %c0_1218 = arith.constant 0 : index
    %1546 = vector.load %arg7[%c15_1216, %c0_1217, %c0_1218] : memref<16x16x80xf32, #tpu.memory_space<vmem>>, vector<1x16x65xf32>
    %1547 = vector.shape_cast %1546 : vector<1x16x65xf32> to vector<16x65xf32>
    %c13_1219 = arith.constant 13 : index
    %c15_1220 = arith.constant 15 : index
    %1548 = memref.load %arg4[%c13_1219, %c15_1220] : memref<16x16xf32, #tpu.memory_space<smem>>
    %1549 = vector.broadcast %1548 : f32 to vector<16x65xf32>
    %1550 = arith.mulf %1547, %1549 : vector<16x65xf32>
    %1551 = arith.addf %1545, %1550 : vector<16x65xf32>
    %c13_1221 = arith.constant 13 : index
    %c3_1222 = arith.constant 3 : index
    %1552 = memref.load %arg5[%c13_1221, %c3_1222] : memref<16x4xf32, #tpu.memory_space<smem>>
    %1553 = vector.broadcast %1552 : f32 to vector<16x65xf32>
    %1554 = arith.addf %1551, %1553 : vector<16x65xf32>
    %cst_1223 = arith.constant 0.000000e+00 : f32
    %1555 = vector.broadcast %cst_1223 : f32 to vector<16x65xf32>
    %1556 = arith.cmpf ogt, %1554, %1555 : vector<16x65xf32>
    %cst_1224 = arith.constant 0.000000e+00 : f32
    %1557 = vector.broadcast %cst_1224 : f32 to vector<16x65xf32>
    %1558 = arith.minimumf %1554, %1557 : vector<16x65xf32>
    %1559 = math.exp %1558 : vector<16x65xf32>
    %cst_1225 = arith.constant 1.000000e+00 : f32
    %1560 = vector.broadcast %cst_1225 : f32 to vector<16x65xf32>
    %1561 = arith.subf %1559, %1560 : vector<16x65xf32>
    %1562 = arith.select %1556, %1554, %1561 : vector<16x65xi1>, vector<16x65xf32>
    %cst_1226 = arith.constant dense<0.000000e+00> : vector<16xf32>
    %1563 = vector.multi_reduction <add>, %1562, %cst_1226 [1] : vector<16x65xf32> to vector<16xf32>
    %cst_1227 = arith.constant 0.0153846154 : f32
    %1564 = vector.broadcast %cst_1227 : f32 to vector<16xf32>
    %1565 = arith.mulf %1563, %1564 : vector<16xf32>
    %c13_1228 = arith.constant 13 : index
    %c0_1229 = arith.constant 0 : index
    %1566 = vector.load %arg6[%c13_1228, %c0_1229] : memref<16x16xf32, #tpu.memory_space<vmem>>, vector<1x16xf32>
    %1567 = vector.shape_cast %1566 : vector<1x16xf32> to vector<16xf32>
    %1568 = vector.shape_cast %1565 : vector<16xf32> to vector<1x16xf32>
    tpu.vector_store %arg6[%c13_1228, %c0_1229], %1568 {strides = array<i32>} : memref<16x16xf32, #tpu.memory_space<vmem>>, vector<1x16xf32>,
    %c0_1230 = arith.constant 0 : index
    %c0_1231 = arith.constant 0 : index
    %c0_1232 = arith.constant 0 : index
    %1569 = vector.load %arg7[%c0_1230, %c0_1231, %c0_1232] : memref<16x16x80xf32, #tpu.memory_space<vmem>>, vector<1x16x65xf32>
    %1570 = vector.shape_cast %1569 : vector<1x16x65xf32> to vector<16x65xf32>
    %c14_1233 = arith.constant 14 : index
    %c0_1234 = arith.constant 0 : index
    %1571 = memref.load %arg4[%c14_1233, %c0_1234] : memref<16x16xf32, #tpu.memory_space<smem>>
    %1572 = vector.broadcast %1571 : f32 to vector<16x65xf32>
    %1573 = arith.mulf %1570, %1572 : vector<16x65xf32>
    %c1_1235 = arith.constant 1 : index
    %c0_1236 = arith.constant 0 : index
    %c0_1237 = arith.constant 0 : index
    %1574 = vector.load %arg7[%c1_1235, %c0_1236, %c0_1237] : memref<16x16x80xf32, #tpu.memory_space<vmem>>, vector<1x16x65xf32>
    %1575 = vector.shape_cast %1574 : vector<1x16x65xf32> to vector<16x65xf32>
    %c14_1238 = arith.constant 14 : index
    %c1_1239 = arith.constant 1 : index
    %1576 = memref.load %arg4[%c14_1238, %c1_1239] : memref<16x16xf32, #tpu.memory_space<smem>>
    %1577 = vector.broadcast %1576 : f32 to vector<16x65xf32>
    %1578 = arith.mulf %1575, %1577 : vector<16x65xf32>
    %1579 = arith.addf %1573, %1578 : vector<16x65xf32>
    %c2_1240 = arith.constant 2 : index
    %c0_1241 = arith.constant 0 : index
    %c0_1242 = arith.constant 0 : index
    %1580 = vector.load %arg7[%c2_1240, %c0_1241, %c0_1242] : memref<16x16x80xf32, #tpu.memory_space<vmem>>, vector<1x16x65xf32>
    %1581 = vector.shape_cast %1580 : vector<1x16x65xf32> to vector<16x65xf32>
    %c14_1243 = arith.constant 14 : index
    %c2_1244 = arith.constant 2 : index
    %1582 = memref.load %arg4[%c14_1243, %c2_1244] : memref<16x16xf32, #tpu.memory_space<smem>>
    %1583 = vector.broadcast %1582 : f32 to vector<16x65xf32>
    %1584 = arith.mulf %1581, %1583 : vector<16x65xf32>
    %1585 = arith.addf %1579, %1584 : vector<16x65xf32>
    %c3_1245 = arith.constant 3 : index
    %c0_1246 = arith.constant 0 : index
    %c0_1247 = arith.constant 0 : index
    %1586 = vector.load %arg7[%c3_1245, %c0_1246, %c0_1247] : memref<16x16x80xf32, #tpu.memory_space<vmem>>, vector<1x16x65xf32>
    %1587 = vector.shape_cast %1586 : vector<1x16x65xf32> to vector<16x65xf32>
    %c14_1248 = arith.constant 14 : index
    %c3_1249 = arith.constant 3 : index
    %1588 = memref.load %arg4[%c14_1248, %c3_1249] : memref<16x16xf32, #tpu.memory_space<smem>>
    %1589 = vector.broadcast %1588 : f32 to vector<16x65xf32>
    %1590 = arith.mulf %1587, %1589 : vector<16x65xf32>
    %1591 = arith.addf %1585, %1590 : vector<16x65xf32>
    %c4_1250 = arith.constant 4 : index
    %c0_1251 = arith.constant 0 : index
    %c0_1252 = arith.constant 0 : index
    %1592 = vector.load %arg7[%c4_1250, %c0_1251, %c0_1252] : memref<16x16x80xf32, #tpu.memory_space<vmem>>, vector<1x16x65xf32>
    %1593 = vector.shape_cast %1592 : vector<1x16x65xf32> to vector<16x65xf32>
    %c14_1253 = arith.constant 14 : index
    %c4_1254 = arith.constant 4 : index
    %1594 = memref.load %arg4[%c14_1253, %c4_1254] : memref<16x16xf32, #tpu.memory_space<smem>>
    %1595 = vector.broadcast %1594 : f32 to vector<16x65xf32>
    %1596 = arith.mulf %1593, %1595 : vector<16x65xf32>
    %1597 = arith.addf %1591, %1596 : vector<16x65xf32>
    %c5_1255 = arith.constant 5 : index
    %c0_1256 = arith.constant 0 : index
    %c0_1257 = arith.constant 0 : index
    %1598 = vector.load %arg7[%c5_1255, %c0_1256, %c0_1257] : memref<16x16x80xf32, #tpu.memory_space<vmem>>, vector<1x16x65xf32>
    %1599 = vector.shape_cast %1598 : vector<1x16x65xf32> to vector<16x65xf32>
    %c14_1258 = arith.constant 14 : index
    %c5_1259 = arith.constant 5 : index
    %1600 = memref.load %arg4[%c14_1258, %c5_1259] : memref<16x16xf32, #tpu.memory_space<smem>>
    %1601 = vector.broadcast %1600 : f32 to vector<16x65xf32>
    %1602 = arith.mulf %1599, %1601 : vector<16x65xf32>
    %1603 = arith.addf %1597, %1602 : vector<16x65xf32>
    %c6_1260 = arith.constant 6 : index
    %c0_1261 = arith.constant 0 : index
    %c0_1262 = arith.constant 0 : index
    %1604 = vector.load %arg7[%c6_1260, %c0_1261, %c0_1262] : memref<16x16x80xf32, #tpu.memory_space<vmem>>, vector<1x16x65xf32>
    %1605 = vector.shape_cast %1604 : vector<1x16x65xf32> to vector<16x65xf32>
    %c14_1263 = arith.constant 14 : index
    %c6_1264 = arith.constant 6 : index
    %1606 = memref.load %arg4[%c14_1263, %c6_1264] : memref<16x16xf32, #tpu.memory_space<smem>>
    %1607 = vector.broadcast %1606 : f32 to vector<16x65xf32>
    %1608 = arith.mulf %1605, %1607 : vector<16x65xf32>
    %1609 = arith.addf %1603, %1608 : vector<16x65xf32>
    %c7_1265 = arith.constant 7 : index
    %c0_1266 = arith.constant 0 : index
    %c0_1267 = arith.constant 0 : index
    %1610 = vector.load %arg7[%c7_1265, %c0_1266, %c0_1267] : memref<16x16x80xf32, #tpu.memory_space<vmem>>, vector<1x16x65xf32>
    %1611 = vector.shape_cast %1610 : vector<1x16x65xf32> to vector<16x65xf32>
    %c14_1268 = arith.constant 14 : index
    %c7_1269 = arith.constant 7 : index
    %1612 = memref.load %arg4[%c14_1268, %c7_1269] : memref<16x16xf32, #tpu.memory_space<smem>>
    %1613 = vector.broadcast %1612 : f32 to vector<16x65xf32>
    %1614 = arith.mulf %1611, %1613 : vector<16x65xf32>
    %1615 = arith.addf %1609, %1614 : vector<16x65xf32>
    %c8_1270 = arith.constant 8 : index
    %c0_1271 = arith.constant 0 : index
    %c0_1272 = arith.constant 0 : index
    %1616 = vector.load %arg7[%c8_1270, %c0_1271, %c0_1272] : memref<16x16x80xf32, #tpu.memory_space<vmem>>, vector<1x16x65xf32>
    %1617 = vector.shape_cast %1616 : vector<1x16x65xf32> to vector<16x65xf32>
    %c14_1273 = arith.constant 14 : index
    %c8_1274 = arith.constant 8 : index
    %1618 = memref.load %arg4[%c14_1273, %c8_1274] : memref<16x16xf32, #tpu.memory_space<smem>>
    %1619 = vector.broadcast %1618 : f32 to vector<16x65xf32>
    %1620 = arith.mulf %1617, %1619 : vector<16x65xf32>
    %1621 = arith.addf %1615, %1620 : vector<16x65xf32>
    %c9_1275 = arith.constant 9 : index
    %c0_1276 = arith.constant 0 : index
    %c0_1277 = arith.constant 0 : index
    %1622 = vector.load %arg7[%c9_1275, %c0_1276, %c0_1277] : memref<16x16x80xf32, #tpu.memory_space<vmem>>, vector<1x16x65xf32>
    %1623 = vector.shape_cast %1622 : vector<1x16x65xf32> to vector<16x65xf32>
    %c14_1278 = arith.constant 14 : index
    %c9_1279 = arith.constant 9 : index
    %1624 = memref.load %arg4[%c14_1278, %c9_1279] : memref<16x16xf32, #tpu.memory_space<smem>>
    %1625 = vector.broadcast %1624 : f32 to vector<16x65xf32>
    %1626 = arith.mulf %1623, %1625 : vector<16x65xf32>
    %1627 = arith.addf %1621, %1626 : vector<16x65xf32>
    %c10_1280 = arith.constant 10 : index
    %c0_1281 = arith.constant 0 : index
    %c0_1282 = arith.constant 0 : index
    %1628 = vector.load %arg7[%c10_1280, %c0_1281, %c0_1282] : memref<16x16x80xf32, #tpu.memory_space<vmem>>, vector<1x16x65xf32>
    %1629 = vector.shape_cast %1628 : vector<1x16x65xf32> to vector<16x65xf32>
    %c14_1283 = arith.constant 14 : index
    %c10_1284 = arith.constant 10 : index
    %1630 = memref.load %arg4[%c14_1283, %c10_1284] : memref<16x16xf32, #tpu.memory_space<smem>>
    %1631 = vector.broadcast %1630 : f32 to vector<16x65xf32>
    %1632 = arith.mulf %1629, %1631 : vector<16x65xf32>
    %1633 = arith.addf %1627, %1632 : vector<16x65xf32>
    %c11_1285 = arith.constant 11 : index
    %c0_1286 = arith.constant 0 : index
    %c0_1287 = arith.constant 0 : index
    %1634 = vector.load %arg7[%c11_1285, %c0_1286, %c0_1287] : memref<16x16x80xf32, #tpu.memory_space<vmem>>, vector<1x16x65xf32>
    %1635 = vector.shape_cast %1634 : vector<1x16x65xf32> to vector<16x65xf32>
    %c14_1288 = arith.constant 14 : index
    %c11_1289 = arith.constant 11 : index
    %1636 = memref.load %arg4[%c14_1288, %c11_1289] : memref<16x16xf32, #tpu.memory_space<smem>>
    %1637 = vector.broadcast %1636 : f32 to vector<16x65xf32>
    %1638 = arith.mulf %1635, %1637 : vector<16x65xf32>
    %1639 = arith.addf %1633, %1638 : vector<16x65xf32>
    %c12_1290 = arith.constant 12 : index
    %c0_1291 = arith.constant 0 : index
    %c0_1292 = arith.constant 0 : index
    %1640 = vector.load %arg7[%c12_1290, %c0_1291, %c0_1292] : memref<16x16x80xf32, #tpu.memory_space<vmem>>, vector<1x16x65xf32>
    %1641 = vector.shape_cast %1640 : vector<1x16x65xf32> to vector<16x65xf32>
    %c14_1293 = arith.constant 14 : index
    %c12_1294 = arith.constant 12 : index
    %1642 = memref.load %arg4[%c14_1293, %c12_1294] : memref<16x16xf32, #tpu.memory_space<smem>>
    %1643 = vector.broadcast %1642 : f32 to vector<16x65xf32>
    %1644 = arith.mulf %1641, %1643 : vector<16x65xf32>
    %1645 = arith.addf %1639, %1644 : vector<16x65xf32>
    %c13_1295 = arith.constant 13 : index
    %c0_1296 = arith.constant 0 : index
    %c0_1297 = arith.constant 0 : index
    %1646 = vector.load %arg7[%c13_1295, %c0_1296, %c0_1297] : memref<16x16x80xf32, #tpu.memory_space<vmem>>, vector<1x16x65xf32>
    %1647 = vector.shape_cast %1646 : vector<1x16x65xf32> to vector<16x65xf32>
    %c14_1298 = arith.constant 14 : index
    %c13_1299 = arith.constant 13 : index
    %1648 = memref.load %arg4[%c14_1298, %c13_1299] : memref<16x16xf32, #tpu.memory_space<smem>>
    %1649 = vector.broadcast %1648 : f32 to vector<16x65xf32>
    %1650 = arith.mulf %1647, %1649 : vector<16x65xf32>
    %1651 = arith.addf %1645, %1650 : vector<16x65xf32>
    %c14_1300 = arith.constant 14 : index
    %c0_1301 = arith.constant 0 : index
    %c0_1302 = arith.constant 0 : index
    %1652 = vector.load %arg7[%c14_1300, %c0_1301, %c0_1302] : memref<16x16x80xf32, #tpu.memory_space<vmem>>, vector<1x16x65xf32>
    %1653 = vector.shape_cast %1652 : vector<1x16x65xf32> to vector<16x65xf32>
    %c14_1303 = arith.constant 14 : index
    %c14_1304 = arith.constant 14 : index
    %1654 = memref.load %arg4[%c14_1303, %c14_1304] : memref<16x16xf32, #tpu.memory_space<smem>>
    %1655 = vector.broadcast %1654 : f32 to vector<16x65xf32>
    %1656 = arith.mulf %1653, %1655 : vector<16x65xf32>
    %1657 = arith.addf %1651, %1656 : vector<16x65xf32>
    %c15_1305 = arith.constant 15 : index
    %c0_1306 = arith.constant 0 : index
    %c0_1307 = arith.constant 0 : index
    %1658 = vector.load %arg7[%c15_1305, %c0_1306, %c0_1307] : memref<16x16x80xf32, #tpu.memory_space<vmem>>, vector<1x16x65xf32>
    %1659 = vector.shape_cast %1658 : vector<1x16x65xf32> to vector<16x65xf32>
    %c14_1308 = arith.constant 14 : index
    %c15_1309 = arith.constant 15 : index
    %1660 = memref.load %arg4[%c14_1308, %c15_1309] : memref<16x16xf32, #tpu.memory_space<smem>>
    %1661 = vector.broadcast %1660 : f32 to vector<16x65xf32>
    %1662 = arith.mulf %1659, %1661 : vector<16x65xf32>
    %1663 = arith.addf %1657, %1662 : vector<16x65xf32>
    %c14_1310 = arith.constant 14 : index
    %c3_1311 = arith.constant 3 : index
    %1664 = memref.load %arg5[%c14_1310, %c3_1311] : memref<16x4xf32, #tpu.memory_space<smem>>
    %1665 = vector.broadcast %1664 : f32 to vector<16x65xf32>
    %1666 = arith.addf %1663, %1665 : vector<16x65xf32>
    %cst_1312 = arith.constant 0.000000e+00 : f32
    %1667 = vector.broadcast %cst_1312 : f32 to vector<16x65xf32>
    %1668 = arith.cmpf ogt, %1666, %1667 : vector<16x65xf32>
    %cst_1313 = arith.constant 0.000000e+00 : f32
    %1669 = vector.broadcast %cst_1313 : f32 to vector<16x65xf32>
    %1670 = arith.minimumf %1666, %1669 : vector<16x65xf32>
    %1671 = math.exp %1670 : vector<16x65xf32>
    %cst_1314 = arith.constant 1.000000e+00 : f32
    %1672 = vector.broadcast %cst_1314 : f32 to vector<16x65xf32>
    %1673 = arith.subf %1671, %1672 : vector<16x65xf32>
    %1674 = arith.select %1668, %1666, %1673 : vector<16x65xi1>, vector<16x65xf32>
    %cst_1315 = arith.constant dense<0.000000e+00> : vector<16xf32>
    %1675 = vector.multi_reduction <add>, %1674, %cst_1315 [1] : vector<16x65xf32> to vector<16xf32>
    %cst_1316 = arith.constant 0.0153846154 : f32
    %1676 = vector.broadcast %cst_1316 : f32 to vector<16xf32>
    %1677 = arith.mulf %1675, %1676 : vector<16xf32>
    %c14_1317 = arith.constant 14 : index
    %c0_1318 = arith.constant 0 : index
    %1678 = vector.load %arg6[%c14_1317, %c0_1318] : memref<16x16xf32, #tpu.memory_space<vmem>>, vector<1x16xf32>
    %1679 = vector.shape_cast %1678 : vector<1x16xf32> to vector<16xf32>
    %1680 = vector.shape_cast %1677 : vector<16xf32> to vector<1x16xf32>
    tpu.vector_store %arg6[%c14_1317, %c0_1318], %1680 {strides = array<i32>} : memref<16x16xf32, #tpu.memory_space<vmem>>, vector<1x16xf32>,
    %c0_1319 = arith.constant 0 : index
    %c0_1320 = arith.constant 0 : index
    %c0_1321 = arith.constant 0 : index
    %1681 = vector.load %arg7[%c0_1319, %c0_1320, %c0_1321] : memref<16x16x80xf32, #tpu.memory_space<vmem>>, vector<1x16x65xf32>
    %1682 = vector.shape_cast %1681 : vector<1x16x65xf32> to vector<16x65xf32>
    %c15_1322 = arith.constant 15 : index
    %c0_1323 = arith.constant 0 : index
    %1683 = memref.load %arg4[%c15_1322, %c0_1323] : memref<16x16xf32, #tpu.memory_space<smem>>
    %1684 = vector.broadcast %1683 : f32 to vector<16x65xf32>
    %1685 = arith.mulf %1682, %1684 : vector<16x65xf32>
    %c1_1324 = arith.constant 1 : index
    %c0_1325 = arith.constant 0 : index
    %c0_1326 = arith.constant 0 : index
    %1686 = vector.load %arg7[%c1_1324, %c0_1325, %c0_1326] : memref<16x16x80xf32, #tpu.memory_space<vmem>>, vector<1x16x65xf32>
    %1687 = vector.shape_cast %1686 : vector<1x16x65xf32> to vector<16x65xf32>
    %c15_1327 = arith.constant 15 : index
    %c1_1328 = arith.constant 1 : index
    %1688 = memref.load %arg4[%c15_1327, %c1_1328] : memref<16x16xf32, #tpu.memory_space<smem>>
    %1689 = vector.broadcast %1688 : f32 to vector<16x65xf32>
    %1690 = arith.mulf %1687, %1689 : vector<16x65xf32>
    %1691 = arith.addf %1685, %1690 : vector<16x65xf32>
    %c2_1329 = arith.constant 2 : index
    %c0_1330 = arith.constant 0 : index
    %c0_1331 = arith.constant 0 : index
    %1692 = vector.load %arg7[%c2_1329, %c0_1330, %c0_1331] : memref<16x16x80xf32, #tpu.memory_space<vmem>>, vector<1x16x65xf32>
    %1693 = vector.shape_cast %1692 : vector<1x16x65xf32> to vector<16x65xf32>
    %c15_1332 = arith.constant 15 : index
    %c2_1333 = arith.constant 2 : index
    %1694 = memref.load %arg4[%c15_1332, %c2_1333] : memref<16x16xf32, #tpu.memory_space<smem>>
    %1695 = vector.broadcast %1694 : f32 to vector<16x65xf32>
    %1696 = arith.mulf %1693, %1695 : vector<16x65xf32>
    %1697 = arith.addf %1691, %1696 : vector<16x65xf32>
    %c3_1334 = arith.constant 3 : index
    %c0_1335 = arith.constant 0 : index
    %c0_1336 = arith.constant 0 : index
    %1698 = vector.load %arg7[%c3_1334, %c0_1335, %c0_1336] : memref<16x16x80xf32, #tpu.memory_space<vmem>>, vector<1x16x65xf32>
    %1699 = vector.shape_cast %1698 : vector<1x16x65xf32> to vector<16x65xf32>
    %c15_1337 = arith.constant 15 : index
    %c3_1338 = arith.constant 3 : index
    %1700 = memref.load %arg4[%c15_1337, %c3_1338] : memref<16x16xf32, #tpu.memory_space<smem>>
    %1701 = vector.broadcast %1700 : f32 to vector<16x65xf32>
    %1702 = arith.mulf %1699, %1701 : vector<16x65xf32>
    %1703 = arith.addf %1697, %1702 : vector<16x65xf32>
    %c4_1339 = arith.constant 4 : index
    %c0_1340 = arith.constant 0 : index
    %c0_1341 = arith.constant 0 : index
    %1704 = vector.load %arg7[%c4_1339, %c0_1340, %c0_1341] : memref<16x16x80xf32, #tpu.memory_space<vmem>>, vector<1x16x65xf32>
    %1705 = vector.shape_cast %1704 : vector<1x16x65xf32> to vector<16x65xf32>
    %c15_1342 = arith.constant 15 : index
    %c4_1343 = arith.constant 4 : index
    %1706 = memref.load %arg4[%c15_1342, %c4_1343] : memref<16x16xf32, #tpu.memory_space<smem>>
    %1707 = vector.broadcast %1706 : f32 to vector<16x65xf32>
    %1708 = arith.mulf %1705, %1707 : vector<16x65xf32>
    %1709 = arith.addf %1703, %1708 : vector<16x65xf32>
    %c5_1344 = arith.constant 5 : index
    %c0_1345 = arith.constant 0 : index
    %c0_1346 = arith.constant 0 : index
    %1710 = vector.load %arg7[%c5_1344, %c0_1345, %c0_1346] : memref<16x16x80xf32, #tpu.memory_space<vmem>>, vector<1x16x65xf32>
    %1711 = vector.shape_cast %1710 : vector<1x16x65xf32> to vector<16x65xf32>
    %c15_1347 = arith.constant 15 : index
    %c5_1348 = arith.constant 5 : index
    %1712 = memref.load %arg4[%c15_1347, %c5_1348] : memref<16x16xf32, #tpu.memory_space<smem>>
    %1713 = vector.broadcast %1712 : f32 to vector<16x65xf32>
    %1714 = arith.mulf %1711, %1713 : vector<16x65xf32>
    %1715 = arith.addf %1709, %1714 : vector<16x65xf32>
    %c6_1349 = arith.constant 6 : index
    %c0_1350 = arith.constant 0 : index
    %c0_1351 = arith.constant 0 : index
    %1716 = vector.load %arg7[%c6_1349, %c0_1350, %c0_1351] : memref<16x16x80xf32, #tpu.memory_space<vmem>>, vector<1x16x65xf32>
    %1717 = vector.shape_cast %1716 : vector<1x16x65xf32> to vector<16x65xf32>
    %c15_1352 = arith.constant 15 : index
    %c6_1353 = arith.constant 6 : index
    %1718 = memref.load %arg4[%c15_1352, %c6_1353] : memref<16x16xf32, #tpu.memory_space<smem>>
    %1719 = vector.broadcast %1718 : f32 to vector<16x65xf32>
    %1720 = arith.mulf %1717, %1719 : vector<16x65xf32>
    %1721 = arith.addf %1715, %1720 : vector<16x65xf32>
    %c7_1354 = arith.constant 7 : index
    %c0_1355 = arith.constant 0 : index
    %c0_1356 = arith.constant 0 : index
    %1722 = vector.load %arg7[%c7_1354, %c0_1355, %c0_1356] : memref<16x16x80xf32, #tpu.memory_space<vmem>>, vector<1x16x65xf32>
    %1723 = vector.shape_cast %1722 : vector<1x16x65xf32> to vector<16x65xf32>
    %c15_1357 = arith.constant 15 : index
    %c7_1358 = arith.constant 7 : index
    %1724 = memref.load %arg4[%c15_1357, %c7_1358] : memref<16x16xf32, #tpu.memory_space<smem>>
    %1725 = vector.broadcast %1724 : f32 to vector<16x65xf32>
    %1726 = arith.mulf %1723, %1725 : vector<16x65xf32>
    %1727 = arith.addf %1721, %1726 : vector<16x65xf32>
    %c8_1359 = arith.constant 8 : index
    %c0_1360 = arith.constant 0 : index
    %c0_1361 = arith.constant 0 : index
    %1728 = vector.load %arg7[%c8_1359, %c0_1360, %c0_1361] : memref<16x16x80xf32, #tpu.memory_space<vmem>>, vector<1x16x65xf32>
    %1729 = vector.shape_cast %1728 : vector<1x16x65xf32> to vector<16x65xf32>
    %c15_1362 = arith.constant 15 : index
    %c8_1363 = arith.constant 8 : index
    %1730 = memref.load %arg4[%c15_1362, %c8_1363] : memref<16x16xf32, #tpu.memory_space<smem>>
    %1731 = vector.broadcast %1730 : f32 to vector<16x65xf32>
    %1732 = arith.mulf %1729, %1731 : vector<16x65xf32>
    %1733 = arith.addf %1727, %1732 : vector<16x65xf32>
    %c9_1364 = arith.constant 9 : index
    %c0_1365 = arith.constant 0 : index
    %c0_1366 = arith.constant 0 : index
    %1734 = vector.load %arg7[%c9_1364, %c0_1365, %c0_1366] : memref<16x16x80xf32, #tpu.memory_space<vmem>>, vector<1x16x65xf32>
    %1735 = vector.shape_cast %1734 : vector<1x16x65xf32> to vector<16x65xf32>
    %c15_1367 = arith.constant 15 : index
    %c9_1368 = arith.constant 9 : index
    %1736 = memref.load %arg4[%c15_1367, %c9_1368] : memref<16x16xf32, #tpu.memory_space<smem>>
    %1737 = vector.broadcast %1736 : f32 to vector<16x65xf32>
    %1738 = arith.mulf %1735, %1737 : vector<16x65xf32>
    %1739 = arith.addf %1733, %1738 : vector<16x65xf32>
    %c10_1369 = arith.constant 10 : index
    %c0_1370 = arith.constant 0 : index
    %c0_1371 = arith.constant 0 : index
    %1740 = vector.load %arg7[%c10_1369, %c0_1370, %c0_1371] : memref<16x16x80xf32, #tpu.memory_space<vmem>>, vector<1x16x65xf32>
    %1741 = vector.shape_cast %1740 : vector<1x16x65xf32> to vector<16x65xf32>
    %c15_1372 = arith.constant 15 : index
    %c10_1373 = arith.constant 10 : index
    %1742 = memref.load %arg4[%c15_1372, %c10_1373] : memref<16x16xf32, #tpu.memory_space<smem>>
    %1743 = vector.broadcast %1742 : f32 to vector<16x65xf32>
    %1744 = arith.mulf %1741, %1743 : vector<16x65xf32>
    %1745 = arith.addf %1739, %1744 : vector<16x65xf32>
    %c11_1374 = arith.constant 11 : index
    %c0_1375 = arith.constant 0 : index
    %c0_1376 = arith.constant 0 : index
    %1746 = vector.load %arg7[%c11_1374, %c0_1375, %c0_1376] : memref<16x16x80xf32, #tpu.memory_space<vmem>>, vector<1x16x65xf32>
    %1747 = vector.shape_cast %1746 : vector<1x16x65xf32> to vector<16x65xf32>
    %c15_1377 = arith.constant 15 : index
    %c11_1378 = arith.constant 11 : index
    %1748 = memref.load %arg4[%c15_1377, %c11_1378] : memref<16x16xf32, #tpu.memory_space<smem>>
    %1749 = vector.broadcast %1748 : f32 to vector<16x65xf32>
    %1750 = arith.mulf %1747, %1749 : vector<16x65xf32>
    %1751 = arith.addf %1745, %1750 : vector<16x65xf32>
    %c12_1379 = arith.constant 12 : index
    %c0_1380 = arith.constant 0 : index
    %c0_1381 = arith.constant 0 : index
    %1752 = vector.load %arg7[%c12_1379, %c0_1380, %c0_1381] : memref<16x16x80xf32, #tpu.memory_space<vmem>>, vector<1x16x65xf32>
    %1753 = vector.shape_cast %1752 : vector<1x16x65xf32> to vector<16x65xf32>
    %c15_1382 = arith.constant 15 : index
    %c12_1383 = arith.constant 12 : index
    %1754 = memref.load %arg4[%c15_1382, %c12_1383] : memref<16x16xf32, #tpu.memory_space<smem>>
    %1755 = vector.broadcast %1754 : f32 to vector<16x65xf32>
    %1756 = arith.mulf %1753, %1755 : vector<16x65xf32>
    %1757 = arith.addf %1751, %1756 : vector<16x65xf32>
    %c13_1384 = arith.constant 13 : index
    %c0_1385 = arith.constant 0 : index
    %c0_1386 = arith.constant 0 : index
    %1758 = vector.load %arg7[%c13_1384, %c0_1385, %c0_1386] : memref<16x16x80xf32, #tpu.memory_space<vmem>>, vector<1x16x65xf32>
    %1759 = vector.shape_cast %1758 : vector<1x16x65xf32> to vector<16x65xf32>
    %c15_1387 = arith.constant 15 : index
    %c13_1388 = arith.constant 13 : index
    %1760 = memref.load %arg4[%c15_1387, %c13_1388] : memref<16x16xf32, #tpu.memory_space<smem>>
    %1761 = vector.broadcast %1760 : f32 to vector<16x65xf32>
    %1762 = arith.mulf %1759, %1761 : vector<16x65xf32>
    %1763 = arith.addf %1757, %1762 : vector<16x65xf32>
    %c14_1389 = arith.constant 14 : index
    %c0_1390 = arith.constant 0 : index
    %c0_1391 = arith.constant 0 : index
    %1764 = vector.load %arg7[%c14_1389, %c0_1390, %c0_1391] : memref<16x16x80xf32, #tpu.memory_space<vmem>>, vector<1x16x65xf32>
    %1765 = vector.shape_cast %1764 : vector<1x16x65xf32> to vector<16x65xf32>
    %c15_1392 = arith.constant 15 : index
    %c14_1393 = arith.constant 14 : index
    %1766 = memref.load %arg4[%c15_1392, %c14_1393] : memref<16x16xf32, #tpu.memory_space<smem>>
    %1767 = vector.broadcast %1766 : f32 to vector<16x65xf32>
    %1768 = arith.mulf %1765, %1767 : vector<16x65xf32>
    %1769 = arith.addf %1763, %1768 : vector<16x65xf32>
    %c15_1394 = arith.constant 15 : index
    %c0_1395 = arith.constant 0 : index
    %c0_1396 = arith.constant 0 : index
    %1770 = vector.load %arg7[%c15_1394, %c0_1395, %c0_1396] : memref<16x16x80xf32, #tpu.memory_space<vmem>>, vector<1x16x65xf32>
    %1771 = vector.shape_cast %1770 : vector<1x16x65xf32> to vector<16x65xf32>
    %c15_1397 = arith.constant 15 : index
    %c15_1398 = arith.constant 15 : index
    %1772 = memref.load %arg4[%c15_1397, %c15_1398] : memref<16x16xf32, #tpu.memory_space<smem>>
    %1773 = vector.broadcast %1772 : f32 to vector<16x65xf32>
    %1774 = arith.mulf %1771, %1773 : vector<16x65xf32>
    %1775 = arith.addf %1769, %1774 : vector<16x65xf32>
    %c15_1399 = arith.constant 15 : index
    %c3_1400 = arith.constant 3 : index
    %1776 = memref.load %arg5[%c15_1399, %c3_1400] : memref<16x4xf32, #tpu.memory_space<smem>>
    %1777 = vector.broadcast %1776 : f32 to vector<16x65xf32>
    %1778 = arith.addf %1775, %1777 : vector<16x65xf32>
    %cst_1401 = arith.constant 0.000000e+00 : f32
    %1779 = vector.broadcast %cst_1401 : f32 to vector<16x65xf32>
    %1780 = arith.cmpf ogt, %1778, %1779 : vector<16x65xf32>
    %cst_1402 = arith.constant 0.000000e+00 : f32
    %1781 = vector.broadcast %cst_1402 : f32 to vector<16x65xf32>
    %1782 = arith.minimumf %1778, %1781 : vector<16x65xf32>
    %1783 = math.exp %1782 : vector<16x65xf32>
    %cst_1403 = arith.constant 1.000000e+00 : f32
    %1784 = vector.broadcast %cst_1403 : f32 to vector<16x65xf32>
    %1785 = arith.subf %1783, %1784 : vector<16x65xf32>
    %1786 = arith.select %1780, %1778, %1785 : vector<16x65xi1>, vector<16x65xf32>
    %cst_1404 = arith.constant dense<0.000000e+00> : vector<16xf32>
    %1787 = vector.multi_reduction <add>, %1786, %cst_1404 [1] : vector<16x65xf32> to vector<16xf32>
    %cst_1405 = arith.constant 0.0153846154 : f32
    %1788 = vector.broadcast %cst_1405 : f32 to vector<16xf32>
    %1789 = arith.mulf %1787, %1788 : vector<16xf32>
    %c15_1406 = arith.constant 15 : index
    %c0_1407 = arith.constant 0 : index
    %1790 = vector.load %arg6[%c15_1406, %c0_1407] : memref<16x16xf32, #tpu.memory_space<vmem>>, vector<1x16xf32>
    %1791 = vector.shape_cast %1790 : vector<1x16xf32> to vector<16xf32>
    %1792 = vector.shape_cast %1789 : vector<16xf32> to vector<1x16xf32>
    tpu.vector_store %arg6[%c15_1406, %c0_1407], %1792 {strides = array<i32>} : memref<16x16xf32, #tpu.memory_space<vmem>>, vector<1x16xf32>,
    return
  }
  func.func @transform_0(%arg0: i32) -> (i32, i32) {
    %c0_i32 = arith.constant 0 : i32
    %c0_i32_0 = arith.constant 0 : i32
    return %arg0, %c0_i32 : i32, i32
  }
  func.func @transform_1(%arg0: i32) -> (i32, i32) {
    %c0_i32 = arith.constant 0 : i32
    %c0_i32_0 = arith.constant 0 : i32
    %c0_i32_1 = arith.constant 0 : i32
    return %c0_i32, %c0_i32_0 : i32, i32
  }
  func.func @transform_2(%arg0: i32) -> (i32, i32) {
    %c0_i32 = arith.constant 0 : i32
    %c0_i32_0 = arith.constant 0 : i32
    %c0_i32_1 = arith.constant 0 : i32
    return %c0_i32, %c0_i32_0 : i32, i32
  }
  func.func @transform_3(%arg0: i32) -> (i32, i32) {
    %c0_i32 = arith.constant 0 : i32
    %c0_i32_0 = arith.constant 0 : i32
    %c0_i32_1 = arith.constant 0 : i32
    return %c0_i32, %c0_i32_0 : i32, i32
  }
  func.func @transform_4(%arg0: i32) -> (i32, i32) {
    %c0_i32 = arith.constant 0 : i32
    %c0_i32_0 = arith.constant 0 : i32
    %c0_i32_1 = arith.constant 0 : i32
    return %c0_i32, %c0_i32_0 : i32, i32
  }
  func.func @transform_5(%arg0: i32) -> (i32, i32) {
    %c0_i32 = arith.constant 0 : i32
    %c0_i32_0 = arith.constant 0 : i32
    return %c0_i32, %arg0 : i32, i32
  }
}

</mosaic_0001>

<llo_original>
// kernel: tpu_custom_call.1
$region0: #{tpu_custom_call.1}
  #allocation0 [shape = 'u32[]', space=smem, size = 0x4, offset = 0x4, fixed_abs, tag = 'smem constant byte address 0x4 - core index']
  #allocation1 [shape = 'u32[144,128]{1,0:T(1,128)}', space=vmem, size = 0x12000, scoped, tag = 'internal scratch']
  #allocation2 [shape = 'f32[16,16,80]{2,1,0:T(8,128)}', space=vmem, size = 0x20000, scoped, tag = 'scratch operand']
  %s0 = inlined_call_operand.vmem [shape: f32[16,88], index: 0, kind: input, shape index: {}]
  %s1 = inlined_call_operand.hbm [shape: f32[16,25], index: 1, kind: input, shape index: {}]
  %s2 = inlined_call_operand.hbm [shape: f32[16,16], index: 2, kind: input, shape index: {}]
  %s3 = inlined_call_operand.hbm [shape: f32[16,16], index: 3, kind: input, shape index: {}]
  %s4 = inlined_call_operand.vmem [shape: f32[16,4], index: 4, kind: input, shape index: {}]
  %s5 = inlined_call_operand.hbm [shape: f32[16,16], index: 5, kind: output, shape index: {}]
  %s6 = sld [smem:[#allocation0]]
  $region53: #{tpu_custom_call.1} parent=0
    _
  %s8 = ssub.s32 1, %s6
  %s9 = scalar_select 0, %s8, %s6
  $region1: #{tpu_custom_call.1} parent=0
    #allocation3 [shape = 'u8[8192]{0}', space=smem, size = 0x2000, scoped, tag = 'input window, operand 1, single buffered']
    #allocation4 [shape = 's32[1]{0}', space=sflag, size = 0x4, scoped, tag = 'scoped memory for tpu_custom_call.1']
    #allocation5 [shape = 's32[1]{0}', space=sflag, size = 0x4, scoped, tag = 'scoped memory for tpu_custom_call.1']
    #allocation6 [shape = 's32[1]{0}', space=sflag, size = 0x4, scoped, tag = 'scoped memory for tpu_custom_call.1']
    #allocation7 [shape = 'u8[8192]{0}', space=smem, size = 0x2000, scoped, tag = 'input window, operand 2, single buffered']
    #allocation8 [shape = 's32[1]{0}', space=sflag, size = 0x4, scoped, tag = 'scoped memory for tpu_custom_call.1']
    #allocation9 [shape = 'u8[8192]{0}', space=smem, size = 0x2000, scoped, tag = 'input window, operand 3, single buffered']
    #allocation10 [shape = 'u8[8192]{0}', space=smem, size = 0x2000, scoped, tag = 'input window, operand 4, single buffered']
    #allocation11 [shape = 'u8[8192]{0}', space=vmem, size = 0x2000, scoped, tag = 'output window, operand 0, single buffered']
    %10 = vsyncpa [#allocation5], 0
    %11 = vsyncpa [#allocation8], 0
    %12 = vsyncpa [#allocation6], 0
    %13 = vsyncpa [#allocation4], 0
    // Predicated region
    $region2: #{tpu_custom_call.1} parent=1 // pred_check
      _
    $region3: #{tpu_custom_call.1} parent=1 // pred_check_branch
      %15 = sbr.rel (0) target = $region5
    $region4: #{tpu_custom_call.1} parent=1 // pred_region
      _
    $region5: #{tpu_custom_call.1} parent=1 // pred_fallthru
      _
    // Predicated region
    $region6: #{tpu_custom_call.1} parent=1 // pred_check
      _
    $region7: #{tpu_custom_call.1} parent=1 // pred_check_branch
      %17 = sbr.rel (0) target = $region9
    $region8: #{tpu_custom_call.1} parent=1 // pred_region
      %s19 = ssub.s32 256, 256
      %20 = vsyncadd [#allocation5], %s19
      %25 = dma.hbm_to_smem %s1, 256, [#allocation3], [#allocation5], 128, 128, 8
    $region9: #{tpu_custom_call.1} parent=1 // pred_fallthru
      _
    // Predicated region
    $region10: #{tpu_custom_call.1} parent=1 // pred_check
      _
    $region11: #{tpu_custom_call.1} parent=1 // pred_check_branch
      %27 = sbr.rel (0) target = $region13
    $region12: #{tpu_custom_call.1} parent=1 // pred_region
      %s29 = ssub.s32 256, 256
      %30 = vsyncadd [#allocation8], %s29
      %35 = dma.hbm_to_smem %s2, 256, [#allocation7], [#allocation8], 128, 128, 8
    $region13: #{tpu_custom_call.1} parent=1 // pred_fallthru
      _
    // Predicated region
    $region14: #{tpu_custom_call.1} parent=1 // pred_check
      _
    $region15: #{tpu_custom_call.1} parent=1 // pred_check_branch
      %37 = sbr.rel (0) target = $region17
    $region16: #{tpu_custom_call.1} parent=1 // pred_region
      %s39 = ssub.s32 256, 256
      %40 = vsyncadd [#allocation8], %s39
      %45 = dma.hbm_to_smem %s3, 256, [#allocation9], [#allocation8], 128, 128, 8
    $region17: #{tpu_custom_call.1} parent=1 // pred_fallthru
      _
    // Predicated region
    $region18: #{tpu_custom_call.1} parent=1 // pred_check
      _
    $region19: #{tpu_custom_call.1} parent=1 // pred_check_branch
      %47 = sbr.rel (0) target = $region21
    $region20: #{tpu_custom_call.1} parent=1 // pred_region
      %s49 = ssub.s32 256, 256
      %50 = vsyncadd [#allocation6], %s49
      %s51 = sshll.u32 %s4, 4
      %s52 = int_to_ptr.vmem [resolvable:$true] %s51
      %57 = dma.vmem_to_smem %s52, 256, [#allocation10], [#allocation6], 128, 128, 8
    $region21: #{tpu_custom_call.1} parent=1 // pred_fallthru
      _
    // Predicated region
    $region22: #{tpu_custom_call.1} parent=1 // pred_check
      _
    $region23: #{tpu_custom_call.1} parent=1 // pred_check_branch
      %59 = sbr.rel (0) target = $region25
    $region24: #{tpu_custom_call.1} parent=1 // pred_region
      %60 = dma.done [#allocation5], 256
    $region25: #{tpu_custom_call.1} parent=1 // pred_fallthru
      _
    // Predicated region
    $region26: #{tpu_custom_call.1} parent=1 // pred_check
      _
    $region27: #{tpu_custom_call.1} parent=1 // pred_check_branch
      %62 = sbr.rel (0) target = $region29
    $region28: #{tpu_custom_call.1} parent=1 // pred_region
      %63 = dma.done [#allocation8], 256
    $region29: #{tpu_custom_call.1} parent=1 // pred_fallthru
      _
    // Predicated region
    $region30: #{tpu_custom_call.1} parent=1 // pred_check
      _
    $region31: #{tpu_custom_call.1} parent=1 // pred_check_branch
      %65 = sbr.rel (0) target = $region33
    $region32: #{tpu_custom_call.1} parent=1 // pred_region
      %66 = dma.done [#allocation8], 256
    $region33: #{tpu_custom_call.1} parent=1 // pred_fallthru
      _
    // Predicated region
    $region34: #{tpu_custom_call.1} parent=1 // pred_check
      _
    $region35: #{tpu_custom_call.1} parent=1 // pred_check_branch
      %68 = sbr.rel (0) target = $region37
    $region36: #{tpu_custom_call.1} parent=1 // pred_region
      %69 = dma.done [#allocation6], 256
    $region37: #{tpu_custom_call.1} parent=1 // pred_fallthru
      _
    %70 = sfence
    loop: start=0, step=1, limit=16
    $region38: #{tpu_custom_call.1} parent=1 // loop_pre_header
      _
    $region39: #{tpu_custom_call.1} parent=1 // loop_header
      %s72 = sphi 0, %s76
      %p73 = scmp.ge.s32.totalorder %s72, 16
    $region40: #{tpu_custom_call.1} parent=1 // loop_header_branch
      %75 = sbr.rel (%p73) target = $region44
    $region41: #{tpu_custom_call.1} parent=1 // loop_body
      %v77 = vld [vmem:[%s0] sm:$0xff]
      %v78 = vld [vmem:[%s0 + $0x8] sm:$0xff]
      %s79 = smul.u32 %s72, 128
      %s80 = sld [smem:[#allocation3 + %s79]]
      %v81 = vstv %s80
      %v82 = vmul.f32 %v77, %v81
      %v83 = vmul.f32 %v78, %v81
      %s84 = sadd.s32 %s79, 1
      %s85 = sld [smem:[#allocation3 + %s84]]
      %v86 = vstv %s85
      %v87 = vmul.f32 %v77, %v86
      %v88 = vmul.f32 %v78, %v86
      %91 = vrot.lane.b32.xlu0 %v87, 127
      %v92 = vpop.permute.xlu0 %91
      %93 = vrot.lane.b32.xlu0 %v88, 127
      %v94 = vpop.permute.xlu0 %93
      %v97 = vadd.f32 %v82, %v92
      %v98 = vadd.f32 %v83, %v94
      %s99 = sadd.s32 %s79, 2
      %s100 = sld [smem:[#allocation3 + %s99]]
      %v101 = vstv %s100
      %v102 = vmul.f32 %v77, %v101
      %v103 = vmul.f32 %v78, %v101
      %106 = vrot.lane.b32.xlu0 %v102, 126
      %v107 = vpop.permute.xlu0 %106
      %108 = vrot.lane.b32.xlu0 %v103, 126
      %v109 = vpop.permute.xlu0 %108
      %v112 = vadd.f32 %v97, %v107
      %v113 = vadd.f32 %v98, %v109
      %s114 = sadd.s32 %s79, 3
      %s115 = sld [smem:[#allocation3 + %s114]]
      %v116 = vstv %s115
      %v117 = vmul.f32 %v77, %v116
      %v118 = vmul.f32 %v78, %v116
      %121 = vrot.lane.b32.xlu0 %v117, 125
      %v122 = vpop.permute.xlu0 %121
      %123 = vrot.lane.b32.xlu0 %v118, 125
      %v124 = vpop.permute.xlu0 %123
      %v127 = vadd.f32 %v112, %v122
      %v128 = vadd.f32 %v113, %v124
      %s129 = sadd.s32 %s79, 4
      %s130 = sld [smem:[#allocation3 + %s129]]
      %v131 = vstv %s130
      %v132 = vmul.f32 %v77, %v131
      %v133 = vmul.f32 %v78, %v131
      %136 = vrot.lane.b32.xlu0 %v132, 124
      %v137 = vpop.permute.xlu0 %136
      %138 = vrot.lane.b32.xlu0 %v133, 124
      %v139 = vpop.permute.xlu0 %138
      %v142 = vadd.f32 %v127, %v137
      %v143 = vadd.f32 %v128, %v139
      %s144 = sadd.s32 %s79, 5
      %s145 = sld [smem:[#allocation3 + %s144]]
      %v146 = vstv %s145
      %v147 = vmul.f32 %v77, %v146
      %v148 = vmul.f32 %v78, %v146
      %151 = vrot.lane.b32.xlu0 %v147, 123
      %v152 = vpop.permute.xlu0 %151
      %153 = vrot.lane.b32.xlu0 %v148, 123
      %v154 = vpop.permute.xlu0 %153
      %v157 = vadd.f32 %v142, %v152
      %v158 = vadd.f32 %v143, %v154
      %s159 = sadd.s32 %s79, 6
      %s160 = sld [smem:[#allocation3 + %s159]]
      %v161 = vstv %s160
      %v162 = vmul.f32 %v77, %v161
      %v163 = vmul.f32 %v78, %v161
      %166 = vrot.lane.b32.xlu0 %v162, 122
      %v167 = vpop.permute.xlu0 %166
      %168 = vrot.lane.b32.xlu0 %v163, 122
      %v169 = vpop.permute.xlu0 %168
      %v172 = vadd.f32 %v157, %v167
      %v173 = vadd.f32 %v158, %v169
      %s174 = sadd.s32 %s79, 7
      %s175 = sld [smem:[#allocation3 + %s174]]
      %v176 = vstv %s175
      %v177 = vmul.f32 %v77, %v176
      %v178 = vmul.f32 %v78, %v176
      %181 = vrot.lane.b32.xlu0 %v177, 121
      %v182 = vpop.permute.xlu0 %181
      %183 = vrot.lane.b32.xlu0 %v178, 121
      %v184 = vpop.permute.xlu0 %183
      %v187 = vadd.f32 %v172, %v182
      %v188 = vadd.f32 %v173, %v184
      %s189 = sadd.s32 %s79, 8
      %s190 = sld [smem:[#allocation3 + %s189]]
      %v191 = vstv %s190
      %v192 = vmul.f32 %v77, %v191
      %v193 = vmul.f32 %v78, %v191
      %196 = vrot.lane.b32.xlu0 %v192, 120
      %v197 = vpop.permute.xlu0 %196
      %198 = vrot.lane.b32.xlu0 %v193, 120
      %v199 = vpop.permute.xlu0 %198
      %v202 = vadd.f32 %v187, %v197
      %v203 = vadd.f32 %v188, %v199
      %s204 = sadd.s32 %s79, 9
      %s205 = sld [smem:[#allocation3 + %s204]]
      %v206 = vstv %s205
      %v207 = vmul.f32 %v77, %v206
      %v208 = vmul.f32 %v78, %v206
      %211 = vrot.lane.b32.xlu0 %v207, 119
      %v212 = vpop.permute.xlu0 %211
      %213 = vrot.lane.b32.xlu0 %v208, 119
      %v214 = vpop.permute.xlu0 %213
      %v217 = vadd.f32 %v202, %v212
      %v218 = vadd.f32 %v203, %v214
      %s219 = sadd.s32 %s79, 10
      %s220 = sld [smem:[#allocation3 + %s219]]
      %v221 = vstv %s220
      %v222 = vmul.f32 %v77, %v221
      %v223 = vmul.f32 %v78, %v221
      %226 = vrot.lane.b32.xlu0 %v222, 118
      %v227 = vpop.permute.xlu0 %226
      %228 = vrot.lane.b32.xlu0 %v223, 118
      %v229 = vpop.permute.xlu0 %228
      %v232 = vadd.f32 %v217, %v227
      %v233 = vadd.f32 %v218, %v229
      %s234 = sadd.s32 %s79, 11
      %s235 = sld [smem:[#allocation3 + %s234]]
      %v236 = vstv %s235
      %v237 = vmul.f32 %v77, %v236
      %v238 = vmul.f32 %v78, %v236
      %241 = vrot.lane.b32.xlu0 %v237, 117
      %v242 = vpop.permute.xlu0 %241
      %243 = vrot.lane.b32.xlu0 %v238, 117
      %v244 = vpop.permute.xlu0 %243
      %v247 = vadd.f32 %v232, %v242
      %v248 = vadd.f32 %v233, %v244
      %s249 = sadd.s32 %s79, 12
      %s250 = sld [smem:[#allocation3 + %s249]]
      %v251 = vstv %s250
      %v252 = vmul.f32 %v77, %v251
      %v253 = vmul.f32 %v78, %v251
      %256 = vrot.lane.b32.xlu0 %v252, 116
      %v257 = vpop.permute.xlu0 %256
      %258 = vrot.lane.b32.xlu0 %v253, 116
      %v259 = vpop.permute.xlu0 %258
      %v262 = vadd.f32 %v247, %v257
      %v263 = vadd.f32 %v248, %v259
      %s264 = sadd.s32 %s79, 13
      %s265 = sld [smem:[#allocation3 + %s264]]
      %v266 = vstv %s265
      %v267 = vmul.f32 %v77, %v266
      %v268 = vmul.f32 %v78, %v266
      %271 = vrot.lane.b32.xlu0 %v267, 115
      %v272 = vpop.permute.xlu0 %271
      %273 = vrot.lane.b32.xlu0 %v268, 115
      %v274 = vpop.permute.xlu0 %273
      %v277 = vadd.f32 %v262, %v272
      %v278 = vadd.f32 %v263, %v274
      %s279 = sadd.s32 %s79, 14
      %s280 = sld [smem:[#allocation3 + %s279]]
      %v281 = vstv %s280
      %v282 = vmul.f32 %v77, %v281
      %v283 = vmul.f32 %v78, %v281
      %286 = vrot.lane.b32.xlu0 %v282, 114
      %v287 = vpop.permute.xlu0 %286
      %288 = vrot.lane.b32.xlu0 %v283, 114
      %v289 = vpop.permute.xlu0 %288
      %v292 = vadd.f32 %v277, %v287
      %v293 = vadd.f32 %v278, %v289
      %s294 = sadd.s32 %s79, 15
      %s295 = sld [smem:[#allocation3 + %s294]]
      %v296 = vstv %s295
      %v297 = vmul.f32 %v77, %v296
      %v298 = vmul.f32 %v78, %v296
      %301 = vrot.lane.b32.xlu0 %v297, 113
      %v302 = vpop.permute.xlu0 %301
      %303 = vrot.lane.b32.xlu0 %v298, 113
      %v304 = vpop.permute.xlu0 %303
      %v307 = vadd.f32 %v292, %v302
      %v308 = vadd.f32 %v293, %v304
      %s309 = sadd.s32 %s79, 16
      %s310 = sld [smem:[#allocation3 + %s309]]
      %v311 = vstv %s310
      %v312 = vmul.f32 %v77, %v311
      %v313 = vmul.f32 %v78, %v311
      %316 = vrot.lane.b32.xlu0 %v312, 112
      %v317 = vpop.permute.xlu0 %316
      %318 = vrot.lane.b32.xlu0 %v313, 112
      %v319 = vpop.permute.xlu0 %318
      %v322 = vadd.f32 %v307, %v317
      %v323 = vadd.f32 %v308, %v319
      %s324 = sadd.s32 %s79, 17
      %s325 = sld [smem:[#allocation3 + %s324]]
      %v326 = vstv %s325
      %v327 = vmul.f32 %v77, %v326
      %v328 = vmul.f32 %v78, %v326
      %331 = vrot.lane.b32.xlu0 %v327, 111
      %v332 = vpop.permute.xlu0 %331
      %333 = vrot.lane.b32.xlu0 %v328, 111
      %v334 = vpop.permute.xlu0 %333
      %v337 = vadd.f32 %v322, %v332
      %v338 = vadd.f32 %v323, %v334
      %s339 = sadd.s32 %s79, 18
      %s340 = sld [smem:[#allocation3 + %s339]]
      %v341 = vstv %s340
      %v342 = vmul.f32 %v77, %v341
      %v343 = vmul.f32 %v78, %v341
      %346 = vrot.lane.b32.xlu0 %v342, 110
      %v347 = vpop.permute.xlu0 %346
      %348 = vrot.lane.b32.xlu0 %v343, 110
      %v349 = vpop.permute.xlu0 %348
      %v352 = vadd.f32 %v337, %v347
      %v353 = vadd.f32 %v338, %v349
      %s354 = sadd.s32 %s79, 19
      %s355 = sld [smem:[#allocation3 + %s354]]
      %v356 = vstv %s355
      %v357 = vmul.f32 %v77, %v356
      %v358 = vmul.f32 %v78, %v356
      %361 = vrot.lane.b32.xlu0 %v357, 109
      %v362 = vpop.permute.xlu0 %361
      %363 = vrot.lane.b32.xlu0 %v358, 109
      %v364 = vpop.permute.xlu0 %363
      %v367 = vadd.f32 %v352, %v362
      %v368 = vadd.f32 %v353, %v364
      %s369 = sadd.s32 %s79, 20
      %s370 = sld [smem:[#allocation3 + %s369]]
      %v371 = vstv %s370
      %v372 = vmul.f32 %v77, %v371
      %v373 = vmul.f32 %v78, %v371
      %376 = vrot.lane.b32.xlu0 %v372, 108
      %v377 = vpop.permute.xlu0 %376
      %378 = vrot.lane.b32.xlu0 %v373, 108
      %v379 = vpop.permute.xlu0 %378
      %v382 = vadd.f32 %v367, %v377
      %v383 = vadd.f32 %v368, %v379
      %s384 = sadd.s32 %s79, 21
      %s385 = sld [smem:[#allocation3 + %s384]]
      %v386 = vstv %s385
      %v387 = vmul.f32 %v77, %v386
      %v388 = vmul.f32 %v78, %v386
      %391 = vrot.lane.b32.xlu0 %v387, 107
      %v392 = vpop.permute.xlu0 %391
      %393 = vrot.lane.b32.xlu0 %v388, 107
      %v394 = vpop.permute.xlu0 %393
      %v397 = vadd.f32 %v382, %v392
      %v398 = vadd.f32 %v383, %v394
      %s399 = sadd.s32 %s79, 22
      %s400 = sld [smem:[#allocation3 + %s399]]
      %v401 = vstv %s400
      %v402 = vmul.f32 %v77, %v401
      %v403 = vmul.f32 %v78, %v401
      %406 = vrot.lane.b32.xlu0 %v402, 106
      %v407 = vpop.permute.xlu0 %406
      %408 = vrot.lane.b32.xlu0 %v403, 106
      %v409 = vpop.permute.xlu0 %408
      %v412 = vadd.f32 %v397, %v407
      %v413 = vadd.f32 %v398, %v409
      %s414 = sadd.s32 %s79, 23
      %s415 = sld [smem:[#allocation3 + %s414]]
      %v416 = vstv %s415
      %v417 = vmul.f32 %v77, %v416
      %v418 = vmul.f32 %v78, %v416
      %421 = vrot.lane.b32.xlu0 %v417, 105
      %v422 = vpop.permute.xlu0 %421
      %423 = vrot.lane.b32.xlu0 %v418, 105
      %v424 = vpop.permute.xlu0 %423
      %v427 = vadd.f32 %v412, %v422
      %v428 = vadd.f32 %v413, %v424
      %s429 = sadd.s32 %s79, 24
      %s430 = sld [smem:[#allocation3 + %s429]]
      %v431 = vstv %s430
      %v432 = vmul.f32 %v77, %v431
      %v433 = vmul.f32 %v78, %v431
      %436 = vrot.lane.b32.xlu0 %v432, 104
      %v437 = vpop.permute.xlu0 %436
      %438 = vrot.lane.b32.xlu0 %v433, 104
      %v439 = vpop.permute.xlu0 %438
      %v442 = vadd.f32 %v427, %v437
      %v443 = vadd.f32 %v428, %v439
      %s444 = sld [smem:[#allocation10 + %s79]]
      %v445 = vstv %s444
      %v446 = vadd.f32 %v442, %v445
      %v447 = vadd.f32 %v443, %v445
      %vm448 = vcmp.gt.f32.partialorder %v446, 0.0
      %vm449 = vcmp.gt.f32.partialorder %v447, 0.0
      %v450 = vmin.f32 %v446, 0.0
      %v451 = vmin.f32 %v447, 0.0
      %v452 = vmul.f32 %v450, 1.442695
      %v453 = vpow.pop %v452
      %v454 = vmul.f32 %v451, 1.442695
      %v455 = vpow.pop %v454
      %v456 = vsub.f32 %v453, 1.0
      %v457 = vsub.f32 %v455, 1.0
      %v458 = vsel %vm448, %v446, %v456
      %v459 = vsel %vm449, %v447, %v457
      %s460 = sld [smem:[#allocation10 + %s84]]
      %v461 = vstv %s460
      %v462 = vmul.f32 %v458, %v461
      %v463 = vmul.f32 %v459, %v461
      %s464 = sld [smem:[#allocation10 + %s99]]
      %v465 = vstv %s464
      %v466 = vadd.f32 %v462, %v465
      %v467 = vadd.f32 %v463, %v465
      %vm468 = vcmp.gt.f32.partialorder %v466, 0.0
      %vm469 = vcmp.gt.f32.partialorder %v467, 0.0
      %v470 = vmin.f32 %v466, 0.0
      %v471 = vmin.f32 %v467, 0.0
      %v472 = vmul.f32 %v470, 1.442695
      %v473 = vpow.pop %v472
      %v474 = vmul.f32 %v471, 1.442695
      %v475 = vpow.pop %v474
      %v476 = vsub.f32 %v473, 1.0
      %v477 = vsub.f32 %v475, 1.0
      %v478 = vsel %vm468, %v466, %v476
      %v479 = vsel %vm469, %v467, %v477
      %s480 = smul.u32 %s72, 16
      %s481 = scalar_lea.vmem [#allocation2], %s480
      %vm482 = vcmask 64512
      %483 = vst.msk [vmem:[%s481] sm:$0xff] %vm482, 0.0
      %484 = vst.msk [vmem:[%s481 + $0x8] sm:$0xff] %vm482, 0.0
      %487 = vrot.lane.b32.xlu0 %v478, 8
      %v488 = vpop.permute.xlu0 %487
      %489 = vrot.lane.b32.xlu0 %v479, 8
      %v490 = vpop.permute.xlu0 %489
      %vm493 = vcmask 588864
      %494 = vst.msk [vmem:[%s481] sm:$0xff] %vm493, %v488
      %495 = vst.msk [vmem:[%s481 + $0x8] sm:$0xff] %vm493, %v490
      %vm496 = vcmask 654912
      %497 = vst.msk [vmem:[%s481] sm:$0xff] %vm496, 0.0
      %498 = vst.msk [vmem:[%s481 + $0x8] sm:$0xff] %vm496, 0.0
      %v499 = vld [vmem:[%s481] sm:$0xff]
      %v500 = vld [vmem:[%s481 + $0x8] sm:$0xff]
      %s501 = sld [smem:[#allocation7 + %s79]]
      %v502 = vstv %s501
      %v503 = vmul.f32 %v499, %v502
      %v504 = vmul.f32 %v500, %v502
      %s505 = sld [smem:[#allocation7 + %s84]]
      %v506 = vstv %s505
      %v507 = vmul.f32 %v499, %v506
      %v508 = vmul.f32 %v500, %v506
      %511 = vrot.lane.b32.xlu0 %v507, 127
      %v512 = vpop.permute.xlu0 %511
      %513 = vrot.lane.b32.xlu0 %v508, 127
      %v514 = vpop.permute.xlu0 %513
      %v517 = vadd.f32 %v503, %v512
      %v518 = vadd.f32 %v504, %v514
      %s519 = sld [smem:[#allocation7 + %s99]]
      %v520 = vstv %s519
      %v521 = vmul.f32 %v499, %v520
      %v522 = vmul.f32 %v500, %v520
      %525 = vrot.lane.b32.xlu0 %v521, 126
      %v526 = vpop.permute.xlu0 %525
      %527 = vrot.lane.b32.xlu0 %v522, 126
      %v528 = vpop.permute.xlu0 %527
      %v531 = vadd.f32 %v517, %v526
      %v532 = vadd.f32 %v518, %v528
      %s533 = sld [smem:[#allocation7 + %s114]]
      %v534 = vstv %s533
      %v535 = vmul.f32 %v499, %v534
      %v536 = vmul.f32 %v500, %v534
      %539 = vrot.lane.b32.xlu0 %v535, 125
      %v540 = vpop.permute.xlu0 %539
      %541 = vrot.lane.b32.xlu0 %v536, 125
      %v542 = vpop.permute.xlu0 %541
      %v545 = vadd.f32 %v531, %v540
      %v546 = vadd.f32 %v532, %v542
      %s547 = sld [smem:[#allocation7 + %s129]]
      %v548 = vstv %s547
      %v549 = vmul.f32 %v499, %v548
      %v550 = vmul.f32 %v500, %v548
      %553 = vrot.lane.b32.xlu0 %v549, 124
      %v554 = vpop.permute.xlu0 %553
      %555 = vrot.lane.b32.xlu0 %v550, 124
      %v556 = vpop.permute.xlu0 %555
      %v559 = vadd.f32 %v545, %v554
      %v560 = vadd.f32 %v546, %v556
      %s561 = sld [smem:[#allocation7 + %s144]]
      %v562 = vstv %s561
      %v563 = vmul.f32 %v499, %v562
      %v564 = vmul.f32 %v500, %v562
      %567 = vrot.lane.b32.xlu0 %v563, 123
      %v568 = vpop.permute.xlu0 %567
      %569 = vrot.lane.b32.xlu0 %v564, 123
      %v570 = vpop.permute.xlu0 %569
      %v573 = vadd.f32 %v559, %v568
      %v574 = vadd.f32 %v560, %v570
      %s575 = sld [smem:[#allocation7 + %s159]]
      %v576 = vstv %s575
      %v577 = vmul.f32 %v499, %v576
      %v578 = vmul.f32 %v500, %v576
      %581 = vrot.lane.b32.xlu0 %v577, 122
      %v582 = vpop.permute.xlu0 %581
      %583 = vrot.lane.b32.xlu0 %v578, 122
      %v584 = vpop.permute.xlu0 %583
      %v587 = vadd.f32 %v573, %v582
      %v588 = vadd.f32 %v574, %v584
      %s589 = sld [smem:[#allocation7 + %s174]]
      %v590 = vstv %s589
      %v591 = vmul.f32 %v499, %v590
      %v592 = vmul.f32 %v500, %v590
      %595 = vrot.lane.b32.xlu0 %v591, 121
      %v596 = vpop.permute.xlu0 %595
      %597 = vrot.lane.b32.xlu0 %v592, 121
      %v598 = vpop.permute.xlu0 %597
      %v601 = vadd.f32 %v587, %v596
      %v602 = vadd.f32 %v588, %v598
      %s603 = sld [smem:[#allocation7 + %s189]]
      %v604 = vstv %s603
      %v605 = vmul.f32 %v499, %v604
      %v606 = vmul.f32 %v500, %v604
      %609 = vrot.lane.b32.xlu0 %v605, 120
      %v610 = vpop.permute.xlu0 %609
      %611 = vrot.lane.b32.xlu0 %v606, 120
      %v612 = vpop.permute.xlu0 %611
      %v615 = vadd.f32 %v601, %v610
      %v616 = vadd.f32 %v602, %v612
      %s617 = sld [smem:[#allocation7 + %s204]]
      %v618 = vstv %s617
      %v619 = vmul.f32 %v499, %v618
      %v620 = vmul.f32 %v500, %v618
      %623 = vrot.lane.b32.xlu0 %v619, 119
      %v624 = vpop.permute.xlu0 %623
      %625 = vrot.lane.b32.xlu0 %v620, 119
      %v626 = vpop.permute.xlu0 %625
      %v629 = vadd.f32 %v615, %v624
      %v630 = vadd.f32 %v616, %v626
      %s631 = sld [smem:[#allocation7 + %s219]]
      %v632 = vstv %s631
      %v633 = vmul.f32 %v499, %v632
      %v634 = vmul.f32 %v500, %v632
      %637 = vrot.lane.b32.xlu0 %v633, 118
      %v638 = vpop.permute.xlu0 %637
      %639 = vrot.lane.b32.xlu0 %v634, 118
      %v640 = vpop.permute.xlu0 %639
      %v643 = vadd.f32 %v629, %v638
      %v644 = vadd.f32 %v630, %v640
      %s645 = sld [smem:[#allocation7 + %s234]]
      %v646 = vstv %s645
      %v647 = vmul.f32 %v499, %v646
      %v648 = vmul.f32 %v500, %v646
      %651 = vrot.lane.b32.xlu0 %v647, 117
      %v652 = vpop.permute.xlu0 %651
      %653 = vrot.lane.b32.xlu0 %v648, 117
      %v654 = vpop.permute.xlu0 %653
      %v657 = vadd.f32 %v643, %v652
      %v658 = vadd.f32 %v644, %v654
      %s659 = sld [smem:[#allocation7 + %s249]]
      %v660 = vstv %s659
      %v661 = vmul.f32 %v499, %v660
      %v662 = vmul.f32 %v500, %v660
      %665 = vrot.lane.b32.xlu0 %v661, 116
      %v666 = vpop.permute.xlu0 %665
      %667 = vrot.lane.b32.xlu0 %v662, 116
      %v668 = vpop.permute.xlu0 %667
      %v671 = vadd.f32 %v657, %v666
      %v672 = vadd.f32 %v658, %v668
      %s673 = sld [smem:[#allocation7 + %s264]]
      %v674 = vstv %s673
      %v675 = vmul.f32 %v499, %v674
      %v676 = vmul.f32 %v500, %v674
      %679 = vrot.lane.b32.xlu0 %v675, 115
      %v680 = vpop.permute.xlu0 %679
      %681 = vrot.lane.b32.xlu0 %v676, 115
      %v682 = vpop.permute.xlu0 %681
      %v685 = vadd.f32 %v671, %v680
      %v686 = vadd.f32 %v672, %v682
      %s687 = sld [smem:[#allocation7 + %s279]]
      %v688 = vstv %s687
      %v689 = vmul.f32 %v499, %v688
      %v690 = vmul.f32 %v500, %v688
      %693 = vrot.lane.b32.xlu0 %v689, 114
      %v694 = vpop.permute.xlu0 %693
      %695 = vrot.lane.b32.xlu0 %v690, 114
      %v696 = vpop.permute.xlu0 %695
      %v699 = vadd.f32 %v685, %v694
      %v700 = vadd.f32 %v686, %v696
      %s701 = sld [smem:[#allocation7 + %s294]]
      %v702 = vstv %s701
      %v703 = vmul.f32 %v499, %v702
      %v704 = vmul.f32 %v500, %v702
      %707 = vrot.lane.b32.xlu0 %v703, 113
      %v708 = vpop.permute.xlu0 %707
      %709 = vrot.lane.b32.xlu0 %v704, 113
      %v710 = vpop.permute.xlu0 %709
      %v713 = vadd.f32 %v699, %v708
      %v714 = vadd.f32 %v700, %v710
      %vm715 = vcmask 531456
      %716 = vst.msk [vmem:[%s481] sm:$0xff] %vm715, %v713
      %717 = vst.msk [vmem:[%s481 + $0x8] sm:$0xff] %vm715, %v714
    $region42: #{tpu_custom_call.1} parent=1 // loop_footer
      %s76 = sadd.s32 1, %s72
    $region43: #{tpu_custom_call.1} parent=1 // loop_footer_branch
      %71 = sbr.rel target = $region39
    $region44: #{tpu_custom_call.1} parent=1 // loop_exit
      _
    %v718 = vld [vmem:[#allocation2] sm:$0xff]
    %v719 = vld [vmem:[#allocation2 + $0x8] sm:$0xff]
    %s720 = sld [smem:[#allocation9]]
    %v721 = vstv %s720
    %v722 = vmul.f32 %v718, %v721
    %v723 = vmul.f32 %v719, %v721
    %s724 = scalar_lea.vmem [#allocation2], 16
    %v725 = vld [vmem:[%s724] sm:$0xff]
    %v726 = vld [vmem:[%s724 + $0x8] sm:$0xff]
    %s727 = sld [smem:[#allocation9 + $0x1]]
    %v728 = vstv %s727
    %v729 = vmul.f32 %v725, %v728
    %v730 = vmul.f32 %v726, %v728
    %v731 = vadd.f32 %v722, %v729
    %v732 = vadd.f32 %v723, %v730
    %s733 = scalar_lea.vmem [#allocation2], 32
    %v734 = vld [vmem:[%s733] sm:$0xff]
    %v735 = vld [vmem:[%s733 + $0x8] sm:$0xff]
    %s736 = sld [smem:[#allocation9 + $0x2]]
    %v737 = vstv %s736
    %v738 = vmul.f32 %v734, %v737
    %v739 = vmul.f32 %v735, %v737
    %v740 = vadd.f32 %v731, %v738
    %v741 = vadd.f32 %v732, %v739
    %s742 = scalar_lea.vmem [#allocation2], 48
    %v743 = vld [vmem:[%s742] sm:$0xff]
    %v744 = vld [vmem:[%s742 + $0x8] sm:$0xff]
    %s745 = sld [smem:[#allocation9 + $0x3]]
    %v746 = vstv %s745
    %v747 = vmul.f32 %v743, %v746
    %v748 = vmul.f32 %v744, %v746
    %v749 = vadd.f32 %v740, %v747
    %v750 = vadd.f32 %v741, %v748
    %s751 = scalar_lea.vmem [#allocation2], 64
    %v752 = vld [vmem:[%s751] sm:$0xff]
    %v753 = vld [vmem:[%s751 + $0x8] sm:$0xff]
    %s754 = sld [smem:[#allocation9 + $0x4]]
    %v755 = vstv %s754
    %v756 = vmul.f32 %v752, %v755
    %v757 = vmul.f32 %v753, %v755
    %v758 = vadd.f32 %v749, %v756
    %v759 = vadd.f32 %v750, %v757
    %s760 = scalar_lea.vmem [#allocation2], 80
    %v761 = vld [vmem:[%s760] sm:$0xff]
    %v762 = vld [vmem:[%s760 + $0x8] sm:$0xff]
    %s763 = sld [smem:[#allocation9 + $0x5]]
    %v764 = vstv %s763
    %v765 = vmul.f32 %v761, %v764
    %v766 = vmul.f32 %v762, %v764
    %v767 = vadd.f32 %v758, %v765
    %v768 = vadd.f32 %v759, %v766
    %s769 = scalar_lea.vmem [#allocation2], 96
    %v770 = vld [vmem:[%s769] sm:$0xff]
    %v771 = vld [vmem:[%s769 + $0x8] sm:$0xff]
    %s772 = sld [smem:[#allocation9 + $0x6]]
    %v773 = vstv %s772
    %v774 = vmul.f32 %v770, %v773
    %v775 = vmul.f32 %v771, %v773
    %v776 = vadd.f32 %v767, %v774
    %v777 = vadd.f32 %v768, %v775
    %s778 = scalar_lea.vmem [#allocation2], 112
    %v779 = vld [vmem:[%s778] sm:$0xff]
    %v780 = vld [vmem:[%s778 + $0x8] sm:$0xff]
    %s781 = sld [smem:[#allocation9 + $0x7]]
    %v782 = vstv %s781
    %v783 = vmul.f32 %v779, %v782
    %v784 = vmul.f32 %v780, %v782
    %v785 = vadd.f32 %v776, %v783
    %v786 = vadd.f32 %v777, %v784
    %s787 = scalar_lea.vmem [#allocation2], 128
    %v788 = vld [vmem:[%s787] sm:$0xff]
    %v789 = vld [vmem:[%s787 + $0x8] sm:$0xff]
    %s790 = sld [smem:[#allocation9 + $0x8]]
    %v791 = vstv %s790
    %v792 = vmul.f32 %v788, %v791
    %v793 = vmul.f32 %v789, %v791
    %v794 = vadd.f32 %v785, %v792
    %v795 = vadd.f32 %v786, %v793
    %s796 = scalar_lea.vmem [#allocation2], 144
    %v797 = vld [vmem:[%s796] sm:$0xff]
    %v798 = vld [vmem:[%s796 + $0x8] sm:$0xff]
    %s799 = sld [smem:[#allocation9 + $0x9]]
    %v800 = vstv %s799
    %v801 = vmul.f32 %v797, %v800
    %v802 = vmul.f32 %v798, %v800
    %v803 = vadd.f32 %v794, %v801
    %v804 = vadd.f32 %v795, %v802
    %s805 = scalar_lea.vmem [#allocation2], 160
    %v806 = vld [vmem:[%s805] sm:$0xff]
    %v807 = vld [vmem:[%s805 + $0x8] sm:$0xff]
    %s808 = sld [smem:[#allocation9 + $0xa]]
    %v809 = vstv %s808
    %v810 = vmul.f32 %v806, %v809
    %v811 = vmul.f32 %v807, %v809
    %v812 = vadd.f32 %v803, %v810
    %v813 = vadd.f32 %v804, %v811
    %s814 = scalar_lea.vmem [#allocation2], 176
    %v815 = vld [vmem:[%s814] sm:$0xff]
    %v816 = vld [vmem:[%s814 + $0x8] sm:$0xff]
    %s817 = sld [smem:[#allocation9 + $0xb]]
    %v818 = vstv %s817
    %v819 = vmul.f32 %v815, %v818
    %v820 = vmul.f32 %v816, %v818
    %v821 = vadd.f32 %v812, %v819
    %v822 = vadd.f32 %v813, %v820
    %s823 = scalar_lea.vmem [#allocation2], 192
    %v824 = vld [vmem:[%s823] sm:$0xff]
    %v825 = vld [vmem:[%s823 + $0x8] sm:$0xff]
    %s826 = sld [smem:[#allocation9 + $0xc]]
    %v827 = vstv %s826
    %v828 = vmul.f32 %v824, %v827
    %v829 = vmul.f32 %v825, %v827
    %v830 = vadd.f32 %v821, %v828
    %v831 = vadd.f32 %v822, %v829
    %s832 = scalar_lea.vmem [#allocation2], 208
    %v833 = vld [vmem:[%s832] sm:$0xff]
    %v834 = vld [vmem:[%s832 + $0x8] sm:$0xff]
    %s835 = sld [smem:[#allocation9 + $0xd]]
    %v836 = vstv %s835
    %v837 = vmul.f32 %v833, %v836
    %v838 = vmul.f32 %v834, %v836
    %v839 = vadd.f32 %v830, %v837
    %v840 = vadd.f32 %v831, %v838
    %s841 = scalar_lea.vmem [#allocation2], 224
    %v842 = vld [vmem:[%s841] sm:$0xff]
    %v843 = vld [vmem:[%s841 + $0x8] sm:$0xff]
    %s844 = sld [smem:[#allocation9 + $0xe]]
    %v845 = vstv %s844
    %v846 = vmul.f32 %v842, %v845
    %v847 = vmul.f32 %v843, %v845
    %v848 = vadd.f32 %v839, %v846
    %v849 = vadd.f32 %v840, %v847
    %s850 = scalar_lea.vmem [#allocation2], 240
    %v851 = vld [vmem:[%s850] sm:$0xff]
    %v852 = vld [vmem:[%s850 + $0x8] sm:$0xff]
    %s853 = sld [smem:[#allocation9 + $0xf]]
    %v854 = vstv %s853
    %v855 = vmul.f32 %v851, %v854
    %v856 = vmul.f32 %v852, %v854
    %v857 = vadd.f32 %v848, %v855
    %v858 = vadd.f32 %v849, %v856
    %s859 = sld [smem:[#allocation10 + $0x3]]
    %v860 = vstv %s859
    %v861 = vadd.f32 %v857, %v860
    %v862 = vadd.f32 %v858, %v860
    %vm863 = vcmp.gt.f32.partialorder %v861, 0.0
    %vm864 = vcmp.gt.f32.partialorder %v862, 0.0
    %v865 = vmin.f32 %v861, 0.0
    %v866 = vmin.f32 %v862, 0.0
    %v867 = vmul.f32 %v865, 1.442695
    %v868 = vpow.pop %v867
    %v869 = vmul.f32 %v866, 1.442695
    %v870 = vpow.pop %v869
    %v871 = vsub.f32 %v868, 1.0
    %v872 = vsub.f32 %v870, 1.0
    %v873 = vsel %vm863, %v861, %v871
    %v874 = vsel %vm864, %v862, %v872
    %vm875 = vcmask 531456
    %v876 = vsel %vm875, %v873, 0.0
    %877 = vadd.xlane.f32.xlu0 %v876
    %v878 = vpop.xlane.xlu0 %877
    %v879 = vsel %vm875, %v874, 0.0
    %880 = vadd.xlane.f32.xlu0 %v879
    %v881 = vpop.xlane.xlu0 %880
    %v882 = vmul.f32 %v878, 0.015384615
    %v883 = vmul.f32 %v881, 0.015384615
    %v886 = vlaneseq
    %v887 = vand.u32 %v886, 127
    %v888 = vlaneseq
    %v889 = vshrl.u32 %v888, 7
    %v890 = vsub.s32 %v887, %v889
    %v891 = vrot.slane %v882, %v890
    %v892 = vadd.s32 %v887, 4294967288
    %v893 = vlaneseq
    %v894 = vshrl.u32 %v893, 7
    %v895 = vsub.s32 %v892, %v894
    %v896 = vrot.slane %v883, %v895
    %vm897 = vcmask 130112
    %v898 = vsel %vm897, %v896, %v891
    %vm900 = vcmask 122880
    %901 = vst.msk [vmem:[#allocation11] sm:$0x1] %vm900, %v898
    %v902 = vld [vmem:[#allocation2] sm:$0xff]
    %v903 = vld [vmem:[#allocation2 + $0x8] sm:$0xff]
    %s904 = sld [smem:[#allocation9 + $0x80]]
    %v905 = vstv %s904
    %v906 = vmul.f32 %v902, %v905
    %v907 = vmul.f32 %v903, %v905
    %v908 = vld [vmem:[%s724] sm:$0xff]
    %v909 = vld [vmem:[%s724 + $0x8] sm:$0xff]
    %s910 = sld [smem:[#allocation9 + $0x81]]
    %v911 = vstv %s910
    %v912 = vmul.f32 %v908, %v911
    %v913 = vmul.f32 %v909, %v911
    %v914 = vadd.f32 %v906, %v912
    %v915 = vadd.f32 %v907, %v913
    %v916 = vld [vmem:[%s733] sm:$0xff]
    %v917 = vld [vmem:[%s733 + $0x8] sm:$0xff]
    %s918 = sld [smem:[#allocation9 + $0x82]]
    %v919 = vstv %s918
    %v920 = vmul.f32 %v916, %v919
    %v921 = vmul.f32 %v917, %v919
    %v922 = vadd.f32 %v914, %v920
    %v923 = vadd.f32 %v915, %v921
    %v924 = vld [vmem:[%s742] sm:$0xff]
    %v925 = vld [vmem:[%s742 + $0x8] sm:$0xff]
    %s926 = sld [smem:[#allocation9 + $0x83]]
    %v927 = vstv %s926
    %v928 = vmul.f32 %v924, %v927
    %v929 = vmul.f32 %v925, %v927
    %v930 = vadd.f32 %v922, %v928
    %v931 = vadd.f32 %v923, %v929
    %v932 = vld [vmem:[%s751] sm:$0xff]
    %v933 = vld [vmem:[%s751 + $0x8] sm:$0xff]
    %s934 = sld [smem:[#allocation9 + $0x84]]
    %v935 = vstv %s934
    %v936 = vmul.f32 %v932, %v935
    %v937 = vmul.f32 %v933, %v935
    %v938 = vadd.f32 %v930, %v936
    %v939 = vadd.f32 %v931, %v937
    %v940 = vld [vmem:[%s760] sm:$0xff]
    %v941 = vld [vmem:[%s760 + $0x8] sm:$0xff]
    %s942 = sld [smem:[#allocation9 + $0x85]]
    %v943 = vstv %s942
    %v944 = vmul.f32 %v940, %v943
    %v945 = vmul.f32 %v941, %v943
    %v946 = vadd.f32 %v938, %v944
    %v947 = vadd.f32 %v939, %v945
    %v948 = vld [vmem:[%s769] sm:$0xff]
    %v949 = vld [vmem:[%s769 + $0x8] sm:$0xff]
    %s950 = sld [smem:[#allocation9 + $0x86]]
    %v951 = vstv %s950
    %v952 = vmul.f32 %v948, %v951
    %v953 = vmul.f32 %v949, %v951
    %v954 = vadd.f32 %v946, %v952
    %v955 = vadd.f32 %v947, %v953
    %v956 = vld [vmem:[%s778] sm:$0xff]
    %v957 = vld [vmem:[%s778 + $0x8] sm:$0xff]
    %s958 = sld [smem:[#allocation9 + $0x87]]
    %v959 = vstv %s958
    %v960 = vmul.f32 %v956, %v959
    %v961 = vmul.f32 %v957, %v959
    %v962 = vadd.f32 %v954, %v960
    %v963 = vadd.f32 %v955, %v961
    %v964 = vld [vmem:[%s787] sm:$0xff]
    %v965 = vld [vmem:[%s787 + $0x8] sm:$0xff]
    %s966 = sld [smem:[#allocation9 + $0x88]]
    %v967 = vstv %s966
    %v968 = vmul.f32 %v964, %v967
    %v969 = vmul.f32 %v965, %v967
    %v970 = vadd.f32 %v962, %v968
    %v971 = vadd.f32 %v963, %v969
    %v972 = vld [vmem:[%s796] sm:$0xff]
    %v973 = vld [vmem:[%s796 + $0x8] sm:$0xff]
    %s974 = sld [smem:[#allocation9 + $0x89]]
    %v975 = vstv %s974
    %v976 = vmul.f32 %v972, %v975
    %v977 = vmul.f32 %v973, %v975
    %v978 = vadd.f32 %v970, %v976
    %v979 = vadd.f32 %v971, %v977
    %v980 = vld [vmem:[%s805] sm:$0xff]
    %v981 = vld [vmem:[%s805 + $0x8] sm:$0xff]
    %s982 = sld [smem:[#allocation9 + $0x8a]]
    %v983 = vstv %s982
    %v984 = vmul.f32 %v980, %v983
    %v985 = vmul.f32 %v981, %v983
    %v986 = vadd.f32 %v978, %v984
    %v987 = vadd.f32 %v979, %v985
    %v988 = vld [vmem:[%s814] sm:$0xff]
    %v989 = vld [vmem:[%s814 + $0x8] sm:$0xff]
    %s990 = sld [smem:[#allocation9 + $0x8b]]
    %v991 = vstv %s990
    %v992 = vmul.f32 %v988, %v991
    %v993 = vmul.f32 %v989, %v991
    %v994 = vadd.f32 %v986, %v992
    %v995 = vadd.f32 %v987, %v993
    %v996 = vld [vmem:[%s823] sm:$0xff]
    %v997 = vld [vmem:[%s823 + $0x8] sm:$0xff]
    %s998 = sld [smem:[#allocation9 + $0x8c]]
    %v999 = vstv %s998
    %v1000 = vmul.f32 %v996, %v999
    %v1001 = vmul.f32 %v997, %v999
    %v1002 = vadd.f32 %v994, %v1000
    %v1003 = vadd.f32 %v995, %v1001
    %v1004 = vld [vmem:[%s832] sm:$0xff]
    %v1005 = vld [vmem:[%s832 + $0x8] sm:$0xff]
    %s1006 = sld [smem:[#allocation9 + $0x8d]]
    %v1007 = vstv %s1006
    %v1008 = vmul.f32 %v1004, %v1007
    %v1009 = vmul.f32 %v1005, %v1007
    %v1010 = vadd.f32 %v1002, %v1008
    %v1011 = vadd.f32 %v1003, %v1009
    %v1012 = vld [vmem:[%s841] sm:$0xff]
    %v1013 = vld [vmem:[%s841 + $0x8] sm:$0xff]
    %s1014 = sld [smem:[#allocation9 + $0x8e]]
    %v1015 = vstv %s1014
    %v1016 = vmul.f32 %v1012, %v1015
    %v1017 = vmul.f32 %v1013, %v1015
    %v1018 = vadd.f32 %v1010, %v1016
    %v1019 = vadd.f32 %v1011, %v1017
    %v1020 = vld [vmem:[%s850] sm:$0xff]
    %v1021 = vld [vmem:[%s850 + $0x8] sm:$0xff]
    %s1022 = sld [smem:[#allocation9 + $0x8f]]
    %v1023 = vstv %s1022
    %v1024 = vmul.f32 %v1020, %v1023
    %v1025 = vmul.f32 %v1021, %v1023
    %v1026 = vadd.f32 %v1018, %v1024
    %v1027 = vadd.f32 %v1019, %v1025
    %s1028 = sld [smem:[#allocation10 + $0x83]]
    %v1029 = vstv %s1028
    %v1030 = vadd.f32 %v1026, %v1029
    %v1031 = vadd.f32 %v1027, %v1029
    %vm1032 = vcmp.gt.f32.partialorder %v1030, 0.0
    %vm1033 = vcmp.gt.f32.partialorder %v1031, 0.0
    %v1034 = vmin.f32 %v1030, 0.0
    %v1035 = vmin.f32 %v1031, 0.0
    %v1036 = vmul.f32 %v1034, 1.442695
    %v1037 = vpow.pop %v1036
    %v1038 = vmul.f32 %v1035, 1.442695
    %v1039 = vpow.pop %v1038
    %v1040 = vsub.f32 %v1037, 1.0
    %v1041 = vsub.f32 %v1039, 1.0
    %v1042 = vsel %vm1032, %v1030, %v1040
    %v1043 = vsel %vm1033, %v1031, %v1041
    %v1044 = vsel %vm875, %v1042, 0.0
    %1045 = vadd.xlane.f32.xlu0 %v1044
    %v1046 = vpop.xlane.xlu0 %1045
    %v1047 = vsel %vm875, %v1043, 0.0
    %1048 = vadd.xlane.f32.xlu0 %v1047
    %v1049 = vpop.xlane.xlu0 %1048
    %v1050 = vmul.f32 %v1046, 0.015384615
    %v1051 = vmul.f32 %v1049, 0.015384615
    %v1054 = vlaneseq
    %v1055 = vshrl.u32 %v1054, 7
    %v1056 = vsub.s32 %v887, %v1055
    %v1057 = vrot.slane %v1050, %v1056
    %v1058 = vlaneseq
    %v1059 = vshrl.u32 %v1058, 7
    %v1060 = vsub.s32 %v892, %v1059
    %v1061 = vrot.slane %v1051, %v1060
    %v1062 = vsel %vm897, %v1061, %v1057
    %1064 = vst.msk [vmem:[#allocation11 + $0x1] sm:$0x1] %vm900, %v1062
    %v1065 = vld [vmem:[#allocation2] sm:$0xff]
    %v1066 = vld [vmem:[#allocation2 + $0x8] sm:$0xff]
    %s1067 = sld [smem:[#allocation9 + $0x100]]
    %v1068 = vstv %s1067
    %v1069 = vmul.f32 %v1065, %v1068
    %v1070 = vmul.f32 %v1066, %v1068
    %v1071 = vld [vmem:[%s724] sm:$0xff]
    %v1072 = vld [vmem:[%s724 + $0x8] sm:$0xff]
    %s1073 = sld [smem:[#allocation9 + $0x101]]
    %v1074 = vstv %s1073
    %v1075 = vmul.f32 %v1071, %v1074
    %v1076 = vmul.f32 %v1072, %v1074
    %v1077 = vadd.f32 %v1069, %v1075
    %v1078 = vadd.f32 %v1070, %v1076
    %v1079 = vld [vmem:[%s733] sm:$0xff]
    %v1080 = vld [vmem:[%s733 + $0x8] sm:$0xff]
    %s1081 = sld [smem:[#allocation9 + $0x102]]
    %v1082 = vstv %s1081
    %v1083 = vmul.f32 %v1079, %v1082
    %v1084 = vmul.f32 %v1080, %v1082
    %v1085 = vadd.f32 %v1077, %v1083
    %v1086 = vadd.f32 %v1078, %v1084
    %v1087 = vld [vmem:[%s742] sm:$0xff]
    %v1088 = vld [vmem:[%s742 + $0x8] sm:$0xff]
    %s1089 = sld [smem:[#allocation9 + $0x103]]
    %v1090 = vstv %s1089
    %v1091 = vmul.f32 %v1087, %v1090
    %v1092 = vmul.f32 %v1088, %v1090
    %v1093 = vadd.f32 %v1085, %v1091
    %v1094 = vadd.f32 %v1086, %v1092
    %v1095 = vld [vmem:[%s751] sm:$0xff]
    %v1096 = vld [vmem:[%s751 + $0x8] sm:$0xff]
    %s1097 = sld [smem:[#allocation9 + $0x104]]
    %v1098 = vstv %s1097
    %v1099 = vmul.f32 %v1095, %v1098
    %v1100 = vmul.f32 %v1096, %v1098
    %v1101 = vadd.f32 %v1093, %v1099
    %v1102 = vadd.f32 %v1094, %v1100
    %v1103 = vld [vmem:[%s760] sm:$0xff]
    %v1104 = vld [vmem:[%s760 + $0x8] sm:$0xff]
    %s1105 = sld [smem:[#allocation9 + $0x105]]
    %v1106 = vstv %s1105
    %v1107 = vmul.f32 %v1103, %v1106
    %v1108 = vmul.f32 %v1104, %v1106
    %v1109 = vadd.f32 %v1101, %v1107
    %v1110 = vadd.f32 %v1102, %v1108
    %v1111 = vld [vmem:[%s769] sm:$0xff]
    %v1112 = vld [vmem:[%s769 + $0x8] sm:$0xff]
    %s1113 = sld [smem:[#allocation9 + $0x106]]
    %v1114 = vstv %s1113
    %v1115 = vmul.f32 %v1111, %v1114
    %v1116 = vmul.f32 %v1112, %v1114
    %v1117 = vadd.f32 %v1109, %v1115
    %v1118 = vadd.f32 %v1110, %v1116
    %v1119 = vld [vmem:[%s778] sm:$0xff]
    %v1120 = vld [vmem:[%s778 + $0x8] sm:$0xff]
    %s1121 = sld [smem:[#allocation9 + $0x107]]
    %v1122 = vstv %s1121
    %v1123 = vmul.f32 %v1119, %v1122
    %v1124 = vmul.f32 %v1120, %v1122
    %v1125 = vadd.f32 %v1117, %v1123
    %v1126 = vadd.f32 %v1118, %v1124
    %v1127 = vld [vmem:[%s787] sm:$0xff]
    %v1128 = vld [vmem:[%s787 + $0x8] sm:$0xff]
    %s1129 = sld [smem:[#allocation9 + $0x108]]
    %v1130 = vstv %s1129
    %v1131 = vmul.f32 %v1127, %v1130
    %v1132 = vmul.f32 %v1128, %v1130
    %v1133 = vadd.f32 %v1125, %v1131
    %v1134 = vadd.f32 %v1126, %v1132
    %v1135 = vld [vmem:[%s796] sm:$0xff]
    %v1136 = vld [vmem:[%s796 + $0x8] sm:$0xff]
    %s1137 = sld [smem:[#allocation9 + $0x109]]
    %v1138 = vstv %s1137
    %v1139 = vmul.f32 %v1135, %v1138
    %v1140 = vmul.f32 %v1136, %v1138
    %v1141 = vadd.f32 %v1133, %v1139
    %v1142 = vadd.f32 %v1134, %v1140
    %v1143 = vld [vmem:[%s805] sm:$0xff]
    %v1144 = vld [vmem:[%s805 + $0x8] sm:$0xff]
    %s1145 = sld [smem:[#allocation9 + $0x10a]]
    %v1146 = vstv %s1145
    %v1147 = vmul.f32 %v1143, %v1146
    %v1148 = vmul.f32 %v1144, %v1146
    %v1149 = vadd.f32 %v1141, %v1147
    %v1150 = vadd.f32 %v1142, %v1148
    %v1151 = vld [vmem:[%s814] sm:$0xff]
    %v1152 = vld [vmem:[%s814 + $0x8] sm:$0xff]
    %s1153 = sld [smem:[#allocation9 + $0x10b]]
    %v1154 = vstv %s1153
    %v1155 = vmul.f32 %v1151, %v1154
    %v1156 = vmul.f32 %v1152, %v1154
    %v1157 = vadd.f32 %v1149, %v1155
    %v1158 = vadd.f32 %v1150, %v1156
    %v1159 = vld [vmem:[%s823] sm:$0xff]
    %v1160 = vld [vmem:[%s823 + $0x8] sm:$0xff]
    %s1161 = sld [smem:[#allocation9 + $0x10c]]
    %v1162 = vstv %s1161
    %v1163 = vmul.f32 %v1159, %v1162
    %v1164 = vmul.f32 %v1160, %v1162
    %v1165 = vadd.f32 %v1157, %v1163
    %v1166 = vadd.f32 %v1158, %v1164
    %v1167 = vld [vmem:[%s832] sm:$0xff]
    %v1168 = vld [vmem:[%s832 + $0x8] sm:$0xff]
    %s1169 = sld [smem:[#allocation9 + $0x10d]]
    %v1170 = vstv %s1169
    %v1171 = vmul.f32 %v1167, %v1170
    %v1172 = vmul.f32 %v1168, %v1170
    %v1173 = vadd.f32 %v1165, %v1171
    %v1174 = vadd.f32 %v1166, %v1172
    %v1175 = vld [vmem:[%s841] sm:$0xff]
    %v1176 = vld [vmem:[%s841 + $0x8] sm:$0xff]
    %s1177 = sld [smem:[#allocation9 + $0x10e]]
    %v1178 = vstv %s1177
    %v1179 = vmul.f32 %v1175, %v1178
    %v1180 = vmul.f32 %v1176, %v1178
    %v1181 = vadd.f32 %v1173, %v1179
    %v1182 = vadd.f32 %v1174, %v1180
    %v1183 = vld [vmem:[%s850] sm:$0xff]
    %v1184 = vld [vmem:[%s850 + $0x8] sm:$0xff]
    %s1185 = sld [smem:[#allocation9 + $0x10f]]
    %v1186 = vstv %s1185
    %v1187 = vmul.f32 %v1183, %v1186
    %v1188 = vmul.f32 %v1184, %v1186
    %v1189 = vadd.f32 %v1181, %v1187
    %v1190 = vadd.f32 %v1182, %v1188
    %s1191 = sld [smem:[#allocation10 + $0x103]]
    %v1192 = vstv %s1191
    %v1193 = vadd.f32 %v1189, %v1192
    %v1194 = vadd.f32 %v1190, %v1192
    %vm1195 = vcmp.gt.f32.partialorder %v1193, 0.0
    %vm1196 = vcmp.gt.f32.partialorder %v1194, 0.0
    %v1197 = vmin.f32 %v1193, 0.0
    %v1198 = vmin.f32 %v1194, 0.0
    %v1199 = vmul.f32 %v1197, 1.442695
    %v1200 = vpow.pop %v1199
    %v1201 = vmul.f32 %v1198, 1.442695
    %v1202 = vpow.pop %v1201
    %v1203 = vsub.f32 %v1200, 1.0
    %v1204 = vsub.f32 %v1202, 1.0
    %v1205 = vsel %vm1195, %v1193, %v1203
    %v1206 = vsel %vm1196, %v1194, %v1204
    %v1207 = vsel %vm875, %v1205, 0.0
    %1208 = vadd.xlane.f32.xlu0 %v1207
    %v1209 = vpop.xlane.xlu0 %1208
    %v1210 = vsel %vm875, %v1206, 0.0
    %1211 = vadd.xlane.f32.xlu0 %v1210
    %v1212 = vpop.xlane.xlu0 %1211
    %v1213 = vmul.f32 %v1209, 0.015384615
    %v1214 = vmul.f32 %v1212, 0.015384615
    %v1217 = vlaneseq
    %v1218 = vshrl.u32 %v1217, 7
    %v1219 = vsub.s32 %v887, %v1218
    %v1220 = vrot.slane %v1213, %v1219
    %v1221 = vlaneseq
    %v1222 = vshrl.u32 %v1221, 7
    %v1223 = vsub.s32 %v892, %v1222
    %v1224 = vrot.slane %v1214, %v1223
    %v1225 = vsel %vm897, %v1224, %v1220
    %1227 = vst.msk [vmem:[#allocation11 + $0x2] sm:$0x1] %vm900, %v1225
    %v1228 = vld [vmem:[#allocation2] sm:$0xff]
    %v1229 = vld [vmem:[#allocation2 + $0x8] sm:$0xff]
    %s1230 = sld [smem:[#allocation9 + $0x180]]
    %v1231 = vstv %s1230
    %v1232 = vmul.f32 %v1228, %v1231
    %v1233 = vmul.f32 %v1229, %v1231
    %v1234 = vld [vmem:[%s724] sm:$0xff]
    %v1235 = vld [vmem:[%s724 + $0x8] sm:$0xff]
    %s1236 = sld [smem:[#allocation9 + $0x181]]
    %v1237 = vstv %s1236
    %v1238 = vmul.f32 %v1234, %v1237
    %v1239 = vmul.f32 %v1235, %v1237
    %v1240 = vadd.f32 %v1232, %v1238
    %v1241 = vadd.f32 %v1233, %v1239
    %v1242 = vld [vmem:[%s733] sm:$0xff]
    %v1243 = vld [vmem:[%s733 + $0x8] sm:$0xff]
    %s1244 = sld [smem:[#allocation9 + $0x182]]
    %v1245 = vstv %s1244
    %v1246 = vmul.f32 %v1242, %v1245
    %v1247 = vmul.f32 %v1243, %v1245
    %v1248 = vadd.f32 %v1240, %v1246
    %v1249 = vadd.f32 %v1241, %v1247
    %v1250 = vld [vmem:[%s742] sm:$0xff]
    %v1251 = vld [vmem:[%s742 + $0x8] sm:$0xff]
    %s1252 = sld [smem:[#allocation9 + $0x183]]
    %v1253 = vstv %s1252
    %v1254 = vmul.f32 %v1250, %v1253
    %v1255 = vmul.f32 %v1251, %v1253
    %v1256 = vadd.f32 %v1248, %v1254
    %v1257 = vadd.f32 %v1249, %v1255
    %v1258 = vld [vmem:[%s751] sm:$0xff]
    %v1259 = vld [vmem:[%s751 + $0x8] sm:$0xff]
    %s1260 = sld [smem:[#allocation9 + $0x184]]
    %v1261 = vstv %s1260
    %v1262 = vmul.f32 %v1258, %v1261
    %v1263 = vmul.f32 %v1259, %v1261
    %v1264 = vadd.f32 %v1256, %v1262
    %v1265 = vadd.f32 %v1257, %v1263
    %v1266 = vld [vmem:[%s760] sm:$0xff]
    %v1267 = vld [vmem:[%s760 + $0x8] sm:$0xff]
    %s1268 = sld [smem:[#allocation9 + $0x185]]
    %v1269 = vstv %s1268
    %v1270 = vmul.f32 %v1266, %v1269
    %v1271 = vmul.f32 %v1267, %v1269
    %v1272 = vadd.f32 %v1264, %v1270
    %v1273 = vadd.f32 %v1265, %v1271
    %v1274 = vld [vmem:[%s769] sm:$0xff]
    %v1275 = vld [vmem:[%s769 + $0x8] sm:$0xff]
    %s1276 = sld [smem:[#allocation9 + $0x186]]
    %v1277 = vstv %s1276
    %v1278 = vmul.f32 %v1274, %v1277
    %v1279 = vmul.f32 %v1275, %v1277
    %v1280 = vadd.f32 %v1272, %v1278
    %v1281 = vadd.f32 %v1273, %v1279
    %v1282 = vld [vmem:[%s778] sm:$0xff]
    %v1283 = vld [vmem:[%s778 + $0x8] sm:$0xff]
    %s1284 = sld [smem:[#allocation9 + $0x187]]
    %v1285 = vstv %s1284
    %v1286 = vmul.f32 %v1282, %v1285
    %v1287 = vmul.f32 %v1283, %v1285
    %v1288 = vadd.f32 %v1280, %v1286
    %v1289 = vadd.f32 %v1281, %v1287
    %v1290 = vld [vmem:[%s787] sm:$0xff]
    %v1291 = vld [vmem:[%s787 + $0x8] sm:$0xff]
    %s1292 = sld [smem:[#allocation9 + $0x188]]
    %v1293 = vstv %s1292
    %v1294 = vmul.f32 %v1290, %v1293
    %v1295 = vmul.f32 %v1291, %v1293
    %v1296 = vadd.f32 %v1288, %v1294
    %v1297 = vadd.f32 %v1289, %v1295
    %v1298 = vld [vmem:[%s796] sm:$0xff]
    %v1299 = vld [vmem:[%s796 + $0x8] sm:$0xff]
    %s1300 = sld [smem:[#allocation9 + $0x189]]
    %v1301 = vstv %s1300
    %v1302 = vmul.f32 %v1298, %v1301
    %v1303 = vmul.f32 %v1299, %v1301
    %v1304 = vadd.f32 %v1296, %v1302
    %v1305 = vadd.f32 %v1297, %v1303
    %v1306 = vld [vmem:[%s805] sm:$0xff]
    %v1307 = vld [vmem:[%s805 + $0x8] sm:$0xff]
    %s1308 = sld [smem:[#allocation9 + $0x18a]]
    %v1309 = vstv %s1308
    %v1310 = vmul.f32 %v1306, %v1309
    %v1311 = vmul.f32 %v1307, %v1309
    %v1312 = vadd.f32 %v1304, %v1310
    %v1313 = vadd.f32 %v1305, %v1311
    %v1314 = vld [vmem:[%s814] sm:$0xff]
    %v1315 = vld [vmem:[%s814 + $0x8] sm:$0xff]
    %s1316 = sld [smem:[#allocation9 + $0x18b]]
    %v1317 = vstv %s1316
    %v1318 = vmul.f32 %v1314, %v1317
    %v1319 = vmul.f32 %v1315, %v1317
    %v1320 = vadd.f32 %v1312, %v1318
    %v1321 = vadd.f32 %v1313, %v1319
    %v1322 = vld [vmem:[%s823] sm:$0xff]
    %v1323 = vld [vmem:[%s823 + $0x8] sm:$0xff]
    %s1324 = sld [smem:[#allocation9 + $0x18c]]
    %v1325 = vstv %s1324
    %v1326 = vmul.f32 %v1322, %v1325
    %v1327 = vmul.f32 %v1323, %v1325
    %v1328 = vadd.f32 %v1320, %v1326
    %v1329 = vadd.f32 %v1321, %v1327
    %v1330 = vld [vmem:[%s832] sm:$0xff]
    %v1331 = vld [vmem:[%s832 + $0x8] sm:$0xff]
    %s1332 = sld [smem:[#allocation9 + $0x18d]]
    %v1333 = vstv %s1332
    %v1334 = vmul.f32 %v1330, %v1333
    %v1335 = vmul.f32 %v1331, %v1333
    %v1336 = vadd.f32 %v1328, %v1334
    %v1337 = vadd.f32 %v1329, %v1335
    %v1338 = vld [vmem:[%s841] sm:$0xff]
    %v1339 = vld [vmem:[%s841 + $0x8] sm:$0xff]
    %s1340 = sld [smem:[#allocation9 + $0x18e]]
    %v1341 = vstv %s1340
    %v1342 = vmul.f32 %v1338, %v1341
    %v1343 = vmul.f32 %v1339, %v1341
    %v1344 = vadd.f32 %v1336, %v1342
    %v1345 = vadd.f32 %v1337, %v1343
    %v1346 = vld [vmem:[%s850] sm:$0xff]
    %v1347 = vld [vmem:[%s850 + $0x8] sm:$0xff]
    %s1348 = sld [smem:[#allocation9 + $0x18f]]
    %v1349 = vstv %s1348
    %v1350 = vmul.f32 %v1346, %v1349
    %v1351 = vmul.f32 %v1347, %v1349
    %v1352 = vadd.f32 %v1344, %v1350
    %v1353 = vadd.f32 %v1345, %v1351
    %s1354 = sld [smem:[#allocation10 + $0x183]]
    %v1355 = vstv %s1354
    %v1356 = vadd.f32 %v1352, %v1355
    %v1357 = vadd.f32 %v1353, %v1355
    %vm1358 = vcmp.gt.f32.partialorder %v1356, 0.0
    %vm1359 = vcmp.gt.f32.partialorder %v1357, 0.0
    %v1360 = vmin.f32 %v1356, 0.0
    %v1361 = vmin.f32 %v1357, 0.0
    %v1362 = vmul.f32 %v1360, 1.442695
    %v1363 = vpow.pop %v1362
    %v1364 = vmul.f32 %v1361, 1.442695
    %v1365 = vpow.pop %v1364
    %v1366 = vsub.f32 %v1363, 1.0
    %v1367 = vsub.f32 %v1365, 1.0
    %v1368 = vsel %vm1358, %v1356, %v1366
    %v1369 = vsel %vm1359, %v1357, %v1367
    %v1370 = vsel %vm875, %v1368, 0.0
    %1371 = vadd.xlane.f32.xlu0 %v1370
    %v1372 = vpop.xlane.xlu0 %1371
    %v1373 = vsel %vm875, %v1369, 0.0
    %1374 = vadd.xlane.f32.xlu0 %v1373
    %v1375 = vpop.xlane.xlu0 %1374
    %v1376 = vmul.f32 %v1372, 0.015384615
    %v1377 = vmul.f32 %v1375, 0.015384615
    %v1380 = vlaneseq
    %v1381 = vshrl.u32 %v1380, 7
    %v1382 = vsub.s32 %v887, %v1381
    %v1383 = vrot.slane %v1376, %v1382
    %v1384 = vlaneseq
    %v1385 = vshrl.u32 %v1384, 7
    %v1386 = vsub.s32 %v892, %v1385
    %v1387 = vrot.slane %v1377, %v1386
    %v1388 = vsel %vm897, %v1387, %v1383
    %1390 = vst.msk [vmem:[#allocation11 + $0x3] sm:$0x1] %vm900, %v1388
    %v1391 = vld [vmem:[#allocation2] sm:$0xff]
    %v1392 = vld [vmem:[#allocation2 + $0x8] sm:$0xff]
    %s1393 = sld [smem:[#allocation9 + $0x200]]
    %v1394 = vstv %s1393
    %v1395 = vmul.f32 %v1391, %v1394
    %v1396 = vmul.f32 %v1392, %v1394
    %v1397 = vld [vmem:[%s724] sm:$0xff]
    %v1398 = vld [vmem:[%s724 + $0x8] sm:$0xff]
    %s1399 = sld [smem:[#allocation9 + $0x201]]
    %v1400 = vstv %s1399
    %v1401 = vmul.f32 %v1397, %v1400
    %v1402 = vmul.f32 %v1398, %v1400
    %v1403 = vadd.f32 %v1395, %v1401
    %v1404 = vadd.f32 %v1396, %v1402
    %v1405 = vld [vmem:[%s733] sm:$0xff]
    %v1406 = vld [vmem:[%s733 + $0x8] sm:$0xff]
    %s1407 = sld [smem:[#allocation9 + $0x202]]
    %v1408 = vstv %s1407
    %v1409 = vmul.f32 %v1405, %v1408
    %v1410 = vmul.f32 %v1406, %v1408
    %v1411 = vadd.f32 %v1403, %v1409
    %v1412 = vadd.f32 %v1404, %v1410
    %v1413 = vld [vmem:[%s742] sm:$0xff]
    %v1414 = vld [vmem:[%s742 + $0x8] sm:$0xff]
    %s1415 = sld [smem:[#allocation9 + $0x203]]
    %v1416 = vstv %s1415
    %v1417 = vmul.f32 %v1413, %v1416
    %v1418 = vmul.f32 %v1414, %v1416
    %v1419 = vadd.f32 %v1411, %v1417
    %v1420 = vadd.f32 %v1412, %v1418
    %v1421 = vld [vmem:[%s751] sm:$0xff]
    %v1422 = vld [vmem:[%s751 + $0x8] sm:$0xff]
    %s1423 = sld [smem:[#allocation9 + $0x204]]
    %v1424 = vstv %s1423
    %v1425 = vmul.f32 %v1421, %v1424
    %v1426 = vmul.f32 %v1422, %v1424
    %v1427 = vadd.f32 %v1419, %v1425
    %v1428 = vadd.f32 %v1420, %v1426
    %v1429 = vld [vmem:[%s760] sm:$0xff]
    %v1430 = vld [vmem:[%s760 + $0x8] sm:$0xff]
    %s1431 = sld [smem:[#allocation9 + $0x205]]
    %v1432 = vstv %s1431
    %v1433 = vmul.f32 %v1429, %v1432
    %v1434 = vmul.f32 %v1430, %v1432
    %v1435 = vadd.f32 %v1427, %v1433
    %v1436 = vadd.f32 %v1428, %v1434
    %v1437 = vld [vmem:[%s769] sm:$0xff]
    %v1438 = vld [vmem:[%s769 + $0x8] sm:$0xff]
    %s1439 = sld [smem:[#allocation9 + $0x206]]
    %v1440 = vstv %s1439
    %v1441 = vmul.f32 %v1437, %v1440
    %v1442 = vmul.f32 %v1438, %v1440
    %v1443 = vadd.f32 %v1435, %v1441
    %v1444 = vadd.f32 %v1436, %v1442
    %v1445 = vld [vmem:[%s778] sm:$0xff]
    %v1446 = vld [vmem:[%s778 + $0x8] sm:$0xff]
    %s1447 = sld [smem:[#allocation9 + $0x207]]
    %v1448 = vstv %s1447
    %v1449 = vmul.f32 %v1445, %v1448
    %v1450 = vmul.f32 %v1446, %v1448
    %v1451 = vadd.f32 %v1443, %v1449
    %v1452 = vadd.f32 %v1444, %v1450
    %v1453 = vld [vmem:[%s787] sm:$0xff]
    %v1454 = vld [vmem:[%s787 + $0x8] sm:$0xff]
    %s1455 = sld [smem:[#allocation9 + $0x208]]
    %v1456 = vstv %s1455
    %v1457 = vmul.f32 %v1453, %v1456
    %v1458 = vmul.f32 %v1454, %v1456
    %v1459 = vadd.f32 %v1451, %v1457
    %v1460 = vadd.f32 %v1452, %v1458
    %v1461 = vld [vmem:[%s796] sm:$0xff]
    %v1462 = vld [vmem:[%s796 + $0x8] sm:$0xff]
    %s1463 = sld [smem:[#allocation9 + $0x209]]
    %v1464 = vstv %s1463
    %v1465 = vmul.f32 %v1461, %v1464
    %v1466 = vmul.f32 %v1462, %v1464
    %v1467 = vadd.f32 %v1459, %v1465
    %v1468 = vadd.f32 %v1460, %v1466
    %v1469 = vld [vmem:[%s805] sm:$0xff]
    %v1470 = vld [vmem:[%s805 + $0x8] sm:$0xff]
    %s1471 = sld [smem:[#allocation9 + $0x20a]]
    %v1472 = vstv %s1471
    %v1473 = vmul.f32 %v1469, %v1472
    %v1474 = vmul.f32 %v1470, %v1472
    %v1475 = vadd.f32 %v1467, %v1473
    %v1476 = vadd.f32 %v1468, %v1474
    %v1477 = vld [vmem:[%s814] sm:$0xff]
    %v1478 = vld [vmem:[%s814 + $0x8] sm:$0xff]
    %s1479 = sld [smem:[#allocation9 + $0x20b]]
    %v1480 = vstv %s1479
    %v1481 = vmul.f32 %v1477, %v1480
    %v1482 = vmul.f32 %v1478, %v1480
    %v1483 = vadd.f32 %v1475, %v1481
    %v1484 = vadd.f32 %v1476, %v1482
    %v1485 = vld [vmem:[%s823] sm:$0xff]
    %v1486 = vld [vmem:[%s823 + $0x8] sm:$0xff]
    %s1487 = sld [smem:[#allocation9 + $0x20c]]
    %v1488 = vstv %s1487
    %v1489 = vmul.f32 %v1485, %v1488
    %v1490 = vmul.f32 %v1486, %v1488
    %v1491 = vadd.f32 %v1483, %v1489
    %v1492 = vadd.f32 %v1484, %v1490
    %v1493 = vld [vmem:[%s832] sm:$0xff]
    %v1494 = vld [vmem:[%s832 + $0x8] sm:$0xff]
    %s1495 = sld [smem:[#allocation9 + $0x20d]]
    %v1496 = vstv %s1495
    %v1497 = vmul.f32 %v1493, %v1496
    %v1498 = vmul.f32 %v1494, %v1496
    %v1499 = vadd.f32 %v1491, %v1497
    %v1500 = vadd.f32 %v1492, %v1498
    %v1501 = vld [vmem:[%s841] sm:$0xff]
    %v1502 = vld [vmem:[%s841 + $0x8] sm:$0xff]
    %s1503 = sld [smem:[#allocation9 + $0x20e]]
    %v1504 = vstv %s1503
    %v1505 = vmul.f32 %v1501, %v1504
    %v1506 = vmul.f32 %v1502, %v1504
    %v1507 = vadd.f32 %v1499, %v1505
    %v1508 = vadd.f32 %v1500, %v1506
    %v1509 = vld [vmem:[%s850] sm:$0xff]
    %v1510 = vld [vmem:[%s850 + $0x8] sm:$0xff]
    %s1511 = sld [smem:[#allocation9 + $0x20f]]
    %v1512 = vstv %s1511
    %v1513 = vmul.f32 %v1509, %v1512
    %v1514 = vmul.f32 %v1510, %v1512
    %v1515 = vadd.f32 %v1507, %v1513
    %v1516 = vadd.f32 %v1508, %v1514
    %s1517 = sld [smem:[#allocation10 + $0x203]]
    %v1518 = vstv %s1517
    %v1519 = vadd.f32 %v1515, %v1518
    %v1520 = vadd.f32 %v1516, %v1518
    %vm1521 = vcmp.gt.f32.partialorder %v1519, 0.0
    %vm1522 = vcmp.gt.f32.partialorder %v1520, 0.0
    %v1523 = vmin.f32 %v1519, 0.0
    %v1524 = vmin.f32 %v1520, 0.0
    %v1525 = vmul.f32 %v1523, 1.442695
    %v1526 = vpow.pop %v1525
    %v1527 = vmul.f32 %v1524, 1.442695
    %v1528 = vpow.pop %v1527
    %v1529 = vsub.f32 %v1526, 1.0
    %v1530 = vsub.f32 %v1528, 1.0
    %v1531 = vsel %vm1521, %v1519, %v1529
    %v1532 = vsel %vm1522, %v1520, %v1530
    %v1533 = vsel %vm875, %v1531, 0.0
    %1534 = vadd.xlane.f32.xlu0 %v1533
    %v1535 = vpop.xlane.xlu0 %1534
    %v1536 = vsel %vm875, %v1532, 0.0
    %1537 = vadd.xlane.f32.xlu0 %v1536
    %v1538 = vpop.xlane.xlu0 %1537
    %v1539 = vmul.f32 %v1535, 0.015384615
    %v1540 = vmul.f32 %v1538, 0.015384615
    %v1543 = vlaneseq
    %v1544 = vshrl.u32 %v1543, 7
    %v1545 = vsub.s32 %v887, %v1544
    %v1546 = vrot.slane %v1539, %v1545
    %v1547 = vlaneseq
    %v1548 = vshrl.u32 %v1547, 7
    %v1549 = vsub.s32 %v892, %v1548
    %v1550 = vrot.slane %v1540, %v1549
    %v1551 = vsel %vm897, %v1550, %v1546
    %1553 = vst.msk [vmem:[#allocation11 + $0x4] sm:$0x1] %vm900, %v1551
    %v1554 = vld [vmem:[#allocation2] sm:$0xff]
    %v1555 = vld [vmem:[#allocation2 + $0x8] sm:$0xff]
    %s1556 = sld [smem:[#allocation9 + $0x280]]
    %v1557 = vstv %s1556
    %v1558 = vmul.f32 %v1554, %v1557
    %v1559 = vmul.f32 %v1555, %v1557
    %v1560 = vld [vmem:[%s724] sm:$0xff]
    %v1561 = vld [vmem:[%s724 + $0x8] sm:$0xff]
    %s1562 = sld [smem:[#allocation9 + $0x281]]
    %v1563 = vstv %s1562
    %v1564 = vmul.f32 %v1560, %v1563
    %v1565 = vmul.f32 %v1561, %v1563
    %v1566 = vadd.f32 %v1558, %v1564
    %v1567 = vadd.f32 %v1559, %v1565
    %v1568 = vld [vmem:[%s733] sm:$0xff]
    %v1569 = vld [vmem:[%s733 + $0x8] sm:$0xff]
    %s1570 = sld [smem:[#allocation9 + $0x282]]
    %v1571 = vstv %s1570
    %v1572 = vmul.f32 %v1568, %v1571
    %v1573 = vmul.f32 %v1569, %v1571
    %v1574 = vadd.f32 %v1566, %v1572
    %v1575 = vadd.f32 %v1567, %v1573
    %v1576 = vld [vmem:[%s742] sm:$0xff]
    %v1577 = vld [vmem:[%s742 + $0x8] sm:$0xff]
    %s1578 = sld [smem:[#allocation9 + $0x283]]
    %v1579 = vstv %s1578
    %v1580 = vmul.f32 %v1576, %v1579
    %v1581 = vmul.f32 %v1577, %v1579
    %v1582 = vadd.f32 %v1574, %v1580
    %v1583 = vadd.f32 %v1575, %v1581
    %v1584 = vld [vmem:[%s751] sm:$0xff]
    %v1585 = vld [vmem:[%s751 + $0x8] sm:$0xff]
    %s1586 = sld [smem:[#allocation9 + $0x284]]
    %v1587 = vstv %s1586
    %v1588 = vmul.f32 %v1584, %v1587
    %v1589 = vmul.f32 %v1585, %v1587
    %v1590 = vadd.f32 %v1582, %v1588
    %v1591 = vadd.f32 %v1583, %v1589
    %v1592 = vld [vmem:[%s760] sm:$0xff]
    %v1593 = vld [vmem:[%s760 + $0x8] sm:$0xff]
    %s1594 = sld [smem:[#allocation9 + $0x285]]
    %v1595 = vstv %s1594
    %v1596 = vmul.f32 %v1592, %v1595
    %v1597 = vmul.f32 %v1593, %v1595
    %v1598 = vadd.f32 %v1590, %v1596
    %v1599 = vadd.f32 %v1591, %v1597
    %v1600 = vld [vmem:[%s769] sm:$0xff]
    %v1601 = vld [vmem:[%s769 + $0x8] sm:$0xff]
    %s1602 = sld [smem:[#allocation9 + $0x286]]
    %v1603 = vstv %s1602
    %v1604 = vmul.f32 %v1600, %v1603
    %v1605 = vmul.f32 %v1601, %v1603
    %v1606 = vadd.f32 %v1598, %v1604
    %v1607 = vadd.f32 %v1599, %v1605
    %v1608 = vld [vmem:[%s778] sm:$0xff]
    %v1609 = vld [vmem:[%s778 + $0x8] sm:$0xff]
    %s1610 = sld [smem:[#allocation9 + $0x287]]
    %v1611 = vstv %s1610
    %v1612 = vmul.f32 %v1608, %v1611
    %v1613 = vmul.f32 %v1609, %v1611
    %v1614 = vadd.f32 %v1606, %v1612
    %v1615 = vadd.f32 %v1607, %v1613
    %v1616 = vld [vmem:[%s787] sm:$0xff]
    %v1617 = vld [vmem:[%s787 + $0x8] sm:$0xff]
    %s1618 = sld [smem:[#allocation9 + $0x288]]
    %v1619 = vstv %s1618
    %v1620 = vmul.f32 %v1616, %v1619
    %v1621 = vmul.f32 %v1617, %v1619
    %v1622 = vadd.f32 %v1614, %v1620
    %v1623 = vadd.f32 %v1615, %v1621
    %v1624 = vld [vmem:[%s796] sm:$0xff]
    %v1625 = vld [vmem:[%s796 + $0x8] sm:$0xff]
    %s1626 = sld [smem:[#allocation9 + $0x289]]
    %v1627 = vstv %s1626
    %v1628 = vmul.f32 %v1624, %v1627
    %v1629 = vmul.f32 %v1625, %v1627
    %v1630 = vadd.f32 %v1622, %v1628
    %v1631 = vadd.f32 %v1623, %v1629
    %v1632 = vld [vmem:[%s805] sm:$0xff]
    %v1633 = vld [vmem:[%s805 + $0x8] sm:$0xff]
    %s1634 = sld [smem:[#allocation9 + $0x28a]]
    %v1635 = vstv %s1634
    %v1636 = vmul.f32 %v1632, %v1635
    %v1637 = vmul.f32 %v1633, %v1635
    %v1638 = vadd.f32 %v1630, %v1636
    %v1639 = vadd.f32 %v1631, %v1637
    %v1640 = vld [vmem:[%s814] sm:$0xff]
    %v1641 = vld [vmem:[%s814 + $0x8] sm:$0xff]
    %s1642 = sld [smem:[#allocation9 + $0x28b]]
    %v1643 = vstv %s1642
    %v1644 = vmul.f32 %v1640, %v1643
    %v1645 = vmul.f32 %v1641, %v1643
    %v1646 = vadd.f32 %v1638, %v1644
    %v1647 = vadd.f32 %v1639, %v1645
    %v1648 = vld [vmem:[%s823] sm:$0xff]
    %v1649 = vld [vmem:[%s823 + $0x8] sm:$0xff]
    %s1650 = sld [smem:[#allocation9 + $0x28c]]
    %v1651 = vstv %s1650
    %v1652 = vmul.f32 %v1648, %v1651
    %v1653 = vmul.f32 %v1649, %v1651
    %v1654 = vadd.f32 %v1646, %v1652
    %v1655 = vadd.f32 %v1647, %v1653
    %v1656 = vld [vmem:[%s832] sm:$0xff]
    %v1657 = vld [vmem:[%s832 + $0x8] sm:$0xff]
    %s1658 = sld [smem:[#allocation9 + $0x28d]]
    %v1659 = vstv %s1658
    %v1660 = vmul.f32 %v1656, %v1659
    %v1661 = vmul.f32 %v1657, %v1659
    %v1662 = vadd.f32 %v1654, %v1660
    %v1663 = vadd.f32 %v1655, %v1661
    %v1664 = vld [vmem:[%s841] sm:$0xff]
    %v1665 = vld [vmem:[%s841 + $0x8] sm:$0xff]
    %s1666 = sld [smem:[#allocation9 + $0x28e]]
    %v1667 = vstv %s1666
    %v1668 = vmul.f32 %v1664, %v1667
    %v1669 = vmul.f32 %v1665, %v1667
    %v1670 = vadd.f32 %v1662, %v1668
    %v1671 = vadd.f32 %v1663, %v1669
    %v1672 = vld [vmem:[%s850] sm:$0xff]
    %v1673 = vld [vmem:[%s850 + $0x8] sm:$0xff]
    %s1674 = sld [smem:[#allocation9 + $0x28f]]
    %v1675 = vstv %s1674
    %v1676 = vmul.f32 %v1672, %v1675
    %v1677 = vmul.f32 %v1673, %v1675
    %v1678 = vadd.f32 %v1670, %v1676
    %v1679 = vadd.f32 %v1671, %v1677
    %s1680 = sld [smem:[#allocation10 + $0x283]]
    %v1681 = vstv %s1680
    %v1682 = vadd.f32 %v1678, %v1681
    %v1683 = vadd.f32 %v1679, %v1681
    %vm1684 = vcmp.gt.f32.partialorder %v1682, 0.0
    %vm1685 = vcmp.gt.f32.partialorder %v1683, 0.0
    %v1686 = vmin.f32 %v1682, 0.0
    %v1687 = vmin.f32 %v1683, 0.0
    %v1688 = vmul.f32 %v1686, 1.442695
    %v1689 = vpow.pop %v1688
    %v1690 = vmul.f32 %v1687, 1.442695
    %v1691 = vpow.pop %v1690
    %v1692 = vsub.f32 %v1689, 1.0
    %v1693 = vsub.f32 %v1691, 1.0
    %v1694 = vsel %vm1684, %v1682, %v1692
    %v1695 = vsel %vm1685, %v1683, %v1693
    %v1696 = vsel %vm875, %v1694, 0.0
    %1697 = vadd.xlane.f32.xlu0 %v1696
    %v1698 = vpop.xlane.xlu0 %1697
    %v1699 = vsel %vm875, %v1695, 0.0
    %1700 = vadd.xlane.f32.xlu0 %v1699
    %v1701 = vpop.xlane.xlu0 %1700
    %v1702 = vmul.f32 %v1698, 0.015384615
    %v1703 = vmul.f32 %v1701, 0.015384615
    %v1706 = vlaneseq
    %v1707 = vshrl.u32 %v1706, 7
    %v1708 = vsub.s32 %v887, %v1707
    %v1709 = vrot.slane %v1702, %v1708
    %v1710 = vlaneseq
    %v1711 = vshrl.u32 %v1710, 7
    %v1712 = vsub.s32 %v892, %v1711
    %v1713 = vrot.slane %v1703, %v1712
    %v1714 = vsel %vm897, %v1713, %v1709
    %1716 = vst.msk [vmem:[#allocation11 + $0x5] sm:$0x1] %vm900, %v1714
    %v1717 = vld [vmem:[#allocation2] sm:$0xff]
    %v1718 = vld [vmem:[#allocation2 + $0x8] sm:$0xff]
    %s1719 = sld [smem:[#allocation9 + $0x300]]
    %v1720 = vstv %s1719
    %v1721 = vmul.f32 %v1717, %v1720
    %v1722 = vmul.f32 %v1718, %v1720
    %v1723 = vld [vmem:[%s724] sm:$0xff]
    %v1724 = vld [vmem:[%s724 + $0x8] sm:$0xff]
    %s1725 = sld [smem:[#allocation9 + $0x301]]
    %v1726 = vstv %s1725
    %v1727 = vmul.f32 %v1723, %v1726
    %v1728 = vmul.f32 %v1724, %v1726
    %v1729 = vadd.f32 %v1721, %v1727
    %v1730 = vadd.f32 %v1722, %v1728
    %v1731 = vld [vmem:[%s733] sm:$0xff]
    %v1732 = vld [vmem:[%s733 + $0x8] sm:$0xff]
    %s1733 = sld [smem:[#allocation9 + $0x302]]
    %v1734 = vstv %s1733
    %v1735 = vmul.f32 %v1731, %v1734
    %v1736 = vmul.f32 %v1732, %v1734
    %v1737 = vadd.f32 %v1729, %v1735
    %v1738 = vadd.f32 %v1730, %v1736
    %v1739 = vld [vmem:[%s742] sm:$0xff]
    %v1740 = vld [vmem:[%s742 + $0x8] sm:$0xff]
    %s1741 = sld [smem:[#allocation9 + $0x303]]
    %v1742 = vstv %s1741
    %v1743 = vmul.f32 %v1739, %v1742
    %v1744 = vmul.f32 %v1740, %v1742
    %v1745 = vadd.f32 %v1737, %v1743
    %v1746 = vadd.f32 %v1738, %v1744
    %v1747 = vld [vmem:[%s751] sm:$0xff]
    %v1748 = vld [vmem:[%s751 + $0x8] sm:$0xff]
    %s1749 = sld [smem:[#allocation9 + $0x304]]
    %v1750 = vstv %s1749
    %v1751 = vmul.f32 %v1747, %v1750
    %v1752 = vmul.f32 %v1748, %v1750
    %v1753 = vadd.f32 %v1745, %v1751
    %v1754 = vadd.f32 %v1746, %v1752
    %v1755 = vld [vmem:[%s760] sm:$0xff]
    %v1756 = vld [vmem:[%s760 + $0x8] sm:$0xff]
    %s1757 = sld [smem:[#allocation9 + $0x305]]
    %v1758 = vstv %s1757
    %v1759 = vmul.f32 %v1755, %v1758
    %v1760 = vmul.f32 %v1756, %v1758
    %v1761 = vadd.f32 %v1753, %v1759
    %v1762 = vadd.f32 %v1754, %v1760
    %v1763 = vld [vmem:[%s769] sm:$0xff]
    %v1764 = vld [vmem:[%s769 + $0x8] sm:$0xff]
    %s1765 = sld [smem:[#allocation9 + $0x306]]
    %v1766 = vstv %s1765
    %v1767 = vmul.f32 %v1763, %v1766
    %v1768 = vmul.f32 %v1764, %v1766
    %v1769 = vadd.f32 %v1761, %v1767
    %v1770 = vadd.f32 %v1762, %v1768
    %v1771 = vld [vmem:[%s778] sm:$0xff]
    %v1772 = vld [vmem:[%s778 + $0x8] sm:$0xff]
    %s1773 = sld [smem:[#allocation9 + $0x307]]
    %v1774 = vstv %s1773
    %v1775 = vmul.f32 %v1771, %v1774
    %v1776 = vmul.f32 %v1772, %v1774
    %v1777 = vadd.f32 %v1769, %v1775
    %v1778 = vadd.f32 %v1770, %v1776
    %v1779 = vld [vmem:[%s787] sm:$0xff]
    %v1780 = vld [vmem:[%s787 + $0x8] sm:$0xff]
    %s1781 = sld [smem:[#allocation9 + $0x308]]
    %v1782 = vstv %s1781
    %v1783 = vmul.f32 %v1779, %v1782
    %v1784 = vmul.f32 %v1780, %v1782
    %v1785 = vadd.f32 %v1777, %v1783
    %v1786 = vadd.f32 %v1778, %v1784
    %v1787 = vld [vmem:[%s796] sm:$0xff]
    %v1788 = vld [vmem:[%s796 + $0x8] sm:$0xff]
    %s1789 = sld [smem:[#allocation9 + $0x309]]
    %v1790 = vstv %s1789
    %v1791 = vmul.f32 %v1787, %v1790
    %v1792 = vmul.f32 %v1788, %v1790
    %v1793 = vadd.f32 %v1785, %v1791
    %v1794 = vadd.f32 %v1786, %v1792
    %v1795 = vld [vmem:[%s805] sm:$0xff]
    %v1796 = vld [vmem:[%s805 + $0x8] sm:$0xff]
    %s1797 = sld [smem:[#allocation9 + $0x30a]]
    %v1798 = vstv %s1797
    %v1799 = vmul.f32 %v1795, %v1798
    %v1800 = vmul.f32 %v1796, %v1798
    %v1801 = vadd.f32 %v1793, %v1799
    %v1802 = vadd.f32 %v1794, %v1800
    %v1803 = vld [vmem:[%s814] sm:$0xff]
    %v1804 = vld [vmem:[%s814 + $0x8] sm:$0xff]
    %s1805 = sld [smem:[#allocation9 + $0x30b]]
    %v1806 = vstv %s1805
    %v1807 = vmul.f32 %v1803, %v1806
    %v1808 = vmul.f32 %v1804, %v1806
    %v1809 = vadd.f32 %v1801, %v1807
    %v1810 = vadd.f32 %v1802, %v1808
    %v1811 = vld [vmem:[%s823] sm:$0xff]
    %v1812 = vld [vmem:[%s823 + $0x8] sm:$0xff]
    %s1813 = sld [smem:[#allocation9 + $0x30c]]
    %v1814 = vstv %s1813
    %v1815 = vmul.f32 %v1811, %v1814
    %v1816 = vmul.f32 %v1812, %v1814
    %v1817 = vadd.f32 %v1809, %v1815
    %v1818 = vadd.f32 %v1810, %v1816
    %v1819 = vld [vmem:[%s832] sm:$0xff]
    %v1820 = vld [vmem:[%s832 + $0x8] sm:$0xff]
    %s1821 = sld [smem:[#allocation9 + $0x30d]]
    %v1822 = vstv %s1821
    %v1823 = vmul.f32 %v1819, %v1822
    %v1824 = vmul.f32 %v1820, %v1822
    %v1825 = vadd.f32 %v1817, %v1823
    %v1826 = vadd.f32 %v1818, %v1824
    %v1827 = vld [vmem:[%s841] sm:$0xff]
    %v1828 = vld [vmem:[%s841 + $0x8] sm:$0xff]
    %s1829 = sld [smem:[#allocation9 + $0x30e]]
    %v1830 = vstv %s1829
    %v1831 = vmul.f32 %v1827, %v1830
    %v1832 = vmul.f32 %v1828, %v1830
    %v1833 = vadd.f32 %v1825, %v1831
    %v1834 = vadd.f32 %v1826, %v1832
    %v1835 = vld [vmem:[%s850] sm:$0xff]
    %v1836 = vld [vmem:[%s850 + $0x8] sm:$0xff]
    %s1837 = sld [smem:[#allocation9 + $0x30f]]
    %v1838 = vstv %s1837
    %v1839 = vmul.f32 %v1835, %v1838
    %v1840 = vmul.f32 %v1836, %v1838
    %v1841 = vadd.f32 %v1833, %v1839
    %v1842 = vadd.f32 %v1834, %v1840
    %s1843 = sld [smem:[#allocation10 + $0x303]]
    %v1844 = vstv %s1843
    %v1845 = vadd.f32 %v1841, %v1844
    %v1846 = vadd.f32 %v1842, %v1844
    %vm1847 = vcmp.gt.f32.partialorder %v1845, 0.0
    %vm1848 = vcmp.gt.f32.partialorder %v1846, 0.0
    %v1849 = vmin.f32 %v1845, 0.0
    %v1850 = vmin.f32 %v1846, 0.0
    %v1851 = vmul.f32 %v1849, 1.442695
    %v1852 = vpow.pop %v1851
    %v1853 = vmul.f32 %v1850, 1.442695
    %v1854 = vpow.pop %v1853
    %v1855 = vsub.f32 %v1852, 1.0
    %v1856 = vsub.f32 %v1854, 1.0
    %v1857 = vsel %vm1847, %v1845, %v1855
    %v1858 = vsel %vm1848, %v1846, %v1856
    %v1859 = vsel %vm875, %v1857, 0.0
    %1860 = vadd.xlane.f32.xlu0 %v1859
    %v1861 = vpop.xlane.xlu0 %1860
    %v1862 = vsel %vm875, %v1858, 0.0
    %1863 = vadd.xlane.f32.xlu0 %v1862
    %v1864 = vpop.xlane.xlu0 %1863
    %v1865 = vmul.f32 %v1861, 0.015384615
    %v1866 = vmul.f32 %v1864, 0.015384615
    %v1869 = vlaneseq
    %v1870 = vshrl.u32 %v1869, 7
    %v1871 = vsub.s32 %v887, %v1870
    %v1872 = vrot.slane %v1865, %v1871
    %v1873 = vlaneseq
    %v1874 = vshrl.u32 %v1873, 7
    %v1875 = vsub.s32 %v892, %v1874
    %v1876 = vrot.slane %v1866, %v1875
    %v1877 = vsel %vm897, %v1876, %v1872
    %1879 = vst.msk [vmem:[#allocation11 + $0x6] sm:$0x1] %vm900, %v1877
    %v1880 = vld [vmem:[#allocation2] sm:$0xff]
    %v1881 = vld [vmem:[#allocation2 + $0x8] sm:$0xff]
    %s1882 = sld [smem:[#allocation9 + $0x380]]
    %v1883 = vstv %s1882
    %v1884 = vmul.f32 %v1880, %v1883
    %v1885 = vmul.f32 %v1881, %v1883
    %v1886 = vld [vmem:[%s724] sm:$0xff]
    %v1887 = vld [vmem:[%s724 + $0x8] sm:$0xff]
    %s1888 = sld [smem:[#allocation9 + $0x381]]
    %v1889 = vstv %s1888
    %v1890 = vmul.f32 %v1886, %v1889
    %v1891 = vmul.f32 %v1887, %v1889
    %v1892 = vadd.f32 %v1884, %v1890
    %v1893 = vadd.f32 %v1885, %v1891
    %v1894 = vld [vmem:[%s733] sm:$0xff]
    %v1895 = vld [vmem:[%s733 + $0x8] sm:$0xff]
    %s1896 = sld [smem:[#allocation9 + $0x382]]
    %v1897 = vstv %s1896
    %v1898 = vmul.f32 %v1894, %v1897
    %v1899 = vmul.f32 %v1895, %v1897
    %v1900 = vadd.f32 %v1892, %v1898
    %v1901 = vadd.f32 %v1893, %v1899
    %v1902 = vld [vmem:[%s742] sm:$0xff]
    %v1903 = vld [vmem:[%s742 + $0x8] sm:$0xff]
    %s1904 = sld [smem:[#allocation9 + $0x383]]
    %v1905 = vstv %s1904
    %v1906 = vmul.f32 %v1902, %v1905
    %v1907 = vmul.f32 %v1903, %v1905
    %v1908 = vadd.f32 %v1900, %v1906
    %v1909 = vadd.f32 %v1901, %v1907
    %v1910 = vld [vmem:[%s751] sm:$0xff]
    %v1911 = vld [vmem:[%s751 + $0x8] sm:$0xff]
    %s1912 = sld [smem:[#allocation9 + $0x384]]
    %v1913 = vstv %s1912
    %v1914 = vmul.f32 %v1910, %v1913
    %v1915 = vmul.f32 %v1911, %v1913
    %v1916 = vadd.f32 %v1908, %v1914
    %v1917 = vadd.f32 %v1909, %v1915
    %v1918 = vld [vmem:[%s760] sm:$0xff]
    %v1919 = vld [vmem:[%s760 + $0x8] sm:$0xff]
    %s1920 = sld [smem:[#allocation9 + $0x385]]
    %v1921 = vstv %s1920
    %v1922 = vmul.f32 %v1918, %v1921
    %v1923 = vmul.f32 %v1919, %v1921
    %v1924 = vadd.f32 %v1916, %v1922
    %v1925 = vadd.f32 %v1917, %v1923
    %v1926 = vld [vmem:[%s769] sm:$0xff]
    %v1927 = vld [vmem:[%s769 + $0x8] sm:$0xff]
    %s1928 = sld [smem:[#allocation9 + $0x386]]
    %v1929 = vstv %s1928
    %v1930 = vmul.f32 %v1926, %v1929
    %v1931 = vmul.f32 %v1927, %v1929
    %v1932 = vadd.f32 %v1924, %v1930
    %v1933 = vadd.f32 %v1925, %v1931
    %v1934 = vld [vmem:[%s778] sm:$0xff]
    %v1935 = vld [vmem:[%s778 + $0x8] sm:$0xff]
    %s1936 = sld [smem:[#allocation9 + $0x387]]
    %v1937 = vstv %s1936
    %v1938 = vmul.f32 %v1934, %v1937
    %v1939 = vmul.f32 %v1935, %v1937
    %v1940 = vadd.f32 %v1932, %v1938
    %v1941 = vadd.f32 %v1933, %v1939
    %v1942 = vld [vmem:[%s787] sm:$0xff]
    %v1943 = vld [vmem:[%s787 + $0x8] sm:$0xff]
    %s1944 = sld [smem:[#allocation9 + $0x388]]
    %v1945 = vstv %s1944
    %v1946 = vmul.f32 %v1942, %v1945
    %v1947 = vmul.f32 %v1943, %v1945
    %v1948 = vadd.f32 %v1940, %v1946
    %v1949 = vadd.f32 %v1941, %v1947
    %v1950 = vld [vmem:[%s796] sm:$0xff]
    %v1951 = vld [vmem:[%s796 + $0x8] sm:$0xff]
    %s1952 = sld [smem:[#allocation9 + $0x389]]
    %v1953 = vstv %s1952
    %v1954 = vmul.f32 %v1950, %v1953
    %v1955 = vmul.f32 %v1951, %v1953
    %v1956 = vadd.f32 %v1948, %v1954
    %v1957 = vadd.f32 %v1949, %v1955
    %v1958 = vld [vmem:[%s805] sm:$0xff]
    %v1959 = vld [vmem:[%s805 + $0x8] sm:$0xff]
    %s1960 = sld [smem:[#allocation9 + $0x38a]]
    %v1961 = vstv %s1960
    %v1962 = vmul.f32 %v1958, %v1961
    %v1963 = vmul.f32 %v1959, %v1961
    %v1964 = vadd.f32 %v1956, %v1962
    %v1965 = vadd.f32 %v1957, %v1963
    %v1966 = vld [vmem:[%s814] sm:$0xff]
    %v1967 = vld [vmem:[%s814 + $0x8] sm:$0xff]
    %s1968 = sld [smem:[#allocation9 + $0x38b]]
    %v1969 = vstv %s1968
    %v1970 = vmul.f32 %v1966, %v1969
    %v1971 = vmul.f32 %v1967, %v1969
    %v1972 = vadd.f32 %v1964, %v1970
    %v1973 = vadd.f32 %v1965, %v1971
    %v1974 = vld [vmem:[%s823] sm:$0xff]
    %v1975 = vld [vmem:[%s823 + $0x8] sm:$0xff]
    %s1976 = sld [smem:[#allocation9 + $0x38c]]
    %v1977 = vstv %s1976
    %v1978 = vmul.f32 %v1974, %v1977
    %v1979 = vmul.f32 %v1975, %v1977
    %v1980 = vadd.f32 %v1972, %v1978
    %v1981 = vadd.f32 %v1973, %v1979
    %v1982 = vld [vmem:[%s832] sm:$0xff]
    %v1983 = vld [vmem:[%s832 + $0x8] sm:$0xff]
    %s1984 = sld [smem:[#allocation9 + $0x38d]]
    %v1985 = vstv %s1984
    %v1986 = vmul.f32 %v1982, %v1985
    %v1987 = vmul.f32 %v1983, %v1985
    %v1988 = vadd.f32 %v1980, %v1986
    %v1989 = vadd.f32 %v1981, %v1987
    %v1990 = vld [vmem:[%s841] sm:$0xff]
    %v1991 = vld [vmem:[%s841 + $0x8] sm:$0xff]
    %s1992 = sld [smem:[#allocation9 + $0x38e]]
    %v1993 = vstv %s1992
    %v1994 = vmul.f32 %v1990, %v1993
    %v1995 = vmul.f32 %v1991, %v1993
    %v1996 = vadd.f32 %v1988, %v1994
    %v1997 = vadd.f32 %v1989, %v1995
    %v1998 = vld [vmem:[%s850] sm:$0xff]
    %v1999 = vld [vmem:[%s850 + $0x8] sm:$0xff]
    %s2000 = sld [smem:[#allocation9 + $0x38f]]
    %v2001 = vstv %s2000
    %v2002 = vmul.f32 %v1998, %v2001
    %v2003 = vmul.f32 %v1999, %v2001
    %v2004 = vadd.f32 %v1996, %v2002
    %v2005 = vadd.f32 %v1997, %v2003
    %s2006 = sld [smem:[#allocation10 + $0x383]]
    %v2007 = vstv %s2006
    %v2008 = vadd.f32 %v2004, %v2007
    %v2009 = vadd.f32 %v2005, %v2007
    %vm2010 = vcmp.gt.f32.partialorder %v2008, 0.0
    %vm2011 = vcmp.gt.f32.partialorder %v2009, 0.0
    %v2012 = vmin.f32 %v2008, 0.0
    %v2013 = vmin.f32 %v2009, 0.0
    %v2014 = vmul.f32 %v2012, 1.442695
    %v2015 = vpow.pop %v2014
    %v2016 = vmul.f32 %v2013, 1.442695
    %v2017 = vpow.pop %v2016
    %v2018 = vsub.f32 %v2015, 1.0
    %v2019 = vsub.f32 %v2017, 1.0
    %v2020 = vsel %vm2010, %v2008, %v2018
    %v2021 = vsel %vm2011, %v2009, %v2019
    %v2022 = vsel %vm875, %v2020, 0.0
    %2023 = vadd.xlane.f32.xlu0 %v2022
    %v2024 = vpop.xlane.xlu0 %2023
    %v2025 = vsel %vm875, %v2021, 0.0
    %2026 = vadd.xlane.f32.xlu0 %v2025
    %v2027 = vpop.xlane.xlu0 %2026
    %v2028 = vmul.f32 %v2024, 0.015384615
    %v2029 = vmul.f32 %v2027, 0.015384615
    %v2032 = vlaneseq
    %v2033 = vshrl.u32 %v2032, 7
    %v2034 = vsub.s32 %v887, %v2033
    %v2035 = vrot.slane %v2028, %v2034
    %v2036 = vlaneseq
    %v2037 = vshrl.u32 %v2036, 7
    %v2038 = vsub.s32 %v892, %v2037
    %v2039 = vrot.slane %v2029, %v2038
    %v2040 = vsel %vm897, %v2039, %v2035
    %2042 = vst.msk [vmem:[#allocation11 + $0x7] sm:$0x1] %vm900, %v2040
    %v2043 = vld [vmem:[#allocation2] sm:$0xff]
    %v2044 = vld [vmem:[#allocation2 + $0x8] sm:$0xff]
    %s2045 = sld [smem:[#allocation9 + $0x400]]
    %v2046 = vstv %s2045
    %v2047 = vmul.f32 %v2043, %v2046
    %v2048 = vmul.f32 %v2044, %v2046
    %v2049 = vld [vmem:[%s724] sm:$0xff]
    %v2050 = vld [vmem:[%s724 + $0x8] sm:$0xff]
    %s2051 = sld [smem:[#allocation9 + $0x401]]
    %v2052 = vstv %s2051
    %v2053 = vmul.f32 %v2049, %v2052
    %v2054 = vmul.f32 %v2050, %v2052
    %v2055 = vadd.f32 %v2047, %v2053
    %v2056 = vadd.f32 %v2048, %v2054
    %v2057 = vld [vmem:[%s733] sm:$0xff]
    %v2058 = vld [vmem:[%s733 + $0x8] sm:$0xff]
    %s2059 = sld [smem:[#allocation9 + $0x402]]
    %v2060 = vstv %s2059
    %v2061 = vmul.f32 %v2057, %v2060
    %v2062 = vmul.f32 %v2058, %v2060
    %v2063 = vadd.f32 %v2055, %v2061
    %v2064 = vadd.f32 %v2056, %v2062
    %v2065 = vld [vmem:[%s742] sm:$0xff]
    %v2066 = vld [vmem:[%s742 + $0x8] sm:$0xff]
    %s2067 = sld [smem:[#allocation9 + $0x403]]
    %v2068 = vstv %s2067
    %v2069 = vmul.f32 %v2065, %v2068
    %v2070 = vmul.f32 %v2066, %v2068
    %v2071 = vadd.f32 %v2063, %v2069
    %v2072 = vadd.f32 %v2064, %v2070
    %v2073 = vld [vmem:[%s751] sm:$0xff]
    %v2074 = vld [vmem:[%s751 + $0x8] sm:$0xff]
    %s2075 = sld [smem:[#allocation9 + $0x404]]
    %v2076 = vstv %s2075
    %v2077 = vmul.f32 %v2073, %v2076
    %v2078 = vmul.f32 %v2074, %v2076
    %v2079 = vadd.f32 %v2071, %v2077
    %v2080 = vadd.f32 %v2072, %v2078
    %v2081 = vld [vmem:[%s760] sm:$0xff]
    %v2082 = vld [vmem:[%s760 + $0x8] sm:$0xff]
    %s2083 = sld [smem:[#allocation9 + $0x405]]
    %v2084 = vstv %s2083
    %v2085 = vmul.f32 %v2081, %v2084
    %v2086 = vmul.f32 %v2082, %v2084
    %v2087 = vadd.f32 %v2079, %v2085
    %v2088 = vadd.f32 %v2080, %v2086
    %v2089 = vld [vmem:[%s769] sm:$0xff]
    %v2090 = vld [vmem:[%s769 + $0x8] sm:$0xff]
    %s2091 = sld [smem:[#allocation9 + $0x406]]
    %v2092 = vstv %s2091
    %v2093 = vmul.f32 %v2089, %v2092
    %v2094 = vmul.f32 %v2090, %v2092
    %v2095 = vadd.f32 %v2087, %v2093
    %v2096 = vadd.f32 %v2088, %v2094
    %v2097 = vld [vmem:[%s778] sm:$0xff]
    %v2098 = vld [vmem:[%s778 + $0x8] sm:$0xff]
    %s2099 = sld [smem:[#allocation9 + $0x407]]
    %v2100 = vstv %s2099
    %v2101 = vmul.f32 %v2097, %v2100
    %v2102 = vmul.f32 %v2098, %v2100
    %v2103 = vadd.f32 %v2095, %v2101
    %v2104 = vadd.f32 %v2096, %v2102
    %v2105 = vld [vmem:[%s787] sm:$0xff]
    %v2106 = vld [vmem:[%s787 + $0x8] sm:$0xff]
    %s2107 = sld [smem:[#allocation9 + $0x408]]
    %v2108 = vstv %s2107
    %v2109 = vmul.f32 %v2105, %v2108
    %v2110 = vmul.f32 %v2106, %v2108
    %v2111 = vadd.f32 %v2103, %v2109
    %v2112 = vadd.f32 %v2104, %v2110
    %v2113 = vld [vmem:[%s796] sm:$0xff]
    %v2114 = vld [vmem:[%s796 + $0x8] sm:$0xff]
    %s2115 = sld [smem:[#allocation9 + $0x409]]
    %v2116 = vstv %s2115
    %v2117 = vmul.f32 %v2113, %v2116
    %v2118 = vmul.f32 %v2114, %v2116
    %v2119 = vadd.f32 %v2111, %v2117
    %v2120 = vadd.f32 %v2112, %v2118
    %v2121 = vld [vmem:[%s805] sm:$0xff]
    %v2122 = vld [vmem:[%s805 + $0x8] sm:$0xff]
    %s2123 = sld [smem:[#allocation9 + $0x40a]]
    %v2124 = vstv %s2123
    %v2125 = vmul.f32 %v2121, %v2124
    %v2126 = vmul.f32 %v2122, %v2124
    %v2127 = vadd.f32 %v2119, %v2125
    %v2128 = vadd.f32 %v2120, %v2126
    %v2129 = vld [vmem:[%s814] sm:$0xff]
    %v2130 = vld [vmem:[%s814 + $0x8] sm:$0xff]
    %s2131 = sld [smem:[#allocation9 + $0x40b]]
    %v2132 = vstv %s2131
    %v2133 = vmul.f32 %v2129, %v2132
    %v2134 = vmul.f32 %v2130, %v2132
    %v2135 = vadd.f32 %v2127, %v2133
    %v2136 = vadd.f32 %v2128, %v2134
    %v2137 = vld [vmem:[%s823] sm:$0xff]
    %v2138 = vld [vmem:[%s823 + $0x8] sm:$0xff]
    %s2139 = sld [smem:[#allocation9 + $0x40c]]
    %v2140 = vstv %s2139
    %v2141 = vmul.f32 %v2137, %v2140
    %v2142 = vmul.f32 %v2138, %v2140
    %v2143 = vadd.f32 %v2135, %v2141
    %v2144 = vadd.f32 %v2136, %v2142
    %v2145 = vld [vmem:[%s832] sm:$0xff]
    %v2146 = vld [vmem:[%s832 + $0x8] sm:$0xff]
    %s2147 = sld [smem:[#allocation9 + $0x40d]]
    %v2148 = vstv %s2147
    %v2149 = vmul.f32 %v2145, %v2148
    %v2150 = vmul.f32 %v2146, %v2148
    %v2151 = vadd.f32 %v2143, %v2149
    %v2152 = vadd.f32 %v2144, %v2150
    %v2153 = vld [vmem:[%s841] sm:$0xff]
    %v2154 = vld [vmem:[%s841 + $0x8] sm:$0xff]
    %s2155 = sld [smem:[#allocation9 + $0x40e]]
    %v2156 = vstv %s2155
    %v2157 = vmul.f32 %v2153, %v2156
    %v2158 = vmul.f32 %v2154, %v2156
    %v2159 = vadd.f32 %v2151, %v2157
    %v2160 = vadd.f32 %v2152, %v2158
    %v2161 = vld [vmem:[%s850] sm:$0xff]
    %v2162 = vld [vmem:[%s850 + $0x8] sm:$0xff]
    %s2163 = sld [smem:[#allocation9 + $0x40f]]
    %v2164 = vstv %s2163
    %v2165 = vmul.f32 %v2161, %v2164
    %v2166 = vmul.f32 %v2162, %v2164
    %v2167 = vadd.f32 %v2159, %v2165
    %v2168 = vadd.f32 %v2160, %v2166
    %s2169 = sld [smem:[#allocation10 + $0x403]]
    %v2170 = vstv %s2169
    %v2171 = vadd.f32 %v2167, %v2170
    %v2172 = vadd.f32 %v2168, %v2170
    %vm2173 = vcmp.gt.f32.partialorder %v2171, 0.0
    %vm2174 = vcmp.gt.f32.partialorder %v2172, 0.0
    %v2175 = vmin.f32 %v2171, 0.0
    %v2176 = vmin.f32 %v2172, 0.0
    %v2177 = vmul.f32 %v2175, 1.442695
    %v2178 = vpow.pop %v2177
    %v2179 = vmul.f32 %v2176, 1.442695
    %v2180 = vpow.pop %v2179
    %v2181 = vsub.f32 %v2178, 1.0
    %v2182 = vsub.f32 %v2180, 1.0
    %v2183 = vsel %vm2173, %v2171, %v2181
    %v2184 = vsel %vm2174, %v2172, %v2182
    %v2185 = vsel %vm875, %v2183, 0.0
    %2186 = vadd.xlane.f32.xlu0 %v2185
    %v2187 = vpop.xlane.xlu0 %2186
    %v2188 = vsel %vm875, %v2184, 0.0
    %2189 = vadd.xlane.f32.xlu0 %v2188
    %v2190 = vpop.xlane.xlu0 %2189
    %v2191 = vmul.f32 %v2187, 0.015384615
    %v2192 = vmul.f32 %v2190, 0.015384615
    %v2195 = vlaneseq
    %v2196 = vshrl.u32 %v2195, 7
    %v2197 = vsub.s32 %v887, %v2196
    %v2198 = vrot.slane %v2191, %v2197
    %v2199 = vlaneseq
    %v2200 = vshrl.u32 %v2199, 7
    %v2201 = vsub.s32 %v892, %v2200
    %v2202 = vrot.slane %v2192, %v2201
    %v2203 = vsel %vm897, %v2202, %v2198
    %2205 = vst.msk [vmem:[#allocation11 + $0x8] sm:$0x1] %vm900, %v2203
    %v2206 = vld [vmem:[#allocation2] sm:$0xff]
    %v2207 = vld [vmem:[#allocation2 + $0x8] sm:$0xff]
    %s2208 = sld [smem:[#allocation9 + $0x480]]
    %v2209 = vstv %s2208
    %v2210 = vmul.f32 %v2206, %v2209
    %v2211 = vmul.f32 %v2207, %v2209
    %v2212 = vld [vmem:[%s724] sm:$0xff]
    %v2213 = vld [vmem:[%s724 + $0x8] sm:$0xff]
    %s2214 = sld [smem:[#allocation9 + $0x481]]
    %v2215 = vstv %s2214
    %v2216 = vmul.f32 %v2212, %v2215
    %v2217 = vmul.f32 %v2213, %v2215
    %v2218 = vadd.f32 %v2210, %v2216
    %v2219 = vadd.f32 %v2211, %v2217
    %v2220 = vld [vmem:[%s733] sm:$0xff]
    %v2221 = vld [vmem:[%s733 + $0x8] sm:$0xff]
    %s2222 = sld [smem:[#allocation9 + $0x482]]
    %v2223 = vstv %s2222
    %v2224 = vmul.f32 %v2220, %v2223
    %v2225 = vmul.f32 %v2221, %v2223
    %v2226 = vadd.f32 %v2218, %v2224
    %v2227 = vadd.f32 %v2219, %v2225
    %v2228 = vld [vmem:[%s742] sm:$0xff]
    %v2229 = vld [vmem:[%s742 + $0x8] sm:$0xff]
    %s2230 = sld [smem:[#allocation9 + $0x483]]
    %v2231 = vstv %s2230
    %v2232 = vmul.f32 %v2228, %v2231
    %v2233 = vmul.f32 %v2229, %v2231
    %v2234 = vadd.f32 %v2226, %v2232
    %v2235 = vadd.f32 %v2227, %v2233
    %v2236 = vld [vmem:[%s751] sm:$0xff]
    %v2237 = vld [vmem:[%s751 + $0x8] sm:$0xff]
    %s2238 = sld [smem:[#allocation9 + $0x484]]
    %v2239 = vstv %s2238
    %v2240 = vmul.f32 %v2236, %v2239
    %v2241 = vmul.f32 %v2237, %v2239
    %v2242 = vadd.f32 %v2234, %v2240
    %v2243 = vadd.f32 %v2235, %v2241
    %v2244 = vld [vmem:[%s760] sm:$0xff]
    %v2245 = vld [vmem:[%s760 + $0x8] sm:$0xff]
    %s2246 = sld [smem:[#allocation9 + $0x485]]
    %v2247 = vstv %s2246
    %v2248 = vmul.f32 %v2244, %v2247
    %v2249 = vmul.f32 %v2245, %v2247
    %v2250 = vadd.f32 %v2242, %v2248
    %v2251 = vadd.f32 %v2243, %v2249
    %v2252 = vld [vmem:[%s769] sm:$0xff]
    %v2253 = vld [vmem:[%s769 + $0x8] sm:$0xff]
    %s2254 = sld [smem:[#allocation9 + $0x486]]
    %v2255 = vstv %s2254
    %v2256 = vmul.f32 %v2252, %v2255
    %v2257 = vmul.f32 %v2253, %v2255
    %v2258 = vadd.f32 %v2250, %v2256
    %v2259 = vadd.f32 %v2251, %v2257
    %v2260 = vld [vmem:[%s778] sm:$0xff]
    %v2261 = vld [vmem:[%s778 + $0x8] sm:$0xff]
    %s2262 = sld [smem:[#allocation9 + $0x487]]
    %v2263 = vstv %s2262
    %v2264 = vmul.f32 %v2260, %v2263
    %v2265 = vmul.f32 %v2261, %v2263
    %v2266 = vadd.f32 %v2258, %v2264
    %v2267 = vadd.f32 %v2259, %v2265
    %v2268 = vld [vmem:[%s787] sm:$0xff]
    %v2269 = vld [vmem:[%s787 + $0x8] sm:$0xff]
    %s2270 = sld [smem:[#allocation9 + $0x488]]
    %v2271 = vstv %s2270
    %v2272 = vmul.f32 %v2268, %v2271
    %v2273 = vmul.f32 %v2269, %v2271
    %v2274 = vadd.f32 %v2266, %v2272
    %v2275 = vadd.f32 %v2267, %v2273
    %v2276 = vld [vmem:[%s796] sm:$0xff]
    %v2277 = vld [vmem:[%s796 + $0x8] sm:$0xff]
    %s2278 = sld [smem:[#allocation9 + $0x489]]
    %v2279 = vstv %s2278
    %v2280 = vmul.f32 %v2276, %v2279
    %v2281 = vmul.f32 %v2277, %v2279
    %v2282 = vadd.f32 %v2274, %v2280
    %v2283 = vadd.f32 %v2275, %v2281
    %v2284 = vld [vmem:[%s805] sm:$0xff]
    %v2285 = vld [vmem:[%s805 + $0x8] sm:$0xff]
    %s2286 = sld [smem:[#allocation9 + $0x48a]]
    %v2287 = vstv %s2286
    %v2288 = vmul.f32 %v2284, %v2287
    %v2289 = vmul.f32 %v2285, %v2287
    %v2290 = vadd.f32 %v2282, %v2288
    %v2291 = vadd.f32 %v2283, %v2289
    %v2292 = vld [vmem:[%s814] sm:$0xff]
    %v2293 = vld [vmem:[%s814 + $0x8] sm:$0xff]
    %s2294 = sld [smem:[#allocation9 + $0x48b]]
    %v2295 = vstv %s2294
    %v2296 = vmul.f32 %v2292, %v2295
    %v2297 = vmul.f32 %v2293, %v2295
    %v2298 = vadd.f32 %v2290, %v2296
    %v2299 = vadd.f32 %v2291, %v2297
    %v2300 = vld [vmem:[%s823] sm:$0xff]
    %v2301 = vld [vmem:[%s823 + $0x8] sm:$0xff]
    %s2302 = sld [smem:[#allocation9 + $0x48c]]
    %v2303 = vstv %s2302
    %v2304 = vmul.f32 %v2300, %v2303
    %v2305 = vmul.f32 %v2301, %v2303
    %v2306 = vadd.f32 %v2298, %v2304
    %v2307 = vadd.f32 %v2299, %v2305
    %v2308 = vld [vmem:[%s832] sm:$0xff]
    %v2309 = vld [vmem:[%s832 + $0x8] sm:$0xff]
    %s2310 = sld [smem:[#allocation9 + $0x48d]]
    %v2311 = vstv %s2310
    %v2312 = vmul.f32 %v2308, %v2311
    %v2313 = vmul.f32 %v2309, %v2311
    %v2314 = vadd.f32 %v2306, %v2312
    %v2315 = vadd.f32 %v2307, %v2313
    %v2316 = vld [vmem:[%s841] sm:$0xff]
    %v2317 = vld [vmem:[%s841 + $0x8] sm:$0xff]
    %s2318 = sld [smem:[#allocation9 + $0x48e]]
    %v2319 = vstv %s2318
    %v2320 = vmul.f32 %v2316, %v2319
    %v2321 = vmul.f32 %v2317, %v2319
    %v2322 = vadd.f32 %v2314, %v2320
    %v2323 = vadd.f32 %v2315, %v2321
    %v2324 = vld [vmem:[%s850] sm:$0xff]
    %v2325 = vld [vmem:[%s850 + $0x8] sm:$0xff]
    %s2326 = sld [smem:[#allocation9 + $0x48f]]
    %v2327 = vstv %s2326
    %v2328 = vmul.f32 %v2324, %v2327
    %v2329 = vmul.f32 %v2325, %v2327
    %v2330 = vadd.f32 %v2322, %v2328
    %v2331 = vadd.f32 %v2323, %v2329
    %s2332 = sld [smem:[#allocation10 + $0x483]]
    %v2333 = vstv %s2332
    %v2334 = vadd.f32 %v2330, %v2333
    %v2335 = vadd.f32 %v2331, %v2333
    %vm2336 = vcmp.gt.f32.partialorder %v2334, 0.0
    %vm2337 = vcmp.gt.f32.partialorder %v2335, 0.0
    %v2338 = vmin.f32 %v2334, 0.0
    %v2339 = vmin.f32 %v2335, 0.0
    %v2340 = vmul.f32 %v2338, 1.442695
    %v2341 = vpow.pop %v2340
    %v2342 = vmul.f32 %v2339, 1.442695
    %v2343 = vpow.pop %v2342
    %v2344 = vsub.f32 %v2341, 1.0
    %v2345 = vsub.f32 %v2343, 1.0
    %v2346 = vsel %vm2336, %v2334, %v2344
    %v2347 = vsel %vm2337, %v2335, %v2345
    %v2348 = vsel %vm875, %v2346, 0.0
    %2349 = vadd.xlane.f32.xlu0 %v2348
    %v2350 = vpop.xlane.xlu0 %2349
    %v2351 = vsel %vm875, %v2347, 0.0
    %2352 = vadd.xlane.f32.xlu0 %v2351
    %v2353 = vpop.xlane.xlu0 %2352
    %v2354 = vmul.f32 %v2350, 0.015384615
    %v2355 = vmul.f32 %v2353, 0.015384615
    %v2358 = vlaneseq
    %v2359 = vshrl.u32 %v2358, 7
    %v2360 = vsub.s32 %v887, %v2359
    %v2361 = vrot.slane %v2354, %v2360
    %v2362 = vlaneseq
    %v2363 = vshrl.u32 %v2362, 7
    %v2364 = vsub.s32 %v892, %v2363
    %v2365 = vrot.slane %v2355, %v2364
    %v2366 = vsel %vm897, %v2365, %v2361
    %2368 = vst.msk [vmem:[#allocation11 + $0x9] sm:$0x1] %vm900, %v2366
    %v2369 = vld [vmem:[#allocation2] sm:$0xff]
    %v2370 = vld [vmem:[#allocation2 + $0x8] sm:$0xff]
    %s2371 = sld [smem:[#allocation9 + $0x500]]
    %v2372 = vstv %s2371
    %v2373 = vmul.f32 %v2369, %v2372
    %v2374 = vmul.f32 %v2370, %v2372
    %v2375 = vld [vmem:[%s724] sm:$0xff]
    %v2376 = vld [vmem:[%s724 + $0x8] sm:$0xff]
    %s2377 = sld [smem:[#allocation9 + $0x501]]
    %v2378 = vstv %s2377
    %v2379 = vmul.f32 %v2375, %v2378
    %v2380 = vmul.f32 %v2376, %v2378
    %v2381 = vadd.f32 %v2373, %v2379
    %v2382 = vadd.f32 %v2374, %v2380
    %v2383 = vld [vmem:[%s733] sm:$0xff]
    %v2384 = vld [vmem:[%s733 + $0x8] sm:$0xff]
    %s2385 = sld [smem:[#allocation9 + $0x502]]
    %v2386 = vstv %s2385
    %v2387 = vmul.f32 %v2383, %v2386
    %v2388 = vmul.f32 %v2384, %v2386
    %v2389 = vadd.f32 %v2381, %v2387
    %v2390 = vadd.f32 %v2382, %v2388
    %v2391 = vld [vmem:[%s742] sm:$0xff]
    %v2392 = vld [vmem:[%s742 + $0x8] sm:$0xff]
    %s2393 = sld [smem:[#allocation9 + $0x503]]
    %v2394 = vstv %s2393
    %v2395 = vmul.f32 %v2391, %v2394
    %v2396 = vmul.f32 %v2392, %v2394
    %v2397 = vadd.f32 %v2389, %v2395
    %v2398 = vadd.f32 %v2390, %v2396
    %v2399 = vld [vmem:[%s751] sm:$0xff]
    %v2400 = vld [vmem:[%s751 + $0x8] sm:$0xff]
    %s2401 = sld [smem:[#allocation9 + $0x504]]
    %v2402 = vstv %s2401
    %v2403 = vmul.f32 %v2399, %v2402
    %v2404 = vmul.f32 %v2400, %v2402
    %v2405 = vadd.f32 %v2397, %v2403
    %v2406 = vadd.f32 %v2398, %v2404
    %v2407 = vld [vmem:[%s760] sm:$0xff]
    %v2408 = vld [vmem:[%s760 + $0x8] sm:$0xff]
    %s2409 = sld [smem:[#allocation9 + $0x505]]
    %v2410 = vstv %s2409
    %v2411 = vmul.f32 %v2407, %v2410
    %v2412 = vmul.f32 %v2408, %v2410
    %v2413 = vadd.f32 %v2405, %v2411
    %v2414 = vadd.f32 %v2406, %v2412
    %v2415 = vld [vmem:[%s769] sm:$0xff]
    %v2416 = vld [vmem:[%s769 + $0x8] sm:$0xff]
    %s2417 = sld [smem:[#allocation9 + $0x506]]
    %v2418 = vstv %s2417
    %v2419 = vmul.f32 %v2415, %v2418
    %v2420 = vmul.f32 %v2416, %v2418
    %v2421 = vadd.f32 %v2413, %v2419
    %v2422 = vadd.f32 %v2414, %v2420
    %v2423 = vld [vmem:[%s778] sm:$0xff]
    %v2424 = vld [vmem:[%s778 + $0x8] sm:$0xff]
    %s2425 = sld [smem:[#allocation9 + $0x507]]
    %v2426 = vstv %s2425
    %v2427 = vmul.f32 %v2423, %v2426
    %v2428 = vmul.f32 %v2424, %v2426
    %v2429 = vadd.f32 %v2421, %v2427
    %v2430 = vadd.f32 %v2422, %v2428
    %v2431 = vld [vmem:[%s787] sm:$0xff]
    %v2432 = vld [vmem:[%s787 + $0x8] sm:$0xff]
    %s2433 = sld [smem:[#allocation9 + $0x508]]
    %v2434 = vstv %s2433
    %v2435 = vmul.f32 %v2431, %v2434
    %v2436 = vmul.f32 %v2432, %v2434
    %v2437 = vadd.f32 %v2429, %v2435
    %v2438 = vadd.f32 %v2430, %v2436
    %v2439 = vld [vmem:[%s796] sm:$0xff]
    %v2440 = vld [vmem:[%s796 + $0x8] sm:$0xff]
    %s2441 = sld [smem:[#allocation9 + $0x509]]
    %v2442 = vstv %s2441
    %v2443 = vmul.f32 %v2439, %v2442
    %v2444 = vmul.f32 %v2440, %v2442
    %v2445 = vadd.f32 %v2437, %v2443
    %v2446 = vadd.f32 %v2438, %v2444
    %v2447 = vld [vmem:[%s805] sm:$0xff]
    %v2448 = vld [vmem:[%s805 + $0x8] sm:$0xff]
    %s2449 = sld [smem:[#allocation9 + $0x50a]]
    %v2450 = vstv %s2449
    %v2451 = vmul.f32 %v2447, %v2450
    %v2452 = vmul.f32 %v2448, %v2450
    %v2453 = vadd.f32 %v2445, %v2451
    %v2454 = vadd.f32 %v2446, %v2452
    %v2455 = vld [vmem:[%s814] sm:$0xff]
    %v2456 = vld [vmem:[%s814 + $0x8] sm:$0xff]
    %s2457 = sld [smem:[#allocation9 + $0x50b]]
    %v2458 = vstv %s2457
    %v2459 = vmul.f32 %v2455, %v2458
    %v2460 = vmul.f32 %v2456, %v2458
    %v2461 = vadd.f32 %v2453, %v2459
    %v2462 = vadd.f32 %v2454, %v2460
    %v2463 = vld [vmem:[%s823] sm:$0xff]
    %v2464 = vld [vmem:[%s823 + $0x8] sm:$0xff]
    %s2465 = sld [smem:[#allocation9 + $0x50c]]
    %v2466 = vstv %s2465
    %v2467 = vmul.f32 %v2463, %v2466
    %v2468 = vmul.f32 %v2464, %v2466
    %v2469 = vadd.f32 %v2461, %v2467
    %v2470 = vadd.f32 %v2462, %v2468
    %v2471 = vld [vmem:[%s832] sm:$0xff]
    %v2472 = vld [vmem:[%s832 + $0x8] sm:$0xff]
    %s2473 = sld [smem:[#allocation9 + $0x50d]]
    %v2474 = vstv %s2473
    %v2475 = vmul.f32 %v2471, %v2474
    %v2476 = vmul.f32 %v2472, %v2474
    %v2477 = vadd.f32 %v2469, %v2475
    %v2478 = vadd.f32 %v2470, %v2476
    %v2479 = vld [vmem:[%s841] sm:$0xff]
    %v2480 = vld [vmem:[%s841 + $0x8] sm:$0xff]
    %s2481 = sld [smem:[#allocation9 + $0x50e]]
    %v2482 = vstv %s2481
    %v2483 = vmul.f32 %v2479, %v2482
    %v2484 = vmul.f32 %v2480, %v2482
    %v2485 = vadd.f32 %v2477, %v2483
    %v2486 = vadd.f32 %v2478, %v2484
    %v2487 = vld [vmem:[%s850] sm:$0xff]
    %v2488 = vld [vmem:[%s850 + $0x8] sm:$0xff]
    %s2489 = sld [smem:[#allocation9 + $0x50f]]
    %v2490 = vstv %s2489
    %v2491 = vmul.f32 %v2487, %v2490
    %v2492 = vmul.f32 %v2488, %v2490
    %v2493 = vadd.f32 %v2485, %v2491
    %v2494 = vadd.f32 %v2486, %v2492
    %s2495 = sld [smem:[#allocation10 + $0x503]]
    %v2496 = vstv %s2495
    %v2497 = vadd.f32 %v2493, %v2496
    %v2498 = vadd.f32 %v2494, %v2496
    %vm2499 = vcmp.gt.f32.partialorder %v2497, 0.0
    %vm2500 = vcmp.gt.f32.partialorder %v2498, 0.0
    %v2501 = vmin.f32 %v2497, 0.0
    %v2502 = vmin.f32 %v2498, 0.0
    %v2503 = vmul.f32 %v2501, 1.442695
    %v2504 = vpow.pop %v2503
    %v2505 = vmul.f32 %v2502, 1.442695
    %v2506 = vpow.pop %v2505
    %v2507 = vsub.f32 %v2504, 1.0
    %v2508 = vsub.f32 %v2506, 1.0
    %v2509 = vsel %vm2499, %v2497, %v2507
    %v2510 = vsel %vm2500, %v2498, %v2508
    %v2511 = vsel %vm875, %v2509, 0.0
    %2512 = vadd.xlane.f32.xlu0 %v2511
    %v2513 = vpop.xlane.xlu0 %2512
    %v2514 = vsel %vm875, %v2510, 0.0
    %2515 = vadd.xlane.f32.xlu0 %v2514
    %v2516 = vpop.xlane.xlu0 %2515
    %v2517 = vmul.f32 %v2513, 0.015384615
    %v2518 = vmul.f32 %v2516, 0.015384615
    %v2521 = vlaneseq
    %v2522 = vshrl.u32 %v2521, 7
    %v2523 = vsub.s32 %v887, %v2522
    %v2524 = vrot.slane %v2517, %v2523
    %v2525 = vlaneseq
    %v2526 = vshrl.u32 %v2525, 7
    %v2527 = vsub.s32 %v892, %v2526
    %v2528 = vrot.slane %v2518, %v2527
    %v2529 = vsel %vm897, %v2528, %v2524
    %2531 = vst.msk [vmem:[#allocation11 + $0xa] sm:$0x1] %vm900, %v2529
    %v2532 = vld [vmem:[#allocation2] sm:$0xff]
    %v2533 = vld [vmem:[#allocation2 + $0x8] sm:$0xff]
    %s2534 = sld [smem:[#allocation9 + $0x580]]
    %v2535 = vstv %s2534
    %v2536 = vmul.f32 %v2532, %v2535
    %v2537 = vmul.f32 %v2533, %v2535
    %v2538 = vld [vmem:[%s724] sm:$0xff]
    %v2539 = vld [vmem:[%s724 + $0x8] sm:$0xff]
    %s2540 = sld [smem:[#allocation9 + $0x581]]
    %v2541 = vstv %s2540
    %v2542 = vmul.f32 %v2538, %v2541
    %v2543 = vmul.f32 %v2539, %v2541
    %v2544 = vadd.f32 %v2536, %v2542
    %v2545 = vadd.f32 %v2537, %v2543
    %v2546 = vld [vmem:[%s733] sm:$0xff]
    %v2547 = vld [vmem:[%s733 + $0x8] sm:$0xff]
    %s2548 = sld [smem:[#allocation9 + $0x582]]
    %v2549 = vstv %s2548
    %v2550 = vmul.f32 %v2546, %v2549
    %v2551 = vmul.f32 %v2547, %v2549
    %v2552 = vadd.f32 %v2544, %v2550
    %v2553 = vadd.f32 %v2545, %v2551
    %v2554 = vld [vmem:[%s742] sm:$0xff]
    %v2555 = vld [vmem:[%s742 + $0x8] sm:$0xff]
    %s2556 = sld [smem:[#allocation9 + $0x583]]
    %v2557 = vstv %s2556
    %v2558 = vmul.f32 %v2554, %v2557
    %v2559 = vmul.f32 %v2555, %v2557
    %v2560 = vadd.f32 %v2552, %v2558
    %v2561 = vadd.f32 %v2553, %v2559
    %v2562 = vld [vmem:[%s751] sm:$0xff]
    %v2563 = vld [vmem:[%s751 + $0x8] sm:$0xff]
    %s2564 = sld [smem:[#allocation9 + $0x584]]
    %v2565 = vstv %s2564
    %v2566 = vmul.f32 %v2562, %v2565
    %v2567 = vmul.f32 %v2563, %v2565
    %v2568 = vadd.f32 %v2560, %v2566
    %v2569 = vadd.f32 %v2561, %v2567
    %v2570 = vld [vmem:[%s760] sm:$0xff]
    %v2571 = vld [vmem:[%s760 + $0x8] sm:$0xff]
    %s2572 = sld [smem:[#allocation9 + $0x585]]
    %v2573 = vstv %s2572
    %v2574 = vmul.f32 %v2570, %v2573
    %v2575 = vmul.f32 %v2571, %v2573
    %v2576 = vadd.f32 %v2568, %v2574
    %v2577 = vadd.f32 %v2569, %v2575
    %v2578 = vld [vmem:[%s769] sm:$0xff]
    %v2579 = vld [vmem:[%s769 + $0x8] sm:$0xff]
    %s2580 = sld [smem:[#allocation9 + $0x586]]
    %v2581 = vstv %s2580
    %v2582 = vmul.f32 %v2578, %v2581
    %v2583 = vmul.f32 %v2579, %v2581
    %v2584 = vadd.f32 %v2576, %v2582
    %v2585 = vadd.f32 %v2577, %v2583
    %v2586 = vld [vmem:[%s778] sm:$0xff]
    %v2587 = vld [vmem:[%s778 + $0x8] sm:$0xff]
    %s2588 = sld [smem:[#allocation9 + $0x587]]
    %v2589 = vstv %s2588
    %v2590 = vmul.f32 %v2586, %v2589
    %v2591 = vmul.f32 %v2587, %v2589
    %v2592 = vadd.f32 %v2584, %v2590
    %v2593 = vadd.f32 %v2585, %v2591
    %v2594 = vld [vmem:[%s787] sm:$0xff]
    %v2595 = vld [vmem:[%s787 + $0x8] sm:$0xff]
    %s2596 = sld [smem:[#allocation9 + $0x588]]
    %v2597 = vstv %s2596
    %v2598 = vmul.f32 %v2594, %v2597
    %v2599 = vmul.f32 %v2595, %v2597
    %v2600 = vadd.f32 %v2592, %v2598
    %v2601 = vadd.f32 %v2593, %v2599
    %v2602 = vld [vmem:[%s796] sm:$0xff]
    %v2603 = vld [vmem:[%s796 + $0x8] sm:$0xff]
    %s2604 = sld [smem:[#allocation9 + $0x589]]
    %v2605 = vstv %s2604
    %v2606 = vmul.f32 %v2602, %v2605
    %v2607 = vmul.f32 %v2603, %v2605
    %v2608 = vadd.f32 %v2600, %v2606
    %v2609 = vadd.f32 %v2601, %v2607
    %v2610 = vld [vmem:[%s805] sm:$0xff]
    %v2611 = vld [vmem:[%s805 + $0x8] sm:$0xff]
    %s2612 = sld [smem:[#allocation9 + $0x58a]]
    %v2613 = vstv %s2612
    %v2614 = vmul.f32 %v2610, %v2613
    %v2615 = vmul.f32 %v2611, %v2613
    %v2616 = vadd.f32 %v2608, %v2614
    %v2617 = vadd.f32 %v2609, %v2615
    %v2618 = vld [vmem:[%s814] sm:$0xff]
    %v2619 = vld [vmem:[%s814 + $0x8] sm:$0xff]
    %s2620 = sld [smem:[#allocation9 + $0x58b]]
    %v2621 = vstv %s2620
    %v2622 = vmul.f32 %v2618, %v2621
    %v2623 = vmul.f32 %v2619, %v2621
    %v2624 = vadd.f32 %v2616, %v2622
    %v2625 = vadd.f32 %v2617, %v2623
    %v2626 = vld [vmem:[%s823] sm:$0xff]
    %v2627 = vld [vmem:[%s823 + $0x8] sm:$0xff]
    %s2628 = sld [smem:[#allocation9 + $0x58c]]
    %v2629 = vstv %s2628
    %v2630 = vmul.f32 %v2626, %v2629
    %v2631 = vmul.f32 %v2627, %v2629
    %v2632 = vadd.f32 %v2624, %v2630
    %v2633 = vadd.f32 %v2625, %v2631
    %v2634 = vld [vmem:[%s832] sm:$0xff]
    %v2635 = vld [vmem:[%s832 + $0x8] sm:$0xff]
    %s2636 = sld [smem:[#allocation9 + $0x58d]]
    %v2637 = vstv %s2636
    %v2638 = vmul.f32 %v2634, %v2637
    %v2639 = vmul.f32 %v2635, %v2637
    %v2640 = vadd.f32 %v2632, %v2638
    %v2641 = vadd.f32 %v2633, %v2639
    %v2642 = vld [vmem:[%s841] sm:$0xff]
    %v2643 = vld [vmem:[%s841 + $0x8] sm:$0xff]
    %s2644 = sld [smem:[#allocation9 + $0x58e]]
    %v2645 = vstv %s2644
    %v2646 = vmul.f32 %v2642, %v2645
    %v2647 = vmul.f32 %v2643, %v2645
    %v2648 = vadd.f32 %v2640, %v2646
    %v2649 = vadd.f32 %v2641, %v2647
    %v2650 = vld [vmem:[%s850] sm:$0xff]
    %v2651 = vld [vmem:[%s850 + $0x8] sm:$0xff]
    %s2652 = sld [smem:[#allocation9 + $0x58f]]
    %v2653 = vstv %s2652
    %v2654 = vmul.f32 %v2650, %v2653
    %v2655 = vmul.f32 %v2651, %v2653
    %v2656 = vadd.f32 %v2648, %v2654
    %v2657 = vadd.f32 %v2649, %v2655
    %s2658 = sld [smem:[#allocation10 + $0x583]]
    %v2659 = vstv %s2658
    %v2660 = vadd.f32 %v2656, %v2659
    %v2661 = vadd.f32 %v2657, %v2659
    %vm2662 = vcmp.gt.f32.partialorder %v2660, 0.0
    %vm2663 = vcmp.gt.f32.partialorder %v2661, 0.0
    %v2664 = vmin.f32 %v2660, 0.0
    %v2665 = vmin.f32 %v2661, 0.0
    %v2666 = vmul.f32 %v2664, 1.442695
    %v2667 = vpow.pop %v2666
    %v2668 = vmul.f32 %v2665, 1.442695
    %v2669 = vpow.pop %v2668
    %v2670 = vsub.f32 %v2667, 1.0
    %v2671 = vsub.f32 %v2669, 1.0
    %v2672 = vsel %vm2662, %v2660, %v2670
    %v2673 = vsel %vm2663, %v2661, %v2671
    %v2674 = vsel %vm875, %v2672, 0.0
    %2675 = vadd.xlane.f32.xlu0 %v2674
    %v2676 = vpop.xlane.xlu0 %2675
    %v2677 = vsel %vm875, %v2673, 0.0
    %2678 = vadd.xlane.f32.xlu0 %v2677
    %v2679 = vpop.xlane.xlu0 %2678
    %v2680 = vmul.f32 %v2676, 0.015384615
    %v2681 = vmul.f32 %v2679, 0.015384615
    %v2684 = vlaneseq
    %v2685 = vshrl.u32 %v2684, 7
    %v2686 = vsub.s32 %v887, %v2685
    %v2687 = vrot.slane %v2680, %v2686
    %v2688 = vlaneseq
    %v2689 = vshrl.u32 %v2688, 7
    %v2690 = vsub.s32 %v892, %v2689
    %v2691 = vrot.slane %v2681, %v2690
    %v2692 = vsel %vm897, %v2691, %v2687
    %2694 = vst.msk [vmem:[#allocation11 + $0xb] sm:$0x1] %vm900, %v2692
    %v2695 = vld [vmem:[#allocation2] sm:$0xff]
    %v2696 = vld [vmem:[#allocation2 + $0x8] sm:$0xff]
    %s2697 = sld [smem:[#allocation9 + $0x600]]
    %v2698 = vstv %s2697
    %v2699 = vmul.f32 %v2695, %v2698
    %v2700 = vmul.f32 %v2696, %v2698
    %v2701 = vld [vmem:[%s724] sm:$0xff]
    %v2702 = vld [vmem:[%s724 + $0x8] sm:$0xff]
    %s2703 = sld [smem:[#allocation9 + $0x601]]
    %v2704 = vstv %s2703
    %v2705 = vmul.f32 %v2701, %v2704
    %v2706 = vmul.f32 %v2702, %v2704
    %v2707 = vadd.f32 %v2699, %v2705
    %v2708 = vadd.f32 %v2700, %v2706
    %v2709 = vld [vmem:[%s733] sm:$0xff]
    %v2710 = vld [vmem:[%s733 + $0x8] sm:$0xff]
    %s2711 = sld [smem:[#allocation9 + $0x602]]
    %v2712 = vstv %s2711
    %v2713 = vmul.f32 %v2709, %v2712
    %v2714 = vmul.f32 %v2710, %v2712
    %v2715 = vadd.f32 %v2707, %v2713
    %v2716 = vadd.f32 %v2708, %v2714
    %v2717 = vld [vmem:[%s742] sm:$0xff]
    %v2718 = vld [vmem:[%s742 + $0x8] sm:$0xff]
    %s2719 = sld [smem:[#allocation9 + $0x603]]
    %v2720 = vstv %s2719
    %v2721 = vmul.f32 %v2717, %v2720
    %v2722 = vmul.f32 %v2718, %v2720
    %v2723 = vadd.f32 %v2715, %v2721
    %v2724 = vadd.f32 %v2716, %v2722
    %v2725 = vld [vmem:[%s751] sm:$0xff]
    %v2726 = vld [vmem:[%s751 + $0x8] sm:$0xff]
    %s2727 = sld [smem:[#allocation9 + $0x604]]
    %v2728 = vstv %s2727
    %v2729 = vmul.f32 %v2725, %v2728
    %v2730 = vmul.f32 %v2726, %v2728
    %v2731 = vadd.f32 %v2723, %v2729
    %v2732 = vadd.f32 %v2724, %v2730
    %v2733 = vld [vmem:[%s760] sm:$0xff]
    %v2734 = vld [vmem:[%s760 + $0x8] sm:$0xff]
    %s2735 = sld [smem:[#allocation9 + $0x605]]
    %v2736 = vstv %s2735
    %v2737 = vmul.f32 %v2733, %v2736
    %v2738 = vmul.f32 %v2734, %v2736
    %v2739 = vadd.f32 %v2731, %v2737
    %v2740 = vadd.f32 %v2732, %v2738
    %v2741 = vld [vmem:[%s769] sm:$0xff]
    %v2742 = vld [vmem:[%s769 + $0x8] sm:$0xff]
    %s2743 = sld [smem:[#allocation9 + $0x606]]
    %v2744 = vstv %s2743
    %v2745 = vmul.f32 %v2741, %v2744
    %v2746 = vmul.f32 %v2742, %v2744
    %v2747 = vadd.f32 %v2739, %v2745
    %v2748 = vadd.f32 %v2740, %v2746
    %v2749 = vld [vmem:[%s778] sm:$0xff]
    %v2750 = vld [vmem:[%s778 + $0x8] sm:$0xff]
    %s2751 = sld [smem:[#allocation9 + $0x607]]
    %v2752 = vstv %s2751
    %v2753 = vmul.f32 %v2749, %v2752
    %v2754 = vmul.f32 %v2750, %v2752
    %v2755 = vadd.f32 %v2747, %v2753
    %v2756 = vadd.f32 %v2748, %v2754
    %v2757 = vld [vmem:[%s787] sm:$0xff]
    %v2758 = vld [vmem:[%s787 + $0x8] sm:$0xff]
    %s2759 = sld [smem:[#allocation9 + $0x608]]
    %v2760 = vstv %s2759
    %v2761 = vmul.f32 %v2757, %v2760
    %v2762 = vmul.f32 %v2758, %v2760
    %v2763 = vadd.f32 %v2755, %v2761
    %v2764 = vadd.f32 %v2756, %v2762
    %v2765 = vld [vmem:[%s796] sm:$0xff]
    %v2766 = vld [vmem:[%s796 + $0x8] sm:$0xff]
    %s2767 = sld [smem:[#allocation9 + $0x609]]
    %v2768 = vstv %s2767
    %v2769 = vmul.f32 %v2765, %v2768
    %v2770 = vmul.f32 %v2766, %v2768
    %v2771 = vadd.f32 %v2763, %v2769
    %v2772 = vadd.f32 %v2764, %v2770
    %v2773 = vld [vmem:[%s805] sm:$0xff]
    %v2774 = vld [vmem:[%s805 + $0x8] sm:$0xff]
    %s2775 = sld [smem:[#allocation9 + $0x60a]]
    %v2776 = vstv %s2775
    %v2777 = vmul.f32 %v2773, %v2776
    %v2778 = vmul.f32 %v2774, %v2776
    %v2779 = vadd.f32 %v2771, %v2777
    %v2780 = vadd.f32 %v2772, %v2778
    %v2781 = vld [vmem:[%s814] sm:$0xff]
    %v2782 = vld [vmem:[%s814 + $0x8] sm:$0xff]
    %s2783 = sld [smem:[#allocation9 + $0x60b]]
    %v2784 = vstv %s2783
    %v2785 = vmul.f32 %v2781, %v2784
    %v2786 = vmul.f32 %v2782, %v2784
    %v2787 = vadd.f32 %v2779, %v2785
    %v2788 = vadd.f32 %v2780, %v2786
    %v2789 = vld [vmem:[%s823] sm:$0xff]
    %v2790 = vld [vmem:[%s823 + $0x8] sm:$0xff]
    %s2791 = sld [smem:[#allocation9 + $0x60c]]
    %v2792 = vstv %s2791
    %v2793 = vmul.f32 %v2789, %v2792
    %v2794 = vmul.f32 %v2790, %v2792
    %v2795 = vadd.f32 %v2787, %v2793
    %v2796 = vadd.f32 %v2788, %v2794
    %v2797 = vld [vmem:[%s832] sm:$0xff]
    %v2798 = vld [vmem:[%s832 + $0x8] sm:$0xff]
    %s2799 = sld [smem:[#allocation9 + $0x60d]]
    %v2800 = vstv %s2799
    %v2801 = vmul.f32 %v2797, %v2800
    %v2802 = vmul.f32 %v2798, %v2800
    %v2803 = vadd.f32 %v2795, %v2801
    %v2804 = vadd.f32 %v2796, %v2802
    %v2805 = vld [vmem:[%s841] sm:$0xff]
    %v2806 = vld [vmem:[%s841 + $0x8] sm:$0xff]
    %s2807 = sld [smem:[#allocation9 + $0x60e]]
    %v2808 = vstv %s2807
    %v2809 = vmul.f32 %v2805, %v2808
    %v2810 = vmul.f32 %v2806, %v2808
    %v2811 = vadd.f32 %v2803, %v2809
    %v2812 = vadd.f32 %v2804, %v2810
    %v2813 = vld [vmem:[%s850] sm:$0xff]
    %v2814 = vld [vmem:[%s850 + $0x8] sm:$0xff]
    %s2815 = sld [smem:[#allocation9 + $0x60f]]
    %v2816 = vstv %s2815
    %v2817 = vmul.f32 %v2813, %v2816
    %v2818 = vmul.f32 %v2814, %v2816
    %v2819 = vadd.f32 %v2811, %v2817
    %v2820 = vadd.f32 %v2812, %v2818
    %s2821 = sld [smem:[#allocation10 + $0x603]]
    %v2822 = vstv %s2821
    %v2823 = vadd.f32 %v2819, %v2822
    %v2824 = vadd.f32 %v2820, %v2822
    %vm2825 = vcmp.gt.f32.partialorder %v2823, 0.0
    %vm2826 = vcmp.gt.f32.partialorder %v2824, 0.0
    %v2827 = vmin.f32 %v2823, 0.0
    %v2828 = vmin.f32 %v2824, 0.0
    %v2829 = vmul.f32 %v2827, 1.442695
    %v2830 = vpow.pop %v2829
    %v2831 = vmul.f32 %v2828, 1.442695
    %v2832 = vpow.pop %v2831
    %v2833 = vsub.f32 %v2830, 1.0
    %v2834 = vsub.f32 %v2832, 1.0
    %v2835 = vsel %vm2825, %v2823, %v2833
    %v2836 = vsel %vm2826, %v2824, %v2834
    %v2837 = vsel %vm875, %v2835, 0.0
    %2838 = vadd.xlane.f32.xlu0 %v2837
    %v2839 = vpop.xlane.xlu0 %2838
    %v2840 = vsel %vm875, %v2836, 0.0
    %2841 = vadd.xlane.f32.xlu0 %v2840
    %v2842 = vpop.xlane.xlu0 %2841
    %v2843 = vmul.f32 %v2839, 0.015384615
    %v2844 = vmul.f32 %v2842, 0.015384615
    %v2847 = vlaneseq
    %v2848 = vshrl.u32 %v2847, 7
    %v2849 = vsub.s32 %v887, %v2848
    %v2850 = vrot.slane %v2843, %v2849
    %v2851 = vlaneseq
    %v2852 = vshrl.u32 %v2851, 7
    %v2853 = vsub.s32 %v892, %v2852
    %v2854 = vrot.slane %v2844, %v2853
    %v2855 = vsel %vm897, %v2854, %v2850
    %2857 = vst.msk [vmem:[#allocation11 + $0xc] sm:$0x1] %vm900, %v2855
    %v2858 = vld [vmem:[#allocation2] sm:$0xff]
    %v2859 = vld [vmem:[#allocation2 + $0x8] sm:$0xff]
    %s2860 = sld [smem:[#allocation9 + $0x680]]
    %v2861 = vstv %s2860
    %v2862 = vmul.f32 %v2858, %v2861
    %v2863 = vmul.f32 %v2859, %v2861
    %v2864 = vld [vmem:[%s724] sm:$0xff]
    %v2865 = vld [vmem:[%s724 + $0x8] sm:$0xff]
    %s2866 = sld [smem:[#allocation9 + $0x681]]
    %v2867 = vstv %s2866
    %v2868 = vmul.f32 %v2864, %v2867
    %v2869 = vmul.f32 %v2865, %v2867
    %v2870 = vadd.f32 %v2862, %v2868
    %v2871 = vadd.f32 %v2863, %v2869
    %v2872 = vld [vmem:[%s733] sm:$0xff]
    %v2873 = vld [vmem:[%s733 + $0x8] sm:$0xff]
    %s2874 = sld [smem:[#allocation9 + $0x682]]
    %v2875 = vstv %s2874
    %v2876 = vmul.f32 %v2872, %v2875
    %v2877 = vmul.f32 %v2873, %v2875
    %v2878 = vadd.f32 %v2870, %v2876
    %v2879 = vadd.f32 %v2871, %v2877
    %v2880 = vld [vmem:[%s742] sm:$0xff]
    %v2881 = vld [vmem:[%s742 + $0x8] sm:$0xff]
    %s2882 = sld [smem:[#allocation9 + $0x683]]
    %v2883 = vstv %s2882
    %v2884 = vmul.f32 %v2880, %v2883
    %v2885 = vmul.f32 %v2881, %v2883
    %v2886 = vadd.f32 %v2878, %v2884
    %v2887 = vadd.f32 %v2879, %v2885
    %v2888 = vld [vmem:[%s751] sm:$0xff]
    %v2889 = vld [vmem:[%s751 + $0x8] sm:$0xff]
    %s2890 = sld [smem:[#allocation9 + $0x684]]
    %v2891 = vstv %s2890
    %v2892 = vmul.f32 %v2888, %v2891
    %v2893 = vmul.f32 %v2889, %v2891
    %v2894 = vadd.f32 %v2886, %v2892
    %v2895 = vadd.f32 %v2887, %v2893
    %v2896 = vld [vmem:[%s760] sm:$0xff]
    %v2897 = vld [vmem:[%s760 + $0x8] sm:$0xff]
    %s2898 = sld [smem:[#allocation9 + $0x685]]
    %v2899 = vstv %s2898
    %v2900 = vmul.f32 %v2896, %v2899
    %v2901 = vmul.f32 %v2897, %v2899
    %v2902 = vadd.f32 %v2894, %v2900
    %v2903 = vadd.f32 %v2895, %v2901
    %v2904 = vld [vmem:[%s769] sm:$0xff]
    %v2905 = vld [vmem:[%s769 + $0x8] sm:$0xff]
    %s2906 = sld [smem:[#allocation9 + $0x686]]
    %v2907 = vstv %s2906
    %v2908 = vmul.f32 %v2904, %v2907
    %v2909 = vmul.f32 %v2905, %v2907
    %v2910 = vadd.f32 %v2902, %v2908
    %v2911 = vadd.f32 %v2903, %v2909
    %v2912 = vld [vmem:[%s778] sm:$0xff]
    %v2913 = vld [vmem:[%s778 + $0x8] sm:$0xff]
    %s2914 = sld [smem:[#allocation9 + $0x687]]
    %v2915 = vstv %s2914
    %v2916 = vmul.f32 %v2912, %v2915
    %v2917 = vmul.f32 %v2913, %v2915
    %v2918 = vadd.f32 %v2910, %v2916
    %v2919 = vadd.f32 %v2911, %v2917
    %v2920 = vld [vmem:[%s787] sm:$0xff]
    %v2921 = vld [vmem:[%s787 + $0x8] sm:$0xff]
    %s2922 = sld [smem:[#allocation9 + $0x688]]
    %v2923 = vstv %s2922
    %v2924 = vmul.f32 %v2920, %v2923
    %v2925 = vmul.f32 %v2921, %v2923
    %v2926 = vadd.f32 %v2918, %v2924
    %v2927 = vadd.f32 %v2919, %v2925
    %v2928 = vld [vmem:[%s796] sm:$0xff]
    %v2929 = vld [vmem:[%s796 + $0x8] sm:$0xff]
    %s2930 = sld [smem:[#allocation9 + $0x689]]
    %v2931 = vstv %s2930
    %v2932 = vmul.f32 %v2928, %v2931
    %v2933 = vmul.f32 %v2929, %v2931
    %v2934 = vadd.f32 %v2926, %v2932
    %v2935 = vadd.f32 %v2927, %v2933
    %v2936 = vld [vmem:[%s805] sm:$0xff]
    %v2937 = vld [vmem:[%s805 + $0x8] sm:$0xff]
    %s2938 = sld [smem:[#allocation9 + $0x68a]]
    %v2939 = vstv %s2938
    %v2940 = vmul.f32 %v2936, %v2939
    %v2941 = vmul.f32 %v2937, %v2939
    %v2942 = vadd.f32 %v2934, %v2940
    %v2943 = vadd.f32 %v2935, %v2941
    %v2944 = vld [vmem:[%s814] sm:$0xff]
    %v2945 = vld [vmem:[%s814 + $0x8] sm:$0xff]
    %s2946 = sld [smem:[#allocation9 + $0x68b]]
    %v2947 = vstv %s2946
    %v2948 = vmul.f32 %v2944, %v2947
    %v2949 = vmul.f32 %v2945, %v2947
    %v2950 = vadd.f32 %v2942, %v2948
    %v2951 = vadd.f32 %v2943, %v2949
    %v2952 = vld [vmem:[%s823] sm:$0xff]
    %v2953 = vld [vmem:[%s823 + $0x8] sm:$0xff]
    %s2954 = sld [smem:[#allocation9 + $0x68c]]
    %v2955 = vstv %s2954
    %v2956 = vmul.f32 %v2952, %v2955
    %v2957 = vmul.f32 %v2953, %v2955
    %v2958 = vadd.f32 %v2950, %v2956
    %v2959 = vadd.f32 %v2951, %v2957
    %v2960 = vld [vmem:[%s832] sm:$0xff]
    %v2961 = vld [vmem:[%s832 + $0x8] sm:$0xff]
    %s2962 = sld [smem:[#allocation9 + $0x68d]]
    %v2963 = vstv %s2962
    %v2964 = vmul.f32 %v2960, %v2963
    %v2965 = vmul.f32 %v2961, %v2963
    %v2966 = vadd.f32 %v2958, %v2964
    %v2967 = vadd.f32 %v2959, %v2965
    %v2968 = vld [vmem:[%s841] sm:$0xff]
    %v2969 = vld [vmem:[%s841 + $0x8] sm:$0xff]
    %s2970 = sld [smem:[#allocation9 + $0x68e]]
    %v2971 = vstv %s2970
    %v2972 = vmul.f32 %v2968, %v2971
    %v2973 = vmul.f32 %v2969, %v2971
    %v2974 = vadd.f32 %v2966, %v2972
    %v2975 = vadd.f32 %v2967, %v2973
    %v2976 = vld [vmem:[%s850] sm:$0xff]
    %v2977 = vld [vmem:[%s850 + $0x8] sm:$0xff]
    %s2978 = sld [smem:[#allocation9 + $0x68f]]
    %v2979 = vstv %s2978
    %v2980 = vmul.f32 %v2976, %v2979
    %v2981 = vmul.f32 %v2977, %v2979
    %v2982 = vadd.f32 %v2974, %v2980
    %v2983 = vadd.f32 %v2975, %v2981
    %s2984 = sld [smem:[#allocation10 + $0x683]]
    %v2985 = vstv %s2984
    %v2986 = vadd.f32 %v2982, %v2985
    %v2987 = vadd.f32 %v2983, %v2985
    %vm2988 = vcmp.gt.f32.partialorder %v2986, 0.0
    %vm2989 = vcmp.gt.f32.partialorder %v2987, 0.0
    %v2990 = vmin.f32 %v2986, 0.0
    %v2991 = vmin.f32 %v2987, 0.0
    %v2992 = vmul.f32 %v2990, 1.442695
    %v2993 = vpow.pop %v2992
    %v2994 = vmul.f32 %v2991, 1.442695
    %v2995 = vpow.pop %v2994
    %v2996 = vsub.f32 %v2993, 1.0
    %v2997 = vsub.f32 %v2995, 1.0
    %v2998 = vsel %vm2988, %v2986, %v2996
    %v2999 = vsel %vm2989, %v2987, %v2997
    %v3000 = vsel %vm875, %v2998, 0.0
    %3001 = vadd.xlane.f32.xlu0 %v3000
    %v3002 = vpop.xlane.xlu0 %3001
    %v3003 = vsel %vm875, %v2999, 0.0
    %3004 = vadd.xlane.f32.xlu0 %v3003
    %v3005 = vpop.xlane.xlu0 %3004
    %v3006 = vmul.f32 %v3002, 0.015384615
    %v3007 = vmul.f32 %v3005, 0.015384615
    %v3010 = vlaneseq
    %v3011 = vshrl.u32 %v3010, 7
    %v3012 = vsub.s32 %v887, %v3011
    %v3013 = vrot.slane %v3006, %v3012
    %v3014 = vlaneseq
    %v3015 = vshrl.u32 %v3014, 7
    %v3016 = vsub.s32 %v892, %v3015
    %v3017 = vrot.slane %v3007, %v3016
    %v3018 = vsel %vm897, %v3017, %v3013
    %3020 = vst.msk [vmem:[#allocation11 + $0xd] sm:$0x1] %vm900, %v3018
    %v3021 = vld [vmem:[#allocation2] sm:$0xff]
    %v3022 = vld [vmem:[#allocation2 + $0x8] sm:$0xff]
    %s3023 = sld [smem:[#allocation9 + $0x700]]
    %v3024 = vstv %s3023
    %v3025 = vmul.f32 %v3021, %v3024
    %v3026 = vmul.f32 %v3022, %v3024
    %v3027 = vld [vmem:[%s724] sm:$0xff]
    %v3028 = vld [vmem:[%s724 + $0x8] sm:$0xff]
    %s3029 = sld [smem:[#allocation9 + $0x701]]
    %v3030 = vstv %s3029
    %v3031 = vmul.f32 %v3027, %v3030
    %v3032 = vmul.f32 %v3028, %v3030
    %v3033 = vadd.f32 %v3025, %v3031
    %v3034 = vadd.f32 %v3026, %v3032
    %v3035 = vld [vmem:[%s733] sm:$0xff]
    %v3036 = vld [vmem:[%s733 + $0x8] sm:$0xff]
    %s3037 = sld [smem:[#allocation9 + $0x702]]
    %v3038 = vstv %s3037
    %v3039 = vmul.f32 %v3035, %v3038
    %v3040 = vmul.f32 %v3036, %v3038
    %v3041 = vadd.f32 %v3033, %v3039
    %v3042 = vadd.f32 %v3034, %v3040
    %v3043 = vld [vmem:[%s742] sm:$0xff]
    %v3044 = vld [vmem:[%s742 + $0x8] sm:$0xff]
    %s3045 = sld [smem:[#allocation9 + $0x703]]
    %v3046 = vstv %s3045
    %v3047 = vmul.f32 %v3043, %v3046
    %v3048 = vmul.f32 %v3044, %v3046
    %v3049 = vadd.f32 %v3041, %v3047
    %v3050 = vadd.f32 %v3042, %v3048
    %v3051 = vld [vmem:[%s751] sm:$0xff]
    %v3052 = vld [vmem:[%s751 + $0x8] sm:$0xff]
    %s3053 = sld [smem:[#allocation9 + $0x704]]
    %v3054 = vstv %s3053
    %v3055 = vmul.f32 %v3051, %v3054
    %v3056 = vmul.f32 %v3052, %v3054
    %v3057 = vadd.f32 %v3049, %v3055
    %v3058 = vadd.f32 %v3050, %v3056
    %v3059 = vld [vmem:[%s760] sm:$0xff]
    %v3060 = vld [vmem:[%s760 + $0x8] sm:$0xff]
    %s3061 = sld [smem:[#allocation9 + $0x705]]
    %v3062 = vstv %s3061
    %v3063 = vmul.f32 %v3059, %v3062
    %v3064 = vmul.f32 %v3060, %v3062
    %v3065 = vadd.f32 %v3057, %v3063
    %v3066 = vadd.f32 %v3058, %v3064
    %v3067 = vld [vmem:[%s769] sm:$0xff]
    %v3068 = vld [vmem:[%s769 + $0x8] sm:$0xff]
    %s3069 = sld [smem:[#allocation9 + $0x706]]
    %v3070 = vstv %s3069
    %v3071 = vmul.f32 %v3067, %v3070
    %v3072 = vmul.f32 %v3068, %v3070
    %v3073 = vadd.f32 %v3065, %v3071
    %v3074 = vadd.f32 %v3066, %v3072
    %v3075 = vld [vmem:[%s778] sm:$0xff]
    %v3076 = vld [vmem:[%s778 + $0x8] sm:$0xff]
    %s3077 = sld [smem:[#allocation9 + $0x707]]
    %v3078 = vstv %s3077
    %v3079 = vmul.f32 %v3075, %v3078
    %v3080 = vmul.f32 %v3076, %v3078
    %v3081 = vadd.f32 %v3073, %v3079
    %v3082 = vadd.f32 %v3074, %v3080
    %v3083 = vld [vmem:[%s787] sm:$0xff]
    %v3084 = vld [vmem:[%s787 + $0x8] sm:$0xff]
    %s3085 = sld [smem:[#allocation9 + $0x708]]
    %v3086 = vstv %s3085
    %v3087 = vmul.f32 %v3083, %v3086
    %v3088 = vmul.f32 %v3084, %v3086
    %v3089 = vadd.f32 %v3081, %v3087
    %v3090 = vadd.f32 %v3082, %v3088
    %v3091 = vld [vmem:[%s796] sm:$0xff]
    %v3092 = vld [vmem:[%s796 + $0x8] sm:$0xff]
    %s3093 = sld [smem:[#allocation9 + $0x709]]
    %v3094 = vstv %s3093
    %v3095 = vmul.f32 %v3091, %v3094
    %v3096 = vmul.f32 %v3092, %v3094
    %v3097 = vadd.f32 %v3089, %v3095
    %v3098 = vadd.f32 %v3090, %v3096
    %v3099 = vld [vmem:[%s805] sm:$0xff]
    %v3100 = vld [vmem:[%s805 + $0x8] sm:$0xff]
    %s3101 = sld [smem:[#allocation9 + $0x70a]]
    %v3102 = vstv %s3101
    %v3103 = vmul.f32 %v3099, %v3102
    %v3104 = vmul.f32 %v3100, %v3102
    %v3105 = vadd.f32 %v3097, %v3103
    %v3106 = vadd.f32 %v3098, %v3104
    %v3107 = vld [vmem:[%s814] sm:$0xff]
    %v3108 = vld [vmem:[%s814 + $0x8] sm:$0xff]
    %s3109 = sld [smem:[#allocation9 + $0x70b]]
    %v3110 = vstv %s3109
    %v3111 = vmul.f32 %v3107, %v3110
    %v3112 = vmul.f32 %v3108, %v3110
    %v3113 = vadd.f32 %v3105, %v3111
    %v3114 = vadd.f32 %v3106, %v3112
    %v3115 = vld [vmem:[%s823] sm:$0xff]
    %v3116 = vld [vmem:[%s823 + $0x8] sm:$0xff]
    %s3117 = sld [smem:[#allocation9 + $0x70c]]
    %v3118 = vstv %s3117
    %v3119 = vmul.f32 %v3115, %v3118
    %v3120 = vmul.f32 %v3116, %v3118
    %v3121 = vadd.f32 %v3113, %v3119
    %v3122 = vadd.f32 %v3114, %v3120
    %v3123 = vld [vmem:[%s832] sm:$0xff]
    %v3124 = vld [vmem:[%s832 + $0x8] sm:$0xff]
    %s3125 = sld [smem:[#allocation9 + $0x70d]]
    %v3126 = vstv %s3125
    %v3127 = vmul.f32 %v3123, %v3126
    %v3128 = vmul.f32 %v3124, %v3126
    %v3129 = vadd.f32 %v3121, %v3127
    %v3130 = vadd.f32 %v3122, %v3128
    %v3131 = vld [vmem:[%s841] sm:$0xff]
    %v3132 = vld [vmem:[%s841 + $0x8] sm:$0xff]
    %s3133 = sld [smem:[#allocation9 + $0x70e]]
    %v3134 = vstv %s3133
    %v3135 = vmul.f32 %v3131, %v3134
    %v3136 = vmul.f32 %v3132, %v3134
    %v3137 = vadd.f32 %v3129, %v3135
    %v3138 = vadd.f32 %v3130, %v3136
    %v3139 = vld [vmem:[%s850] sm:$0xff]
    %v3140 = vld [vmem:[%s850 + $0x8] sm:$0xff]
    %s3141 = sld [smem:[#allocation9 + $0x70f]]
    %v3142 = vstv %s3141
    %v3143 = vmul.f32 %v3139, %v3142
    %v3144 = vmul.f32 %v3140, %v3142
    %v3145 = vadd.f32 %v3137, %v3143
    %v3146 = vadd.f32 %v3138, %v3144
    %s3147 = sld [smem:[#allocation10 + $0x703]]
    %v3148 = vstv %s3147
    %v3149 = vadd.f32 %v3145, %v3148
    %v3150 = vadd.f32 %v3146, %v3148
    %vm3151 = vcmp.gt.f32.partialorder %v3149, 0.0
    %vm3152 = vcmp.gt.f32.partialorder %v3150, 0.0
    %v3153 = vmin.f32 %v3149, 0.0
    %v3154 = vmin.f32 %v3150, 0.0
    %v3155 = vmul.f32 %v3153, 1.442695
    %v3156 = vpow.pop %v3155
    %v3157 = vmul.f32 %v3154, 1.442695
    %v3158 = vpow.pop %v3157
    %v3159 = vsub.f32 %v3156, 1.0
    %v3160 = vsub.f32 %v3158, 1.0
    %v3161 = vsel %vm3151, %v3149, %v3159
    %v3162 = vsel %vm3152, %v3150, %v3160
    %v3163 = vsel %vm875, %v3161, 0.0
    %3164 = vadd.xlane.f32.xlu0 %v3163
    %v3165 = vpop.xlane.xlu0 %3164
    %v3166 = vsel %vm875, %v3162, 0.0
    %3167 = vadd.xlane.f32.xlu0 %v3166
    %v3168 = vpop.xlane.xlu0 %3167
    %v3169 = vmul.f32 %v3165, 0.015384615
    %v3170 = vmul.f32 %v3168, 0.015384615
    %v3173 = vlaneseq
    %v3174 = vshrl.u32 %v3173, 7
    %v3175 = vsub.s32 %v887, %v3174
    %v3176 = vrot.slane %v3169, %v3175
    %v3177 = vlaneseq
    %v3178 = vshrl.u32 %v3177, 7
    %v3179 = vsub.s32 %v892, %v3178
    %v3180 = vrot.slane %v3170, %v3179
    %v3181 = vsel %vm897, %v3180, %v3176
    %3183 = vst.msk [vmem:[#allocation11 + $0xe] sm:$0x1] %vm900, %v3181
    %v3184 = vld [vmem:[#allocation2] sm:$0xff]
    %v3185 = vld [vmem:[#allocation2 + $0x8] sm:$0xff]
    %s3186 = sld [smem:[#allocation9 + $0x780]]
    %v3187 = vstv %s3186
    %v3188 = vmul.f32 %v3184, %v3187
    %v3189 = vmul.f32 %v3185, %v3187
    %v3190 = vld [vmem:[%s724] sm:$0xff]
    %v3191 = vld [vmem:[%s724 + $0x8] sm:$0xff]
    %s3192 = sld [smem:[#allocation9 + $0x781]]
    %v3193 = vstv %s3192
    %v3194 = vmul.f32 %v3190, %v3193
    %v3195 = vmul.f32 %v3191, %v3193
    %v3196 = vadd.f32 %v3188, %v3194
    %v3197 = vadd.f32 %v3189, %v3195
    %v3198 = vld [vmem:[%s733] sm:$0xff]
    %v3199 = vld [vmem:[%s733 + $0x8] sm:$0xff]
    %s3200 = sld [smem:[#allocation9 + $0x782]]
    %v3201 = vstv %s3200
    %v3202 = vmul.f32 %v3198, %v3201
    %v3203 = vmul.f32 %v3199, %v3201
    %v3204 = vadd.f32 %v3196, %v3202
    %v3205 = vadd.f32 %v3197, %v3203
    %v3206 = vld [vmem:[%s742] sm:$0xff]
    %v3207 = vld [vmem:[%s742 + $0x8] sm:$0xff]
    %s3208 = sld [smem:[#allocation9 + $0x783]]
    %v3209 = vstv %s3208
    %v3210 = vmul.f32 %v3206, %v3209
    %v3211 = vmul.f32 %v3207, %v3209
    %v3212 = vadd.f32 %v3204, %v3210
    %v3213 = vadd.f32 %v3205, %v3211
    %v3214 = vld [vmem:[%s751] sm:$0xff]
    %v3215 = vld [vmem:[%s751 + $0x8] sm:$0xff]
    %s3216 = sld [smem:[#allocation9 + $0x784]]
    %v3217 = vstv %s3216
    %v3218 = vmul.f32 %v3214, %v3217
    %v3219 = vmul.f32 %v3215, %v3217
    %v3220 = vadd.f32 %v3212, %v3218
    %v3221 = vadd.f32 %v3213, %v3219
    %v3222 = vld [vmem:[%s760] sm:$0xff]
    %v3223 = vld [vmem:[%s760 + $0x8] sm:$0xff]
    %s3224 = sld [smem:[#allocation9 + $0x785]]
    %v3225 = vstv %s3224
    %v3226 = vmul.f32 %v3222, %v3225
    %v3227 = vmul.f32 %v3223, %v3225
    %v3228 = vadd.f32 %v3220, %v3226
    %v3229 = vadd.f32 %v3221, %v3227
    %v3230 = vld [vmem:[%s769] sm:$0xff]
    %v3231 = vld [vmem:[%s769 + $0x8] sm:$0xff]
    %s3232 = sld [smem:[#allocation9 + $0x786]]
    %v3233 = vstv %s3232
    %v3234 = vmul.f32 %v3230, %v3233
    %v3235 = vmul.f32 %v3231, %v3233
    %v3236 = vadd.f32 %v3228, %v3234
    %v3237 = vadd.f32 %v3229, %v3235
    %v3238 = vld [vmem:[%s778] sm:$0xff]
    %v3239 = vld [vmem:[%s778 + $0x8] sm:$0xff]
    %s3240 = sld [smem:[#allocation9 + $0x787]]
    %v3241 = vstv %s3240
    %v3242 = vmul.f32 %v3238, %v3241
    %v3243 = vmul.f32 %v3239, %v3241
    %v3244 = vadd.f32 %v3236, %v3242
    %v3245 = vadd.f32 %v3237, %v3243
    %v3246 = vld [vmem:[%s787] sm:$0xff]
    %v3247 = vld [vmem:[%s787 + $0x8] sm:$0xff]
    %s3248 = sld [smem:[#allocation9 + $0x788]]
    %v3249 = vstv %s3248
    %v3250 = vmul.f32 %v3246, %v3249
    %v3251 = vmul.f32 %v3247, %v3249
    %v3252 = vadd.f32 %v3244, %v3250
    %v3253 = vadd.f32 %v3245, %v3251
    %v3254 = vld [vmem:[%s796] sm:$0xff]
    %v3255 = vld [vmem:[%s796 + $0x8] sm:$0xff]
    %s3256 = sld [smem:[#allocation9 + $0x789]]
    %v3257 = vstv %s3256
    %v3258 = vmul.f32 %v3254, %v3257
    %v3259 = vmul.f32 %v3255, %v3257
    %v3260 = vadd.f32 %v3252, %v3258
    %v3261 = vadd.f32 %v3253, %v3259
    %v3262 = vld [vmem:[%s805] sm:$0xff]
    %v3263 = vld [vmem:[%s805 + $0x8] sm:$0xff]
    %s3264 = sld [smem:[#allocation9 + $0x78a]]
    %v3265 = vstv %s3264
    %v3266 = vmul.f32 %v3262, %v3265
    %v3267 = vmul.f32 %v3263, %v3265
    %v3268 = vadd.f32 %v3260, %v3266
    %v3269 = vadd.f32 %v3261, %v3267
    %v3270 = vld [vmem:[%s814] sm:$0xff]
    %v3271 = vld [vmem:[%s814 + $0x8] sm:$0xff]
    %s3272 = sld [smem:[#allocation9 + $0x78b]]
    %v3273 = vstv %s3272
    %v3274 = vmul.f32 %v3270, %v3273
    %v3275 = vmul.f32 %v3271, %v3273
    %v3276 = vadd.f32 %v3268, %v3274
    %v3277 = vadd.f32 %v3269, %v3275
    %v3278 = vld [vmem:[%s823] sm:$0xff]
    %v3279 = vld [vmem:[%s823 + $0x8] sm:$0xff]
    %s3280 = sld [smem:[#allocation9 + $0x78c]]
    %v3281 = vstv %s3280
    %v3282 = vmul.f32 %v3278, %v3281
    %v3283 = vmul.f32 %v3279, %v3281
    %v3284 = vadd.f32 %v3276, %v3282
    %v3285 = vadd.f32 %v3277, %v3283
    %v3286 = vld [vmem:[%s832] sm:$0xff]
    %v3287 = vld [vmem:[%s832 + $0x8] sm:$0xff]
    %s3288 = sld [smem:[#allocation9 + $0x78d]]
    %v3289 = vstv %s3288
    %v3290 = vmul.f32 %v3286, %v3289
    %v3291 = vmul.f32 %v3287, %v3289
    %v3292 = vadd.f32 %v3284, %v3290
    %v3293 = vadd.f32 %v3285, %v3291
    %v3294 = vld [vmem:[%s841] sm:$0xff]
    %v3295 = vld [vmem:[%s841 + $0x8] sm:$0xff]
    %s3296 = sld [smem:[#allocation9 + $0x78e]]
    %v3297 = vstv %s3296
    %v3298 = vmul.f32 %v3294, %v3297
    %v3299 = vmul.f32 %v3295, %v3297
    %v3300 = vadd.f32 %v3292, %v3298
    %v3301 = vadd.f32 %v3293, %v3299
    %v3302 = vld [vmem:[%s850] sm:$0xff]
    %v3303 = vld [vmem:[%s850 + $0x8] sm:$0xff]
    %s3304 = sld [smem:[#allocation9 + $0x78f]]
    %v3305 = vstv %s3304
    %v3306 = vmul.f32 %v3302, %v3305
    %v3307 = vmul.f32 %v3303, %v3305
    %v3308 = vadd.f32 %v3300, %v3306
    %v3309 = vadd.f32 %v3301, %v3307
    %s3310 = sld [smem:[#allocation10 + $0x783]]
    %v3311 = vstv %s3310
    %v3312 = vadd.f32 %v3308, %v3311
    %v3313 = vadd.f32 %v3309, %v3311
    %vm3314 = vcmp.gt.f32.partialorder %v3312, 0.0
    %vm3315 = vcmp.gt.f32.partialorder %v3313, 0.0
    %v3316 = vmin.f32 %v3312, 0.0
    %v3317 = vmin.f32 %v3313, 0.0
    %v3318 = vmul.f32 %v3316, 1.442695
    %v3319 = vpow.pop %v3318
    %v3320 = vmul.f32 %v3317, 1.442695
    %v3321 = vpow.pop %v3320
    %v3322 = vsub.f32 %v3319, 1.0
    %v3323 = vsub.f32 %v3321, 1.0
    %v3324 = vsel %vm3314, %v3312, %v3322
    %v3325 = vsel %vm3315, %v3313, %v3323
    %v3326 = vsel %vm875, %v3324, 0.0
    %3327 = vadd.xlane.f32.xlu0 %v3326
    %v3328 = vpop.xlane.xlu0 %3327
    %v3329 = vsel %vm875, %v3325, 0.0
    %3330 = vadd.xlane.f32.xlu0 %v3329
    %v3331 = vpop.xlane.xlu0 %3330
    %v3332 = vmul.f32 %v3328, 0.015384615
    %v3333 = vmul.f32 %v3331, 0.015384615
    %v3336 = vlaneseq
    %v3337 = vshrl.u32 %v3336, 7
    %v3338 = vsub.s32 %v887, %v3337
    %v3339 = vrot.slane %v3332, %v3338
    %v3340 = vlaneseq
    %v3341 = vshrl.u32 %v3340, 7
    %v3342 = vsub.s32 %v892, %v3341
    %v3343 = vrot.slane %v3333, %v3342
    %v3344 = vsel %vm897, %v3343, %v3339
    %3346 = vst.msk [vmem:[#allocation11 + $0xf] sm:$0x1] %vm900, %v3344
    // Predicated region
    $region45: #{tpu_custom_call.1} parent=1 // pred_check
      _
    $region46: #{tpu_custom_call.1} parent=1 // pred_check_branch
      %3348 = sbr.rel (0) target = $region48
    $region47: #{tpu_custom_call.1} parent=1 // pred_region
      %s3350 = ssub.s32 256, 256
      %3351 = vsyncadd [#allocation4], %s3350
      %s3352 = sshll.u32 [#allocation11], 4
      %s3353 = int_to_ptr.vmem [resolvable:$true] %s3352
      %3358 = dma.vmem_to_hbm [thread:$0]  %s3353, 256, %s5, [#allocation4], 128, 128, 8
    $region48: #{tpu_custom_call.1} parent=1 // pred_fallthru
      _
    // Predicated region
    $region49: #{tpu_custom_call.1} parent=1 // pred_check
      _
    $region50: #{tpu_custom_call.1} parent=1 // pred_check_branch
      %3360 = sbr.rel (0) target = $region52
    $region51: #{tpu_custom_call.1} parent=1 // pred_region
      %3361 = dma.done [#allocation4], 256
    $region52: #{tpu_custom_call.1} parent=1 // pred_fallthru
      _
    %3362 = vsyncpa [#allocation4], 1
    %3363 = vsyncpa [#allocation5], 1
    %3364 = vsyncpa [#allocation8], 1
    %3365 = vsyncpa [#allocation6], 1

</llo_original>
